<compile_context>
chip_gen: v7x
topology: tpu7x:2x2x1
jax: 0.10.0
libtpu: 0.0.40
codegen_flags: <defaults>
</compile_context>

<pallas_src>
import functools

import jax
import jax.numpy as jnp
from jax.experimental import pallas as pl
from jax.experimental.pallas import tpu as pltpu

_GN_EPS = 1e-5
_INV_SQRT2 = 0.7071067811865476


def _round_up(x, m):
    return ((x + m - 1) // m) * m


# ------------------------------ in-kernel math helpers ------------------------------

def _erf_poly(x):
    # Abramowitz & Stegun 7.1.26 polynomial erf, |abs err| <= ~1.5e-7.
    # Exact divide + one Newton step (NOT pl.reciprocal(approx=True)): the approximate
    # reciprocal's error previously amplified through conv2 past the 1e-3 tolerance.
    p = 0.3275911
    a1, a2, a3, a4, a5 = (0.254829592, -0.284496736, 1.421413741,
                          -1.453152027, 1.061405429)
    ax = jnp.abs(x)
    den = 1.0 + p * ax
    t = 1.0 / den
    t = t * (2.0 - den * t)                                # Newton refine (no-op if exact)
    poly = ((((a5 * t + a4) * t + a3) * t + a2) * t + a1) * t
    y = 1.0 - poly * jnp.exp(-ax * ax)
    return jnp.where(x >= 0.0, y, -y)


def _gelu(x):
    # exact (erf-based) GELU, matching torch.nn.GELU() default.
    # TODO(synk): tanh-GELU is ~2x fewer VALU ops but deviates up to ~1e-3 from the exact
    # form; that does not survive the 1e-3 end-to-end tolerance once amplified by conv2.
    return 0.5 * x * (1.0 + _erf_poly(x * _INV_SQRT2))


def _group_norm(h, gamma, beta, inv_count, pad_count):
    # GroupNorm(num_groups=1) over a (C_p, HW) tile, two-pass (mean, then centered var).
    # Padded channels hold exact zeros with zero gamma/beta; their centered contribution
    # (pad_count * mean^2) is subtracted analytically so the variance matches torch's.
    s1 = jnp.sum(h, axis=1, keepdims=True)                  # (C_p, 1) lane reduce (XLU)
    mean = jnp.sum(s1, axis=0, keepdims=True) * inv_count   # (1, 1)
    d = h - mean
    s2 = jnp.sum(d * d, axis=1, keepdims=True)              # (C_p, 1)
    var = (jnp.sum(s2, axis=0, keepdims=True) - pad_count * mean * mean) * inv_count
    v = var + _GN_EPS
    r = jax.lax.rsqrt(v)
    r = r * (1.5 - 0.5 * v * r * r)                         # Newton refine rsqrt ((1,1): free)
    scale = gamma * r                                       # (C_p, 1)
    return d * scale + beta


def _conv3x3(x2d, w_ref, mask_ref, H, W, mxu_dtype, precision):
    # 3x3 "same" conv over a (Cin_p, HW) tile as 9 tap-accumulated matmuls.
    # w_ref: (9, Cout_p, Cin_p); mask_ref: (9, 1, HW) boundary masks (center tap unmasked).
    HW = H * W
    acc = None
    t = 0
    for dy in (-1, 0, 1):
        for dx in (-1, 0, 1):
            if dy == 0 and dx == 0:
                tap = x2d                                   # center: no shift, no mask
            else:
                shift = (-(dy * W + dx)) % HW
                tap = pltpu.roll(x2d, shift=shift, axis=1) * mask_ref[t]
            contrib = jnp.dot(w_ref[t], tap.astype(mxu_dtype),
                              preferred_element_type=jnp.float32,
                              precision=precision)
            acc = contrib if acc is None else acc + contrib
            t += 1
    return acc                                              # (Cout_p, HW) f32


# ----------------------------------- the kernel -------------------------------------

def _double_conv_kernel(mask_ref, x_ref, w1_ref, g1_ref, b1_ref,
                        w2_ref, g2_ref, b2_ref, o_ref,
                        *, H, W, residual, inv_n1, pad1, inv_n2, pad2,
                        mxu_dtype, precision):
    x2d = x_ref[0].astype(jnp.float32)                      # (Cin_p, HW)

    # conv1 (3x3, pad=1, no bias) -> GN(1) -> GELU
    h1 = _conv3x3(x2d, w1_ref, mask_ref, H, W, mxu_dtype, precision)
    h1 = _gelu(_group_norm(h1, g1_ref[...], b1_ref[...], inv_n1, pad1))

    # conv2 (3x3, pad=1, no bias) -> GN(1)
    h2 = _conv3x3(h1, w2_ref, mask_ref, H, W, mxu_dtype, precision)
    h2 = _group_norm(h2, g2_ref[...], b2_ref[...], inv_n2, pad2)

    if residual:                                            # static Python bool
        h2 = _gelu(h2 + x2d)                                # residual from the resident input

    o_ref[0] = h2.astype(o_ref.dtype)                       # lane-dense, full-width store


# ----------------------------------- the wrapper ------------------------------------

def double_conv(x_nchw, params, *, residual=False, mxu_dtype=jnp.float32):
    """DoubleConv forward. x_nchw: (B, Cin, H, W) -> (B, Cout, H, W).

    mxu_dtype=jnp.bfloat16 halves matmul-operand / weight-DMA bytes on every TPU
    generation (v5e included — bf16 is its native MXU path); GroupNorm/GELU math and
    accumulation stay f32.
    """
    w1, g1, b1, w2, g2, b2 = params
    B, Cin, H, W = x_nchw.shape
    Cmid, Cout = w1.shape[0], w2.shape[0]
    HW = H * W
    if residual and Cin != Cout:
        raise ValueError("residual requires in_channels == out_channels")

    # pad channels to sublane multiples: 8 for f32, 16 for bf16 (packed-vreg alignment)
    cpad = 16 if mxu_dtype == jnp.bfloat16 else 8
    Cin_p, Cmid_p, Cout_p = (_round_up(c, cpad) for c in (Cin, Cmid, Cout))

    # f32 path computes true-f32 convs (matches torch Conv2d); bf16 path is native 1-pass
    precision = jax.lax.Precision.HIGHEST if mxu_dtype == jnp.float32 else None

    # NCHW stays NCHW — just flatten spatial onto the lane axis
    x = x_nchw.reshape(B, Cin, HW)
    if Cin_p != Cin:
        x = jnp.pad(x, ((0, 0), (0, Cin_p - Cin), (0, 0)))

    def prep_w(w, o_p, i_p):
        # OIHW -> (9 taps, O_p, I_p); tap t = 3*(dy+1)+(dx+1) matches the kernel loop order
        o, i = w.shape[0], w.shape[1]
        w = jnp.transpose(w, (2, 3, 0, 1)).reshape(9, o, i)
        return jnp.pad(w, ((0, 0), (0, o_p - o), (0, i_p - i))).astype(mxu_dtype)

    def prep_affine(v, c_p):
        return jnp.pad(v, (0, c_p - v.shape[0])).reshape(c_p, 1).astype(jnp.float32)

    w1k, w2k = prep_w(w1, Cmid_p, Cin_p), prep_w(w2, Cout_p, Cmid_p)
    g1r, b1r = prep_affine(g1, Cmid_p), prep_affine(b1, Cmid_p)
    g2r, b2r = prep_affine(g2, Cout_p), prep_affine(b2, Cout_p)

    # 3x3 "same"-conv boundary masks for the 9 taps, flattened onto the lane axis
    ys = jnp.arange(H).reshape(H, 1)
    xs = jnp.arange(W).reshape(1, W)
    m = []
    for dy in (-1, 0, 1):
        for dx in (-1, 0, 1):
            ok = ((ys + dy >= 0) & (ys + dy <= H - 1) &
                  (xs + dx >= 0) & (xs + dx <= W - 1))
            m.append(ok.reshape(1, 1, HW))
    masks = jnp.concatenate(m, axis=0).astype(jnp.float32)         # (9, 1, HW)

    kernel = functools.partial(
        _double_conv_kernel, H=H, W=W, residual=residual,
        inv_n1=1.0 / float(Cmid * HW), pad1=float((Cmid_p - Cmid) * HW),
        inv_n2=1.0 / float(Cout * HW), pad2=float((Cout_p - Cout) * HW),
        mxu_dtype=mxu_dtype, precision=precision)

    # One sample per grid step: B >= 2 gives >= 2 "parallel" steps (v7x 2 TensorCores),
    # and there is no static per-sample unroll inflating vreg pressure inside the body.
    out = pl.pallas_call(
        kernel,
        out_shape=jax.ShapeDtypeStruct((B, Cout_p, HW), x_nchw.dtype),
        grid=(B,),
        in_specs=[
            pl.BlockSpec((9, 1, HW), lambda b: (0, 0, 0)),          # tap masks (grid-invariant)
            pl.BlockSpec((1, Cin_p, HW), lambda b: (b, 0, 0)),      # input sample
            pl.BlockSpec((9, Cmid_p, Cin_p), lambda b: (0, 0, 0)),  # conv1 weights, per tap
            pl.BlockSpec((Cmid_p, 1), lambda b: (0, 0)),            # gamma1
            pl.BlockSpec((Cmid_p, 1), lambda b: (0, 0)),            # beta1
            pl.BlockSpec((9, Cout_p, Cmid_p), lambda b: (0, 0, 0)), # conv2 weights, per tap
            pl.BlockSpec((Cout_p, 1), lambda b: (0, 0)),            # gamma2
            pl.BlockSpec((Cout_p, 1), lambda b: (0, 0)),            # beta2
        ],
        out_specs=pl.BlockSpec((1, Cout_p, HW), lambda b: (b, 0, 0)),
        compiler_params=pltpu.CompilerParams(dimension_semantics=("parallel",)),
    )(masks, x, w1k, g1r, b1r, w2k, g2r, b2r)

    # TODO(synk): for large H/W/C add an H-strip (1-row halo) grid axis with per-strip
    # masks, lane-pad HW to a 128 multiple, set vmem_limit_bytes explicitly (<= ~56 MiB
    # on v7x), and single-buffer the grid-invariant operands (pipeline_mode=pl.Buffered(1)).
    if Cout_p != Cout:
        out = out[:, :Cout, :]                              # only pays HBM when padding exists
    return out.reshape(B, Cout, H, W)


# ------------------------- deterministic parameter init + ref -------------------------

def init_params(key, in_channels, out_channels, mid_channels=None):
    if mid_channels is None:
        mid_channels = out_channels
    k1, k2, k3, k4, k5, k6 = jax.random.split(key, 6)
    w1 = jax.random.normal(k1, (mid_channels, in_channels, 3, 3), jnp.float32) \
        * (1.0 / jnp.sqrt(in_channels * 9.0))
    g1 = 1.0 + 0.1 * jax.random.normal(k2, (mid_channels,), jnp.float32)
    b1 = 0.1 * jax.random.normal(k3, (mid_channels,), jnp.float32)
    w2 = jax.random.normal(k4, (out_channels, mid_channels, 3, 3), jnp.float32) \
        * (1.0 / jnp.sqrt(mid_channels * 9.0))
    g2 = 1.0 + 0.1 * jax.random.normal(k5, (out_channels,), jnp.float32)
    b2 = 0.1 * jax.random.normal(k6, (out_channels,), jnp.float32)
    return (w1, g1, b1, w2, g2, b2)


def double_conv_reference(x, params, *, residual=False):
    # plain-JAX (XLA) reference, PyTorch semantics, NCHW, true-f32 convolutions
    w1, g1, b1, w2, g2, b2 = params

    def conv(h, w):
        return jax.lax.conv_general_dilated(
            h, w, window_strides=(1, 1), padding=((1, 1), (1, 1)),
            dimension_numbers=("NCHW", "OIHW", "NCHW"),
            precision=jax.lax.Precision.HIGHEST)

    def gn(h, g, b):
        mean = jnp.mean(h, axis=(1, 2, 3), keepdims=True)
        var = jnp.mean((h - mean) ** 2, axis=(1, 2, 3), keepdims=True)  # biased, like torch
        hn = (h - mean) * jax.lax.rsqrt(var + _GN_EPS)
        return hn * g.reshape(1, -1, 1, 1) + b.reshape(1, -1, 1, 1)

    def gelu(h):
        return 0.5 * h * (1.0 + jax.lax.erf(h * _INV_SQRT2))

    h = gelu(gn(conv(x, w1), g1, b1))
    h = gn(conv(h, w2), g2, b2)
    if residual:
        h = gelu(h + x)
    return h


if __name__ == "__main__":
    key = jax.random.PRNGKey(0)
    kx1, kp1, kx2, kp2 = jax.random.split(key, 4)

    # case 1: DoubleConv(4 -> 8), residual=False
    x1 = jax.random.normal(kx1, (2, 4, 16, 16), jnp.float32)
    p1 = init_params(kp1, 4, 8)
    y1 = jax.block_until_ready(double_conv(x1, p1, residual=False))
    r1 = double_conv_reference(x1, p1, residual=False)
    assert y1.shape == (2, 8, 16, 16)
    assert jnp.allclose(y1, r1, atol=1e-3, rtol=1e-3), \
        f"non-residual mismatch, max abs err {jnp.max(jnp.abs(y1 - r1))}"

    # case 2: DoubleConv(8 -> 8), residual=True
    x2 = jax.random.normal(kx2, (2, 8, 16, 16), jnp.float32)
    p2 = init_params(kp2, 8, 8)
    y2 = jax.block_until_ready(double_conv(x2, p2, residual=True))
    r2 = double_conv_reference(x2, p2, residual=True)
    assert y2.shape == (2, 8, 16, 16)
    assert jnp.allclose(y2, r2, atol=1e-3, rtol=1e-3), \
        f"residual mismatch, max abs err {jnp.max(jnp.abs(y2 - r2))}"

    # case 3: bf16 MXU-operand path (f32 accumulation / GN / GELU; looser tolerance
    # because the matmul operands are rounded to bf16)
    y3 = jax.block_until_ready(double_conv(x2, p2, residual=True, mxu_dtype=jnp.bfloat16))
    assert y3.shape == (2, 8, 16, 16)
    assert jnp.allclose(y3, r2, atol=5e-2, rtol=5e-2), \
        f"bf16 mismatch, max abs err {jnp.max(jnp.abs(y3 - r2))}"

    print("KERNEL_OK")
</pallas_src>

<mosaic_0001>
module attributes {stable_mosaic.version = 11 : i64} {
  func.func @_double_conv_kernel(%arg0: i32, %arg1: memref<9x1x256xf32, #tpu.memory_space<vmem>>, %arg2: memref<1x8x256xf32, #tpu.memory_space<vmem>>, %arg3: memref<9x8x8xf32, #tpu.memory_space<vmem>>, %arg4: memref<8x1xf32, #tpu.memory_space<vmem>>, %arg5: memref<8x1xf32, #tpu.memory_space<vmem>>, %arg6: memref<9x8x8xf32, #tpu.memory_space<vmem>>, %arg7: memref<8x1xf32, #tpu.memory_space<vmem>>, %arg8: memref<8x1xf32, #tpu.memory_space<vmem>>, %arg9: memref<1x8x256xf32, #tpu.memory_space<vmem>>) attributes {dimension_semantics = [#tpu.dimension_semantics<parallel>], iteration_bounds = array<i64: 2>, scalar_prefetch = 0 : i64, scratch_operands = 0 : i64, tpu.core_type = #tpu.core_type<tc>, window_params = [{pipeline_mode = #tpu.pipeline_mode<synchronous>, transform_indices = @transform_0, window_bounds = array<i64: 9, 1, 256>}, {transform_indices = @transform_1, window_bounds = array<i64: 1, 8, 256>}, {pipeline_mode = #tpu.pipeline_mode<synchronous>, transform_indices = @transform_2, window_bounds = array<i64: 9, 8, 8>}, {pipeline_mode = #tpu.pipeline_mode<synchronous>, transform_indices = @transform_3, window_bounds = array<i64: 8, 1>}, {pipeline_mode = #tpu.pipeline_mode<synchronous>, transform_indices = @transform_4, window_bounds = array<i64: 8, 1>}, {pipeline_mode = #tpu.pipeline_mode<synchronous>, transform_indices = @transform_5, window_bounds = array<i64: 9, 8, 8>}, {pipeline_mode = #tpu.pipeline_mode<synchronous>, transform_indices = @transform_6, window_bounds = array<i64: 8, 1>}, {pipeline_mode = #tpu.pipeline_mode<synchronous>, transform_indices = @transform_7, window_bounds = array<i64: 8, 1>}, {transform_indices = @transform_8, window_bounds = array<i64: 1, 8, 256>}]} {
    %c0 = arith.constant 0 : index
    %c0_0 = arith.constant 0 : index
    %c0_1 = arith.constant 0 : index
    %0 = vector.load %arg2[%c0, %c0_0, %c0_1] : memref<1x8x256xf32, #tpu.memory_space<vmem>>, vector<1x8x256xf32>
    %1 = vector.shape_cast %0 : vector<1x8x256xf32> to vector<8x256xf32>
    %c17_i32 = arith.constant 17 : i32
    %2 = tpu.dynamic_rotate %1 by %c17_i32 dim 1 : vector<8x256xf32>, i32 -> vector<8x256xf32>
    %c0_2 = arith.constant 0 : index
    %c0_3 = arith.constant 0 : index
    %c0_4 = arith.constant 0 : index
    %3 = vector.load %arg1[%c0_2, %c0_3, %c0_4] : memref<9x1x256xf32, #tpu.memory_space<vmem>>, vector<1x1x256xf32>
    %4 = vector.shape_cast %3 : vector<1x1x256xf32> to vector<1x256xf32>
    %5 = vector.broadcast %4 : vector<1x256xf32> to vector<8x256xf32>
    %6 = arith.mulf %2, %5 : vector<8x256xf32>
    %c0_5 = arith.constant 0 : index
    %c0_6 = arith.constant 0 : index
    %c0_7 = arith.constant 0 : index
    %7 = vector.load %arg3[%c0_5, %c0_6, %c0_7] : memref<9x8x8xf32, #tpu.memory_space<vmem>>, vector<1x8x8xf32>
    %8 = vector.shape_cast %7 : vector<1x8x8xf32> to vector<8x8xf32>
    %cst = arith.constant dense<0.000000e+00> : vector<8x256xf32>
    %9 = tpu.matmul %8, %6, %cst {dimension_numbers = #tpu.dot_dimension_numbers<[1], [0], [0], [1], [0, 0, 1, 1], [], []>, precision = #tpu.contract_precision<fp32>} : vector<8x8xf32>, vector<8x256xf32>, vector<8x256xf32> -> vector<8x256xf32>
    %c16_i32 = arith.constant 16 : i32
    %10 = tpu.dynamic_rotate %1 by %c16_i32 dim 1 : vector<8x256xf32>, i32 -> vector<8x256xf32>
    %c1 = arith.constant 1 : index
    %c0_8 = arith.constant 0 : index
    %c0_9 = arith.constant 0 : index
    %11 = vector.load %arg1[%c1, %c0_8, %c0_9] : memref<9x1x256xf32, #tpu.memory_space<vmem>>, vector<1x1x256xf32>
    %12 = vector.shape_cast %11 : vector<1x1x256xf32> to vector<1x256xf32>
    %13 = vector.broadcast %12 : vector<1x256xf32> to vector<8x256xf32>
    %14 = arith.mulf %10, %13 : vector<8x256xf32>
    %c1_10 = arith.constant 1 : index
    %c0_11 = arith.constant 0 : index
    %c0_12 = arith.constant 0 : index
    %15 = vector.load %arg3[%c1_10, %c0_11, %c0_12] : memref<9x8x8xf32, #tpu.memory_space<vmem>>, vector<1x8x8xf32>
    %16 = vector.shape_cast %15 : vector<1x8x8xf32> to vector<8x8xf32>
    %cst_13 = arith.constant dense<0.000000e+00> : vector<8x256xf32>
    %17 = tpu.matmul %16, %14, %cst_13 {dimension_numbers = #tpu.dot_dimension_numbers<[1], [0], [0], [1], [0, 0, 1, 1], [], []>, precision = #tpu.contract_precision<fp32>} : vector<8x8xf32>, vector<8x256xf32>, vector<8x256xf32> -> vector<8x256xf32>
    %18 = arith.addf %9, %17 : vector<8x256xf32>
    %c15_i32 = arith.constant 15 : i32
    %19 = tpu.dynamic_rotate %1 by %c15_i32 dim 1 : vector<8x256xf32>, i32 -> vector<8x256xf32>
    %c2 = arith.constant 2 : index
    %c0_14 = arith.constant 0 : index
    %c0_15 = arith.constant 0 : index
    %20 = vector.load %arg1[%c2, %c0_14, %c0_15] : memref<9x1x256xf32, #tpu.memory_space<vmem>>, vector<1x1x256xf32>
    %21 = vector.shape_cast %20 : vector<1x1x256xf32> to vector<1x256xf32>
    %22 = vector.broadcast %21 : vector<1x256xf32> to vector<8x256xf32>
    %23 = arith.mulf %19, %22 : vector<8x256xf32>
    %c2_16 = arith.constant 2 : index
    %c0_17 = arith.constant 0 : index
    %c0_18 = arith.constant 0 : index
    %24 = vector.load %arg3[%c2_16, %c0_17, %c0_18] : memref<9x8x8xf32, #tpu.memory_space<vmem>>, vector<1x8x8xf32>
    %25 = vector.shape_cast %24 : vector<1x8x8xf32> to vector<8x8xf32>
    %cst_19 = arith.constant dense<0.000000e+00> : vector<8x256xf32>
    %26 = tpu.matmul %25, %23, %cst_19 {dimension_numbers = #tpu.dot_dimension_numbers<[1], [0], [0], [1], [0, 0, 1, 1], [], []>, precision = #tpu.contract_precision<fp32>} : vector<8x8xf32>, vector<8x256xf32>, vector<8x256xf32> -> vector<8x256xf32>
    %27 = arith.addf %18, %26 : vector<8x256xf32>
    %c1_i32 = arith.constant 1 : i32
    %28 = tpu.dynamic_rotate %1 by %c1_i32 dim 1 : vector<8x256xf32>, i32 -> vector<8x256xf32>
    %c3 = arith.constant 3 : index
    %c0_20 = arith.constant 0 : index
    %c0_21 = arith.constant 0 : index
    %29 = vector.load %arg1[%c3, %c0_20, %c0_21] : memref<9x1x256xf32, #tpu.memory_space<vmem>>, vector<1x1x256xf32>
    %30 = vector.shape_cast %29 : vector<1x1x256xf32> to vector<1x256xf32>
    %31 = vector.broadcast %30 : vector<1x256xf32> to vector<8x256xf32>
    %32 = arith.mulf %28, %31 : vector<8x256xf32>
    %c3_22 = arith.constant 3 : index
    %c0_23 = arith.constant 0 : index
    %c0_24 = arith.constant 0 : index
    %33 = vector.load %arg3[%c3_22, %c0_23, %c0_24] : memref<9x8x8xf32, #tpu.memory_space<vmem>>, vector<1x8x8xf32>
    %34 = vector.shape_cast %33 : vector<1x8x8xf32> to vector<8x8xf32>
    %cst_25 = arith.constant dense<0.000000e+00> : vector<8x256xf32>
    %35 = tpu.matmul %34, %32, %cst_25 {dimension_numbers = #tpu.dot_dimension_numbers<[1], [0], [0], [1], [0, 0, 1, 1], [], []>, precision = #tpu.contract_precision<fp32>} : vector<8x8xf32>, vector<8x256xf32>, vector<8x256xf32> -> vector<8x256xf32>
    %36 = arith.addf %27, %35 : vector<8x256xf32>
    %c4 = arith.constant 4 : index
    %c0_26 = arith.constant 0 : index
    %c0_27 = arith.constant 0 : index
    %37 = vector.load %arg3[%c4, %c0_26, %c0_27] : memref<9x8x8xf32, #tpu.memory_space<vmem>>, vector<1x8x8xf32>
    %38 = vector.shape_cast %37 : vector<1x8x8xf32> to vector<8x8xf32>
    %cst_28 = arith.constant dense<0.000000e+00> : vector<8x256xf32>
    %39 = tpu.matmul %38, %1, %cst_28 {dimension_numbers = #tpu.dot_dimension_numbers<[1], [0], [0], [1], [0, 0, 1, 1], [], []>, precision = #tpu.contract_precision<fp32>} : vector<8x8xf32>, vector<8x256xf32>, vector<8x256xf32> -> vector<8x256xf32>
    %40 = arith.addf %36, %39 : vector<8x256xf32>
    %c255_i32 = arith.constant 255 : i32
    %41 = tpu.dynamic_rotate %1 by %c255_i32 dim 1 : vector<8x256xf32>, i32 -> vector<8x256xf32>
    %c5 = arith.constant 5 : index
    %c0_29 = arith.constant 0 : index
    %c0_30 = arith.constant 0 : index
    %42 = vector.load %arg1[%c5, %c0_29, %c0_30] : memref<9x1x256xf32, #tpu.memory_space<vmem>>, vector<1x1x256xf32>
    %43 = vector.shape_cast %42 : vector<1x1x256xf32> to vector<1x256xf32>
    %44 = vector.broadcast %43 : vector<1x256xf32> to vector<8x256xf32>
    %45 = arith.mulf %41, %44 : vector<8x256xf32>
    %c5_31 = arith.constant 5 : index
    %c0_32 = arith.constant 0 : index
    %c0_33 = arith.constant 0 : index
    %46 = vector.load %arg3[%c5_31, %c0_32, %c0_33] : memref<9x8x8xf32, #tpu.memory_space<vmem>>, vector<1x8x8xf32>
    %47 = vector.shape_cast %46 : vector<1x8x8xf32> to vector<8x8xf32>
    %cst_34 = arith.constant dense<0.000000e+00> : vector<8x256xf32>
    %48 = tpu.matmul %47, %45, %cst_34 {dimension_numbers = #tpu.dot_dimension_numbers<[1], [0], [0], [1], [0, 0, 1, 1], [], []>, precision = #tpu.contract_precision<fp32>} : vector<8x8xf32>, vector<8x256xf32>, vector<8x256xf32> -> vector<8x256xf32>
    %49 = arith.addf %40, %48 : vector<8x256xf32>
    %c241_i32 = arith.constant 241 : i32
    %50 = tpu.dynamic_rotate %1 by %c241_i32 dim 1 : vector<8x256xf32>, i32 -> vector<8x256xf32>
    %c6 = arith.constant 6 : index
    %c0_35 = arith.constant 0 : index
    %c0_36 = arith.constant 0 : index
    %51 = vector.load %arg1[%c6, %c0_35, %c0_36] : memref<9x1x256xf32, #tpu.memory_space<vmem>>, vector<1x1x256xf32>
    %52 = vector.shape_cast %51 : vector<1x1x256xf32> to vector<1x256xf32>
    %53 = vector.broadcast %52 : vector<1x256xf32> to vector<8x256xf32>
    %54 = arith.mulf %50, %53 : vector<8x256xf32>
    %c6_37 = arith.constant 6 : index
    %c0_38 = arith.constant 0 : index
    %c0_39 = arith.constant 0 : index
    %55 = vector.load %arg3[%c6_37, %c0_38, %c0_39] : memref<9x8x8xf32, #tpu.memory_space<vmem>>, vector<1x8x8xf32>
    %56 = vector.shape_cast %55 : vector<1x8x8xf32> to vector<8x8xf32>
    %cst_40 = arith.constant dense<0.000000e+00> : vector<8x256xf32>
    %57 = tpu.matmul %56, %54, %cst_40 {dimension_numbers = #tpu.dot_dimension_numbers<[1], [0], [0], [1], [0, 0, 1, 1], [], []>, precision = #tpu.contract_precision<fp32>} : vector<8x8xf32>, vector<8x256xf32>, vector<8x256xf32> -> vector<8x256xf32>
    %58 = arith.addf %49, %57 : vector<8x256xf32>
    %c240_i32 = arith.constant 240 : i32
    %59 = tpu.dynamic_rotate %1 by %c240_i32 dim 1 : vector<8x256xf32>, i32 -> vector<8x256xf32>
    %c7 = arith.constant 7 : index
    %c0_41 = arith.constant 0 : index
    %c0_42 = arith.constant 0 : index
    %60 = vector.load %arg1[%c7, %c0_41, %c0_42] : memref<9x1x256xf32, #tpu.memory_space<vmem>>, vector<1x1x256xf32>
    %61 = vector.shape_cast %60 : vector<1x1x256xf32> to vector<1x256xf32>
    %62 = vector.broadcast %61 : vector<1x256xf32> to vector<8x256xf32>
    %63 = arith.mulf %59, %62 : vector<8x256xf32>
    %c7_43 = arith.constant 7 : index
    %c0_44 = arith.constant 0 : index
    %c0_45 = arith.constant 0 : index
    %64 = vector.load %arg3[%c7_43, %c0_44, %c0_45] : memref<9x8x8xf32, #tpu.memory_space<vmem>>, vector<1x8x8xf32>
    %65 = vector.shape_cast %64 : vector<1x8x8xf32> to vector<8x8xf32>
    %cst_46 = arith.constant dense<0.000000e+00> : vector<8x256xf32>
    %66 = tpu.matmul %65, %63, %cst_46 {dimension_numbers = #tpu.dot_dimension_numbers<[1], [0], [0], [1], [0, 0, 1, 1], [], []>, precision = #tpu.contract_precision<fp32>} : vector<8x8xf32>, vector<8x256xf32>, vector<8x256xf32> -> vector<8x256xf32>
    %67 = arith.addf %58, %66 : vector<8x256xf32>
    %c239_i32 = arith.constant 239 : i32
    %68 = tpu.dynamic_rotate %1 by %c239_i32 dim 1 : vector<8x256xf32>, i32 -> vector<8x256xf32>
    %c8 = arith.constant 8 : index
    %c0_47 = arith.constant 0 : index
    %c0_48 = arith.constant 0 : index
    %69 = vector.load %arg1[%c8, %c0_47, %c0_48] : memref<9x1x256xf32, #tpu.memory_space<vmem>>, vector<1x1x256xf32>
    %70 = vector.shape_cast %69 : vector<1x1x256xf32> to vector<1x256xf32>
    %71 = vector.broadcast %70 : vector<1x256xf32> to vector<8x256xf32>
    %72 = arith.mulf %68, %71 : vector<8x256xf32>
    %c8_49 = arith.constant 8 : index
    %c0_50 = arith.constant 0 : index
    %c0_51 = arith.constant 0 : index
    %73 = vector.load %arg3[%c8_49, %c0_50, %c0_51] : memref<9x8x8xf32, #tpu.memory_space<vmem>>, vector<1x8x8xf32>
    %74 = vector.shape_cast %73 : vector<1x8x8xf32> to vector<8x8xf32>
    %cst_52 = arith.constant dense<0.000000e+00> : vector<8x256xf32>
    %75 = tpu.matmul %74, %72, %cst_52 {dimension_numbers = #tpu.dot_dimension_numbers<[1], [0], [0], [1], [0, 0, 1, 1], [], []>, precision = #tpu.contract_precision<fp32>} : vector<8x8xf32>, vector<8x256xf32>, vector<8x256xf32> -> vector<8x256xf32>
    %76 = arith.addf %67, %75 : vector<8x256xf32>
    %c0_53 = arith.constant 0 : index
    %c0_54 = arith.constant 0 : index
    %77 = vector.load %arg4[%c0_53, %c0_54] : memref<8x1xf32, #tpu.memory_space<vmem>>, vector<8x1xf32>
    %c0_55 = arith.constant 0 : index
    %c0_56 = arith.constant 0 : index
    %78 = vector.load %arg5[%c0_55, %c0_56] : memref<8x1xf32, #tpu.memory_space<vmem>>, vector<8x1xf32>
    %cst_57 = arith.constant dense<0.000000e+00> : vector<8xf32>
    %79 = vector.multi_reduction <add>, %76, %cst_57 [1] : vector<8x256xf32> to vector<8xf32>
    %80 = vector.shape_cast %79 : vector<8xf32> to vector<8x1xf32>
    %cst_58 = arith.constant dense<0.000000e+00> : vector<1xf32>
    %81 = vector.multi_reduction <add>, %80, %cst_58 [0] : vector<8x1xf32> to vector<1xf32>
    %82 = vector.shape_cast %81 : vector<1xf32> to vector<1x1xf32>
    %cst_59 = arith.constant 4.8828125E-4 : f32
    %83 = vector.broadcast %cst_59 : f32 to vector<1x1xf32>
    %84 = arith.mulf %82, %83 : vector<1x1xf32>
    %85 = vector.broadcast %84 : vector<1x1xf32> to vector<8x256xf32>
    %86 = arith.subf %76, %85 : vector<8x256xf32>
    %87 = arith.mulf %86, %86 : vector<8x256xf32>
    %cst_60 = arith.constant dense<0.000000e+00> : vector<8xf32>
    %88 = vector.multi_reduction <add>, %87, %cst_60 [1] : vector<8x256xf32> to vector<8xf32>
    %89 = vector.shape_cast %88 : vector<8xf32> to vector<8x1xf32>
    %cst_61 = arith.constant dense<0.000000e+00> : vector<1xf32>
    %90 = vector.multi_reduction <add>, %89, %cst_61 [0] : vector<8x1xf32> to vector<1xf32>
    %91 = vector.shape_cast %90 : vector<1xf32> to vector<1x1xf32>
    %cst_62 = arith.constant 0.000000e+00 : f32
    %92 = vector.broadcast %cst_62 : f32 to vector<1x1xf32>
    %93 = arith.mulf %92, %84 : vector<1x1xf32>
    %94 = arith.mulf %93, %84 : vector<1x1xf32>
    %95 = arith.subf %91, %94 : vector<1x1xf32>
    %cst_63 = arith.constant 4.8828125E-4 : f32
    %96 = vector.broadcast %cst_63 : f32 to vector<1x1xf32>
    %97 = arith.mulf %95, %96 : vector<1x1xf32>
    %cst_64 = arith.constant 9.99999974E-6 : f32
    %98 = vector.broadcast %cst_64 : f32 to vector<1x1xf32>
    %99 = arith.addf %97, %98 : vector<1x1xf32>
    %100 = math.rsqrt %99 : vector<1x1xf32>
    %cst_65 = arith.constant 5.000000e-01 : f32
    %101 = vector.broadcast %cst_65 : f32 to vector<1x1xf32>
    %102 = arith.mulf %101, %99 : vector<1x1xf32>
    %103 = arith.mulf %102, %100 : vector<1x1xf32>
    %104 = arith.mulf %103, %100 : vector<1x1xf32>
    %cst_66 = arith.constant 1.500000e+00 : f32
    %105 = vector.broadcast %cst_66 : f32 to vector<1x1xf32>
    %106 = arith.subf %105, %104 : vector<1x1xf32>
    %107 = arith.mulf %100, %106 : vector<1x1xf32>
    %108 = vector.broadcast %107 : vector<1x1xf32> to vector<8x1xf32>
    %109 = arith.mulf %77, %108 : vector<8x1xf32>
    %110 = vector.broadcast %109 : vector<8x1xf32> to vector<8x256xf32>
    %111 = arith.mulf %86, %110 : vector<8x256xf32>
    %112 = vector.broadcast %78 : vector<8x1xf32> to vector<8x256xf32>
    %113 = arith.addf %111, %112 : vector<8x256xf32>
    %cst_67 = arith.constant 5.000000e-01 : f32
    %114 = vector.broadcast %cst_67 : f32 to vector<8x256xf32>
    %115 = arith.mulf %114, %113 : vector<8x256xf32>
    %cst_68 = arith.constant 0.707106769 : f32
    %116 = vector.broadcast %cst_68 : f32 to vector<8x256xf32>
    %117 = arith.mulf %113, %116 : vector<8x256xf32>
    %118 = math.absf %117 : vector<8x256xf32>
    %cst_69 = arith.constant 0.327591091 : f32
    %119 = vector.broadcast %cst_69 : f32 to vector<8x256xf32>
    %120 = arith.mulf %119, %118 : vector<8x256xf32>
    %cst_70 = arith.constant 1.000000e+00 : f32
    %121 = vector.broadcast %cst_70 : f32 to vector<8x256xf32>
    %122 = arith.addf %121, %120 : vector<8x256xf32>
    %cst_71 = arith.constant 1.000000e+00 : f32
    %123 = vector.broadcast %cst_71 : f32 to vector<8x256xf32>
    %124 = arith.divf %123, %122 : vector<8x256xf32>
    %125 = arith.mulf %122, %124 : vector<8x256xf32>
    %cst_72 = arith.constant 2.000000e+00 : f32
    %126 = vector.broadcast %cst_72 : f32 to vector<8x256xf32>
    %127 = arith.subf %126, %125 : vector<8x256xf32>
    %128 = arith.mulf %124, %127 : vector<8x256xf32>
    %cst_73 = arith.constant 1.06140542 : f32
    %129 = vector.broadcast %cst_73 : f32 to vector<8x256xf32>
    %130 = arith.mulf %129, %128 : vector<8x256xf32>
    %cst_74 = arith.constant -1.45315206 : f32
    %131 = vector.broadcast %cst_74 : f32 to vector<8x256xf32>
    %132 = arith.addf %130, %131 : vector<8x256xf32>
    %133 = arith.mulf %132, %128 : vector<8x256xf32>
    %cst_75 = arith.constant 1.42141378 : f32
    %134 = vector.broadcast %cst_75 : f32 to vector<8x256xf32>
    %135 = arith.addf %133, %134 : vector<8x256xf32>
    %136 = arith.mulf %135, %128 : vector<8x256xf32>
    %cst_76 = arith.constant -0.284496725 : f32
    %137 = vector.broadcast %cst_76 : f32 to vector<8x256xf32>
    %138 = arith.addf %136, %137 : vector<8x256xf32>
    %139 = arith.mulf %138, %128 : vector<8x256xf32>
    %cst_77 = arith.constant 0.254829586 : f32
    %140 = vector.broadcast %cst_77 : f32 to vector<8x256xf32>
    %141 = arith.addf %139, %140 : vector<8x256xf32>
    %142 = arith.mulf %141, %128 : vector<8x256xf32>
    %cst_78 = arith.constant 0.000000e+00 : f32
    %143 = vector.broadcast %cst_78 : f32 to vector<8x256xf32>
    %144 = arith.subf %143, %118 : vector<8x256xf32>
    %145 = arith.mulf %144, %118 : vector<8x256xf32>
    %146 = math.exp %145 : vector<8x256xf32>
    %147 = arith.mulf %142, %146 : vector<8x256xf32>
    %cst_79 = arith.constant 1.000000e+00 : f32
    %148 = vector.broadcast %cst_79 : f32 to vector<8x256xf32>
    %149 = arith.subf %148, %147 : vector<8x256xf32>
    %cst_80 = arith.constant 0.000000e+00 : f32
    %150 = vector.broadcast %cst_80 : f32 to vector<8x256xf32>
    %151 = arith.cmpf oge, %117, %150 : vector<8x256xf32>
    %cst_81 = arith.constant 0.000000e+00 : f32
    %152 = vector.broadcast %cst_81 : f32 to vector<8x256xf32>
    %153 = arith.subf %152, %149 : vector<8x256xf32>
    %154 = arith.select %151, %149, %153 : vector<8x256xi1>, vector<8x256xf32>
    %cst_82 = arith.constant 1.000000e+00 : f32
    %155 = vector.broadcast %cst_82 : f32 to vector<8x256xf32>
    %156 = arith.addf %155, %154 : vector<8x256xf32>
    %157 = arith.mulf %115, %156 : vector<8x256xf32>
    %c17_i32_83 = arith.constant 17 : i32
    %158 = tpu.dynamic_rotate %157 by %c17_i32_83 dim 1 : vector<8x256xf32>, i32 -> vector<8x256xf32>
    %c0_84 = arith.constant 0 : index
    %c0_85 = arith.constant 0 : index
    %c0_86 = arith.constant 0 : index
    %159 = vector.load %arg1[%c0_84, %c0_85, %c0_86] : memref<9x1x256xf32, #tpu.memory_space<vmem>>, vector<1x1x256xf32>
    %160 = vector.shape_cast %159 : vector<1x1x256xf32> to vector<1x256xf32>
    %161 = vector.broadcast %160 : vector<1x256xf32> to vector<8x256xf32>
    %162 = arith.mulf %158, %161 : vector<8x256xf32>
    %c0_87 = arith.constant 0 : index
    %c0_88 = arith.constant 0 : index
    %c0_89 = arith.constant 0 : index
    %163 = vector.load %arg6[%c0_87, %c0_88, %c0_89] : memref<9x8x8xf32, #tpu.memory_space<vmem>>, vector<1x8x8xf32>
    %164 = vector.shape_cast %163 : vector<1x8x8xf32> to vector<8x8xf32>
    %cst_90 = arith.constant dense<0.000000e+00> : vector<8x256xf32>
    %165 = tpu.matmul %164, %162, %cst_90 {dimension_numbers = #tpu.dot_dimension_numbers<[1], [0], [0], [1], [0, 0, 1, 1], [], []>, precision = #tpu.contract_precision<fp32>} : vector<8x8xf32>, vector<8x256xf32>, vector<8x256xf32> -> vector<8x256xf32>
    %c16_i32_91 = arith.constant 16 : i32
    %166 = tpu.dynamic_rotate %157 by %c16_i32_91 dim 1 : vector<8x256xf32>, i32 -> vector<8x256xf32>
    %c1_92 = arith.constant 1 : index
    %c0_93 = arith.constant 0 : index
    %c0_94 = arith.constant 0 : index
    %167 = vector.load %arg1[%c1_92, %c0_93, %c0_94] : memref<9x1x256xf32, #tpu.memory_space<vmem>>, vector<1x1x256xf32>
    %168 = vector.shape_cast %167 : vector<1x1x256xf32> to vector<1x256xf32>
    %169 = vector.broadcast %168 : vector<1x256xf32> to vector<8x256xf32>
    %170 = arith.mulf %166, %169 : vector<8x256xf32>
    %c1_95 = arith.constant 1 : index
    %c0_96 = arith.constant 0 : index
    %c0_97 = arith.constant 0 : index
    %171 = vector.load %arg6[%c1_95, %c0_96, %c0_97] : memref<9x8x8xf32, #tpu.memory_space<vmem>>, vector<1x8x8xf32>
    %172 = vector.shape_cast %171 : vector<1x8x8xf32> to vector<8x8xf32>
    %cst_98 = arith.constant dense<0.000000e+00> : vector<8x256xf32>
    %173 = tpu.matmul %172, %170, %cst_98 {dimension_numbers = #tpu.dot_dimension_numbers<[1], [0], [0], [1], [0, 0, 1, 1], [], []>, precision = #tpu.contract_precision<fp32>} : vector<8x8xf32>, vector<8x256xf32>, vector<8x256xf32> -> vector<8x256xf32>
    %174 = arith.addf %165, %173 : vector<8x256xf32>
    %c15_i32_99 = arith.constant 15 : i32
    %175 = tpu.dynamic_rotate %157 by %c15_i32_99 dim 1 : vector<8x256xf32>, i32 -> vector<8x256xf32>
    %c2_100 = arith.constant 2 : index
    %c0_101 = arith.constant 0 : index
    %c0_102 = arith.constant 0 : index
    %176 = vector.load %arg1[%c2_100, %c0_101, %c0_102] : memref<9x1x256xf32, #tpu.memory_space<vmem>>, vector<1x1x256xf32>
    %177 = vector.shape_cast %176 : vector<1x1x256xf32> to vector<1x256xf32>
    %178 = vector.broadcast %177 : vector<1x256xf32> to vector<8x256xf32>
    %179 = arith.mulf %175, %178 : vector<8x256xf32>
    %c2_103 = arith.constant 2 : index
    %c0_104 = arith.constant 0 : index
    %c0_105 = arith.constant 0 : index
    %180 = vector.load %arg6[%c2_103, %c0_104, %c0_105] : memref<9x8x8xf32, #tpu.memory_space<vmem>>, vector<1x8x8xf32>
    %181 = vector.shape_cast %180 : vector<1x8x8xf32> to vector<8x8xf32>
    %cst_106 = arith.constant dense<0.000000e+00> : vector<8x256xf32>
    %182 = tpu.matmul %181, %179, %cst_106 {dimension_numbers = #tpu.dot_dimension_numbers<[1], [0], [0], [1], [0, 0, 1, 1], [], []>, precision = #tpu.contract_precision<fp32>} : vector<8x8xf32>, vector<8x256xf32>, vector<8x256xf32> -> vector<8x256xf32>
    %183 = arith.addf %174, %182 : vector<8x256xf32>
    %c1_i32_107 = arith.constant 1 : i32
    %184 = tpu.dynamic_rotate %157 by %c1_i32_107 dim 1 : vector<8x256xf32>, i32 -> vector<8x256xf32>
    %c3_108 = arith.constant 3 : index
    %c0_109 = arith.constant 0 : index
    %c0_110 = arith.constant 0 : index
    %185 = vector.load %arg1[%c3_108, %c0_109, %c0_110] : memref<9x1x256xf32, #tpu.memory_space<vmem>>, vector<1x1x256xf32>
    %186 = vector.shape_cast %185 : vector<1x1x256xf32> to vector<1x256xf32>
    %187 = vector.broadcast %186 : vector<1x256xf32> to vector<8x256xf32>
    %188 = arith.mulf %184, %187 : vector<8x256xf32>
    %c3_111 = arith.constant 3 : index
    %c0_112 = arith.constant 0 : index
    %c0_113 = arith.constant 0 : index
    %189 = vector.load %arg6[%c3_111, %c0_112, %c0_113] : memref<9x8x8xf32, #tpu.memory_space<vmem>>, vector<1x8x8xf32>
    %190 = vector.shape_cast %189 : vector<1x8x8xf32> to vector<8x8xf32>
    %cst_114 = arith.constant dense<0.000000e+00> : vector<8x256xf32>
    %191 = tpu.matmul %190, %188, %cst_114 {dimension_numbers = #tpu.dot_dimension_numbers<[1], [0], [0], [1], [0, 0, 1, 1], [], []>, precision = #tpu.contract_precision<fp32>} : vector<8x8xf32>, vector<8x256xf32>, vector<8x256xf32> -> vector<8x256xf32>
    %192 = arith.addf %183, %191 : vector<8x256xf32>
    %c4_115 = arith.constant 4 : index
    %c0_116 = arith.constant 0 : index
    %c0_117 = arith.constant 0 : index
    %193 = vector.load %arg6[%c4_115, %c0_116, %c0_117] : memref<9x8x8xf32, #tpu.memory_space<vmem>>, vector<1x8x8xf32>
    %194 = vector.shape_cast %193 : vector<1x8x8xf32> to vector<8x8xf32>
    %cst_118 = arith.constant dense<0.000000e+00> : vector<8x256xf32>
    %195 = tpu.matmul %194, %157, %cst_118 {dimension_numbers = #tpu.dot_dimension_numbers<[1], [0], [0], [1], [0, 0, 1, 1], [], []>, precision = #tpu.contract_precision<fp32>} : vector<8x8xf32>, vector<8x256xf32>, vector<8x256xf32> -> vector<8x256xf32>
    %196 = arith.addf %192, %195 : vector<8x256xf32>
    %c255_i32_119 = arith.constant 255 : i32
    %197 = tpu.dynamic_rotate %157 by %c255_i32_119 dim 1 : vector<8x256xf32>, i32 -> vector<8x256xf32>
    %c5_120 = arith.constant 5 : index
    %c0_121 = arith.constant 0 : index
    %c0_122 = arith.constant 0 : index
    %198 = vector.load %arg1[%c5_120, %c0_121, %c0_122] : memref<9x1x256xf32, #tpu.memory_space<vmem>>, vector<1x1x256xf32>
    %199 = vector.shape_cast %198 : vector<1x1x256xf32> to vector<1x256xf32>
    %200 = vector.broadcast %199 : vector<1x256xf32> to vector<8x256xf32>
    %201 = arith.mulf %197, %200 : vector<8x256xf32>
    %c5_123 = arith.constant 5 : index
    %c0_124 = arith.constant 0 : index
    %c0_125 = arith.constant 0 : index
    %202 = vector.load %arg6[%c5_123, %c0_124, %c0_125] : memref<9x8x8xf32, #tpu.memory_space<vmem>>, vector<1x8x8xf32>
    %203 = vector.shape_cast %202 : vector<1x8x8xf32> to vector<8x8xf32>
    %cst_126 = arith.constant dense<0.000000e+00> : vector<8x256xf32>
    %204 = tpu.matmul %203, %201, %cst_126 {dimension_numbers = #tpu.dot_dimension_numbers<[1], [0], [0], [1], [0, 0, 1, 1], [], []>, precision = #tpu.contract_precision<fp32>} : vector<8x8xf32>, vector<8x256xf32>, vector<8x256xf32> -> vector<8x256xf32>
    %205 = arith.addf %196, %204 : vector<8x256xf32>
    %c241_i32_127 = arith.constant 241 : i32
    %206 = tpu.dynamic_rotate %157 by %c241_i32_127 dim 1 : vector<8x256xf32>, i32 -> vector<8x256xf32>
    %c6_128 = arith.constant 6 : index
    %c0_129 = arith.constant 0 : index
    %c0_130 = arith.constant 0 : index
    %207 = vector.load %arg1[%c6_128, %c0_129, %c0_130] : memref<9x1x256xf32, #tpu.memory_space<vmem>>, vector<1x1x256xf32>
    %208 = vector.shape_cast %207 : vector<1x1x256xf32> to vector<1x256xf32>
    %209 = vector.broadcast %208 : vector<1x256xf32> to vector<8x256xf32>
    %210 = arith.mulf %206, %209 : vector<8x256xf32>
    %c6_131 = arith.constant 6 : index
    %c0_132 = arith.constant 0 : index
    %c0_133 = arith.constant 0 : index
    %211 = vector.load %arg6[%c6_131, %c0_132, %c0_133] : memref<9x8x8xf32, #tpu.memory_space<vmem>>, vector<1x8x8xf32>
    %212 = vector.shape_cast %211 : vector<1x8x8xf32> to vector<8x8xf32>
    %cst_134 = arith.constant dense<0.000000e+00> : vector<8x256xf32>
    %213 = tpu.matmul %212, %210, %cst_134 {dimension_numbers = #tpu.dot_dimension_numbers<[1], [0], [0], [1], [0, 0, 1, 1], [], []>, precision = #tpu.contract_precision<fp32>} : vector<8x8xf32>, vector<8x256xf32>, vector<8x256xf32> -> vector<8x256xf32>
    %214 = arith.addf %205, %213 : vector<8x256xf32>
    %c240_i32_135 = arith.constant 240 : i32
    %215 = tpu.dynamic_rotate %157 by %c240_i32_135 dim 1 : vector<8x256xf32>, i32 -> vector<8x256xf32>
    %c7_136 = arith.constant 7 : index
    %c0_137 = arith.constant 0 : index
    %c0_138 = arith.constant 0 : index
    %216 = vector.load %arg1[%c7_136, %c0_137, %c0_138] : memref<9x1x256xf32, #tpu.memory_space<vmem>>, vector<1x1x256xf32>
    %217 = vector.shape_cast %216 : vector<1x1x256xf32> to vector<1x256xf32>
    %218 = vector.broadcast %217 : vector<1x256xf32> to vector<8x256xf32>
    %219 = arith.mulf %215, %218 : vector<8x256xf32>
    %c7_139 = arith.constant 7 : index
    %c0_140 = arith.constant 0 : index
    %c0_141 = arith.constant 0 : index
    %220 = vector.load %arg6[%c7_139, %c0_140, %c0_141] : memref<9x8x8xf32, #tpu.memory_space<vmem>>, vector<1x8x8xf32>
    %221 = vector.shape_cast %220 : vector<1x8x8xf32> to vector<8x8xf32>
    %cst_142 = arith.constant dense<0.000000e+00> : vector<8x256xf32>
    %222 = tpu.matmul %221, %219, %cst_142 {dimension_numbers = #tpu.dot_dimension_numbers<[1], [0], [0], [1], [0, 0, 1, 1], [], []>, precision = #tpu.contract_precision<fp32>} : vector<8x8xf32>, vector<8x256xf32>, vector<8x256xf32> -> vector<8x256xf32>
    %223 = arith.addf %214, %222 : vector<8x256xf32>
    %c239_i32_143 = arith.constant 239 : i32
    %224 = tpu.dynamic_rotate %157 by %c239_i32_143 dim 1 : vector<8x256xf32>, i32 -> vector<8x256xf32>
    %c8_144 = arith.constant 8 : index
    %c0_145 = arith.constant 0 : index
    %c0_146 = arith.constant 0 : index
    %225 = vector.load %arg1[%c8_144, %c0_145, %c0_146] : memref<9x1x256xf32, #tpu.memory_space<vmem>>, vector<1x1x256xf32>
    %226 = vector.shape_cast %225 : vector<1x1x256xf32> to vector<1x256xf32>
    %227 = vector.broadcast %226 : vector<1x256xf32> to vector<8x256xf32>
    %228 = arith.mulf %224, %227 : vector<8x256xf32>
    %c8_147 = arith.constant 8 : index
    %c0_148 = arith.constant 0 : index
    %c0_149 = arith.constant 0 : index
    %229 = vector.load %arg6[%c8_147, %c0_148, %c0_149] : memref<9x8x8xf32, #tpu.memory_space<vmem>>, vector<1x8x8xf32>
    %230 = vector.shape_cast %229 : vector<1x8x8xf32> to vector<8x8xf32>
    %cst_150 = arith.constant dense<0.000000e+00> : vector<8x256xf32>
    %231 = tpu.matmul %230, %228, %cst_150 {dimension_numbers = #tpu.dot_dimension_numbers<[1], [0], [0], [1], [0, 0, 1, 1], [], []>, precision = #tpu.contract_precision<fp32>} : vector<8x8xf32>, vector<8x256xf32>, vector<8x256xf32> -> vector<8x256xf32>
    %232 = arith.addf %223, %231 : vector<8x256xf32>
    %c0_151 = arith.constant 0 : index
    %c0_152 = arith.constant 0 : index
    %233 = vector.load %arg7[%c0_151, %c0_152] : memref<8x1xf32, #tpu.memory_space<vmem>>, vector<8x1xf32>
    %c0_153 = arith.constant 0 : index
    %c0_154 = arith.constant 0 : index
    %234 = vector.load %arg8[%c0_153, %c0_154] : memref<8x1xf32, #tpu.memory_space<vmem>>, vector<8x1xf32>
    %cst_155 = arith.constant dense<0.000000e+00> : vector<8xf32>
    %235 = vector.multi_reduction <add>, %232, %cst_155 [1] : vector<8x256xf32> to vector<8xf32>
    %236 = vector.shape_cast %235 : vector<8xf32> to vector<8x1xf32>
    %cst_156 = arith.constant dense<0.000000e+00> : vector<1xf32>
    %237 = vector.multi_reduction <add>, %236, %cst_156 [0] : vector<8x1xf32> to vector<1xf32>
    %238 = vector.shape_cast %237 : vector<1xf32> to vector<1x1xf32>
    %cst_157 = arith.constant 4.8828125E-4 : f32
    %239 = vector.broadcast %cst_157 : f32 to vector<1x1xf32>
    %240 = arith.mulf %238, %239 : vector<1x1xf32>
    %241 = vector.broadcast %240 : vector<1x1xf32> to vector<8x256xf32>
    %242 = arith.subf %232, %241 : vector<8x256xf32>
    %243 = arith.mulf %242, %242 : vector<8x256xf32>
    %cst_158 = arith.constant dense<0.000000e+00> : vector<8xf32>
    %244 = vector.multi_reduction <add>, %243, %cst_158 [1] : vector<8x256xf32> to vector<8xf32>
    %245 = vector.shape_cast %244 : vector<8xf32> to vector<8x1xf32>
    %cst_159 = arith.constant dense<0.000000e+00> : vector<1xf32>
    %246 = vector.multi_reduction <add>, %245, %cst_159 [0] : vector<8x1xf32> to vector<1xf32>
    %247 = vector.shape_cast %246 : vector<1xf32> to vector<1x1xf32>
    %cst_160 = arith.constant 0.000000e+00 : f32
    %248 = vector.broadcast %cst_160 : f32 to vector<1x1xf32>
    %249 = arith.mulf %248, %240 : vector<1x1xf32>
    %250 = arith.mulf %249, %240 : vector<1x1xf32>
    %251 = arith.subf %247, %250 : vector<1x1xf32>
    %cst_161 = arith.constant 4.8828125E-4 : f32
    %252 = vector.broadcast %cst_161 : f32 to vector<1x1xf32>
    %253 = arith.mulf %251, %252 : vector<1x1xf32>
    %cst_162 = arith.constant 9.99999974E-6 : f32
    %254 = vector.broadcast %cst_162 : f32 to vector<1x1xf32>
    %255 = arith.addf %253, %254 : vector<1x1xf32>
    %256 = math.rsqrt %255 : vector<1x1xf32>
    %cst_163 = arith.constant 5.000000e-01 : f32
    %257 = vector.broadcast %cst_163 : f32 to vector<1x1xf32>
    %258 = arith.mulf %257, %255 : vector<1x1xf32>
    %259 = arith.mulf %258, %256 : vector<1x1xf32>
    %260 = arith.mulf %259, %256 : vector<1x1xf32>
    %cst_164 = arith.constant 1.500000e+00 : f32
    %261 = vector.broadcast %cst_164 : f32 to vector<1x1xf32>
    %262 = arith.subf %261, %260 : vector<1x1xf32>
    %263 = arith.mulf %256, %262 : vector<1x1xf32>
    %264 = vector.broadcast %263 : vector<1x1xf32> to vector<8x1xf32>
    %265 = arith.mulf %233, %264 : vector<8x1xf32>
    %266 = vector.broadcast %265 : vector<8x1xf32> to vector<8x256xf32>
    %267 = arith.mulf %242, %266 : vector<8x256xf32>
    %268 = vector.broadcast %234 : vector<8x1xf32> to vector<8x256xf32>
    %269 = arith.addf %267, %268 : vector<8x256xf32>
    %c0_165 = arith.constant 0 : index
    %c0_166 = arith.constant 0 : index
    %c0_167 = arith.constant 0 : index
    %270 = vector.load %arg9[%c0_165, %c0_166, %c0_167] : memref<1x8x256xf32, #tpu.memory_space<vmem>>, vector<1x8x256xf32>
    %271 = vector.shape_cast %270 : vector<1x8x256xf32> to vector<8x256xf32>
    %272 = vector.shape_cast %269 : vector<8x256xf32> to vector<1x8x256xf32>
    tpu.vector_store %arg9[%c0_165, %c0_166, %c0_167], %272 {strides = array<i32>} : memref<1x8x256xf32, #tpu.memory_space<vmem>>, vector<1x8x256xf32>,
    return
  }
  func.func @transform_0(%arg0: i32) -> (i32, i32, i32) {
    %c0_i32 = arith.constant 0 : i32
    %c0_i32_0 = arith.constant 0 : i32
    %c0_i32_1 = arith.constant 0 : i32
    %c0_i32_2 = arith.constant 0 : i32
    return %c0_i32, %c0_i32_0, %c0_i32_1 : i32, i32, i32
  }
  func.func @transform_1(%arg0: i32) -> (i32, i32, i32) {
    %c0_i32 = arith.constant 0 : i32
    %c0_i32_0 = arith.constant 0 : i32
    %c0_i32_1 = arith.constant 0 : i32
    return %arg0, %c0_i32, %c0_i32_0 : i32, i32, i32
  }
  func.func @transform_2(%arg0: i32) -> (i32, i32, i32) {
    %c0_i32 = arith.constant 0 : i32
    %c0_i32_0 = arith.constant 0 : i32
    %c0_i32_1 = arith.constant 0 : i32
    %c0_i32_2 = arith.constant 0 : i32
    return %c0_i32, %c0_i32_0, %c0_i32_1 : i32, i32, i32
  }
  func.func @transform_3(%arg0: i32) -> (i32, i32) {
    %c0_i32 = arith.constant 0 : i32
    %c0_i32_0 = arith.constant 0 : i32
    %c0_i32_1 = arith.constant 0 : i32
    return %c0_i32, %c0_i32_0 : i32, i32
  }
  func.func @transform_4(%arg0: i32) -> (i32, i32) {
    %c0_i32 = arith.constant 0 : i32
    %c0_i32_0 = arith.constant 0 : i32
    %c0_i32_1 = arith.constant 0 : i32
    return %c0_i32, %c0_i32_0 : i32, i32
  }
  func.func @transform_5(%arg0: i32) -> (i32, i32, i32) {
    %c0_i32 = arith.constant 0 : i32
    %c0_i32_0 = arith.constant 0 : i32
    %c0_i32_1 = arith.constant 0 : i32
    %c0_i32_2 = arith.constant 0 : i32
    return %c0_i32, %c0_i32_0, %c0_i32_1 : i32, i32, i32
  }
  func.func @transform_6(%arg0: i32) -> (i32, i32) {
    %c0_i32 = arith.constant 0 : i32
    %c0_i32_0 = arith.constant 0 : i32
    %c0_i32_1 = arith.constant 0 : i32
    return %c0_i32, %c0_i32_0 : i32, i32
  }
  func.func @transform_7(%arg0: i32) -> (i32, i32) {
    %c0_i32 = arith.constant 0 : i32
    %c0_i32_0 = arith.constant 0 : i32
    %c0_i32_1 = arith.constant 0 : i32
    return %c0_i32, %c0_i32_0 : i32, i32
  }
  func.func @transform_8(%arg0: i32) -> (i32, i32, i32) {
    %c0_i32 = arith.constant 0 : i32
    %c0_i32_0 = arith.constant 0 : i32
    %c0_i32_1 = arith.constant 0 : i32
    return %arg0, %c0_i32, %c0_i32_0 : i32, i32, i32
  }
}

</mosaic_0001>

<llo_original>
// kernel: tpu_custom_call.1
$region0: #{tpu_custom_call.1}
  #allocation0 [shape = 'u32[]', space=smem, size = 0x4, offset = 0x4, fixed_abs, tag = 'smem constant byte address 0x4 - core index']
  #allocation1 [shape = 'u32[144,128]{1,0:T(1,128)}', space=vmem, size = 0x12000, scoped, tag = 'internal scratch']
  %s0 = inlined_call_operand.vmem [shape: f32[9,1,256], index: 0, kind: input, shape index: {}]
  %s1 = inlined_call_operand.vmem [shape: f32[2,8,256], index: 1, kind: input, shape index: {}]
  %s2 = inlined_call_operand.vmem [shape: f32[9,8,8], index: 2, kind: input, shape index: {}]
  %s3 = inlined_call_operand.vmem [shape: f32[8,1], index: 3, kind: input, shape index: {}]
  %s4 = inlined_call_operand.vmem [shape: f32[8,1], index: 4, kind: input, shape index: {}]
  %s5 = inlined_call_operand.vmem [shape: f32[9,8,8], index: 5, kind: input, shape index: {}]
  %s6 = inlined_call_operand.vmem [shape: f32[8,1], index: 6, kind: input, shape index: {}]
  %s7 = inlined_call_operand.vmem [shape: f32[8,1], index: 7, kind: input, shape index: {}]
  %s8 = inlined_call_operand.hbm [shape: f32[2,8,256], index: 8, kind: output, shape index: {}]
  %s9 = sld [smem:[#allocation0]]
  $region65: #{tpu_custom_call.1} parent=0
    _
  %s11 = ssub.s32 1, %s9
  %s12 = scalar_select 0, %s11, %s9
  $region1: #{tpu_custom_call.1} parent=0
    #allocation2 [shape = 'u8[16384]{0}', space=vmem, size = 0x4000, scoped, tag = 'output window, operand 0']
    #allocation3 [shape = 's32[2]{0}', space=sflag, size = 0x8, scoped, tag = 'scoped memory for tpu_custom_call.1']
    %13 = vsyncpa [#allocation3], 0
    %s14 = scalar_lea.sflag [#allocation3], 1
    %15 = vsyncpa %s14, 0
    loop: start=0, step=1, limit=4
    $region2: #{tpu_custom_call.1} parent=1 // loop_pre_header
      _
    $region3: #{tpu_custom_call.1} parent=1 // loop_header
      %s17 = sphi 0, %s21
      %p18 = scmp.ge.s32.totalorder %s17, 4
      %s25 = sphi 0, %s25
      %s27 = sphi 0, %s25
      %s28 = sphi 0, %s27
      %s42 = sphi 0, %s28
      %s48 = sphi 0, %s50
      %s51 = sphi 0, %s48
      %s52 = sphi 0, %s51
      %s68 = sphi 0, %s52
      %s72 = sphi 0, %s72
      %s74 = sphi 0, %s72
      %s75 = sphi 0, %s74
      %s89 = sphi 0, %s75
      %s93 = sphi 0, %s93
      %s95 = sphi 0, %s93
      %s96 = sphi 0, %s95
      %s110 = sphi 0, %s96
      %s114 = sphi 0, %s114
      %s116 = sphi 0, %s114
      %s117 = sphi 0, %s116
      %s131 = sphi 0, %s117
      %s135 = sphi 0, %s135
      %s137 = sphi 0, %s135
      %s138 = sphi 0, %s137
      %s152 = sphi 0, %s138
      %s156 = sphi 0, %s156
      %s158 = sphi 0, %s156
      %s159 = sphi 0, %s158
      %s173 = sphi 0, %s159
      %s177 = sphi 0, %s177
      %s179 = sphi 0, %s177
      %s180 = sphi 0, %s179
      %s194 = sphi 0, %s180
      %s200 = sphi 0, %s202
      %s203 = sphi 0, %s200
      %s204 = sphi 0, %s203
      %s220 = sphi 0, %s204
    $region4: #{tpu_custom_call.1} parent=1 // loop_header_branch
      %20 = sbr.rel (%p18) target = $region8
    $region5: #{tpu_custom_call.1} parent=1 // loop_body
      %s22 = ssub.s32 %s17, 1
      %s23 = ssub.s32 %s17, 2
      %s24 = sadd.s32 %s17, 1
      %s26 = sadd.s32 %s25, 1
      %p29 = scmp.eq.s32.totalorder %s17, 1
      %p30 = scmp.ne.s32.totalorder %s25, %s27
      %p31 = scmp.eq.s32.totalorder %s17, 0
      %p32 = por %p30, %p31
      %p33 = scmp.ne.s32.totalorder %s25, %s27
      %p34 = scmp.eq.s32.totalorder %s22, 1
      %p35 = por %p33, %p34
      %p36 = scmp.ne.s32.totalorder %s27, %s28
      %p37 = scmp.eq.s32.totalorder %s22, 0
      %p38 = por %p36, %p37
      %p39 = scmp.ne.s32.totalorder %s27, %s28
      %p40 = scmp.eq.s32.totalorder %s23, 1
      %p41 = por %p39, %p40
      %p43 = scmp.ne.s32.totalorder %s28, %s42
      %p44 = scmp.eq.s32.totalorder %s23, 0
      %p45 = por %p43, %p44
      %s46 = ssub.s32 %s17, %s24
      %p47 = scmp.eq.s32.totalorder %s46, 0
      %s49 = sadd.s32 %s48, 1
      %s50 = scalar_select %p47, %s48, %s49
      %p53 = pneg %p47
      %p54 = scmp.eq.s32.totalorder %s17, 1
      %p55 = por %p53, %p54
      %p56 = scmp.ne.s32.totalorder %s48, %s51
      %p57 = scmp.eq.s32.totalorder %s17, 0
      %p58 = por %p56, %p57
      %p59 = scmp.ne.s32.totalorder %s48, %s51
      %p60 = scmp.eq.s32.totalorder %s22, 1
      %p61 = por %p59, %p60
      %p62 = scmp.ne.s32.totalorder %s51, %s52
      %p63 = scmp.eq.s32.totalorder %s22, 0
      %p64 = por %p62, %p63
      %p65 = scmp.ne.s32.totalorder %s51, %s52
      %p66 = scmp.eq.s32.totalorder %s23, 1
      %p67 = por %p65, %p66
      %p69 = scmp.ne.s32.totalorder %s52, %s68
      %p70 = scmp.eq.s32.totalorder %s23, 0
      %p71 = por %p69, %p70
      %s73 = sadd.s32 %s72, 1
      %p76 = scmp.eq.s32.totalorder %s17, 1
      %p77 = scmp.ne.s32.totalorder %s72, %s74
      %p78 = scmp.eq.s32.totalorder %s17, 0
      %p79 = por %p77, %p78
      %p80 = scmp.ne.s32.totalorder %s72, %s74
      %p81 = scmp.eq.s32.totalorder %s22, 1
      %p82 = por %p80, %p81
      %p83 = scmp.ne.s32.totalorder %s74, %s75
      %p84 = scmp.eq.s32.totalorder %s22, 0
      %p85 = por %p83, %p84
      %p86 = scmp.ne.s32.totalorder %s74, %s75
      %p87 = scmp.eq.s32.totalorder %s23, 1
      %p88 = por %p86, %p87
      %p90 = scmp.ne.s32.totalorder %s75, %s89
      %p91 = scmp.eq.s32.totalorder %s23, 0
      %p92 = por %p90, %p91
      %s94 = sadd.s32 %s93, 1
      %p97 = scmp.eq.s32.totalorder %s17, 1
      %p98 = scmp.ne.s32.totalorder %s93, %s95
      %p99 = scmp.eq.s32.totalorder %s17, 0
      %p100 = por %p98, %p99
      %p101 = scmp.ne.s32.totalorder %s93, %s95
      %p102 = scmp.eq.s32.totalorder %s22, 1
      %p103 = por %p101, %p102
      %p104 = scmp.ne.s32.totalorder %s95, %s96
      %p105 = scmp.eq.s32.totalorder %s22, 0
      %p106 = por %p104, %p105
      %p107 = scmp.ne.s32.totalorder %s95, %s96
      %p108 = scmp.eq.s32.totalorder %s23, 1
      %p109 = por %p107, %p108
      %p111 = scmp.ne.s32.totalorder %s96, %s110
      %p112 = scmp.eq.s32.totalorder %s23, 0
      %p113 = por %p111, %p112
      %s115 = sadd.s32 %s114, 1
      %p118 = scmp.eq.s32.totalorder %s17, 1
      %p119 = scmp.ne.s32.totalorder %s114, %s116
      %p120 = scmp.eq.s32.totalorder %s17, 0
      %p121 = por %p119, %p120
      %p122 = scmp.ne.s32.totalorder %s114, %s116
      %p123 = scmp.eq.s32.totalorder %s22, 1
      %p124 = por %p122, %p123
      %p125 = scmp.ne.s32.totalorder %s116, %s117
      %p126 = scmp.eq.s32.totalorder %s22, 0
      %p127 = por %p125, %p126
      %p128 = scmp.ne.s32.totalorder %s116, %s117
      %p129 = scmp.eq.s32.totalorder %s23, 1
      %p130 = por %p128, %p129
      %p132 = scmp.ne.s32.totalorder %s117, %s131
      %p133 = scmp.eq.s32.totalorder %s23, 0
      %p134 = por %p132, %p133
      %s136 = sadd.s32 %s135, 1
      %p139 = scmp.eq.s32.totalorder %s17, 1
      %p140 = scmp.ne.s32.totalorder %s135, %s137
      %p141 = scmp.eq.s32.totalorder %s17, 0
      %p142 = por %p140, %p141
      %p143 = scmp.ne.s32.totalorder %s135, %s137
      %p144 = scmp.eq.s32.totalorder %s22, 1
      %p145 = por %p143, %p144
      %p146 = scmp.ne.s32.totalorder %s137, %s138
      %p147 = scmp.eq.s32.totalorder %s22, 0
      %p148 = por %p146, %p147
      %p149 = scmp.ne.s32.totalorder %s137, %s138
      %p150 = scmp.eq.s32.totalorder %s23, 1
      %p151 = por %p149, %p150
      %p153 = scmp.ne.s32.totalorder %s138, %s152
      %p154 = scmp.eq.s32.totalorder %s23, 0
      %p155 = por %p153, %p154
      %s157 = sadd.s32 %s156, 1
      %p160 = scmp.eq.s32.totalorder %s17, 1
      %p161 = scmp.ne.s32.totalorder %s156, %s158
      %p162 = scmp.eq.s32.totalorder %s17, 0
      %p163 = por %p161, %p162
      %p164 = scmp.ne.s32.totalorder %s156, %s158
      %p165 = scmp.eq.s32.totalorder %s22, 1
      %p166 = por %p164, %p165
      %p167 = scmp.ne.s32.totalorder %s158, %s159
      %p168 = scmp.eq.s32.totalorder %s22, 0
      %p169 = por %p167, %p168
      %p170 = scmp.ne.s32.totalorder %s158, %s159
      %p171 = scmp.eq.s32.totalorder %s23, 1
      %p172 = por %p170, %p171
      %p174 = scmp.ne.s32.totalorder %s159, %s173
      %p175 = scmp.eq.s32.totalorder %s23, 0
      %p176 = por %p174, %p175
      %s178 = sadd.s32 %s177, 1
      %p181 = scmp.eq.s32.totalorder %s17, 1
      %p182 = scmp.ne.s32.totalorder %s177, %s179
      %p183 = scmp.eq.s32.totalorder %s17, 0
      %p184 = por %p182, %p183
      %p185 = scmp.ne.s32.totalorder %s177, %s179
      %p186 = scmp.eq.s32.totalorder %s22, 1
      %p187 = por %p185, %p186
      %p188 = scmp.ne.s32.totalorder %s179, %s180
      %p189 = scmp.eq.s32.totalorder %s22, 0
      %p190 = por %p188, %p189
      %p191 = scmp.ne.s32.totalorder %s179, %s180
      %p192 = scmp.eq.s32.totalorder %s23, 1
      %p193 = por %p191, %p192
      %p195 = scmp.ne.s32.totalorder %s180, %s194
      %p196 = scmp.eq.s32.totalorder %s23, 0
      %p197 = por %p195, %p196
      %s198 = ssub.s32 %s17, %s24
      %p199 = scmp.eq.s32.totalorder %s198, 0
      %s201 = sadd.s32 %s200, 1
      %s202 = scalar_select %p199, %s200, %s201
      %p205 = pneg %p199
      %p206 = scmp.eq.s32.totalorder %s17, 1
      %p207 = por %p205, %p206
      %p208 = scmp.ne.s32.totalorder %s200, %s203
      %p209 = scmp.eq.s32.totalorder %s17, 0
      %p210 = por %p208, %p209
      %p211 = scmp.ne.s32.totalorder %s200, %s203
      %p212 = scmp.eq.s32.totalorder %s22, 1
      %p213 = por %p211, %p212
      %p214 = scmp.ne.s32.totalorder %s203, %s204
      %p215 = scmp.eq.s32.totalorder %s22, 0
      %p216 = por %p214, %p215
      %p217 = scmp.ne.s32.totalorder %s203, %s204
      %p218 = scmp.eq.s32.totalorder %s23, 1
      %p219 = por %p217, %p218
      %p221 = scmp.ne.s32.totalorder %s204, %s220
      %p222 = scmp.eq.s32.totalorder %s23, 0
      %p223 = por %p221, %p222
      %p224 = scmp.le.s32.totalorder 1, %s17
      %p225 = scmp.lt.s32.totalorder %s17, 3
      %p226 = pnand %p224, %p225
      %p227 = pneg %p226
      // Predicated region
      $region9: #{tpu_custom_call.1} parent=5 // pred_check
        _
      $region10: #{tpu_custom_call.1} parent=5 // pred_check_branch
        %229 = sbr.rel (%p226) target = $region12
      $region11: #{tpu_custom_call.1} parent=5 // pred_region
        %s230 = ssub.s32 %s17, 1
        // Predicated region
        $region13: #{tpu_custom_call.1} parent=11 // pred_check
          %p231 = pneg %p38
        $region14: #{tpu_custom_call.1} parent=11 // pred_check_branch
          %233 = sbr.rel (%p231) target = $region16
        $region15: #{tpu_custom_call.1} parent=11 // pred_region
          _
        $region16: #{tpu_custom_call.1} parent=11 // pred_fallthru
          _
        // Predicated region
        $region17: #{tpu_custom_call.1} parent=11 // pred_check
          %p234 = pneg %p85
        $region18: #{tpu_custom_call.1} parent=11 // pred_check_branch
          %236 = sbr.rel (%p234) target = $region20
        $region19: #{tpu_custom_call.1} parent=11 // pred_region
          _
        $region20: #{tpu_custom_call.1} parent=11 // pred_fallthru
          _
        // Predicated region
        $region21: #{tpu_custom_call.1} parent=11 // pred_check
          %p237 = pneg %p106
        $region22: #{tpu_custom_call.1} parent=11 // pred_check_branch
          %239 = sbr.rel (%p237) target = $region24
        $region23: #{tpu_custom_call.1} parent=11 // pred_region
          _
        $region24: #{tpu_custom_call.1} parent=11 // pred_fallthru
          _
        // Predicated region
        $region25: #{tpu_custom_call.1} parent=11 // pred_check
          %p240 = pneg %p127
        $region26: #{tpu_custom_call.1} parent=11 // pred_check_branch
          %242 = sbr.rel (%p240) target = $region28
        $region27: #{tpu_custom_call.1} parent=11 // pred_region
          _
        $region28: #{tpu_custom_call.1} parent=11 // pred_fallthru
          _
        // Predicated region
        $region29: #{tpu_custom_call.1} parent=11 // pred_check
          %p243 = pneg %p148
        $region30: #{tpu_custom_call.1} parent=11 // pred_check_branch
          %245 = sbr.rel (%p243) target = $region32
        $region31: #{tpu_custom_call.1} parent=11 // pred_region
          _
        $region32: #{tpu_custom_call.1} parent=11 // pred_fallthru
          _
        // Predicated region
        $region33: #{tpu_custom_call.1} parent=11 // pred_check
          %p246 = pneg %p169
        $region34: #{tpu_custom_call.1} parent=11 // pred_check_branch
          %248 = sbr.rel (%p246) target = $region36
        $region35: #{tpu_custom_call.1} parent=11 // pred_region
          _
        $region36: #{tpu_custom_call.1} parent=11 // pred_fallthru
          _
        // Predicated region
        $region37: #{tpu_custom_call.1} parent=11 // pred_check
          %p249 = pneg %p190
        $region38: #{tpu_custom_call.1} parent=11 // pred_check_branch
          %251 = sbr.rel (%p249) target = $region40
        $region39: #{tpu_custom_call.1} parent=11 // pred_region
          _
        $region40: #{tpu_custom_call.1} parent=11 // pred_fallthru
          _
      $region12: #{tpu_custom_call.1} parent=5 // pred_fallthru
        _
      %p252 = scmp.lt.s32.totalorder %s17, 2
      // Predicated region
      $region41: #{tpu_custom_call.1} parent=5 // pred_check
        %p253 = pneg %p252
      $region42: #{tpu_custom_call.1} parent=5 // pred_check_branch
        %255 = sbr.rel (%p253) target = $region44
      $region43: #{tpu_custom_call.1} parent=5 // pred_region
        // Predicated region
        $region45: #{tpu_custom_call.1} parent=43 // pred_check
          %p256 = pneg %p58
        $region46: #{tpu_custom_call.1} parent=43 // pred_check_branch
          %258 = sbr.rel (%p256) target = $region48
        $region47: #{tpu_custom_call.1} parent=43 // pred_region
          %p259 = scmp.lt.s32.totalorder %s17, 1
          %s260 = scalar_select %p259, %s17, 1
          %s261 = smul.addr %s260, 2
          %s262 = smul.addr %s261, 8
          %s263 = scalar_lea.vmem %s1, %s262
        $region48: #{tpu_custom_call.1} parent=43 // pred_fallthru
          _
      $region44: #{tpu_custom_call.1} parent=5 // pred_fallthru
        _
      %p264 = scmp.le.s32.totalorder 1, %s17
      %p265 = scmp.lt.s32.totalorder %s17, 3
      %p266 = pnand %p264, %p265
      %p267 = pneg %p266
      // Predicated region
      $region49: #{tpu_custom_call.1} parent=5 // pred_check
        _
      $region50: #{tpu_custom_call.1} parent=5 // pred_check_branch
        %269 = sbr.rel (%p266) target = $region52
      $region51: #{tpu_custom_call.1} parent=5 // pred_region
        %s270 = ssub.s32 %s17, 1
        %p271 = pneg %p38
        %p272 = pneg %p35
        %p273 = scmp.lt.s32.totalorder %s22, 1
        %s274 = scalar_select %p273, %s22, 1
        %s275 = smul.addr %s274, 2
        %s276 = smul.addr %s275, 8
        %s277 = scalar_lea.vmem %s1, %s276
        %p278 = pneg %p64
        %p279 = pneg %p61
        %p280 = pneg %p85
        %p281 = pneg %p82
        %p282 = pneg %p106
        %p283 = pneg %p103
        %p284 = pneg %p127
        %p285 = pneg %p124
        %p286 = pneg %p148
        %p287 = pneg %p145
        %p288 = pneg %p169
        %p289 = pneg %p166
        %p290 = pneg %p190
        %p291 = pneg %p187
        %p292 = pneg %p216
        %p293 = pneg %p213
        %s294 = sand.u32 %s203, 1
        %s295 = scalar_lea.sflag [#allocation3], %s294
        %s296 = sand.u32 %s203, 1
        %s297 = smul.addr %s296, 16
        %s298 = scalar_lea.vmem [#allocation2], %s297
        %p299 = scmp.lt.s32.totalorder %s22, 1
        %s300 = scalar_select %p299, %s22, 1
        %s301 = smul.addr %s300, 2
        %s302 = smul.addr %s301, 8
        %s303 = scalar_lea.vmem %s1, %s302
        %v304 = vld [vmem:[%s303] sm:$0xff]
        %v305 = vld [vmem:[%s303 + $0x8] sm:$0xff]
        %306 = vrot.lane.b32.xlu0 %v304, 17
        %v307 = vpop.permute.xlu0 %306
        %308 = vrot.lane.b32.xlu0 %v305, 17
        %v309 = vpop.permute.xlu0 %308
        %v310 = vlaneseq
        %v311 = vand.u32 %v310, 127
        %vm312 = vcmp.lt.s32.totalorder %v311, 17
        %v313 = vsel %vm312, %v307, %v309
        %v314 = vsel %vm312, %v309, %v307
        %v315 = vld [vmem:[%s0] sm:$0x3]
        %v317 = vlaneseq
        %v318 = vshrl.u32 %v317, 7
        %v319 = vsub.s32 0, %v318
        %v320 = vrot.slane %v315, %v319
        %v321 = vlaneseq
        %v322 = vshrl.u32 %v321, 7
        %v323 = vsub.s32 1, %v322
        %v324 = vrot.slane %v315, %v323
        %v327 = vmul.f32 %v314, %v320
        %v328 = vmul.f32 %v313, %v324
        %v329 = vld [vmem:[%s2] sm:$0xff]
        %330 = vrot.lane.b32.xlu0 %v304, 16
        %v331 = vpop.permute.xlu0 %330
        %332 = vrot.lane.b32.xlu0 %v305, 16
        %v333 = vpop.permute.xlu0 %332
        %vm334 = vcmp.lt.s32.totalorder %v311, 16
        %v335 = vsel %vm334, %v331, %v333
        %v336 = vsel %vm334, %v333, %v331
        %s337 = scalar_lea.vmem %s0, 2
        %v338 = vld [vmem:[%s337] sm:$0x3]
        %v340 = vlaneseq
        %v341 = vshrl.u32 %v340, 7
        %v342 = vsub.s32 0, %v341
        %v343 = vrot.slane %v338, %v342
        %v344 = vlaneseq
        %v345 = vshrl.u32 %v344, 7
        %v346 = vsub.s32 1, %v345
        %v347 = vrot.slane %v338, %v346
        %v350 = vmul.f32 %v336, %v343
        %v351 = vmul.f32 %v335, %v347
        %s352 = scalar_lea.vmem %s2, 8
        %v353 = vld [vmem:[%s352] sm:$0xff]
        %vm354 = vcmask 64512
        %v356 = vsel %vm354, %v353, 0
        %v358 = vand.u32 %v351, 4294901760
        %359 = vmatprep.subr.mxu0 %v358
        %v360 = vand.u32 %v350, 4294901760
        %361 = vmatpush1.msra.mxu0 %v360
        %362 = vmatprep.subr.mxu0 0.0
        %363 = vmatpush1.msra.mxu0 0.0
        %364 = vmatprep.subr.mxu0 0.0
        %365 = vmatpush1.msra.mxu0 0.0
        %366 = vmatprep.subr.mxu0 0.0
        %367 = vmatpush1.msra.mxu0 0.0
        %368 = vmatprep.subr.mxu0 0.0
        %369 = vmatpush1.msra.mxu0 0.0
        %370 = vmatprep.subr.mxu0 0.0
        %371 = vmatpush1.msra.mxu0 0.0
        %372 = vmatprep.subr.mxu0 0.0
        %373 = vmatpush1.msra.mxu0 0.0
        %374 = vmatprep.subr.mxu0 0.0
        %375 = vmatpush1.msra.mxu0 0.0
        %376 = vmatprep.subr.mxu0 0.0
        %377 = vmatpush1.msra.mxu0 0.0
        %378 = vmatprep.subr.mxu0 0.0
        %379 = vmatpush1.msra.mxu0 0.0
        %380 = vmatprep.subr.mxu0 0.0
        %381 = vmatpush1.msra.mxu0 0.0
        %382 = vmatprep.subr.mxu0 0.0
        %383 = vmatpush1.msra.mxu0 0.0
        %384 = vmatprep.subr.mxu0 0.0
        %385 = vmatpush1.msra.mxu0 0.0
        %386 = vmatprep.subr.mxu0 0.0
        %387 = vmatpush1.msra.mxu0 0.0
        %388 = vmatprep.subr.mxu0 0.0
        %389 = vmatpush1.msra.mxu0 0.0
        %390 = vmatprep.subr.mxu0 0.0
        %391 = vmatpush1.msra.mxu0 0.0
        %392 = vmatprep.subr.mxu0 0.0
        %393 = vmatpush1.msra.mxu0 0.0
        %394 = vmatprep.subr.mxu0 0.0
        %395 = vmatpush1.msra.mxu0 0.0
        %396 = vmatprep.subr.mxu0 0.0
        %397 = vmatpush1.msra.mxu0 0.0
        %398 = vmatprep.subr.mxu0 0.0
        %399 = vmatpush1.msra.mxu0 0.0
        %400 = vmatprep.subr.mxu0 0.0
        %401 = vmatpush1.msra.mxu0 0.0
        %402 = vmatprep.subr.mxu0 0.0
        %403 = vmatpush1.msra.mxu0 0.0
        %404 = vmatprep.subr.mxu0 0.0
        %405 = vmatpush1.msra.mxu0 0.0
        %406 = vmatprep.subr.mxu0 0.0
        %407 = vmatpush1.msra.mxu0 0.0
        %408 = vmatprep.subr.mxu0 0.0
        %409 = vmatpush1.msra.mxu0 0.0
        %410 = vmatprep.subr.mxu0 0.0
        %411 = vmatpush1.msra.mxu0 0.0
        %412 = vmatprep.subr.mxu0 0.0
        %413 = vmatpush1.msra.mxu0 0.0
        %414 = vmatprep.subr.mxu0 0.0
        %415 = vmatpush1.msra.mxu0 0.0
        %416 = vmatprep.subr.mxu0 0.0
        %417 = vmatpush1.msra.mxu0 0.0
        %418 = vmatprep.subr.mxu0 0.0
        %419 = vmatpush1.msra.mxu0 0.0
        %420 = vmatprep.subr.mxu0 0.0
        %421 = vmatpush1.msra.mxu0 0.0
        %422 = vmatprep.subr.mxu0 0.0
        %423 = vmatpush1.msra.mxu0 0.0
        %424 = vmatprep.mubr.f32.mxu0 0.0
        %v425 = vand.u32 %v356, 4294901760
        %v426 = vsub.f32 %v356, %v425
        %v427 = vand.u32 %v426, 4294901760
        %v428 = vsub.f32 %v426, %v427
        %v429 = vand.u32 %v428, 4294901760
        %430 = vmatmul.mubr.f32.gmra.mrb[0].mxu0 %v429
        %v431 = vpop.f32.mrb[0].mxu0
        %v432 = vadd.f32 0.0, %v431
        %v433 = vpop.f32.mrb[0].mxu0
        %v434 = vadd.f32 0.0, %v433
        %435 = vdwg.mxu0
        %v436 = vand.u32 %v351, 4294901760
        %v437 = vsub.f32 %v351, %v436
        %v438 = vand.u32 %v437, 4294901760
        %v439 = vsub.f32 %v437, %v438
        %v440 = vand.u32 %v439, 4294901760
        %441 = vmatprep.subr.mxu0 %v440
        %v442 = vand.u32 %v350, 4294901760
        %v443 = vsub.f32 %v350, %v442
        %v444 = vand.u32 %v443, 4294901760
        %v445 = vsub.f32 %v443, %v444
        %v446 = vand.u32 %v445, 4294901760
        %447 = vmatpush1.msra.mxu0 %v446
        %448 = vmatprep.subr.mxu0 0.0
        %449 = vmatpush1.msra.mxu0 0.0
        %450 = vmatprep.subr.mxu0 0.0
        %451 = vmatpush1.msra.mxu0 0.0
        %452 = vmatprep.subr.mxu0 0.0
        %453 = vmatpush1.msra.mxu0 0.0
        %454 = vmatprep.subr.mxu0 0.0
        %455 = vmatpush1.msra.mxu0 0.0
        %456 = vmatprep.subr.mxu0 0.0
        %457 = vmatpush1.msra.mxu0 0.0
        %458 = vmatprep.subr.mxu0 0.0
        %459 = vmatpush1.msra.mxu0 0.0
        %460 = vmatprep.subr.mxu0 0.0
        %461 = vmatpush1.msra.mxu0 0.0
        %462 = vmatprep.subr.mxu0 0.0
        %463 = vmatpush1.msra.mxu0 0.0
        %464 = vmatprep.subr.mxu0 0.0
        %465 = vmatpush1.msra.mxu0 0.0
        %466 = vmatprep.subr.mxu0 0.0
        %467 = vmatpush1.msra.mxu0 0.0
        %468 = vmatprep.subr.mxu0 0.0
        %469 = vmatpush1.msra.mxu0 0.0
        %470 = vmatprep.subr.mxu0 0.0
        %471 = vmatpush1.msra.mxu0 0.0
        %472 = vmatprep.subr.mxu0 0.0
        %473 = vmatpush1.msra.mxu0 0.0
        %474 = vmatprep.subr.mxu0 0.0
        %475 = vmatpush1.msra.mxu0 0.0
        %476 = vmatprep.subr.mxu0 0.0
        %477 = vmatpush1.msra.mxu0 0.0
        %478 = vmatprep.subr.mxu0 0.0
        %479 = vmatpush1.msra.mxu0 0.0
        %480 = vmatprep.subr.mxu0 0.0
        %481 = vmatpush1.msra.mxu0 0.0
        %482 = vmatprep.subr.mxu0 0.0
        %483 = vmatpush1.msra.mxu0 0.0
        %484 = vmatprep.subr.mxu0 0.0
        %485 = vmatpush1.msra.mxu0 0.0
        %486 = vmatprep.subr.mxu0 0.0
        %487 = vmatpush1.msra.mxu0 0.0
        %488 = vmatprep.subr.mxu0 0.0
        %489 = vmatpush1.msra.mxu0 0.0
        %490 = vmatprep.subr.mxu0 0.0
        %491 = vmatpush1.msra.mxu0 0.0
        %492 = vmatprep.subr.mxu0 0.0
        %493 = vmatpush1.msra.mxu0 0.0
        %494 = vmatprep.subr.mxu0 0.0
        %495 = vmatpush1.msra.mxu0 0.0
        %496 = vmatprep.subr.mxu0 0.0
        %497 = vmatpush1.msra.mxu0 0.0
        %498 = vmatprep.subr.mxu0 0.0
        %499 = vmatpush1.msra.mxu0 0.0
        %500 = vmatprep.subr.mxu0 0.0
        %501 = vmatpush1.msra.mxu0 0.0
        %502 = vmatprep.subr.mxu0 0.0
        %503 = vmatpush1.msra.mxu0 0.0
        %504 = vmatprep.subr.mxu0 0.0
        %505 = vmatpush1.msra.mxu0 0.0
        %506 = vmatprep.subr.mxu0 0.0
        %507 = vmatpush1.msra.mxu0 0.0
        %508 = vmatprep.subr.mxu0 0.0
        %509 = vmatpush1.msra.mxu0 0.0
        %510 = vmatprep.mubr.f32.mxu0 0.0
        %v511 = vand.u32 %v356, 4294901760
        %512 = vmatmul.mubr.f32.gmra.mrb[0].mxu0 %v511
        %v513 = vpop.f32.mrb[0].mxu0
        %v514 = vadd.f32 %v432, %v513
        %v515 = vpop.f32.mrb[0].mxu0
        %v516 = vadd.f32 %v434, %v515
        %517 = vdwg.mxu0
        %v518 = vand.u32 %v351, 4294901760
        %v519 = vsub.f32 %v351, %v518
        %520 = vmatprep.subr.mxu0 %v519
        %v521 = vand.u32 %v350, 4294901760
        %v522 = vsub.f32 %v350, %v521
        %523 = vmatpush1.msra.mxu0 %v522
        %524 = vmatprep.subr.mxu0 0.0
        %525 = vmatpush1.msra.mxu0 0.0
        %526 = vmatprep.subr.mxu0 0.0
        %527 = vmatpush1.msra.mxu0 0.0
        %528 = vmatprep.subr.mxu0 0.0
        %529 = vmatpush1.msra.mxu0 0.0
        %530 = vmatprep.subr.mxu0 0.0
        %531 = vmatpush1.msra.mxu0 0.0
        %532 = vmatprep.subr.mxu0 0.0
        %533 = vmatpush1.msra.mxu0 0.0
        %534 = vmatprep.subr.mxu0 0.0
        %535 = vmatpush1.msra.mxu0 0.0
        %536 = vmatprep.subr.mxu0 0.0
        %537 = vmatpush1.msra.mxu0 0.0
        %538 = vmatprep.subr.mxu0 0.0
        %539 = vmatpush1.msra.mxu0 0.0
        %540 = vmatprep.subr.mxu0 0.0
        %541 = vmatpush1.msra.mxu0 0.0
        %542 = vmatprep.subr.mxu0 0.0
        %543 = vmatpush1.msra.mxu0 0.0
        %544 = vmatprep.subr.mxu0 0.0
        %545 = vmatpush1.msra.mxu0 0.0
        %546 = vmatprep.subr.mxu0 0.0
        %547 = vmatpush1.msra.mxu0 0.0
        %548 = vmatprep.subr.mxu0 0.0
        %549 = vmatpush1.msra.mxu0 0.0
        %550 = vmatprep.subr.mxu0 0.0
        %551 = vmatpush1.msra.mxu0 0.0
        %552 = vmatprep.subr.mxu0 0.0
        %553 = vmatpush1.msra.mxu0 0.0
        %554 = vmatprep.subr.mxu0 0.0
        %555 = vmatpush1.msra.mxu0 0.0
        %556 = vmatprep.subr.mxu0 0.0
        %557 = vmatpush1.msra.mxu0 0.0
        %558 = vmatprep.subr.mxu0 0.0
        %559 = vmatpush1.msra.mxu0 0.0
        %560 = vmatprep.subr.mxu0 0.0
        %561 = vmatpush1.msra.mxu0 0.0
        %562 = vmatprep.subr.mxu0 0.0
        %563 = vmatpush1.msra.mxu0 0.0
        %564 = vmatprep.subr.mxu0 0.0
        %565 = vmatpush1.msra.mxu0 0.0
        %566 = vmatprep.subr.mxu0 0.0
        %567 = vmatpush1.msra.mxu0 0.0
        %568 = vmatprep.subr.mxu0 0.0
        %569 = vmatpush1.msra.mxu0 0.0
        %570 = vmatprep.subr.mxu0 0.0
        %571 = vmatpush1.msra.mxu0 0.0
        %572 = vmatprep.subr.mxu0 0.0
        %573 = vmatpush1.msra.mxu0 0.0
        %574 = vmatprep.subr.mxu0 0.0
        %575 = vmatpush1.msra.mxu0 0.0
        %576 = vmatprep.subr.mxu0 0.0
        %577 = vmatpush1.msra.mxu0 0.0
        %578 = vmatprep.subr.mxu0 0.0
        %579 = vmatpush1.msra.mxu0 0.0
        %580 = vmatprep.subr.mxu0 0.0
        %581 = vmatpush1.msra.mxu0 0.0
        %582 = vmatprep.subr.mxu0 0.0
        %583 = vmatpush1.msra.mxu0 0.0
        %584 = vmatprep.subr.mxu0 0.0
        %585 = vmatpush1.msra.mxu0 0.0
        %586 = vmatprep.mubr.f32.mxu0 0.0
        %v587 = vand.u32 %v356, 4294901760
        %v588 = vsub.f32 %v356, %v587
        %589 = vmatmul.mubr.f32.gmra.mrb[0].mxu0 %v588
        %v590 = vpop.f32.mrb[0].mxu0
        %v591 = vadd.f32 %v514, %v590
        %v592 = vpop.f32.mrb[0].mxu0
        %v593 = vadd.f32 %v516, %v592
        %594 = vdwg.mxu0
        %v595 = vand.u32 %v351, 4294901760
        %596 = vmatprep.subr.mxu0 %v595
        %v597 = vand.u32 %v350, 4294901760
        %598 = vmatpush1.msra.mxu0 %v597
        %599 = vmatprep.subr.mxu0 0.0
        %600 = vmatpush1.msra.mxu0 0.0
        %601 = vmatprep.subr.mxu0 0.0
        %602 = vmatpush1.msra.mxu0 0.0
        %603 = vmatprep.subr.mxu0 0.0
        %604 = vmatpush1.msra.mxu0 0.0
        %605 = vmatprep.subr.mxu0 0.0
        %606 = vmatpush1.msra.mxu0 0.0
        %607 = vmatprep.subr.mxu0 0.0
        %608 = vmatpush1.msra.mxu0 0.0
        %609 = vmatprep.subr.mxu0 0.0
        %610 = vmatpush1.msra.mxu0 0.0
        %611 = vmatprep.subr.mxu0 0.0
        %612 = vmatpush1.msra.mxu0 0.0
        %613 = vmatprep.subr.mxu0 0.0
        %614 = vmatpush1.msra.mxu0 0.0
        %615 = vmatprep.subr.mxu0 0.0
        %616 = vmatpush1.msra.mxu0 0.0
        %617 = vmatprep.subr.mxu0 0.0
        %618 = vmatpush1.msra.mxu0 0.0
        %619 = vmatprep.subr.mxu0 0.0
        %620 = vmatpush1.msra.mxu0 0.0
        %621 = vmatprep.subr.mxu0 0.0
        %622 = vmatpush1.msra.mxu0 0.0
        %623 = vmatprep.subr.mxu0 0.0
        %624 = vmatpush1.msra.mxu0 0.0
        %625 = vmatprep.subr.mxu0 0.0
        %626 = vmatpush1.msra.mxu0 0.0
        %627 = vmatprep.subr.mxu0 0.0
        %628 = vmatpush1.msra.mxu0 0.0
        %629 = vmatprep.subr.mxu0 0.0
        %630 = vmatpush1.msra.mxu0 0.0
        %631 = vmatprep.subr.mxu0 0.0
        %632 = vmatpush1.msra.mxu0 0.0
        %633 = vmatprep.subr.mxu0 0.0
        %634 = vmatpush1.msra.mxu0 0.0
        %635 = vmatprep.subr.mxu0 0.0
        %636 = vmatpush1.msra.mxu0 0.0
        %637 = vmatprep.subr.mxu0 0.0
        %638 = vmatpush1.msra.mxu0 0.0
        %639 = vmatprep.subr.mxu0 0.0
        %640 = vmatpush1.msra.mxu0 0.0
        %641 = vmatprep.subr.mxu0 0.0
        %642 = vmatpush1.msra.mxu0 0.0
        %643 = vmatprep.subr.mxu0 0.0
        %644 = vmatpush1.msra.mxu0 0.0
        %645 = vmatprep.subr.mxu0 0.0
        %646 = vmatpush1.msra.mxu0 0.0
        %647 = vmatprep.subr.mxu0 0.0
        %648 = vmatpush1.msra.mxu0 0.0
        %649 = vmatprep.subr.mxu0 0.0
        %650 = vmatpush1.msra.mxu0 0.0
        %651 = vmatprep.subr.mxu0 0.0
        %652 = vmatpush1.msra.mxu0 0.0
        %653 = vmatprep.subr.mxu0 0.0
        %654 = vmatpush1.msra.mxu0 0.0
        %655 = vmatprep.subr.mxu0 0.0
        %656 = vmatpush1.msra.mxu0 0.0
        %657 = vmatprep.subr.mxu0 0.0
        %658 = vmatpush1.msra.mxu0 0.0
        %659 = vmatprep.subr.mxu0 0.0
        %660 = vmatpush1.msra.mxu0 0.0
        %661 = vmatprep.mubr.f32.mxu0 0.0
        %v662 = vand.u32 %v356, 4294901760
        %v663 = vsub.f32 %v356, %v662
        %v664 = vand.u32 %v663, 4294901760
        %665 = vmatmul.mubr.f32.gmra.mrb[0].mxu0 %v664
        %v666 = vpop.f32.mrb[0].mxu0
        %v667 = vadd.f32 %v591, %v666
        %v668 = vpop.f32.mrb[0].mxu0
        %v669 = vadd.f32 %v593, %v668
        %670 = vdwg.mxu0
        %v671 = vand.u32 %v351, 4294901760
        %v672 = vsub.f32 %v351, %v671
        %v673 = vand.u32 %v672, 4294901760
        %674 = vmatprep.subr.mxu0 %v673
        %v675 = vand.u32 %v350, 4294901760
        %v676 = vsub.f32 %v350, %v675
        %v677 = vand.u32 %v676, 4294901760
        %678 = vmatpush1.msra.mxu0 %v677
        %679 = vmatprep.subr.mxu0 0.0
        %680 = vmatpush1.msra.mxu0 0.0
        %681 = vmatprep.subr.mxu0 0.0
        %682 = vmatpush1.msra.mxu0 0.0
        %683 = vmatprep.subr.mxu0 0.0
        %684 = vmatpush1.msra.mxu0 0.0
        %685 = vmatprep.subr.mxu0 0.0
        %686 = vmatpush1.msra.mxu0 0.0
        %687 = vmatprep.subr.mxu0 0.0
        %688 = vmatpush1.msra.mxu0 0.0
        %689 = vmatprep.subr.mxu0 0.0
        %690 = vmatpush1.msra.mxu0 0.0
        %691 = vmatprep.subr.mxu0 0.0
        %692 = vmatpush1.msra.mxu0 0.0
        %693 = vmatprep.subr.mxu0 0.0
        %694 = vmatpush1.msra.mxu0 0.0
        %695 = vmatprep.subr.mxu0 0.0
        %696 = vmatpush1.msra.mxu0 0.0
        %697 = vmatprep.subr.mxu0 0.0
        %698 = vmatpush1.msra.mxu0 0.0
        %699 = vmatprep.subr.mxu0 0.0
        %700 = vmatpush1.msra.mxu0 0.0
        %701 = vmatprep.subr.mxu0 0.0
        %702 = vmatpush1.msra.mxu0 0.0
        %703 = vmatprep.subr.mxu0 0.0
        %704 = vmatpush1.msra.mxu0 0.0
        %705 = vmatprep.subr.mxu0 0.0
        %706 = vmatpush1.msra.mxu0 0.0
        %707 = vmatprep.subr.mxu0 0.0
        %708 = vmatpush1.msra.mxu0 0.0
        %709 = vmatprep.subr.mxu0 0.0
        %710 = vmatpush1.msra.mxu0 0.0
        %711 = vmatprep.subr.mxu0 0.0
        %712 = vmatpush1.msra.mxu0 0.0
        %713 = vmatprep.subr.mxu0 0.0
        %714 = vmatpush1.msra.mxu0 0.0
        %715 = vmatprep.subr.mxu0 0.0
        %716 = vmatpush1.msra.mxu0 0.0
        %717 = vmatprep.subr.mxu0 0.0
        %718 = vmatpush1.msra.mxu0 0.0
        %719 = vmatprep.subr.mxu0 0.0
        %720 = vmatpush1.msra.mxu0 0.0
        %721 = vmatprep.subr.mxu0 0.0
        %722 = vmatpush1.msra.mxu0 0.0
        %723 = vmatprep.subr.mxu0 0.0
        %724 = vmatpush1.msra.mxu0 0.0
        %725 = vmatprep.subr.mxu0 0.0
        %726 = vmatpush1.msra.mxu0 0.0
        %727 = vmatprep.subr.mxu0 0.0
        %728 = vmatpush1.msra.mxu0 0.0
        %729 = vmatprep.subr.mxu0 0.0
        %730 = vmatpush1.msra.mxu0 0.0
        %731 = vmatprep.subr.mxu0 0.0
        %732 = vmatpush1.msra.mxu0 0.0
        %733 = vmatprep.subr.mxu0 0.0
        %734 = vmatpush1.msra.mxu0 0.0
        %735 = vmatprep.subr.mxu0 0.0
        %736 = vmatpush1.msra.mxu0 0.0
        %737 = vmatprep.subr.mxu0 0.0
        %738 = vmatpush1.msra.mxu0 0.0
        %739 = vmatprep.subr.mxu0 0.0
        %740 = vmatpush1.msra.mxu0 0.0
        %741 = vmatprep.mubr.f32.mxu0 0.0
        %v742 = vand.u32 %v356, 4294901760
        %743 = vmatmul.mubr.f32.gmra.mrb[0].mxu0 %v742
        %v744 = vpop.f32.mrb[0].mxu0
        %v745 = vadd.f32 %v667, %v744
        %v746 = vpop.f32.mrb[0].mxu0
        %v747 = vadd.f32 %v669, %v746
        %748 = vdwg.mxu0
        %v749 = vand.u32 %v351, 4294901760
        %750 = vmatprep.subr.mxu0 %v749
        %v751 = vand.u32 %v350, 4294901760
        %752 = vmatpush1.msra.mxu0 %v751
        %753 = vmatprep.subr.mxu0 0.0
        %754 = vmatpush1.msra.mxu0 0.0
        %755 = vmatprep.subr.mxu0 0.0
        %756 = vmatpush1.msra.mxu0 0.0
        %757 = vmatprep.subr.mxu0 0.0
        %758 = vmatpush1.msra.mxu0 0.0
        %759 = vmatprep.subr.mxu0 0.0
        %760 = vmatpush1.msra.mxu0 0.0
        %761 = vmatprep.subr.mxu0 0.0
        %762 = vmatpush1.msra.mxu0 0.0
        %763 = vmatprep.subr.mxu0 0.0
        %764 = vmatpush1.msra.mxu0 0.0
        %765 = vmatprep.subr.mxu0 0.0
        %766 = vmatpush1.msra.mxu0 0.0
        %767 = vmatprep.subr.mxu0 0.0
        %768 = vmatpush1.msra.mxu0 0.0
        %769 = vmatprep.subr.mxu0 0.0
        %770 = vmatpush1.msra.mxu0 0.0
        %771 = vmatprep.subr.mxu0 0.0
        %772 = vmatpush1.msra.mxu0 0.0
        %773 = vmatprep.subr.mxu0 0.0
        %774 = vmatpush1.msra.mxu0 0.0
        %775 = vmatprep.subr.mxu0 0.0
        %776 = vmatpush1.msra.mxu0 0.0
        %777 = vmatprep.subr.mxu0 0.0
        %778 = vmatpush1.msra.mxu0 0.0
        %779 = vmatprep.subr.mxu0 0.0
        %780 = vmatpush1.msra.mxu0 0.0
        %781 = vmatprep.subr.mxu0 0.0
        %782 = vmatpush1.msra.mxu0 0.0
        %783 = vmatprep.subr.mxu0 0.0
        %784 = vmatpush1.msra.mxu0 0.0
        %785 = vmatprep.subr.mxu0 0.0
        %786 = vmatpush1.msra.mxu0 0.0
        %787 = vmatprep.subr.mxu0 0.0
        %788 = vmatpush1.msra.mxu0 0.0
        %789 = vmatprep.subr.mxu0 0.0
        %790 = vmatpush1.msra.mxu0 0.0
        %791 = vmatprep.subr.mxu0 0.0
        %792 = vmatpush1.msra.mxu0 0.0
        %793 = vmatprep.subr.mxu0 0.0
        %794 = vmatpush1.msra.mxu0 0.0
        %795 = vmatprep.subr.mxu0 0.0
        %796 = vmatpush1.msra.mxu0 0.0
        %797 = vmatprep.subr.mxu0 0.0
        %798 = vmatpush1.msra.mxu0 0.0
        %799 = vmatprep.subr.mxu0 0.0
        %800 = vmatpush1.msra.mxu0 0.0
        %801 = vmatprep.subr.mxu0 0.0
        %802 = vmatpush1.msra.mxu0 0.0
        %803 = vmatprep.subr.mxu0 0.0
        %804 = vmatpush1.msra.mxu0 0.0
        %805 = vmatprep.subr.mxu0 0.0
        %806 = vmatpush1.msra.mxu0 0.0
        %807 = vmatprep.subr.mxu0 0.0
        %808 = vmatpush1.msra.mxu0 0.0
        %809 = vmatprep.subr.mxu0 0.0
        %810 = vmatpush1.msra.mxu0 0.0
        %811 = vmatprep.subr.mxu0 0.0
        %812 = vmatpush1.msra.mxu0 0.0
        %813 = vmatprep.subr.mxu0 0.0
        %814 = vmatpush1.msra.mxu0 0.0
        %815 = vmatprep.mubr.f32.mxu0 0.0
        %v816 = vand.u32 %v356, 4294901760
        %817 = vmatmul.mubr.f32.gmra.mrb[0].mxu0 %v816
        %v818 = vpop.f32.mrb[0].mxu0
        %v819 = vadd.f32 %v745, %v818
        %v820 = vpop.f32.mrb[0].mxu0
        %v821 = vadd.f32 %v747, %v820
        %822 = vdwg.mxu0
        %v824 = vsel %vm354, %v329, 0
        %v826 = vand.u32 %v328, 4294901760
        %827 = vmatprep.subr.mxu0 %v826
        %v828 = vand.u32 %v327, 4294901760
        %829 = vmatpush1.msra.mxu0 %v828
        %830 = vmatprep.subr.mxu0 0.0
        %831 = vmatpush1.msra.mxu0 0.0
        %832 = vmatprep.subr.mxu0 0.0
        %833 = vmatpush1.msra.mxu0 0.0
        %834 = vmatprep.subr.mxu0 0.0
        %835 = vmatpush1.msra.mxu0 0.0
        %836 = vmatprep.subr.mxu0 0.0
        %837 = vmatpush1.msra.mxu0 0.0
        %838 = vmatprep.subr.mxu0 0.0
        %839 = vmatpush1.msra.mxu0 0.0
        %840 = vmatprep.subr.mxu0 0.0
        %841 = vmatpush1.msra.mxu0 0.0
        %842 = vmatprep.subr.mxu0 0.0
        %843 = vmatpush1.msra.mxu0 0.0
        %844 = vmatprep.subr.mxu0 0.0
        %845 = vmatpush1.msra.mxu0 0.0
        %846 = vmatprep.subr.mxu0 0.0
        %847 = vmatpush1.msra.mxu0 0.0
        %848 = vmatprep.subr.mxu0 0.0
        %849 = vmatpush1.msra.mxu0 0.0
        %850 = vmatprep.subr.mxu0 0.0
        %851 = vmatpush1.msra.mxu0 0.0
        %852 = vmatprep.subr.mxu0 0.0
        %853 = vmatpush1.msra.mxu0 0.0
        %854 = vmatprep.subr.mxu0 0.0
        %855 = vmatpush1.msra.mxu0 0.0
        %856 = vmatprep.subr.mxu0 0.0
        %857 = vmatpush1.msra.mxu0 0.0
        %858 = vmatprep.subr.mxu0 0.0
        %859 = vmatpush1.msra.mxu0 0.0
        %860 = vmatprep.subr.mxu0 0.0
        %861 = vmatpush1.msra.mxu0 0.0
        %862 = vmatprep.subr.mxu0 0.0
        %863 = vmatpush1.msra.mxu0 0.0
        %864 = vmatprep.subr.mxu0 0.0
        %865 = vmatpush1.msra.mxu0 0.0
        %866 = vmatprep.subr.mxu0 0.0
        %867 = vmatpush1.msra.mxu0 0.0
        %868 = vmatprep.subr.mxu0 0.0
        %869 = vmatpush1.msra.mxu0 0.0
        %870 = vmatprep.subr.mxu0 0.0
        %871 = vmatpush1.msra.mxu0 0.0
        %872 = vmatprep.subr.mxu0 0.0
        %873 = vmatpush1.msra.mxu0 0.0
        %874 = vmatprep.subr.mxu0 0.0
        %875 = vmatpush1.msra.mxu0 0.0
        %876 = vmatprep.subr.mxu0 0.0
        %877 = vmatpush1.msra.mxu0 0.0
        %878 = vmatprep.subr.mxu0 0.0
        %879 = vmatpush1.msra.mxu0 0.0
        %880 = vmatprep.subr.mxu0 0.0
        %881 = vmatpush1.msra.mxu0 0.0
        %882 = vmatprep.subr.mxu0 0.0
        %883 = vmatpush1.msra.mxu0 0.0
        %884 = vmatprep.subr.mxu0 0.0
        %885 = vmatpush1.msra.mxu0 0.0
        %886 = vmatprep.subr.mxu0 0.0
        %887 = vmatpush1.msra.mxu0 0.0
        %888 = vmatprep.subr.mxu0 0.0
        %889 = vmatpush1.msra.mxu0 0.0
        %890 = vmatprep.subr.mxu0 0.0
        %891 = vmatpush1.msra.mxu0 0.0
        %892 = vmatprep.mubr.f32.mxu0 0.0
        %v893 = vand.u32 %v824, 4294901760
        %v894 = vsub.f32 %v824, %v893
        %v895 = vand.u32 %v894, 4294901760
        %v896 = vsub.f32 %v894, %v895
        %v897 = vand.u32 %v896, 4294901760
        %898 = vmatmul.mubr.f32.gmra.mrb[0].mxu0 %v897
        %v899 = vpop.f32.mrb[0].mxu0
        %v900 = vadd.f32 %v819, %v899
        %v901 = vpop.f32.mrb[0].mxu0
        %v902 = vadd.f32 %v821, %v901
        %903 = vdwg.mxu0
        %v904 = vand.u32 %v328, 4294901760
        %v905 = vsub.f32 %v328, %v904
        %v906 = vand.u32 %v905, 4294901760
        %v907 = vsub.f32 %v905, %v906
        %v908 = vand.u32 %v907, 4294901760
        %909 = vmatprep.subr.mxu0 %v908
        %v910 = vand.u32 %v327, 4294901760
        %v911 = vsub.f32 %v327, %v910
        %v912 = vand.u32 %v911, 4294901760
        %v913 = vsub.f32 %v911, %v912
        %v914 = vand.u32 %v913, 4294901760
        %915 = vmatpush1.msra.mxu0 %v914
        %916 = vmatprep.subr.mxu0 0.0
        %917 = vmatpush1.msra.mxu0 0.0
        %918 = vmatprep.subr.mxu0 0.0
        %919 = vmatpush1.msra.mxu0 0.0
        %920 = vmatprep.subr.mxu0 0.0
        %921 = vmatpush1.msra.mxu0 0.0
        %922 = vmatprep.subr.mxu0 0.0
        %923 = vmatpush1.msra.mxu0 0.0
        %924 = vmatprep.subr.mxu0 0.0
        %925 = vmatpush1.msra.mxu0 0.0
        %926 = vmatprep.subr.mxu0 0.0
        %927 = vmatpush1.msra.mxu0 0.0
        %928 = vmatprep.subr.mxu0 0.0
        %929 = vmatpush1.msra.mxu0 0.0
        %930 = vmatprep.subr.mxu0 0.0
        %931 = vmatpush1.msra.mxu0 0.0
        %932 = vmatprep.subr.mxu0 0.0
        %933 = vmatpush1.msra.mxu0 0.0
        %934 = vmatprep.subr.mxu0 0.0
        %935 = vmatpush1.msra.mxu0 0.0
        %936 = vmatprep.subr.mxu0 0.0
        %937 = vmatpush1.msra.mxu0 0.0
        %938 = vmatprep.subr.mxu0 0.0
        %939 = vmatpush1.msra.mxu0 0.0
        %940 = vmatprep.subr.mxu0 0.0
        %941 = vmatpush1.msra.mxu0 0.0
        %942 = vmatprep.subr.mxu0 0.0
        %943 = vmatpush1.msra.mxu0 0.0
        %944 = vmatprep.subr.mxu0 0.0
        %945 = vmatpush1.msra.mxu0 0.0
        %946 = vmatprep.subr.mxu0 0.0
        %947 = vmatpush1.msra.mxu0 0.0
        %948 = vmatprep.subr.mxu0 0.0
        %949 = vmatpush1.msra.mxu0 0.0
        %950 = vmatprep.subr.mxu0 0.0
        %951 = vmatpush1.msra.mxu0 0.0
        %952 = vmatprep.subr.mxu0 0.0
        %953 = vmatpush1.msra.mxu0 0.0
        %954 = vmatprep.subr.mxu0 0.0
        %955 = vmatpush1.msra.mxu0 0.0
        %956 = vmatprep.subr.mxu0 0.0
        %957 = vmatpush1.msra.mxu0 0.0
        %958 = vmatprep.subr.mxu0 0.0
        %959 = vmatpush1.msra.mxu0 0.0
        %960 = vmatprep.subr.mxu0 0.0
        %961 = vmatpush1.msra.mxu0 0.0
        %962 = vmatprep.subr.mxu0 0.0
        %963 = vmatpush1.msra.mxu0 0.0
        %964 = vmatprep.subr.mxu0 0.0
        %965 = vmatpush1.msra.mxu0 0.0
        %966 = vmatprep.subr.mxu0 0.0
        %967 = vmatpush1.msra.mxu0 0.0
        %968 = vmatprep.subr.mxu0 0.0
        %969 = vmatpush1.msra.mxu0 0.0
        %970 = vmatprep.subr.mxu0 0.0
        %971 = vmatpush1.msra.mxu0 0.0
        %972 = vmatprep.subr.mxu0 0.0
        %973 = vmatpush1.msra.mxu0 0.0
        %974 = vmatprep.subr.mxu0 0.0
        %975 = vmatpush1.msra.mxu0 0.0
        %976 = vmatprep.subr.mxu0 0.0
        %977 = vmatpush1.msra.mxu0 0.0
        %978 = vmatprep.mubr.f32.mxu0 0.0
        %v979 = vand.u32 %v824, 4294901760
        %980 = vmatmul.mubr.f32.gmra.mrb[0].mxu0 %v979
        %v981 = vpop.f32.mrb[0].mxu0
        %v982 = vadd.f32 %v900, %v981
        %v983 = vpop.f32.mrb[0].mxu0
        %v984 = vadd.f32 %v902, %v983
        %985 = vdwg.mxu0
        %v986 = vand.u32 %v328, 4294901760
        %v987 = vsub.f32 %v328, %v986
        %988 = vmatprep.subr.mxu0 %v987
        %v989 = vand.u32 %v327, 4294901760
        %v990 = vsub.f32 %v327, %v989
        %991 = vmatpush1.msra.mxu0 %v990
        %992 = vmatprep.subr.mxu0 0.0
        %993 = vmatpush1.msra.mxu0 0.0
        %994 = vmatprep.subr.mxu0 0.0
        %995 = vmatpush1.msra.mxu0 0.0
        %996 = vmatprep.subr.mxu0 0.0
        %997 = vmatpush1.msra.mxu0 0.0
        %998 = vmatprep.subr.mxu0 0.0
        %999 = vmatpush1.msra.mxu0 0.0
        %1000 = vmatprep.subr.mxu0 0.0
        %1001 = vmatpush1.msra.mxu0 0.0
        %1002 = vmatprep.subr.mxu0 0.0
        %1003 = vmatpush1.msra.mxu0 0.0
        %1004 = vmatprep.subr.mxu0 0.0
        %1005 = vmatpush1.msra.mxu0 0.0
        %1006 = vmatprep.subr.mxu0 0.0
        %1007 = vmatpush1.msra.mxu0 0.0
        %1008 = vmatprep.subr.mxu0 0.0
        %1009 = vmatpush1.msra.mxu0 0.0
        %1010 = vmatprep.subr.mxu0 0.0
        %1011 = vmatpush1.msra.mxu0 0.0
        %1012 = vmatprep.subr.mxu0 0.0
        %1013 = vmatpush1.msra.mxu0 0.0
        %1014 = vmatprep.subr.mxu0 0.0
        %1015 = vmatpush1.msra.mxu0 0.0
        %1016 = vmatprep.subr.mxu0 0.0
        %1017 = vmatpush1.msra.mxu0 0.0
        %1018 = vmatprep.subr.mxu0 0.0
        %1019 = vmatpush1.msra.mxu0 0.0
        %1020 = vmatprep.subr.mxu0 0.0
        %1021 = vmatpush1.msra.mxu0 0.0
        %1022 = vmatprep.subr.mxu0 0.0
        %1023 = vmatpush1.msra.mxu0 0.0
        %1024 = vmatprep.subr.mxu0 0.0
        %1025 = vmatpush1.msra.mxu0 0.0
        %1026 = vmatprep.subr.mxu0 0.0
        %1027 = vmatpush1.msra.mxu0 0.0
        %1028 = vmatprep.subr.mxu0 0.0
        %1029 = vmatpush1.msra.mxu0 0.0
        %1030 = vmatprep.subr.mxu0 0.0
        %1031 = vmatpush1.msra.mxu0 0.0
        %1032 = vmatprep.subr.mxu0 0.0
        %1033 = vmatpush1.msra.mxu0 0.0
        %1034 = vmatprep.subr.mxu0 0.0
        %1035 = vmatpush1.msra.mxu0 0.0
        %1036 = vmatprep.subr.mxu0 0.0
        %1037 = vmatpush1.msra.mxu0 0.0
        %1038 = vmatprep.subr.mxu0 0.0
        %1039 = vmatpush1.msra.mxu0 0.0
        %1040 = vmatprep.subr.mxu0 0.0
        %1041 = vmatpush1.msra.mxu0 0.0
        %1042 = vmatprep.subr.mxu0 0.0
        %1043 = vmatpush1.msra.mxu0 0.0
        %1044 = vmatprep.subr.mxu0 0.0
        %1045 = vmatpush1.msra.mxu0 0.0
        %1046 = vmatprep.subr.mxu0 0.0
        %1047 = vmatpush1.msra.mxu0 0.0
        %1048 = vmatprep.subr.mxu0 0.0
        %1049 = vmatpush1.msra.mxu0 0.0
        %1050 = vmatprep.subr.mxu0 0.0
        %1051 = vmatpush1.msra.mxu0 0.0
        %1052 = vmatprep.subr.mxu0 0.0
        %1053 = vmatpush1.msra.mxu0 0.0
        %1054 = vmatprep.mubr.f32.mxu0 0.0
        %v1055 = vand.u32 %v824, 4294901760
        %v1056 = vsub.f32 %v824, %v1055
        %1057 = vmatmul.mubr.f32.gmra.mrb[0].mxu0 %v1056
        %v1058 = vpop.f32.mrb[0].mxu0
        %v1059 = vadd.f32 %v982, %v1058
        %v1060 = vpop.f32.mrb[0].mxu0
        %v1061 = vadd.f32 %v984, %v1060
        %1062 = vdwg.mxu0
        %v1063 = vand.u32 %v328, 4294901760
        %1064 = vmatprep.subr.mxu0 %v1063
        %v1065 = vand.u32 %v327, 4294901760
        %1066 = vmatpush1.msra.mxu0 %v1065
        %1067 = vmatprep.subr.mxu0 0.0
        %1068 = vmatpush1.msra.mxu0 0.0
        %1069 = vmatprep.subr.mxu0 0.0
        %1070 = vmatpush1.msra.mxu0 0.0
        %1071 = vmatprep.subr.mxu0 0.0
        %1072 = vmatpush1.msra.mxu0 0.0
        %1073 = vmatprep.subr.mxu0 0.0
        %1074 = vmatpush1.msra.mxu0 0.0
        %1075 = vmatprep.subr.mxu0 0.0
        %1076 = vmatpush1.msra.mxu0 0.0
        %1077 = vmatprep.subr.mxu0 0.0
        %1078 = vmatpush1.msra.mxu0 0.0
        %1079 = vmatprep.subr.mxu0 0.0
        %1080 = vmatpush1.msra.mxu0 0.0
        %1081 = vmatprep.subr.mxu0 0.0
        %1082 = vmatpush1.msra.mxu0 0.0
        %1083 = vmatprep.subr.mxu0 0.0
        %1084 = vmatpush1.msra.mxu0 0.0
        %1085 = vmatprep.subr.mxu0 0.0
        %1086 = vmatpush1.msra.mxu0 0.0
        %1087 = vmatprep.subr.mxu0 0.0
        %1088 = vmatpush1.msra.mxu0 0.0
        %1089 = vmatprep.subr.mxu0 0.0
        %1090 = vmatpush1.msra.mxu0 0.0
        %1091 = vmatprep.subr.mxu0 0.0
        %1092 = vmatpush1.msra.mxu0 0.0
        %1093 = vmatprep.subr.mxu0 0.0
        %1094 = vmatpush1.msra.mxu0 0.0
        %1095 = vmatprep.subr.mxu0 0.0
        %1096 = vmatpush1.msra.mxu0 0.0
        %1097 = vmatprep.subr.mxu0 0.0
        %1098 = vmatpush1.msra.mxu0 0.0
        %1099 = vmatprep.subr.mxu0 0.0
        %1100 = vmatpush1.msra.mxu0 0.0
        %1101 = vmatprep.subr.mxu0 0.0
        %1102 = vmatpush1.msra.mxu0 0.0
        %1103 = vmatprep.subr.mxu0 0.0
        %1104 = vmatpush1.msra.mxu0 0.0
        %1105 = vmatprep.subr.mxu0 0.0
        %1106 = vmatpush1.msra.mxu0 0.0
        %1107 = vmatprep.subr.mxu0 0.0
        %1108 = vmatpush1.msra.mxu0 0.0
        %1109 = vmatprep.subr.mxu0 0.0
        %1110 = vmatpush1.msra.mxu0 0.0
        %1111 = vmatprep.subr.mxu0 0.0
        %1112 = vmatpush1.msra.mxu0 0.0
        %1113 = vmatprep.subr.mxu0 0.0
        %1114 = vmatpush1.msra.mxu0 0.0
        %1115 = vmatprep.subr.mxu0 0.0
        %1116 = vmatpush1.msra.mxu0 0.0
        %1117 = vmatprep.subr.mxu0 0.0
        %1118 = vmatpush1.msra.mxu0 0.0
        %1119 = vmatprep.subr.mxu0 0.0
        %1120 = vmatpush1.msra.mxu0 0.0
        %1121 = vmatprep.subr.mxu0 0.0
        %1122 = vmatpush1.msra.mxu0 0.0
        %1123 = vmatprep.subr.mxu0 0.0
        %1124 = vmatpush1.msra.mxu0 0.0
        %1125 = vmatprep.subr.mxu0 0.0
        %1126 = vmatpush1.msra.mxu0 0.0
        %1127 = vmatprep.subr.mxu0 0.0
        %1128 = vmatpush1.msra.mxu0 0.0
        %1129 = vmatprep.mubr.f32.mxu0 0.0
        %v1130 = vand.u32 %v824, 4294901760
        %v1131 = vsub.f32 %v824, %v1130
        %v1132 = vand.u32 %v1131, 4294901760
        %1133 = vmatmul.mubr.f32.gmra.mrb[0].mxu0 %v1132
        %v1134 = vpop.f32.mrb[0].mxu0
        %v1135 = vadd.f32 %v1059, %v1134
        %v1136 = vpop.f32.mrb[0].mxu0
        %v1137 = vadd.f32 %v1061, %v1136
        %1138 = vdwg.mxu0
        %v1139 = vand.u32 %v328, 4294901760
        %v1140 = vsub.f32 %v328, %v1139
        %v1141 = vand.u32 %v1140, 4294901760
        %1142 = vmatprep.subr.mxu0 %v1141
        %v1143 = vand.u32 %v327, 4294901760
        %v1144 = vsub.f32 %v327, %v1143
        %v1145 = vand.u32 %v1144, 4294901760
        %1146 = vmatpush1.msra.mxu0 %v1145
        %1147 = vmatprep.subr.mxu0 0.0
        %1148 = vmatpush1.msra.mxu0 0.0
        %1149 = vmatprep.subr.mxu0 0.0
        %1150 = vmatpush1.msra.mxu0 0.0
        %1151 = vmatprep.subr.mxu0 0.0
        %1152 = vmatpush1.msra.mxu0 0.0
        %1153 = vmatprep.subr.mxu0 0.0
        %1154 = vmatpush1.msra.mxu0 0.0
        %1155 = vmatprep.subr.mxu0 0.0
        %1156 = vmatpush1.msra.mxu0 0.0
        %1157 = vmatprep.subr.mxu0 0.0
        %1158 = vmatpush1.msra.mxu0 0.0
        %1159 = vmatprep.subr.mxu0 0.0
        %1160 = vmatpush1.msra.mxu0 0.0
        %1161 = vmatprep.subr.mxu0 0.0
        %1162 = vmatpush1.msra.mxu0 0.0
        %1163 = vmatprep.subr.mxu0 0.0
        %1164 = vmatpush1.msra.mxu0 0.0
        %1165 = vmatprep.subr.mxu0 0.0
        %1166 = vmatpush1.msra.mxu0 0.0
        %1167 = vmatprep.subr.mxu0 0.0
        %1168 = vmatpush1.msra.mxu0 0.0
        %1169 = vmatprep.subr.mxu0 0.0
        %1170 = vmatpush1.msra.mxu0 0.0
        %1171 = vmatprep.subr.mxu0 0.0
        %1172 = vmatpush1.msra.mxu0 0.0
        %1173 = vmatprep.subr.mxu0 0.0
        %1174 = vmatpush1.msra.mxu0 0.0
        %1175 = vmatprep.subr.mxu0 0.0
        %1176 = vmatpush1.msra.mxu0 0.0
        %1177 = vmatprep.subr.mxu0 0.0
        %1178 = vmatpush1.msra.mxu0 0.0
        %1179 = vmatprep.subr.mxu0 0.0
        %1180 = vmatpush1.msra.mxu0 0.0
        %1181 = vmatprep.subr.mxu0 0.0
        %1182 = vmatpush1.msra.mxu0 0.0
        %1183 = vmatprep.subr.mxu0 0.0
        %1184 = vmatpush1.msra.mxu0 0.0
        %1185 = vmatprep.subr.mxu0 0.0
        %1186 = vmatpush1.msra.mxu0 0.0
        %1187 = vmatprep.subr.mxu0 0.0
        %1188 = vmatpush1.msra.mxu0 0.0
        %1189 = vmatprep.subr.mxu0 0.0
        %1190 = vmatpush1.msra.mxu0 0.0
        %1191 = vmatprep.subr.mxu0 0.0
        %1192 = vmatpush1.msra.mxu0 0.0
        %1193 = vmatprep.subr.mxu0 0.0
        %1194 = vmatpush1.msra.mxu0 0.0
        %1195 = vmatprep.subr.mxu0 0.0
        %1196 = vmatpush1.msra.mxu0 0.0
        %1197 = vmatprep.subr.mxu0 0.0
        %1198 = vmatpush1.msra.mxu0 0.0
        %1199 = vmatprep.subr.mxu0 0.0
        %1200 = vmatpush1.msra.mxu0 0.0
        %1201 = vmatprep.subr.mxu0 0.0
        %1202 = vmatpush1.msra.mxu0 0.0
        %1203 = vmatprep.subr.mxu0 0.0
        %1204 = vmatpush1.msra.mxu0 0.0
        %1205 = vmatprep.subr.mxu0 0.0
        %1206 = vmatpush1.msra.mxu0 0.0
        %1207 = vmatprep.subr.mxu0 0.0
        %1208 = vmatpush1.msra.mxu0 0.0
        %1209 = vmatprep.mubr.f32.mxu0 0.0
        %v1210 = vand.u32 %v824, 4294901760
        %1211 = vmatmul.mubr.f32.gmra.mrb[0].mxu0 %v1210
        %v1212 = vpop.f32.mrb[0].mxu0
        %v1213 = vadd.f32 %v1135, %v1212
        %v1214 = vpop.f32.mrb[0].mxu0
        %v1215 = vadd.f32 %v1137, %v1214
        %1216 = vdwg.mxu0
        %v1217 = vand.u32 %v328, 4294901760
        %1218 = vmatprep.subr.mxu0 %v1217
        %v1219 = vand.u32 %v327, 4294901760
        %1220 = vmatpush1.msra.mxu0 %v1219
        %1221 = vmatprep.subr.mxu0 0.0
        %1222 = vmatpush1.msra.mxu0 0.0
        %1223 = vmatprep.subr.mxu0 0.0
        %1224 = vmatpush1.msra.mxu0 0.0
        %1225 = vmatprep.subr.mxu0 0.0
        %1226 = vmatpush1.msra.mxu0 0.0
        %1227 = vmatprep.subr.mxu0 0.0
        %1228 = vmatpush1.msra.mxu0 0.0
        %1229 = vmatprep.subr.mxu0 0.0
        %1230 = vmatpush1.msra.mxu0 0.0
        %1231 = vmatprep.subr.mxu0 0.0
        %1232 = vmatpush1.msra.mxu0 0.0
        %1233 = vmatprep.subr.mxu0 0.0
        %1234 = vmatpush1.msra.mxu0 0.0
        %1235 = vmatprep.subr.mxu0 0.0
        %1236 = vmatpush1.msra.mxu0 0.0
        %1237 = vmatprep.subr.mxu0 0.0
        %1238 = vmatpush1.msra.mxu0 0.0
        %1239 = vmatprep.subr.mxu0 0.0
        %1240 = vmatpush1.msra.mxu0 0.0
        %1241 = vmatprep.subr.mxu0 0.0
        %1242 = vmatpush1.msra.mxu0 0.0
        %1243 = vmatprep.subr.mxu0 0.0
        %1244 = vmatpush1.msra.mxu0 0.0
        %1245 = vmatprep.subr.mxu0 0.0
        %1246 = vmatpush1.msra.mxu0 0.0
        %1247 = vmatprep.subr.mxu0 0.0
        %1248 = vmatpush1.msra.mxu0 0.0
        %1249 = vmatprep.subr.mxu0 0.0
        %1250 = vmatpush1.msra.mxu0 0.0
        %1251 = vmatprep.subr.mxu0 0.0
        %1252 = vmatpush1.msra.mxu0 0.0
        %1253 = vmatprep.subr.mxu0 0.0
        %1254 = vmatpush1.msra.mxu0 0.0
        %1255 = vmatprep.subr.mxu0 0.0
        %1256 = vmatpush1.msra.mxu0 0.0
        %1257 = vmatprep.subr.mxu0 0.0
        %1258 = vmatpush1.msra.mxu0 0.0
        %1259 = vmatprep.subr.mxu0 0.0
        %1260 = vmatpush1.msra.mxu0 0.0
        %1261 = vmatprep.subr.mxu0 0.0
        %1262 = vmatpush1.msra.mxu0 0.0
        %1263 = vmatprep.subr.mxu0 0.0
        %1264 = vmatpush1.msra.mxu0 0.0
        %1265 = vmatprep.subr.mxu0 0.0
        %1266 = vmatpush1.msra.mxu0 0.0
        %1267 = vmatprep.subr.mxu0 0.0
        %1268 = vmatpush1.msra.mxu0 0.0
        %1269 = vmatprep.subr.mxu0 0.0
        %1270 = vmatpush1.msra.mxu0 0.0
        %1271 = vmatprep.subr.mxu0 0.0
        %1272 = vmatpush1.msra.mxu0 0.0
        %1273 = vmatprep.subr.mxu0 0.0
        %1274 = vmatpush1.msra.mxu0 0.0
        %1275 = vmatprep.subr.mxu0 0.0
        %1276 = vmatpush1.msra.mxu0 0.0
        %1277 = vmatprep.subr.mxu0 0.0
        %1278 = vmatpush1.msra.mxu0 0.0
        %1279 = vmatprep.subr.mxu0 0.0
        %1280 = vmatpush1.msra.mxu0 0.0
        %1281 = vmatprep.subr.mxu0 0.0
        %1282 = vmatpush1.msra.mxu0 0.0
        %1283 = vmatprep.mubr.f32.mxu0 0.0
        %v1284 = vand.u32 %v824, 4294901760
        %1285 = vmatmul.mubr.f32.gmra.mrb[0].mxu0 %v1284
        %v1286 = vpop.f32.mrb[0].mxu0
        %v1287 = vadd.f32 %v1213, %v1286
        %v1288 = vpop.f32.mrb[0].mxu0
        %v1289 = vadd.f32 %v1215, %v1288
        %1290 = vdwg.mxu0
        %1291 = vrot.lane.b32.xlu0 %v304, 15
        %v1292 = vpop.permute.xlu0 %1291
        %1293 = vrot.lane.b32.xlu0 %v305, 15
        %v1294 = vpop.permute.xlu0 %1293
        %vm1295 = vcmp.lt.s32.totalorder %v311, 15
        %v1296 = vsel %vm1295, %v1292, %v1294
        %v1297 = vsel %vm1295, %v1294, %v1292
        %s1298 = scalar_lea.vmem %s0, 4
        %v1299 = vld [vmem:[%s1298] sm:$0x3]
        %v1301 = vlaneseq
        %v1302 = vshrl.u32 %v1301, 7
        %v1303 = vsub.s32 0, %v1302
        %v1304 = vrot.slane %v1299, %v1303
        %v1305 = vlaneseq
        %v1306 = vshrl.u32 %v1305, 7
        %v1307 = vsub.s32 1, %v1306
        %v1308 = vrot.slane %v1299, %v1307
        %v1311 = vmul.f32 %v1297, %v1304
        %v1312 = vmul.f32 %v1296, %v1308
        %s1313 = scalar_lea.vmem %s2, 16
        %v1314 = vld [vmem:[%s1313] sm:$0xff]
        %v1316 = vsel %vm354, %v1314, 0
        %v1318 = vand.u32 %v1312, 4294901760
        %1319 = vmatprep.subr.mxu0 %v1318
        %v1320 = vand.u32 %v1311, 4294901760
        %1321 = vmatpush1.msra.mxu0 %v1320
        %1322 = vmatprep.subr.mxu0 0.0
        %1323 = vmatpush1.msra.mxu0 0.0
        %1324 = vmatprep.subr.mxu0 0.0
        %1325 = vmatpush1.msra.mxu0 0.0
        %1326 = vmatprep.subr.mxu0 0.0
        %1327 = vmatpush1.msra.mxu0 0.0
        %1328 = vmatprep.subr.mxu0 0.0
        %1329 = vmatpush1.msra.mxu0 0.0
        %1330 = vmatprep.subr.mxu0 0.0
        %1331 = vmatpush1.msra.mxu0 0.0
        %1332 = vmatprep.subr.mxu0 0.0
        %1333 = vmatpush1.msra.mxu0 0.0
        %1334 = vmatprep.subr.mxu0 0.0
        %1335 = vmatpush1.msra.mxu0 0.0
        %1336 = vmatprep.subr.mxu0 0.0
        %1337 = vmatpush1.msra.mxu0 0.0
        %1338 = vmatprep.subr.mxu0 0.0
        %1339 = vmatpush1.msra.mxu0 0.0
        %1340 = vmatprep.subr.mxu0 0.0
        %1341 = vmatpush1.msra.mxu0 0.0
        %1342 = vmatprep.subr.mxu0 0.0
        %1343 = vmatpush1.msra.mxu0 0.0
        %1344 = vmatprep.subr.mxu0 0.0
        %1345 = vmatpush1.msra.mxu0 0.0
        %1346 = vmatprep.subr.mxu0 0.0
        %1347 = vmatpush1.msra.mxu0 0.0
        %1348 = vmatprep.subr.mxu0 0.0
        %1349 = vmatpush1.msra.mxu0 0.0
        %1350 = vmatprep.subr.mxu0 0.0
        %1351 = vmatpush1.msra.mxu0 0.0
        %1352 = vmatprep.subr.mxu0 0.0
        %1353 = vmatpush1.msra.mxu0 0.0
        %1354 = vmatprep.subr.mxu0 0.0
        %1355 = vmatpush1.msra.mxu0 0.0
        %1356 = vmatprep.subr.mxu0 0.0
        %1357 = vmatpush1.msra.mxu0 0.0
        %1358 = vmatprep.subr.mxu0 0.0
        %1359 = vmatpush1.msra.mxu0 0.0
        %1360 = vmatprep.subr.mxu0 0.0
        %1361 = vmatpush1.msra.mxu0 0.0
        %1362 = vmatprep.subr.mxu0 0.0
        %1363 = vmatpush1.msra.mxu0 0.0
        %1364 = vmatprep.subr.mxu0 0.0
        %1365 = vmatpush1.msra.mxu0 0.0
        %1366 = vmatprep.subr.mxu0 0.0
        %1367 = vmatpush1.msra.mxu0 0.0
        %1368 = vmatprep.subr.mxu0 0.0
        %1369 = vmatpush1.msra.mxu0 0.0
        %1370 = vmatprep.subr.mxu0 0.0
        %1371 = vmatpush1.msra.mxu0 0.0
        %1372 = vmatprep.subr.mxu0 0.0
        %1373 = vmatpush1.msra.mxu0 0.0
        %1374 = vmatprep.subr.mxu0 0.0
        %1375 = vmatpush1.msra.mxu0 0.0
        %1376 = vmatprep.subr.mxu0 0.0
        %1377 = vmatpush1.msra.mxu0 0.0
        %1378 = vmatprep.subr.mxu0 0.0
        %1379 = vmatpush1.msra.mxu0 0.0
        %1380 = vmatprep.subr.mxu0 0.0
        %1381 = vmatpush1.msra.mxu0 0.0
        %1382 = vmatprep.subr.mxu0 0.0
        %1383 = vmatpush1.msra.mxu0 0.0
        %1384 = vmatprep.mubr.f32.mxu0 0.0
        %v1385 = vand.u32 %v1316, 4294901760
        %v1386 = vsub.f32 %v1316, %v1385
        %v1387 = vand.u32 %v1386, 4294901760
        %v1388 = vsub.f32 %v1386, %v1387
        %v1389 = vand.u32 %v1388, 4294901760
        %1390 = vmatmul.mubr.f32.gmra.mrb[0].mxu0 %v1389
        %v1391 = vpop.f32.mrb[0].mxu0
        %v1392 = vadd.f32 0.0, %v1391
        %v1393 = vpop.f32.mrb[0].mxu0
        %v1394 = vadd.f32 0.0, %v1393
        %1395 = vdwg.mxu0
        %v1396 = vand.u32 %v1312, 4294901760
        %v1397 = vsub.f32 %v1312, %v1396
        %v1398 = vand.u32 %v1397, 4294901760
        %v1399 = vsub.f32 %v1397, %v1398
        %v1400 = vand.u32 %v1399, 4294901760
        %1401 = vmatprep.subr.mxu0 %v1400
        %v1402 = vand.u32 %v1311, 4294901760
        %v1403 = vsub.f32 %v1311, %v1402
        %v1404 = vand.u32 %v1403, 4294901760
        %v1405 = vsub.f32 %v1403, %v1404
        %v1406 = vand.u32 %v1405, 4294901760
        %1407 = vmatpush1.msra.mxu0 %v1406
        %1408 = vmatprep.subr.mxu0 0.0
        %1409 = vmatpush1.msra.mxu0 0.0
        %1410 = vmatprep.subr.mxu0 0.0
        %1411 = vmatpush1.msra.mxu0 0.0
        %1412 = vmatprep.subr.mxu0 0.0
        %1413 = vmatpush1.msra.mxu0 0.0
        %1414 = vmatprep.subr.mxu0 0.0
        %1415 = vmatpush1.msra.mxu0 0.0
        %1416 = vmatprep.subr.mxu0 0.0
        %1417 = vmatpush1.msra.mxu0 0.0
        %1418 = vmatprep.subr.mxu0 0.0
        %1419 = vmatpush1.msra.mxu0 0.0
        %1420 = vmatprep.subr.mxu0 0.0
        %1421 = vmatpush1.msra.mxu0 0.0
        %1422 = vmatprep.subr.mxu0 0.0
        %1423 = vmatpush1.msra.mxu0 0.0
        %1424 = vmatprep.subr.mxu0 0.0
        %1425 = vmatpush1.msra.mxu0 0.0
        %1426 = vmatprep.subr.mxu0 0.0
        %1427 = vmatpush1.msra.mxu0 0.0
        %1428 = vmatprep.subr.mxu0 0.0
        %1429 = vmatpush1.msra.mxu0 0.0
        %1430 = vmatprep.subr.mxu0 0.0
        %1431 = vmatpush1.msra.mxu0 0.0
        %1432 = vmatprep.subr.mxu0 0.0
        %1433 = vmatpush1.msra.mxu0 0.0
        %1434 = vmatprep.subr.mxu0 0.0
        %1435 = vmatpush1.msra.mxu0 0.0
        %1436 = vmatprep.subr.mxu0 0.0
        %1437 = vmatpush1.msra.mxu0 0.0
        %1438 = vmatprep.subr.mxu0 0.0
        %1439 = vmatpush1.msra.mxu0 0.0
        %1440 = vmatprep.subr.mxu0 0.0
        %1441 = vmatpush1.msra.mxu0 0.0
        %1442 = vmatprep.subr.mxu0 0.0
        %1443 = vmatpush1.msra.mxu0 0.0
        %1444 = vmatprep.subr.mxu0 0.0
        %1445 = vmatpush1.msra.mxu0 0.0
        %1446 = vmatprep.subr.mxu0 0.0
        %1447 = vmatpush1.msra.mxu0 0.0
        %1448 = vmatprep.subr.mxu0 0.0
        %1449 = vmatpush1.msra.mxu0 0.0
        %1450 = vmatprep.subr.mxu0 0.0
        %1451 = vmatpush1.msra.mxu0 0.0
        %1452 = vmatprep.subr.mxu0 0.0
        %1453 = vmatpush1.msra.mxu0 0.0
        %1454 = vmatprep.subr.mxu0 0.0
        %1455 = vmatpush1.msra.mxu0 0.0
        %1456 = vmatprep.subr.mxu0 0.0
        %1457 = vmatpush1.msra.mxu0 0.0
        %1458 = vmatprep.subr.mxu0 0.0
        %1459 = vmatpush1.msra.mxu0 0.0
        %1460 = vmatprep.subr.mxu0 0.0
        %1461 = vmatpush1.msra.mxu0 0.0
        %1462 = vmatprep.subr.mxu0 0.0
        %1463 = vmatpush1.msra.mxu0 0.0
        %1464 = vmatprep.subr.mxu0 0.0
        %1465 = vmatpush1.msra.mxu0 0.0
        %1466 = vmatprep.subr.mxu0 0.0
        %1467 = vmatpush1.msra.mxu0 0.0
        %1468 = vmatprep.subr.mxu0 0.0
        %1469 = vmatpush1.msra.mxu0 0.0
        %1470 = vmatprep.mubr.f32.mxu0 0.0
        %v1471 = vand.u32 %v1316, 4294901760
        %1472 = vmatmul.mubr.f32.gmra.mrb[0].mxu0 %v1471
        %v1473 = vpop.f32.mrb[0].mxu0
        %v1474 = vadd.f32 %v1392, %v1473
        %v1475 = vpop.f32.mrb[0].mxu0
        %v1476 = vadd.f32 %v1394, %v1475
        %1477 = vdwg.mxu0
        %v1478 = vand.u32 %v1312, 4294901760
        %v1479 = vsub.f32 %v1312, %v1478
        %1480 = vmatprep.subr.mxu0 %v1479
        %v1481 = vand.u32 %v1311, 4294901760
        %v1482 = vsub.f32 %v1311, %v1481
        %1483 = vmatpush1.msra.mxu0 %v1482
        %1484 = vmatprep.subr.mxu0 0.0
        %1485 = vmatpush1.msra.mxu0 0.0
        %1486 = vmatprep.subr.mxu0 0.0
        %1487 = vmatpush1.msra.mxu0 0.0
        %1488 = vmatprep.subr.mxu0 0.0
        %1489 = vmatpush1.msra.mxu0 0.0
        %1490 = vmatprep.subr.mxu0 0.0
        %1491 = vmatpush1.msra.mxu0 0.0
        %1492 = vmatprep.subr.mxu0 0.0
        %1493 = vmatpush1.msra.mxu0 0.0
        %1494 = vmatprep.subr.mxu0 0.0
        %1495 = vmatpush1.msra.mxu0 0.0
        %1496 = vmatprep.subr.mxu0 0.0
        %1497 = vmatpush1.msra.mxu0 0.0
        %1498 = vmatprep.subr.mxu0 0.0
        %1499 = vmatpush1.msra.mxu0 0.0
        %1500 = vmatprep.subr.mxu0 0.0
        %1501 = vmatpush1.msra.mxu0 0.0
        %1502 = vmatprep.subr.mxu0 0.0
        %1503 = vmatpush1.msra.mxu0 0.0
        %1504 = vmatprep.subr.mxu0 0.0
        %1505 = vmatpush1.msra.mxu0 0.0
        %1506 = vmatprep.subr.mxu0 0.0
        %1507 = vmatpush1.msra.mxu0 0.0
        %1508 = vmatprep.subr.mxu0 0.0
        %1509 = vmatpush1.msra.mxu0 0.0
        %1510 = vmatprep.subr.mxu0 0.0
        %1511 = vmatpush1.msra.mxu0 0.0
        %1512 = vmatprep.subr.mxu0 0.0
        %1513 = vmatpush1.msra.mxu0 0.0
        %1514 = vmatprep.subr.mxu0 0.0
        %1515 = vmatpush1.msra.mxu0 0.0
        %1516 = vmatprep.subr.mxu0 0.0
        %1517 = vmatpush1.msra.mxu0 0.0
        %1518 = vmatprep.subr.mxu0 0.0
        %1519 = vmatpush1.msra.mxu0 0.0
        %1520 = vmatprep.subr.mxu0 0.0
        %1521 = vmatpush1.msra.mxu0 0.0
        %1522 = vmatprep.subr.mxu0 0.0
        %1523 = vmatpush1.msra.mxu0 0.0
        %1524 = vmatprep.subr.mxu0 0.0
        %1525 = vmatpush1.msra.mxu0 0.0
        %1526 = vmatprep.subr.mxu0 0.0
        %1527 = vmatpush1.msra.mxu0 0.0
        %1528 = vmatprep.subr.mxu0 0.0
        %1529 = vmatpush1.msra.mxu0 0.0
        %1530 = vmatprep.subr.mxu0 0.0
        %1531 = vmatpush1.msra.mxu0 0.0
        %1532 = vmatprep.subr.mxu0 0.0
        %1533 = vmatpush1.msra.mxu0 0.0
        %1534 = vmatprep.subr.mxu0 0.0
        %1535 = vmatpush1.msra.mxu0 0.0
        %1536 = vmatprep.subr.mxu0 0.0
        %1537 = vmatpush1.msra.mxu0 0.0
        %1538 = vmatprep.subr.mxu0 0.0
        %1539 = vmatpush1.msra.mxu0 0.0
        %1540 = vmatprep.subr.mxu0 0.0
        %1541 = vmatpush1.msra.mxu0 0.0
        %1542 = vmatprep.subr.mxu0 0.0
        %1543 = vmatpush1.msra.mxu0 0.0
        %1544 = vmatprep.subr.mxu0 0.0
        %1545 = vmatpush1.msra.mxu0 0.0
        %1546 = vmatprep.mubr.f32.mxu0 0.0
        %v1547 = vand.u32 %v1316, 4294901760
        %v1548 = vsub.f32 %v1316, %v1547
        %1549 = vmatmul.mubr.f32.gmra.mrb[0].mxu0 %v1548
        %v1550 = vpop.f32.mrb[0].mxu0
        %v1551 = vadd.f32 %v1474, %v1550
        %v1552 = vpop.f32.mrb[0].mxu0
        %v1553 = vadd.f32 %v1476, %v1552
        %1554 = vdwg.mxu0
        %v1555 = vand.u32 %v1312, 4294901760
        %1556 = vmatprep.subr.mxu0 %v1555
        %v1557 = vand.u32 %v1311, 4294901760
        %1558 = vmatpush1.msra.mxu0 %v1557
        %1559 = vmatprep.subr.mxu0 0.0
        %1560 = vmatpush1.msra.mxu0 0.0
        %1561 = vmatprep.subr.mxu0 0.0
        %1562 = vmatpush1.msra.mxu0 0.0
        %1563 = vmatprep.subr.mxu0 0.0
        %1564 = vmatpush1.msra.mxu0 0.0
        %1565 = vmatprep.subr.mxu0 0.0
        %1566 = vmatpush1.msra.mxu0 0.0
        %1567 = vmatprep.subr.mxu0 0.0
        %1568 = vmatpush1.msra.mxu0 0.0
        %1569 = vmatprep.subr.mxu0 0.0
        %1570 = vmatpush1.msra.mxu0 0.0
        %1571 = vmatprep.subr.mxu0 0.0
        %1572 = vmatpush1.msra.mxu0 0.0
        %1573 = vmatprep.subr.mxu0 0.0
        %1574 = vmatpush1.msra.mxu0 0.0
        %1575 = vmatprep.subr.mxu0 0.0
        %1576 = vmatpush1.msra.mxu0 0.0
        %1577 = vmatprep.subr.mxu0 0.0
        %1578 = vmatpush1.msra.mxu0 0.0
        %1579 = vmatprep.subr.mxu0 0.0
        %1580 = vmatpush1.msra.mxu0 0.0
        %1581 = vmatprep.subr.mxu0 0.0
        %1582 = vmatpush1.msra.mxu0 0.0
        %1583 = vmatprep.subr.mxu0 0.0
        %1584 = vmatpush1.msra.mxu0 0.0
        %1585 = vmatprep.subr.mxu0 0.0
        %1586 = vmatpush1.msra.mxu0 0.0
        %1587 = vmatprep.subr.mxu0 0.0
        %1588 = vmatpush1.msra.mxu0 0.0
        %1589 = vmatprep.subr.mxu0 0.0
        %1590 = vmatpush1.msra.mxu0 0.0
        %1591 = vmatprep.subr.mxu0 0.0
        %1592 = vmatpush1.msra.mxu0 0.0
        %1593 = vmatprep.subr.mxu0 0.0
        %1594 = vmatpush1.msra.mxu0 0.0
        %1595 = vmatprep.subr.mxu0 0.0
        %1596 = vmatpush1.msra.mxu0 0.0
        %1597 = vmatprep.subr.mxu0 0.0
        %1598 = vmatpush1.msra.mxu0 0.0
        %1599 = vmatprep.subr.mxu0 0.0
        %1600 = vmatpush1.msra.mxu0 0.0
        %1601 = vmatprep.subr.mxu0 0.0
        %1602 = vmatpush1.msra.mxu0 0.0
        %1603 = vmatprep.subr.mxu0 0.0
        %1604 = vmatpush1.msra.mxu0 0.0
        %1605 = vmatprep.subr.mxu0 0.0
        %1606 = vmatpush1.msra.mxu0 0.0
        %1607 = vmatprep.subr.mxu0 0.0
        %1608 = vmatpush1.msra.mxu0 0.0
        %1609 = vmatprep.subr.mxu0 0.0
        %1610 = vmatpush1.msra.mxu0 0.0
        %1611 = vmatprep.subr.mxu0 0.0
        %1612 = vmatpush1.msra.mxu0 0.0
        %1613 = vmatprep.subr.mxu0 0.0
        %1614 = vmatpush1.msra.mxu0 0.0
        %1615 = vmatprep.subr.mxu0 0.0
        %1616 = vmatpush1.msra.mxu0 0.0
        %1617 = vmatprep.subr.mxu0 0.0
        %1618 = vmatpush1.msra.mxu0 0.0
        %1619 = vmatprep.subr.mxu0 0.0
        %1620 = vmatpush1.msra.mxu0 0.0
        %1621 = vmatprep.mubr.f32.mxu0 0.0
        %v1622 = vand.u32 %v1316, 4294901760
        %v1623 = vsub.f32 %v1316, %v1622
        %v1624 = vand.u32 %v1623, 4294901760
        %1625 = vmatmul.mubr.f32.gmra.mrb[0].mxu0 %v1624
        %v1626 = vpop.f32.mrb[0].mxu0
        %v1627 = vadd.f32 %v1551, %v1626
        %v1628 = vpop.f32.mrb[0].mxu0
        %v1629 = vadd.f32 %v1553, %v1628
        %1630 = vdwg.mxu0
        %v1631 = vand.u32 %v1312, 4294901760
        %v1632 = vsub.f32 %v1312, %v1631
        %v1633 = vand.u32 %v1632, 4294901760
        %1634 = vmatprep.subr.mxu0 %v1633
        %v1635 = vand.u32 %v1311, 4294901760
        %v1636 = vsub.f32 %v1311, %v1635
        %v1637 = vand.u32 %v1636, 4294901760
        %1638 = vmatpush1.msra.mxu0 %v1637
        %1639 = vmatprep.subr.mxu0 0.0
        %1640 = vmatpush1.msra.mxu0 0.0
        %1641 = vmatprep.subr.mxu0 0.0
        %1642 = vmatpush1.msra.mxu0 0.0
        %1643 = vmatprep.subr.mxu0 0.0
        %1644 = vmatpush1.msra.mxu0 0.0
        %1645 = vmatprep.subr.mxu0 0.0
        %1646 = vmatpush1.msra.mxu0 0.0
        %1647 = vmatprep.subr.mxu0 0.0
        %1648 = vmatpush1.msra.mxu0 0.0
        %1649 = vmatprep.subr.mxu0 0.0
        %1650 = vmatpush1.msra.mxu0 0.0
        %1651 = vmatprep.subr.mxu0 0.0
        %1652 = vmatpush1.msra.mxu0 0.0
        %1653 = vmatprep.subr.mxu0 0.0
        %1654 = vmatpush1.msra.mxu0 0.0
        %1655 = vmatprep.subr.mxu0 0.0
        %1656 = vmatpush1.msra.mxu0 0.0
        %1657 = vmatprep.subr.mxu0 0.0
        %1658 = vmatpush1.msra.mxu0 0.0
        %1659 = vmatprep.subr.mxu0 0.0
        %1660 = vmatpush1.msra.mxu0 0.0
        %1661 = vmatprep.subr.mxu0 0.0
        %1662 = vmatpush1.msra.mxu0 0.0
        %1663 = vmatprep.subr.mxu0 0.0
        %1664 = vmatpush1.msra.mxu0 0.0
        %1665 = vmatprep.subr.mxu0 0.0
        %1666 = vmatpush1.msra.mxu0 0.0
        %1667 = vmatprep.subr.mxu0 0.0
        %1668 = vmatpush1.msra.mxu0 0.0
        %1669 = vmatprep.subr.mxu0 0.0
        %1670 = vmatpush1.msra.mxu0 0.0
        %1671 = vmatprep.subr.mxu0 0.0
        %1672 = vmatpush1.msra.mxu0 0.0
        %1673 = vmatprep.subr.mxu0 0.0
        %1674 = vmatpush1.msra.mxu0 0.0
        %1675 = vmatprep.subr.mxu0 0.0
        %1676 = vmatpush1.msra.mxu0 0.0
        %1677 = vmatprep.subr.mxu0 0.0
        %1678 = vmatpush1.msra.mxu0 0.0
        %1679 = vmatprep.subr.mxu0 0.0
        %1680 = vmatpush1.msra.mxu0 0.0
        %1681 = vmatprep.subr.mxu0 0.0
        %1682 = vmatpush1.msra.mxu0 0.0
        %1683 = vmatprep.subr.mxu0 0.0
        %1684 = vmatpush1.msra.mxu0 0.0
        %1685 = vmatprep.subr.mxu0 0.0
        %1686 = vmatpush1.msra.mxu0 0.0
        %1687 = vmatprep.subr.mxu0 0.0
        %1688 = vmatpush1.msra.mxu0 0.0
        %1689 = vmatprep.subr.mxu0 0.0
        %1690 = vmatpush1.msra.mxu0 0.0
        %1691 = vmatprep.subr.mxu0 0.0
        %1692 = vmatpush1.msra.mxu0 0.0
        %1693 = vmatprep.subr.mxu0 0.0
        %1694 = vmatpush1.msra.mxu0 0.0
        %1695 = vmatprep.subr.mxu0 0.0
        %1696 = vmatpush1.msra.mxu0 0.0
        %1697 = vmatprep.subr.mxu0 0.0
        %1698 = vmatpush1.msra.mxu0 0.0
        %1699 = vmatprep.subr.mxu0 0.0
        %1700 = vmatpush1.msra.mxu0 0.0
        %1701 = vmatprep.mubr.f32.mxu0 0.0
        %v1702 = vand.u32 %v1316, 4294901760
        %1703 = vmatmul.mubr.f32.gmra.mrb[0].mxu0 %v1702
        %v1704 = vpop.f32.mrb[0].mxu0
        %v1705 = vadd.f32 %v1627, %v1704
        %v1706 = vpop.f32.mrb[0].mxu0
        %v1707 = vadd.f32 %v1629, %v1706
        %1708 = vdwg.mxu0
        %v1709 = vand.u32 %v1312, 4294901760
        %1710 = vmatprep.subr.mxu0 %v1709
        %v1711 = vand.u32 %v1311, 4294901760
        %1712 = vmatpush1.msra.mxu0 %v1711
        %1713 = vmatprep.subr.mxu0 0.0
        %1714 = vmatpush1.msra.mxu0 0.0
        %1715 = vmatprep.subr.mxu0 0.0
        %1716 = vmatpush1.msra.mxu0 0.0
        %1717 = vmatprep.subr.mxu0 0.0
        %1718 = vmatpush1.msra.mxu0 0.0
        %1719 = vmatprep.subr.mxu0 0.0
        %1720 = vmatpush1.msra.mxu0 0.0
        %1721 = vmatprep.subr.mxu0 0.0
        %1722 = vmatpush1.msra.mxu0 0.0
        %1723 = vmatprep.subr.mxu0 0.0
        %1724 = vmatpush1.msra.mxu0 0.0
        %1725 = vmatprep.subr.mxu0 0.0
        %1726 = vmatpush1.msra.mxu0 0.0
        %1727 = vmatprep.subr.mxu0 0.0
        %1728 = vmatpush1.msra.mxu0 0.0
        %1729 = vmatprep.subr.mxu0 0.0
        %1730 = vmatpush1.msra.mxu0 0.0
        %1731 = vmatprep.subr.mxu0 0.0
        %1732 = vmatpush1.msra.mxu0 0.0
        %1733 = vmatprep.subr.mxu0 0.0
        %1734 = vmatpush1.msra.mxu0 0.0
        %1735 = vmatprep.subr.mxu0 0.0
        %1736 = vmatpush1.msra.mxu0 0.0
        %1737 = vmatprep.subr.mxu0 0.0
        %1738 = vmatpush1.msra.mxu0 0.0
        %1739 = vmatprep.subr.mxu0 0.0
        %1740 = vmatpush1.msra.mxu0 0.0
        %1741 = vmatprep.subr.mxu0 0.0
        %1742 = vmatpush1.msra.mxu0 0.0
        %1743 = vmatprep.subr.mxu0 0.0
        %1744 = vmatpush1.msra.mxu0 0.0
        %1745 = vmatprep.subr.mxu0 0.0
        %1746 = vmatpush1.msra.mxu0 0.0
        %1747 = vmatprep.subr.mxu0 0.0
        %1748 = vmatpush1.msra.mxu0 0.0
        %1749 = vmatprep.subr.mxu0 0.0
        %1750 = vmatpush1.msra.mxu0 0.0
        %1751 = vmatprep.subr.mxu0 0.0
        %1752 = vmatpush1.msra.mxu0 0.0
        %1753 = vmatprep.subr.mxu0 0.0
        %1754 = vmatpush1.msra.mxu0 0.0
        %1755 = vmatprep.subr.mxu0 0.0
        %1756 = vmatpush1.msra.mxu0 0.0
        %1757 = vmatprep.subr.mxu0 0.0
        %1758 = vmatpush1.msra.mxu0 0.0
        %1759 = vmatprep.subr.mxu0 0.0
        %1760 = vmatpush1.msra.mxu0 0.0
        %1761 = vmatprep.subr.mxu0 0.0
        %1762 = vmatpush1.msra.mxu0 0.0
        %1763 = vmatprep.subr.mxu0 0.0
        %1764 = vmatpush1.msra.mxu0 0.0
        %1765 = vmatprep.subr.mxu0 0.0
        %1766 = vmatpush1.msra.mxu0 0.0
        %1767 = vmatprep.subr.mxu0 0.0
        %1768 = vmatpush1.msra.mxu0 0.0
        %1769 = vmatprep.subr.mxu0 0.0
        %1770 = vmatpush1.msra.mxu0 0.0
        %1771 = vmatprep.subr.mxu0 0.0
        %1772 = vmatpush1.msra.mxu0 0.0
        %1773 = vmatprep.subr.mxu0 0.0
        %1774 = vmatpush1.msra.mxu0 0.0
        %1775 = vmatprep.mubr.f32.mxu0 0.0
        %v1776 = vand.u32 %v1316, 4294901760
        %1777 = vmatmul.mubr.f32.gmra.mrb[0].mxu0 %v1776
        %v1778 = vpop.f32.mrb[0].mxu0
        %v1779 = vadd.f32 %v1705, %v1778
        %v1780 = vpop.f32.mrb[0].mxu0
        %v1781 = vadd.f32 %v1707, %v1780
        %1782 = vdwg.mxu0
        %v1783 = vadd.f32 %v1287, %v1779
        %v1784 = vadd.f32 %v1289, %v1781
        %1785 = vrot.lane.b32.xlu0 %v304, 1
        %v1786 = vpop.permute.xlu0 %1785
        %1787 = vrot.lane.b32.xlu0 %v305, 1
        %v1788 = vpop.permute.xlu0 %1787
        %vm1789 = vcmp.lt.s32.totalorder %v311, 1
        %v1790 = vsel %vm1789, %v1786, %v1788
        %v1791 = vsel %vm1789, %v1788, %v1786
        %s1792 = scalar_lea.vmem %s0, 6
        %v1793 = vld [vmem:[%s1792] sm:$0x3]
        %v1795 = vlaneseq
        %v1796 = vshrl.u32 %v1795, 7
        %v1797 = vsub.s32 0, %v1796
        %v1798 = vrot.slane %v1793, %v1797
        %v1799 = vlaneseq
        %v1800 = vshrl.u32 %v1799, 7
        %v1801 = vsub.s32 1, %v1800
        %v1802 = vrot.slane %v1793, %v1801
        %v1805 = vmul.f32 %v1791, %v1798
        %v1806 = vmul.f32 %v1790, %v1802
        %s1807 = scalar_lea.vmem %s2, 24
        %v1808 = vld [vmem:[%s1807] sm:$0xff]
        %v1810 = vsel %vm354, %v1808, 0
        %v1812 = vand.u32 %v1806, 4294901760
        %1813 = vmatprep.subr.mxu0 %v1812
        %v1814 = vand.u32 %v1805, 4294901760
        %1815 = vmatpush1.msra.mxu0 %v1814
        %1816 = vmatprep.subr.mxu0 0.0
        %1817 = vmatpush1.msra.mxu0 0.0
        %1818 = vmatprep.subr.mxu0 0.0
        %1819 = vmatpush1.msra.mxu0 0.0
        %1820 = vmatprep.subr.mxu0 0.0
        %1821 = vmatpush1.msra.mxu0 0.0
        %1822 = vmatprep.subr.mxu0 0.0
        %1823 = vmatpush1.msra.mxu0 0.0
        %1824 = vmatprep.subr.mxu0 0.0
        %1825 = vmatpush1.msra.mxu0 0.0
        %1826 = vmatprep.subr.mxu0 0.0
        %1827 = vmatpush1.msra.mxu0 0.0
        %1828 = vmatprep.subr.mxu0 0.0
        %1829 = vmatpush1.msra.mxu0 0.0
        %1830 = vmatprep.subr.mxu0 0.0
        %1831 = vmatpush1.msra.mxu0 0.0
        %1832 = vmatprep.subr.mxu0 0.0
        %1833 = vmatpush1.msra.mxu0 0.0
        %1834 = vmatprep.subr.mxu0 0.0
        %1835 = vmatpush1.msra.mxu0 0.0
        %1836 = vmatprep.subr.mxu0 0.0
        %1837 = vmatpush1.msra.mxu0 0.0
        %1838 = vmatprep.subr.mxu0 0.0
        %1839 = vmatpush1.msra.mxu0 0.0
        %1840 = vmatprep.subr.mxu0 0.0
        %1841 = vmatpush1.msra.mxu0 0.0
        %1842 = vmatprep.subr.mxu0 0.0
        %1843 = vmatpush1.msra.mxu0 0.0
        %1844 = vmatprep.subr.mxu0 0.0
        %1845 = vmatpush1.msra.mxu0 0.0
        %1846 = vmatprep.subr.mxu0 0.0
        %1847 = vmatpush1.msra.mxu0 0.0
        %1848 = vmatprep.subr.mxu0 0.0
        %1849 = vmatpush1.msra.mxu0 0.0
        %1850 = vmatprep.subr.mxu0 0.0
        %1851 = vmatpush1.msra.mxu0 0.0
        %1852 = vmatprep.subr.mxu0 0.0
        %1853 = vmatpush1.msra.mxu0 0.0
        %1854 = vmatprep.subr.mxu0 0.0
        %1855 = vmatpush1.msra.mxu0 0.0
        %1856 = vmatprep.subr.mxu0 0.0
        %1857 = vmatpush1.msra.mxu0 0.0
        %1858 = vmatprep.subr.mxu0 0.0
        %1859 = vmatpush1.msra.mxu0 0.0
        %1860 = vmatprep.subr.mxu0 0.0
        %1861 = vmatpush1.msra.mxu0 0.0
        %1862 = vmatprep.subr.mxu0 0.0
        %1863 = vmatpush1.msra.mxu0 0.0
        %1864 = vmatprep.subr.mxu0 0.0
        %1865 = vmatpush1.msra.mxu0 0.0
        %1866 = vmatprep.subr.mxu0 0.0
        %1867 = vmatpush1.msra.mxu0 0.0
        %1868 = vmatprep.subr.mxu0 0.0
        %1869 = vmatpush1.msra.mxu0 0.0
        %1870 = vmatprep.subr.mxu0 0.0
        %1871 = vmatpush1.msra.mxu0 0.0
        %1872 = vmatprep.subr.mxu0 0.0
        %1873 = vmatpush1.msra.mxu0 0.0
        %1874 = vmatprep.subr.mxu0 0.0
        %1875 = vmatpush1.msra.mxu0 0.0
        %1876 = vmatprep.subr.mxu0 0.0
        %1877 = vmatpush1.msra.mxu0 0.0
        %1878 = vmatprep.mubr.f32.mxu0 0.0
        %v1879 = vand.u32 %v1810, 4294901760
        %v1880 = vsub.f32 %v1810, %v1879
        %v1881 = vand.u32 %v1880, 4294901760
        %v1882 = vsub.f32 %v1880, %v1881
        %v1883 = vand.u32 %v1882, 4294901760
        %1884 = vmatmul.mubr.f32.gmra.mrb[0].mxu0 %v1883
        %v1885 = vpop.f32.mrb[0].mxu0
        %v1886 = vadd.f32 0.0, %v1885
        %v1887 = vpop.f32.mrb[0].mxu0
        %v1888 = vadd.f32 0.0, %v1887
        %1889 = vdwg.mxu0
        %v1890 = vand.u32 %v1806, 4294901760
        %v1891 = vsub.f32 %v1806, %v1890
        %v1892 = vand.u32 %v1891, 4294901760
        %v1893 = vsub.f32 %v1891, %v1892
        %v1894 = vand.u32 %v1893, 4294901760
        %1895 = vmatprep.subr.mxu0 %v1894
        %v1896 = vand.u32 %v1805, 4294901760
        %v1897 = vsub.f32 %v1805, %v1896
        %v1898 = vand.u32 %v1897, 4294901760
        %v1899 = vsub.f32 %v1897, %v1898
        %v1900 = vand.u32 %v1899, 4294901760
        %1901 = vmatpush1.msra.mxu0 %v1900
        %1902 = vmatprep.subr.mxu0 0.0
        %1903 = vmatpush1.msra.mxu0 0.0
        %1904 = vmatprep.subr.mxu0 0.0
        %1905 = vmatpush1.msra.mxu0 0.0
        %1906 = vmatprep.subr.mxu0 0.0
        %1907 = vmatpush1.msra.mxu0 0.0
        %1908 = vmatprep.subr.mxu0 0.0
        %1909 = vmatpush1.msra.mxu0 0.0
        %1910 = vmatprep.subr.mxu0 0.0
        %1911 = vmatpush1.msra.mxu0 0.0
        %1912 = vmatprep.subr.mxu0 0.0
        %1913 = vmatpush1.msra.mxu0 0.0
        %1914 = vmatprep.subr.mxu0 0.0
        %1915 = vmatpush1.msra.mxu0 0.0
        %1916 = vmatprep.subr.mxu0 0.0
        %1917 = vmatpush1.msra.mxu0 0.0
        %1918 = vmatprep.subr.mxu0 0.0
        %1919 = vmatpush1.msra.mxu0 0.0
        %1920 = vmatprep.subr.mxu0 0.0
        %1921 = vmatpush1.msra.mxu0 0.0
        %1922 = vmatprep.subr.mxu0 0.0
        %1923 = vmatpush1.msra.mxu0 0.0
        %1924 = vmatprep.subr.mxu0 0.0
        %1925 = vmatpush1.msra.mxu0 0.0
        %1926 = vmatprep.subr.mxu0 0.0
        %1927 = vmatpush1.msra.mxu0 0.0
        %1928 = vmatprep.subr.mxu0 0.0
        %1929 = vmatpush1.msra.mxu0 0.0
        %1930 = vmatprep.subr.mxu0 0.0
        %1931 = vmatpush1.msra.mxu0 0.0
        %1932 = vmatprep.subr.mxu0 0.0
        %1933 = vmatpush1.msra.mxu0 0.0
        %1934 = vmatprep.subr.mxu0 0.0
        %1935 = vmatpush1.msra.mxu0 0.0
        %1936 = vmatprep.subr.mxu0 0.0
        %1937 = vmatpush1.msra.mxu0 0.0
        %1938 = vmatprep.subr.mxu0 0.0
        %1939 = vmatpush1.msra.mxu0 0.0
        %1940 = vmatprep.subr.mxu0 0.0
        %1941 = vmatpush1.msra.mxu0 0.0
        %1942 = vmatprep.subr.mxu0 0.0
        %1943 = vmatpush1.msra.mxu0 0.0
        %1944 = vmatprep.subr.mxu0 0.0
        %1945 = vmatpush1.msra.mxu0 0.0
        %1946 = vmatprep.subr.mxu0 0.0
        %1947 = vmatpush1.msra.mxu0 0.0
        %1948 = vmatprep.subr.mxu0 0.0
        %1949 = vmatpush1.msra.mxu0 0.0
        %1950 = vmatprep.subr.mxu0 0.0
        %1951 = vmatpush1.msra.mxu0 0.0
        %1952 = vmatprep.subr.mxu0 0.0
        %1953 = vmatpush1.msra.mxu0 0.0
        %1954 = vmatprep.subr.mxu0 0.0
        %1955 = vmatpush1.msra.mxu0 0.0
        %1956 = vmatprep.subr.mxu0 0.0
        %1957 = vmatpush1.msra.mxu0 0.0
        %1958 = vmatprep.subr.mxu0 0.0
        %1959 = vmatpush1.msra.mxu0 0.0
        %1960 = vmatprep.subr.mxu0 0.0
        %1961 = vmatpush1.msra.mxu0 0.0
        %1962 = vmatprep.subr.mxu0 0.0
        %1963 = vmatpush1.msra.mxu0 0.0
        %1964 = vmatprep.mubr.f32.mxu0 0.0
        %v1965 = vand.u32 %v1810, 4294901760
        %1966 = vmatmul.mubr.f32.gmra.mrb[0].mxu0 %v1965
        %v1967 = vpop.f32.mrb[0].mxu0
        %v1968 = vadd.f32 %v1886, %v1967
        %v1969 = vpop.f32.mrb[0].mxu0
        %v1970 = vadd.f32 %v1888, %v1969
        %1971 = vdwg.mxu0
        %v1972 = vand.u32 %v1806, 4294901760
        %v1973 = vsub.f32 %v1806, %v1972
        %1974 = vmatprep.subr.mxu0 %v1973
        %v1975 = vand.u32 %v1805, 4294901760
        %v1976 = vsub.f32 %v1805, %v1975
        %1977 = vmatpush1.msra.mxu0 %v1976
        %1978 = vmatprep.subr.mxu0 0.0
        %1979 = vmatpush1.msra.mxu0 0.0
        %1980 = vmatprep.subr.mxu0 0.0
        %1981 = vmatpush1.msra.mxu0 0.0
        %1982 = vmatprep.subr.mxu0 0.0
        %1983 = vmatpush1.msra.mxu0 0.0
        %1984 = vmatprep.subr.mxu0 0.0
        %1985 = vmatpush1.msra.mxu0 0.0
        %1986 = vmatprep.subr.mxu0 0.0
        %1987 = vmatpush1.msra.mxu0 0.0
        %1988 = vmatprep.subr.mxu0 0.0
        %1989 = vmatpush1.msra.mxu0 0.0
        %1990 = vmatprep.subr.mxu0 0.0
        %1991 = vmatpush1.msra.mxu0 0.0
        %1992 = vmatprep.subr.mxu0 0.0
        %1993 = vmatpush1.msra.mxu0 0.0
        %1994 = vmatprep.subr.mxu0 0.0
        %1995 = vmatpush1.msra.mxu0 0.0
        %1996 = vmatprep.subr.mxu0 0.0
        %1997 = vmatpush1.msra.mxu0 0.0
        %1998 = vmatprep.subr.mxu0 0.0
        %1999 = vmatpush1.msra.mxu0 0.0
        %2000 = vmatprep.subr.mxu0 0.0
        %2001 = vmatpush1.msra.mxu0 0.0
        %2002 = vmatprep.subr.mxu0 0.0
        %2003 = vmatpush1.msra.mxu0 0.0
        %2004 = vmatprep.subr.mxu0 0.0
        %2005 = vmatpush1.msra.mxu0 0.0
        %2006 = vmatprep.subr.mxu0 0.0
        %2007 = vmatpush1.msra.mxu0 0.0
        %2008 = vmatprep.subr.mxu0 0.0
        %2009 = vmatpush1.msra.mxu0 0.0
        %2010 = vmatprep.subr.mxu0 0.0
        %2011 = vmatpush1.msra.mxu0 0.0
        %2012 = vmatprep.subr.mxu0 0.0
        %2013 = vmatpush1.msra.mxu0 0.0
        %2014 = vmatprep.subr.mxu0 0.0
        %2015 = vmatpush1.msra.mxu0 0.0
        %2016 = vmatprep.subr.mxu0 0.0
        %2017 = vmatpush1.msra.mxu0 0.0
        %2018 = vmatprep.subr.mxu0 0.0
        %2019 = vmatpush1.msra.mxu0 0.0
        %2020 = vmatprep.subr.mxu0 0.0
        %2021 = vmatpush1.msra.mxu0 0.0
        %2022 = vmatprep.subr.mxu0 0.0
        %2023 = vmatpush1.msra.mxu0 0.0
        %2024 = vmatprep.subr.mxu0 0.0
        %2025 = vmatpush1.msra.mxu0 0.0
        %2026 = vmatprep.subr.mxu0 0.0
        %2027 = vmatpush1.msra.mxu0 0.0
        %2028 = vmatprep.subr.mxu0 0.0
        %2029 = vmatpush1.msra.mxu0 0.0
        %2030 = vmatprep.subr.mxu0 0.0
        %2031 = vmatpush1.msra.mxu0 0.0
        %2032 = vmatprep.subr.mxu0 0.0
        %2033 = vmatpush1.msra.mxu0 0.0
        %2034 = vmatprep.subr.mxu0 0.0
        %2035 = vmatpush1.msra.mxu0 0.0
        %2036 = vmatprep.subr.mxu0 0.0
        %2037 = vmatpush1.msra.mxu0 0.0
        %2038 = vmatprep.subr.mxu0 0.0
        %2039 = vmatpush1.msra.mxu0 0.0
        %2040 = vmatprep.mubr.f32.mxu0 0.0
        %v2041 = vand.u32 %v1810, 4294901760
        %v2042 = vsub.f32 %v1810, %v2041
        %2043 = vmatmul.mubr.f32.gmra.mrb[0].mxu0 %v2042
        %v2044 = vpop.f32.mrb[0].mxu0
        %v2045 = vadd.f32 %v1968, %v2044
        %v2046 = vpop.f32.mrb[0].mxu0
        %v2047 = vadd.f32 %v1970, %v2046
        %2048 = vdwg.mxu0
        %v2049 = vand.u32 %v1806, 4294901760
        %2050 = vmatprep.subr.mxu0 %v2049
        %v2051 = vand.u32 %v1805, 4294901760
        %2052 = vmatpush1.msra.mxu0 %v2051
        %2053 = vmatprep.subr.mxu0 0.0
        %2054 = vmatpush1.msra.mxu0 0.0
        %2055 = vmatprep.subr.mxu0 0.0
        %2056 = vmatpush1.msra.mxu0 0.0
        %2057 = vmatprep.subr.mxu0 0.0
        %2058 = vmatpush1.msra.mxu0 0.0
        %2059 = vmatprep.subr.mxu0 0.0
        %2060 = vmatpush1.msra.mxu0 0.0
        %2061 = vmatprep.subr.mxu0 0.0
        %2062 = vmatpush1.msra.mxu0 0.0
        %2063 = vmatprep.subr.mxu0 0.0
        %2064 = vmatpush1.msra.mxu0 0.0
        %2065 = vmatprep.subr.mxu0 0.0
        %2066 = vmatpush1.msra.mxu0 0.0
        %2067 = vmatprep.subr.mxu0 0.0
        %2068 = vmatpush1.msra.mxu0 0.0
        %2069 = vmatprep.subr.mxu0 0.0
        %2070 = vmatpush1.msra.mxu0 0.0
        %2071 = vmatprep.subr.mxu0 0.0
        %2072 = vmatpush1.msra.mxu0 0.0
        %2073 = vmatprep.subr.mxu0 0.0
        %2074 = vmatpush1.msra.mxu0 0.0
        %2075 = vmatprep.subr.mxu0 0.0
        %2076 = vmatpush1.msra.mxu0 0.0
        %2077 = vmatprep.subr.mxu0 0.0
        %2078 = vmatpush1.msra.mxu0 0.0
        %2079 = vmatprep.subr.mxu0 0.0
        %2080 = vmatpush1.msra.mxu0 0.0
        %2081 = vmatprep.subr.mxu0 0.0
        %2082 = vmatpush1.msra.mxu0 0.0
        %2083 = vmatprep.subr.mxu0 0.0
        %2084 = vmatpush1.msra.mxu0 0.0
        %2085 = vmatprep.subr.mxu0 0.0
        %2086 = vmatpush1.msra.mxu0 0.0
        %2087 = vmatprep.subr.mxu0 0.0
        %2088 = vmatpush1.msra.mxu0 0.0
        %2089 = vmatprep.subr.mxu0 0.0
        %2090 = vmatpush1.msra.mxu0 0.0
        %2091 = vmatprep.subr.mxu0 0.0
        %2092 = vmatpush1.msra.mxu0 0.0
        %2093 = vmatprep.subr.mxu0 0.0
        %2094 = vmatpush1.msra.mxu0 0.0
        %2095 = vmatprep.subr.mxu0 0.0
        %2096 = vmatpush1.msra.mxu0 0.0
        %2097 = vmatprep.subr.mxu0 0.0
        %2098 = vmatpush1.msra.mxu0 0.0
        %2099 = vmatprep.subr.mxu0 0.0
        %2100 = vmatpush1.msra.mxu0 0.0
        %2101 = vmatprep.subr.mxu0 0.0
        %2102 = vmatpush1.msra.mxu0 0.0
        %2103 = vmatprep.subr.mxu0 0.0
        %2104 = vmatpush1.msra.mxu0 0.0
        %2105 = vmatprep.subr.mxu0 0.0
        %2106 = vmatpush1.msra.mxu0 0.0
        %2107 = vmatprep.subr.mxu0 0.0
        %2108 = vmatpush1.msra.mxu0 0.0
        %2109 = vmatprep.subr.mxu0 0.0
        %2110 = vmatpush1.msra.mxu0 0.0
        %2111 = vmatprep.subr.mxu0 0.0
        %2112 = vmatpush1.msra.mxu0 0.0
        %2113 = vmatprep.subr.mxu0 0.0
        %2114 = vmatpush1.msra.mxu0 0.0
        %2115 = vmatprep.mubr.f32.mxu0 0.0
        %v2116 = vand.u32 %v1810, 4294901760
        %v2117 = vsub.f32 %v1810, %v2116
        %v2118 = vand.u32 %v2117, 4294901760
        %2119 = vmatmul.mubr.f32.gmra.mrb[0].mxu0 %v2118
        %v2120 = vpop.f32.mrb[0].mxu0
        %v2121 = vadd.f32 %v2045, %v2120
        %v2122 = vpop.f32.mrb[0].mxu0
        %v2123 = vadd.f32 %v2047, %v2122
        %2124 = vdwg.mxu0
        %v2125 = vand.u32 %v1806, 4294901760
        %v2126 = vsub.f32 %v1806, %v2125
        %v2127 = vand.u32 %v2126, 4294901760
        %2128 = vmatprep.subr.mxu0 %v2127
        %v2129 = vand.u32 %v1805, 4294901760
        %v2130 = vsub.f32 %v1805, %v2129
        %v2131 = vand.u32 %v2130, 4294901760
        %2132 = vmatpush1.msra.mxu0 %v2131
        %2133 = vmatprep.subr.mxu0 0.0
        %2134 = vmatpush1.msra.mxu0 0.0
        %2135 = vmatprep.subr.mxu0 0.0
        %2136 = vmatpush1.msra.mxu0 0.0
        %2137 = vmatprep.subr.mxu0 0.0
        %2138 = vmatpush1.msra.mxu0 0.0
        %2139 = vmatprep.subr.mxu0 0.0
        %2140 = vmatpush1.msra.mxu0 0.0
        %2141 = vmatprep.subr.mxu0 0.0
        %2142 = vmatpush1.msra.mxu0 0.0
        %2143 = vmatprep.subr.mxu0 0.0
        %2144 = vmatpush1.msra.mxu0 0.0
        %2145 = vmatprep.subr.mxu0 0.0
        %2146 = vmatpush1.msra.mxu0 0.0
        %2147 = vmatprep.subr.mxu0 0.0
        %2148 = vmatpush1.msra.mxu0 0.0
        %2149 = vmatprep.subr.mxu0 0.0
        %2150 = vmatpush1.msra.mxu0 0.0
        %2151 = vmatprep.subr.mxu0 0.0
        %2152 = vmatpush1.msra.mxu0 0.0
        %2153 = vmatprep.subr.mxu0 0.0
        %2154 = vmatpush1.msra.mxu0 0.0
        %2155 = vmatprep.subr.mxu0 0.0
        %2156 = vmatpush1.msra.mxu0 0.0
        %2157 = vmatprep.subr.mxu0 0.0
        %2158 = vmatpush1.msra.mxu0 0.0
        %2159 = vmatprep.subr.mxu0 0.0
        %2160 = vmatpush1.msra.mxu0 0.0
        %2161 = vmatprep.subr.mxu0 0.0
        %2162 = vmatpush1.msra.mxu0 0.0
        %2163 = vmatprep.subr.mxu0 0.0
        %2164 = vmatpush1.msra.mxu0 0.0
        %2165 = vmatprep.subr.mxu0 0.0
        %2166 = vmatpush1.msra.mxu0 0.0
        %2167 = vmatprep.subr.mxu0 0.0
        %2168 = vmatpush1.msra.mxu0 0.0
        %2169 = vmatprep.subr.mxu0 0.0
        %2170 = vmatpush1.msra.mxu0 0.0
        %2171 = vmatprep.subr.mxu0 0.0
        %2172 = vmatpush1.msra.mxu0 0.0
        %2173 = vmatprep.subr.mxu0 0.0
        %2174 = vmatpush1.msra.mxu0 0.0
        %2175 = vmatprep.subr.mxu0 0.0
        %2176 = vmatpush1.msra.mxu0 0.0
        %2177 = vmatprep.subr.mxu0 0.0
        %2178 = vmatpush1.msra.mxu0 0.0
        %2179 = vmatprep.subr.mxu0 0.0
        %2180 = vmatpush1.msra.mxu0 0.0
        %2181 = vmatprep.subr.mxu0 0.0
        %2182 = vmatpush1.msra.mxu0 0.0
        %2183 = vmatprep.subr.mxu0 0.0
        %2184 = vmatpush1.msra.mxu0 0.0
        %2185 = vmatprep.subr.mxu0 0.0
        %2186 = vmatpush1.msra.mxu0 0.0
        %2187 = vmatprep.subr.mxu0 0.0
        %2188 = vmatpush1.msra.mxu0 0.0
        %2189 = vmatprep.subr.mxu0 0.0
        %2190 = vmatpush1.msra.mxu0 0.0
        %2191 = vmatprep.subr.mxu0 0.0
        %2192 = vmatpush1.msra.mxu0 0.0
        %2193 = vmatprep.subr.mxu0 0.0
        %2194 = vmatpush1.msra.mxu0 0.0
        %2195 = vmatprep.mubr.f32.mxu0 0.0
        %v2196 = vand.u32 %v1810, 4294901760
        %2197 = vmatmul.mubr.f32.gmra.mrb[0].mxu0 %v2196
        %v2198 = vpop.f32.mrb[0].mxu0
        %v2199 = vadd.f32 %v2121, %v2198
        %v2200 = vpop.f32.mrb[0].mxu0
        %v2201 = vadd.f32 %v2123, %v2200
        %2202 = vdwg.mxu0
        %v2203 = vand.u32 %v1806, 4294901760
        %2204 = vmatprep.subr.mxu0 %v2203
        %v2205 = vand.u32 %v1805, 4294901760
        %2206 = vmatpush1.msra.mxu0 %v2205
        %2207 = vmatprep.subr.mxu0 0.0
        %2208 = vmatpush1.msra.mxu0 0.0
        %2209 = vmatprep.subr.mxu0 0.0
        %2210 = vmatpush1.msra.mxu0 0.0
        %2211 = vmatprep.subr.mxu0 0.0
        %2212 = vmatpush1.msra.mxu0 0.0
        %2213 = vmatprep.subr.mxu0 0.0
        %2214 = vmatpush1.msra.mxu0 0.0
        %2215 = vmatprep.subr.mxu0 0.0
        %2216 = vmatpush1.msra.mxu0 0.0
        %2217 = vmatprep.subr.mxu0 0.0
        %2218 = vmatpush1.msra.mxu0 0.0
        %2219 = vmatprep.subr.mxu0 0.0
        %2220 = vmatpush1.msra.mxu0 0.0
        %2221 = vmatprep.subr.mxu0 0.0
        %2222 = vmatpush1.msra.mxu0 0.0
        %2223 = vmatprep.subr.mxu0 0.0
        %2224 = vmatpush1.msra.mxu0 0.0
        %2225 = vmatprep.subr.mxu0 0.0
        %2226 = vmatpush1.msra.mxu0 0.0
        %2227 = vmatprep.subr.mxu0 0.0
        %2228 = vmatpush1.msra.mxu0 0.0
        %2229 = vmatprep.subr.mxu0 0.0
        %2230 = vmatpush1.msra.mxu0 0.0
        %2231 = vmatprep.subr.mxu0 0.0
        %2232 = vmatpush1.msra.mxu0 0.0
        %2233 = vmatprep.subr.mxu0 0.0
        %2234 = vmatpush1.msra.mxu0 0.0
        %2235 = vmatprep.subr.mxu0 0.0
        %2236 = vmatpush1.msra.mxu0 0.0
        %2237 = vmatprep.subr.mxu0 0.0
        %2238 = vmatpush1.msra.mxu0 0.0
        %2239 = vmatprep.subr.mxu0 0.0
        %2240 = vmatpush1.msra.mxu0 0.0
        %2241 = vmatprep.subr.mxu0 0.0
        %2242 = vmatpush1.msra.mxu0 0.0
        %2243 = vmatprep.subr.mxu0 0.0
        %2244 = vmatpush1.msra.mxu0 0.0
        %2245 = vmatprep.subr.mxu0 0.0
        %2246 = vmatpush1.msra.mxu0 0.0
        %2247 = vmatprep.subr.mxu0 0.0
        %2248 = vmatpush1.msra.mxu0 0.0
        %2249 = vmatprep.subr.mxu0 0.0
        %2250 = vmatpush1.msra.mxu0 0.0
        %2251 = vmatprep.subr.mxu0 0.0
        %2252 = vmatpush1.msra.mxu0 0.0
        %2253 = vmatprep.subr.mxu0 0.0
        %2254 = vmatpush1.msra.mxu0 0.0
        %2255 = vmatprep.subr.mxu0 0.0
        %2256 = vmatpush1.msra.mxu0 0.0
        %2257 = vmatprep.subr.mxu0 0.0
        %2258 = vmatpush1.msra.mxu0 0.0
        %2259 = vmatprep.subr.mxu0 0.0
        %2260 = vmatpush1.msra.mxu0 0.0
        %2261 = vmatprep.subr.mxu0 0.0
        %2262 = vmatpush1.msra.mxu0 0.0
        %2263 = vmatprep.subr.mxu0 0.0
        %2264 = vmatpush1.msra.mxu0 0.0
        %2265 = vmatprep.subr.mxu0 0.0
        %2266 = vmatpush1.msra.mxu0 0.0
        %2267 = vmatprep.subr.mxu0 0.0
        %2268 = vmatpush1.msra.mxu0 0.0
        %2269 = vmatprep.mubr.f32.mxu0 0.0
        %v2270 = vand.u32 %v1810, 4294901760
        %2271 = vmatmul.mubr.f32.gmra.mrb[0].mxu0 %v2270
        %v2272 = vpop.f32.mrb[0].mxu0
        %v2273 = vadd.f32 %v2199, %v2272
        %v2274 = vpop.f32.mrb[0].mxu0
        %v2275 = vadd.f32 %v2201, %v2274
        %2276 = vdwg.mxu0
        %v2277 = vadd.f32 %v1783, %v2273
        %v2278 = vadd.f32 %v1784, %v2275
        %s2279 = scalar_lea.vmem %s2, 32
        %v2280 = vld [vmem:[%s2279] sm:$0xff]
        %v2282 = vsel %vm354, %v2280, 0
        %v2284 = vand.u32 %v305, 4294901760
        %2285 = vmatprep.subr.mxu0 %v2284
        %v2286 = vand.u32 %v304, 4294901760
        %2287 = vmatpush1.msra.mxu0 %v2286
        %2288 = vmatprep.subr.mxu0 0.0
        %2289 = vmatpush1.msra.mxu0 0.0
        %2290 = vmatprep.subr.mxu0 0.0
        %2291 = vmatpush1.msra.mxu0 0.0
        %2292 = vmatprep.subr.mxu0 0.0
        %2293 = vmatpush1.msra.mxu0 0.0
        %2294 = vmatprep.subr.mxu0 0.0
        %2295 = vmatpush1.msra.mxu0 0.0
        %2296 = vmatprep.subr.mxu0 0.0
        %2297 = vmatpush1.msra.mxu0 0.0
        %2298 = vmatprep.subr.mxu0 0.0
        %2299 = vmatpush1.msra.mxu0 0.0
        %2300 = vmatprep.subr.mxu0 0.0
        %2301 = vmatpush1.msra.mxu0 0.0
        %2302 = vmatprep.subr.mxu0 0.0
        %2303 = vmatpush1.msra.mxu0 0.0
        %2304 = vmatprep.subr.mxu0 0.0
        %2305 = vmatpush1.msra.mxu0 0.0
        %2306 = vmatprep.subr.mxu0 0.0
        %2307 = vmatpush1.msra.mxu0 0.0
        %2308 = vmatprep.subr.mxu0 0.0
        %2309 = vmatpush1.msra.mxu0 0.0
        %2310 = vmatprep.subr.mxu0 0.0
        %2311 = vmatpush1.msra.mxu0 0.0
        %2312 = vmatprep.subr.mxu0 0.0
        %2313 = vmatpush1.msra.mxu0 0.0
        %2314 = vmatprep.subr.mxu0 0.0
        %2315 = vmatpush1.msra.mxu0 0.0
        %2316 = vmatprep.subr.mxu0 0.0
        %2317 = vmatpush1.msra.mxu0 0.0
        %2318 = vmatprep.subr.mxu0 0.0
        %2319 = vmatpush1.msra.mxu0 0.0
        %2320 = vmatprep.subr.mxu0 0.0
        %2321 = vmatpush1.msra.mxu0 0.0
        %2322 = vmatprep.subr.mxu0 0.0
        %2323 = vmatpush1.msra.mxu0 0.0
        %2324 = vmatprep.subr.mxu0 0.0
        %2325 = vmatpush1.msra.mxu0 0.0
        %2326 = vmatprep.subr.mxu0 0.0
        %2327 = vmatpush1.msra.mxu0 0.0
        %2328 = vmatprep.subr.mxu0 0.0
        %2329 = vmatpush1.msra.mxu0 0.0
        %2330 = vmatprep.subr.mxu0 0.0
        %2331 = vmatpush1.msra.mxu0 0.0
        %2332 = vmatprep.subr.mxu0 0.0
        %2333 = vmatpush1.msra.mxu0 0.0
        %2334 = vmatprep.subr.mxu0 0.0
        %2335 = vmatpush1.msra.mxu0 0.0
        %2336 = vmatprep.subr.mxu0 0.0
        %2337 = vmatpush1.msra.mxu0 0.0
        %2338 = vmatprep.subr.mxu0 0.0
        %2339 = vmatpush1.msra.mxu0 0.0
        %2340 = vmatprep.subr.mxu0 0.0
        %2341 = vmatpush1.msra.mxu0 0.0
        %2342 = vmatprep.subr.mxu0 0.0
        %2343 = vmatpush1.msra.mxu0 0.0
        %2344 = vmatprep.subr.mxu0 0.0
        %2345 = vmatpush1.msra.mxu0 0.0
        %2346 = vmatprep.subr.mxu0 0.0
        %2347 = vmatpush1.msra.mxu0 0.0
        %2348 = vmatprep.subr.mxu0 0.0
        %2349 = vmatpush1.msra.mxu0 0.0
        %2350 = vmatprep.mubr.f32.mxu0 0.0
        %v2351 = vand.u32 %v2282, 4294901760
        %v2352 = vsub.f32 %v2282, %v2351
        %v2353 = vand.u32 %v2352, 4294901760
        %v2354 = vsub.f32 %v2352, %v2353
        %v2355 = vand.u32 %v2354, 4294901760
        %2356 = vmatmul.mubr.f32.gmra.mrb[0].mxu0 %v2355
        %v2357 = vpop.f32.mrb[0].mxu0
        %v2358 = vadd.f32 0.0, %v2357
        %v2359 = vpop.f32.mrb[0].mxu0
        %v2360 = vadd.f32 0.0, %v2359
        %2361 = vdwg.mxu0
        %v2362 = vand.u32 %v305, 4294901760
        %v2363 = vsub.f32 %v305, %v2362
        %v2364 = vand.u32 %v2363, 4294901760
        %v2365 = vsub.f32 %v2363, %v2364
        %v2366 = vand.u32 %v2365, 4294901760
        %2367 = vmatprep.subr.mxu0 %v2366
        %v2368 = vand.u32 %v304, 4294901760
        %v2369 = vsub.f32 %v304, %v2368
        %v2370 = vand.u32 %v2369, 4294901760
        %v2371 = vsub.f32 %v2369, %v2370
        %v2372 = vand.u32 %v2371, 4294901760
        %2373 = vmatpush1.msra.mxu0 %v2372
        %2374 = vmatprep.subr.mxu0 0.0
        %2375 = vmatpush1.msra.mxu0 0.0
        %2376 = vmatprep.subr.mxu0 0.0
        %2377 = vmatpush1.msra.mxu0 0.0
        %2378 = vmatprep.subr.mxu0 0.0
        %2379 = vmatpush1.msra.mxu0 0.0
        %2380 = vmatprep.subr.mxu0 0.0
        %2381 = vmatpush1.msra.mxu0 0.0
        %2382 = vmatprep.subr.mxu0 0.0
        %2383 = vmatpush1.msra.mxu0 0.0
        %2384 = vmatprep.subr.mxu0 0.0
        %2385 = vmatpush1.msra.mxu0 0.0
        %2386 = vmatprep.subr.mxu0 0.0
        %2387 = vmatpush1.msra.mxu0 0.0
        %2388 = vmatprep.subr.mxu0 0.0
        %2389 = vmatpush1.msra.mxu0 0.0
        %2390 = vmatprep.subr.mxu0 0.0
        %2391 = vmatpush1.msra.mxu0 0.0
        %2392 = vmatprep.subr.mxu0 0.0
        %2393 = vmatpush1.msra.mxu0 0.0
        %2394 = vmatprep.subr.mxu0 0.0
        %2395 = vmatpush1.msra.mxu0 0.0
        %2396 = vmatprep.subr.mxu0 0.0
        %2397 = vmatpush1.msra.mxu0 0.0
        %2398 = vmatprep.subr.mxu0 0.0
        %2399 = vmatpush1.msra.mxu0 0.0
        %2400 = vmatprep.subr.mxu0 0.0
        %2401 = vmatpush1.msra.mxu0 0.0
        %2402 = vmatprep.subr.mxu0 0.0
        %2403 = vmatpush1.msra.mxu0 0.0
        %2404 = vmatprep.subr.mxu0 0.0
        %2405 = vmatpush1.msra.mxu0 0.0
        %2406 = vmatprep.subr.mxu0 0.0
        %2407 = vmatpush1.msra.mxu0 0.0
        %2408 = vmatprep.subr.mxu0 0.0
        %2409 = vmatpush1.msra.mxu0 0.0
        %2410 = vmatprep.subr.mxu0 0.0
        %2411 = vmatpush1.msra.mxu0 0.0
        %2412 = vmatprep.subr.mxu0 0.0
        %2413 = vmatpush1.msra.mxu0 0.0
        %2414 = vmatprep.subr.mxu0 0.0
        %2415 = vmatpush1.msra.mxu0 0.0
        %2416 = vmatprep.subr.mxu0 0.0
        %2417 = vmatpush1.msra.mxu0 0.0
        %2418 = vmatprep.subr.mxu0 0.0
        %2419 = vmatpush1.msra.mxu0 0.0
        %2420 = vmatprep.subr.mxu0 0.0
        %2421 = vmatpush1.msra.mxu0 0.0
        %2422 = vmatprep.subr.mxu0 0.0
        %2423 = vmatpush1.msra.mxu0 0.0
        %2424 = vmatprep.subr.mxu0 0.0
        %2425 = vmatpush1.msra.mxu0 0.0
        %2426 = vmatprep.subr.mxu0 0.0
        %2427 = vmatpush1.msra.mxu0 0.0
        %2428 = vmatprep.subr.mxu0 0.0
        %2429 = vmatpush1.msra.mxu0 0.0
        %2430 = vmatprep.subr.mxu0 0.0
        %2431 = vmatpush1.msra.mxu0 0.0
        %2432 = vmatprep.subr.mxu0 0.0
        %2433 = vmatpush1.msra.mxu0 0.0
        %2434 = vmatprep.subr.mxu0 0.0
        %2435 = vmatpush1.msra.mxu0 0.0
        %2436 = vmatprep.mubr.f32.mxu0 0.0
        %v2437 = vand.u32 %v2282, 4294901760
        %2438 = vmatmul.mubr.f32.gmra.mrb[0].mxu0 %v2437
        %v2439 = vpop.f32.mrb[0].mxu0
        %v2440 = vadd.f32 %v2358, %v2439
        %v2441 = vpop.f32.mrb[0].mxu0
        %v2442 = vadd.f32 %v2360, %v2441
        %2443 = vdwg.mxu0
        %v2444 = vand.u32 %v305, 4294901760
        %v2445 = vsub.f32 %v305, %v2444
        %2446 = vmatprep.subr.mxu0 %v2445
        %v2447 = vand.u32 %v304, 4294901760
        %v2448 = vsub.f32 %v304, %v2447
        %2449 = vmatpush1.msra.mxu0 %v2448
        %2450 = vmatprep.subr.mxu0 0.0
        %2451 = vmatpush1.msra.mxu0 0.0
        %2452 = vmatprep.subr.mxu0 0.0
        %2453 = vmatpush1.msra.mxu0 0.0
        %2454 = vmatprep.subr.mxu0 0.0
        %2455 = vmatpush1.msra.mxu0 0.0
        %2456 = vmatprep.subr.mxu0 0.0
        %2457 = vmatpush1.msra.mxu0 0.0
        %2458 = vmatprep.subr.mxu0 0.0
        %2459 = vmatpush1.msra.mxu0 0.0
        %2460 = vmatprep.subr.mxu0 0.0
        %2461 = vmatpush1.msra.mxu0 0.0
        %2462 = vmatprep.subr.mxu0 0.0
        %2463 = vmatpush1.msra.mxu0 0.0
        %2464 = vmatprep.subr.mxu0 0.0
        %2465 = vmatpush1.msra.mxu0 0.0
        %2466 = vmatprep.subr.mxu0 0.0
        %2467 = vmatpush1.msra.mxu0 0.0
        %2468 = vmatprep.subr.mxu0 0.0
        %2469 = vmatpush1.msra.mxu0 0.0
        %2470 = vmatprep.subr.mxu0 0.0
        %2471 = vmatpush1.msra.mxu0 0.0
        %2472 = vmatprep.subr.mxu0 0.0
        %2473 = vmatpush1.msra.mxu0 0.0
        %2474 = vmatprep.subr.mxu0 0.0
        %2475 = vmatpush1.msra.mxu0 0.0
        %2476 = vmatprep.subr.mxu0 0.0
        %2477 = vmatpush1.msra.mxu0 0.0
        %2478 = vmatprep.subr.mxu0 0.0
        %2479 = vmatpush1.msra.mxu0 0.0
        %2480 = vmatprep.subr.mxu0 0.0
        %2481 = vmatpush1.msra.mxu0 0.0
        %2482 = vmatprep.subr.mxu0 0.0
        %2483 = vmatpush1.msra.mxu0 0.0
        %2484 = vmatprep.subr.mxu0 0.0
        %2485 = vmatpush1.msra.mxu0 0.0
        %2486 = vmatprep.subr.mxu0 0.0
        %2487 = vmatpush1.msra.mxu0 0.0
        %2488 = vmatprep.subr.mxu0 0.0
        %2489 = vmatpush1.msra.mxu0 0.0
        %2490 = vmatprep.subr.mxu0 0.0
        %2491 = vmatpush1.msra.mxu0 0.0
        %2492 = vmatprep.subr.mxu0 0.0
        %2493 = vmatpush1.msra.mxu0 0.0
        %2494 = vmatprep.subr.mxu0 0.0
        %2495 = vmatpush1.msra.mxu0 0.0
        %2496 = vmatprep.subr.mxu0 0.0
        %2497 = vmatpush1.msra.mxu0 0.0
        %2498 = vmatprep.subr.mxu0 0.0
        %2499 = vmatpush1.msra.mxu0 0.0
        %2500 = vmatprep.subr.mxu0 0.0
        %2501 = vmatpush1.msra.mxu0 0.0
        %2502 = vmatprep.subr.mxu0 0.0
        %2503 = vmatpush1.msra.mxu0 0.0
        %2504 = vmatprep.subr.mxu0 0.0
        %2505 = vmatpush1.msra.mxu0 0.0
        %2506 = vmatprep.subr.mxu0 0.0
        %2507 = vmatpush1.msra.mxu0 0.0
        %2508 = vmatprep.subr.mxu0 0.0
        %2509 = vmatpush1.msra.mxu0 0.0
        %2510 = vmatprep.subr.mxu0 0.0
        %2511 = vmatpush1.msra.mxu0 0.0
        %2512 = vmatprep.mubr.f32.mxu0 0.0
        %v2513 = vand.u32 %v2282, 4294901760
        %v2514 = vsub.f32 %v2282, %v2513
        %2515 = vmatmul.mubr.f32.gmra.mrb[0].mxu0 %v2514
        %v2516 = vpop.f32.mrb[0].mxu0
        %v2517 = vadd.f32 %v2440, %v2516
        %v2518 = vpop.f32.mrb[0].mxu0
        %v2519 = vadd.f32 %v2442, %v2518
        %2520 = vdwg.mxu0
        %v2521 = vand.u32 %v305, 4294901760
        %2522 = vmatprep.subr.mxu0 %v2521
        %v2523 = vand.u32 %v304, 4294901760
        %2524 = vmatpush1.msra.mxu0 %v2523
        %2525 = vmatprep.subr.mxu0 0.0
        %2526 = vmatpush1.msra.mxu0 0.0
        %2527 = vmatprep.subr.mxu0 0.0
        %2528 = vmatpush1.msra.mxu0 0.0
        %2529 = vmatprep.subr.mxu0 0.0
        %2530 = vmatpush1.msra.mxu0 0.0
        %2531 = vmatprep.subr.mxu0 0.0
        %2532 = vmatpush1.msra.mxu0 0.0
        %2533 = vmatprep.subr.mxu0 0.0
        %2534 = vmatpush1.msra.mxu0 0.0
        %2535 = vmatprep.subr.mxu0 0.0
        %2536 = vmatpush1.msra.mxu0 0.0
        %2537 = vmatprep.subr.mxu0 0.0
        %2538 = vmatpush1.msra.mxu0 0.0
        %2539 = vmatprep.subr.mxu0 0.0
        %2540 = vmatpush1.msra.mxu0 0.0
        %2541 = vmatprep.subr.mxu0 0.0
        %2542 = vmatpush1.msra.mxu0 0.0
        %2543 = vmatprep.subr.mxu0 0.0
        %2544 = vmatpush1.msra.mxu0 0.0
        %2545 = vmatprep.subr.mxu0 0.0
        %2546 = vmatpush1.msra.mxu0 0.0
        %2547 = vmatprep.subr.mxu0 0.0
        %2548 = vmatpush1.msra.mxu0 0.0
        %2549 = vmatprep.subr.mxu0 0.0
        %2550 = vmatpush1.msra.mxu0 0.0
        %2551 = vmatprep.subr.mxu0 0.0
        %2552 = vmatpush1.msra.mxu0 0.0
        %2553 = vmatprep.subr.mxu0 0.0
        %2554 = vmatpush1.msra.mxu0 0.0
        %2555 = vmatprep.subr.mxu0 0.0
        %2556 = vmatpush1.msra.mxu0 0.0
        %2557 = vmatprep.subr.mxu0 0.0
        %2558 = vmatpush1.msra.mxu0 0.0
        %2559 = vmatprep.subr.mxu0 0.0
        %2560 = vmatpush1.msra.mxu0 0.0
        %2561 = vmatprep.subr.mxu0 0.0
        %2562 = vmatpush1.msra.mxu0 0.0
        %2563 = vmatprep.subr.mxu0 0.0
        %2564 = vmatpush1.msra.mxu0 0.0
        %2565 = vmatprep.subr.mxu0 0.0
        %2566 = vmatpush1.msra.mxu0 0.0
        %2567 = vmatprep.subr.mxu0 0.0
        %2568 = vmatpush1.msra.mxu0 0.0
        %2569 = vmatprep.subr.mxu0 0.0
        %2570 = vmatpush1.msra.mxu0 0.0
        %2571 = vmatprep.subr.mxu0 0.0
        %2572 = vmatpush1.msra.mxu0 0.0
        %2573 = vmatprep.subr.mxu0 0.0
        %2574 = vmatpush1.msra.mxu0 0.0
        %2575 = vmatprep.subr.mxu0 0.0
        %2576 = vmatpush1.msra.mxu0 0.0
        %2577 = vmatprep.subr.mxu0 0.0
        %2578 = vmatpush1.msra.mxu0 0.0
        %2579 = vmatprep.subr.mxu0 0.0
        %2580 = vmatpush1.msra.mxu0 0.0
        %2581 = vmatprep.subr.mxu0 0.0
        %2582 = vmatpush1.msra.mxu0 0.0
        %2583 = vmatprep.subr.mxu0 0.0
        %2584 = vmatpush1.msra.mxu0 0.0
        %2585 = vmatprep.subr.mxu0 0.0
        %2586 = vmatpush1.msra.mxu0 0.0
        %2587 = vmatprep.mubr.f32.mxu0 0.0
        %v2588 = vand.u32 %v2282, 4294901760
        %v2589 = vsub.f32 %v2282, %v2588
        %v2590 = vand.u32 %v2589, 4294901760
        %2591 = vmatmul.mubr.f32.gmra.mrb[0].mxu0 %v2590
        %v2592 = vpop.f32.mrb[0].mxu0
        %v2593 = vadd.f32 %v2517, %v2592
        %v2594 = vpop.f32.mrb[0].mxu0
        %v2595 = vadd.f32 %v2519, %v2594
        %2596 = vdwg.mxu0
        %v2597 = vand.u32 %v305, 4294901760
        %v2598 = vsub.f32 %v305, %v2597
        %v2599 = vand.u32 %v2598, 4294901760
        %2600 = vmatprep.subr.mxu0 %v2599
        %v2601 = vand.u32 %v304, 4294901760
        %v2602 = vsub.f32 %v304, %v2601
        %v2603 = vand.u32 %v2602, 4294901760
        %2604 = vmatpush1.msra.mxu0 %v2603
        %2605 = vmatprep.subr.mxu0 0.0
        %2606 = vmatpush1.msra.mxu0 0.0
        %2607 = vmatprep.subr.mxu0 0.0
        %2608 = vmatpush1.msra.mxu0 0.0
        %2609 = vmatprep.subr.mxu0 0.0
        %2610 = vmatpush1.msra.mxu0 0.0
        %2611 = vmatprep.subr.mxu0 0.0
        %2612 = vmatpush1.msra.mxu0 0.0
        %2613 = vmatprep.subr.mxu0 0.0
        %2614 = vmatpush1.msra.mxu0 0.0
        %2615 = vmatprep.subr.mxu0 0.0
        %2616 = vmatpush1.msra.mxu0 0.0
        %2617 = vmatprep.subr.mxu0 0.0
        %2618 = vmatpush1.msra.mxu0 0.0
        %2619 = vmatprep.subr.mxu0 0.0
        %2620 = vmatpush1.msra.mxu0 0.0
        %2621 = vmatprep.subr.mxu0 0.0
        %2622 = vmatpush1.msra.mxu0 0.0
        %2623 = vmatprep.subr.mxu0 0.0
        %2624 = vmatpush1.msra.mxu0 0.0
        %2625 = vmatprep.subr.mxu0 0.0
        %2626 = vmatpush1.msra.mxu0 0.0
        %2627 = vmatprep.subr.mxu0 0.0
        %2628 = vmatpush1.msra.mxu0 0.0
        %2629 = vmatprep.subr.mxu0 0.0
        %2630 = vmatpush1.msra.mxu0 0.0
        %2631 = vmatprep.subr.mxu0 0.0
        %2632 = vmatpush1.msra.mxu0 0.0
        %2633 = vmatprep.subr.mxu0 0.0
        %2634 = vmatpush1.msra.mxu0 0.0
        %2635 = vmatprep.subr.mxu0 0.0
        %2636 = vmatpush1.msra.mxu0 0.0
        %2637 = vmatprep.subr.mxu0 0.0
        %2638 = vmatpush1.msra.mxu0 0.0
        %2639 = vmatprep.subr.mxu0 0.0
        %2640 = vmatpush1.msra.mxu0 0.0
        %2641 = vmatprep.subr.mxu0 0.0
        %2642 = vmatpush1.msra.mxu0 0.0
        %2643 = vmatprep.subr.mxu0 0.0
        %2644 = vmatpush1.msra.mxu0 0.0
        %2645 = vmatprep.subr.mxu0 0.0
        %2646 = vmatpush1.msra.mxu0 0.0
        %2647 = vmatprep.subr.mxu0 0.0
        %2648 = vmatpush1.msra.mxu0 0.0
        %2649 = vmatprep.subr.mxu0 0.0
        %2650 = vmatpush1.msra.mxu0 0.0
        %2651 = vmatprep.subr.mxu0 0.0
        %2652 = vmatpush1.msra.mxu0 0.0
        %2653 = vmatprep.subr.mxu0 0.0
        %2654 = vmatpush1.msra.mxu0 0.0
        %2655 = vmatprep.subr.mxu0 0.0
        %2656 = vmatpush1.msra.mxu0 0.0
        %2657 = vmatprep.subr.mxu0 0.0
        %2658 = vmatpush1.msra.mxu0 0.0
        %2659 = vmatprep.subr.mxu0 0.0
        %2660 = vmatpush1.msra.mxu0 0.0
        %2661 = vmatprep.subr.mxu0 0.0
        %2662 = vmatpush1.msra.mxu0 0.0
        %2663 = vmatprep.subr.mxu0 0.0
        %2664 = vmatpush1.msra.mxu0 0.0
        %2665 = vmatprep.subr.mxu0 0.0
        %2666 = vmatpush1.msra.mxu0 0.0
        %2667 = vmatprep.mubr.f32.mxu0 0.0
        %v2668 = vand.u32 %v2282, 4294901760
        %2669 = vmatmul.mubr.f32.gmra.mrb[0].mxu0 %v2668
        %v2670 = vpop.f32.mrb[0].mxu0
        %v2671 = vadd.f32 %v2593, %v2670
        %v2672 = vpop.f32.mrb[0].mxu0
        %v2673 = vadd.f32 %v2595, %v2672
        %2674 = vdwg.mxu0
        %v2675 = vand.u32 %v305, 4294901760
        %2676 = vmatprep.subr.mxu0 %v2675
        %v2677 = vand.u32 %v304, 4294901760
        %2678 = vmatpush1.msra.mxu0 %v2677
        %2679 = vmatprep.subr.mxu0 0.0
        %2680 = vmatpush1.msra.mxu0 0.0
        %2681 = vmatprep.subr.mxu0 0.0
        %2682 = vmatpush1.msra.mxu0 0.0
        %2683 = vmatprep.subr.mxu0 0.0
        %2684 = vmatpush1.msra.mxu0 0.0
        %2685 = vmatprep.subr.mxu0 0.0
        %2686 = vmatpush1.msra.mxu0 0.0
        %2687 = vmatprep.subr.mxu0 0.0
        %2688 = vmatpush1.msra.mxu0 0.0
        %2689 = vmatprep.subr.mxu0 0.0
        %2690 = vmatpush1.msra.mxu0 0.0
        %2691 = vmatprep.subr.mxu0 0.0
        %2692 = vmatpush1.msra.mxu0 0.0
        %2693 = vmatprep.subr.mxu0 0.0
        %2694 = vmatpush1.msra.mxu0 0.0
        %2695 = vmatprep.subr.mxu0 0.0
        %2696 = vmatpush1.msra.mxu0 0.0
        %2697 = vmatprep.subr.mxu0 0.0
        %2698 = vmatpush1.msra.mxu0 0.0
        %2699 = vmatprep.subr.mxu0 0.0
        %2700 = vmatpush1.msra.mxu0 0.0
        %2701 = vmatprep.subr.mxu0 0.0
        %2702 = vmatpush1.msra.mxu0 0.0
        %2703 = vmatprep.subr.mxu0 0.0
        %2704 = vmatpush1.msra.mxu0 0.0
        %2705 = vmatprep.subr.mxu0 0.0
        %2706 = vmatpush1.msra.mxu0 0.0
        %2707 = vmatprep.subr.mxu0 0.0
        %2708 = vmatpush1.msra.mxu0 0.0
        %2709 = vmatprep.subr.mxu0 0.0
        %2710 = vmatpush1.msra.mxu0 0.0
        %2711 = vmatprep.subr.mxu0 0.0
        %2712 = vmatpush1.msra.mxu0 0.0
        %2713 = vmatprep.subr.mxu0 0.0
        %2714 = vmatpush1.msra.mxu0 0.0
        %2715 = vmatprep.subr.mxu0 0.0
        %2716 = vmatpush1.msra.mxu0 0.0
        %2717 = vmatprep.subr.mxu0 0.0
        %2718 = vmatpush1.msra.mxu0 0.0
        %2719 = vmatprep.subr.mxu0 0.0
        %2720 = vmatpush1.msra.mxu0 0.0
        %2721 = vmatprep.subr.mxu0 0.0
        %2722 = vmatpush1.msra.mxu0 0.0
        %2723 = vmatprep.subr.mxu0 0.0
        %2724 = vmatpush1.msra.mxu0 0.0
        %2725 = vmatprep.subr.mxu0 0.0
        %2726 = vmatpush1.msra.mxu0 0.0
        %2727 = vmatprep.subr.mxu0 0.0
        %2728 = vmatpush1.msra.mxu0 0.0
        %2729 = vmatprep.subr.mxu0 0.0
        %2730 = vmatpush1.msra.mxu0 0.0
        %2731 = vmatprep.subr.mxu0 0.0
        %2732 = vmatpush1.msra.mxu0 0.0
        %2733 = vmatprep.subr.mxu0 0.0
        %2734 = vmatpush1.msra.mxu0 0.0
        %2735 = vmatprep.subr.mxu0 0.0
        %2736 = vmatpush1.msra.mxu0 0.0
        %2737 = vmatprep.subr.mxu0 0.0
        %2738 = vmatpush1.msra.mxu0 0.0
        %2739 = vmatprep.subr.mxu0 0.0
        %2740 = vmatpush1.msra.mxu0 0.0
        %2741 = vmatprep.mubr.f32.mxu0 0.0
        %v2742 = vand.u32 %v2282, 4294901760
        %2743 = vmatmul.mubr.f32.gmra.mrb[0].mxu0 %v2742
        %v2744 = vpop.f32.mrb[0].mxu0
        %v2745 = vadd.f32 %v2671, %v2744
        %v2746 = vpop.f32.mrb[0].mxu0
        %v2747 = vadd.f32 %v2673, %v2746
        %2748 = vdwg.mxu0
        %v2749 = vadd.f32 %v2277, %v2745
        %v2750 = vadd.f32 %v2278, %v2747
        %2751 = vrot.lane.b32.xlu0 %v304, 127
        %v2752 = vpop.permute.xlu0 %2751
        %2753 = vrot.lane.b32.xlu0 %v305, 127
        %v2754 = vpop.permute.xlu0 %2753
        %vm2755 = vcmp.lt.s32.totalorder %v311, 127
        %v2756 = vsel %vm2755, %v2752, %v2754
        %v2757 = vsel %vm2755, %v2754, %v2752
        %s2758 = scalar_lea.vmem %s0, 10
        %v2759 = vld [vmem:[%s2758] sm:$0x3]
        %v2761 = vlaneseq
        %v2762 = vshrl.u32 %v2761, 7
        %v2763 = vsub.s32 0, %v2762
        %v2764 = vrot.slane %v2759, %v2763
        %v2765 = vlaneseq
        %v2766 = vshrl.u32 %v2765, 7
        %v2767 = vsub.s32 1, %v2766
        %v2768 = vrot.slane %v2759, %v2767
        %v2771 = vmul.f32 %v2756, %v2764
        %v2772 = vmul.f32 %v2757, %v2768
        %s2773 = scalar_lea.vmem %s2, 40
        %v2774 = vld [vmem:[%s2773] sm:$0xff]
        %v2776 = vsel %vm354, %v2774, 0
        %v2778 = vand.u32 %v2772, 4294901760
        %2779 = vmatprep.subr.mxu0 %v2778
        %v2780 = vand.u32 %v2771, 4294901760
        %2781 = vmatpush1.msra.mxu0 %v2780
        %2782 = vmatprep.subr.mxu0 0.0
        %2783 = vmatpush1.msra.mxu0 0.0
        %2784 = vmatprep.subr.mxu0 0.0
        %2785 = vmatpush1.msra.mxu0 0.0
        %2786 = vmatprep.subr.mxu0 0.0
        %2787 = vmatpush1.msra.mxu0 0.0
        %2788 = vmatprep.subr.mxu0 0.0
        %2789 = vmatpush1.msra.mxu0 0.0
        %2790 = vmatprep.subr.mxu0 0.0
        %2791 = vmatpush1.msra.mxu0 0.0
        %2792 = vmatprep.subr.mxu0 0.0
        %2793 = vmatpush1.msra.mxu0 0.0
        %2794 = vmatprep.subr.mxu0 0.0
        %2795 = vmatpush1.msra.mxu0 0.0
        %2796 = vmatprep.subr.mxu0 0.0
        %2797 = vmatpush1.msra.mxu0 0.0
        %2798 = vmatprep.subr.mxu0 0.0
        %2799 = vmatpush1.msra.mxu0 0.0
        %2800 = vmatprep.subr.mxu0 0.0
        %2801 = vmatpush1.msra.mxu0 0.0
        %2802 = vmatprep.subr.mxu0 0.0
        %2803 = vmatpush1.msra.mxu0 0.0
        %2804 = vmatprep.subr.mxu0 0.0
        %2805 = vmatpush1.msra.mxu0 0.0
        %2806 = vmatprep.subr.mxu0 0.0
        %2807 = vmatpush1.msra.mxu0 0.0
        %2808 = vmatprep.subr.mxu0 0.0
        %2809 = vmatpush1.msra.mxu0 0.0
        %2810 = vmatprep.subr.mxu0 0.0
        %2811 = vmatpush1.msra.mxu0 0.0
        %2812 = vmatprep.subr.mxu0 0.0
        %2813 = vmatpush1.msra.mxu0 0.0
        %2814 = vmatprep.subr.mxu0 0.0
        %2815 = vmatpush1.msra.mxu0 0.0
        %2816 = vmatprep.subr.mxu0 0.0
        %2817 = vmatpush1.msra.mxu0 0.0
        %2818 = vmatprep.subr.mxu0 0.0
        %2819 = vmatpush1.msra.mxu0 0.0
        %2820 = vmatprep.subr.mxu0 0.0
        %2821 = vmatpush1.msra.mxu0 0.0
        %2822 = vmatprep.subr.mxu0 0.0
        %2823 = vmatpush1.msra.mxu0 0.0
        %2824 = vmatprep.subr.mxu0 0.0
        %2825 = vmatpush1.msra.mxu0 0.0
        %2826 = vmatprep.subr.mxu0 0.0
        %2827 = vmatpush1.msra.mxu0 0.0
        %2828 = vmatprep.subr.mxu0 0.0
        %2829 = vmatpush1.msra.mxu0 0.0
        %2830 = vmatprep.subr.mxu0 0.0
        %2831 = vmatpush1.msra.mxu0 0.0
        %2832 = vmatprep.subr.mxu0 0.0
        %2833 = vmatpush1.msra.mxu0 0.0
        %2834 = vmatprep.subr.mxu0 0.0
        %2835 = vmatpush1.msra.mxu0 0.0
        %2836 = vmatprep.subr.mxu0 0.0
        %2837 = vmatpush1.msra.mxu0 0.0
        %2838 = vmatprep.subr.mxu0 0.0
        %2839 = vmatpush1.msra.mxu0 0.0
        %2840 = vmatprep.subr.mxu0 0.0
        %2841 = vmatpush1.msra.mxu0 0.0
        %2842 = vmatprep.subr.mxu0 0.0
        %2843 = vmatpush1.msra.mxu0 0.0
        %2844 = vmatprep.mubr.f32.mxu0 0.0
        %v2845 = vand.u32 %v2776, 4294901760
        %v2846 = vsub.f32 %v2776, %v2845
        %v2847 = vand.u32 %v2846, 4294901760
        %v2848 = vsub.f32 %v2846, %v2847
        %v2849 = vand.u32 %v2848, 4294901760
        %2850 = vmatmul.mubr.f32.gmra.mrb[0].mxu0 %v2849
        %v2851 = vpop.f32.mrb[0].mxu0
        %v2852 = vadd.f32 0.0, %v2851
        %v2853 = vpop.f32.mrb[0].mxu0
        %v2854 = vadd.f32 0.0, %v2853
        %2855 = vdwg.mxu0
        %v2856 = vand.u32 %v2772, 4294901760
        %v2857 = vsub.f32 %v2772, %v2856
        %v2858 = vand.u32 %v2857, 4294901760
        %v2859 = vsub.f32 %v2857, %v2858
        %v2860 = vand.u32 %v2859, 4294901760
        %2861 = vmatprep.subr.mxu0 %v2860
        %v2862 = vand.u32 %v2771, 4294901760
        %v2863 = vsub.f32 %v2771, %v2862
        %v2864 = vand.u32 %v2863, 4294901760
        %v2865 = vsub.f32 %v2863, %v2864
        %v2866 = vand.u32 %v2865, 4294901760
        %2867 = vmatpush1.msra.mxu0 %v2866
        %2868 = vmatprep.subr.mxu0 0.0
        %2869 = vmatpush1.msra.mxu0 0.0
        %2870 = vmatprep.subr.mxu0 0.0
        %2871 = vmatpush1.msra.mxu0 0.0
        %2872 = vmatprep.subr.mxu0 0.0
        %2873 = vmatpush1.msra.mxu0 0.0
        %2874 = vmatprep.subr.mxu0 0.0
        %2875 = vmatpush1.msra.mxu0 0.0
        %2876 = vmatprep.subr.mxu0 0.0
        %2877 = vmatpush1.msra.mxu0 0.0
        %2878 = vmatprep.subr.mxu0 0.0
        %2879 = vmatpush1.msra.mxu0 0.0
        %2880 = vmatprep.subr.mxu0 0.0
        %2881 = vmatpush1.msra.mxu0 0.0
        %2882 = vmatprep.subr.mxu0 0.0
        %2883 = vmatpush1.msra.mxu0 0.0
        %2884 = vmatprep.subr.mxu0 0.0
        %2885 = vmatpush1.msra.mxu0 0.0
        %2886 = vmatprep.subr.mxu0 0.0
        %2887 = vmatpush1.msra.mxu0 0.0
        %2888 = vmatprep.subr.mxu0 0.0
        %2889 = vmatpush1.msra.mxu0 0.0
        %2890 = vmatprep.subr.mxu0 0.0
        %2891 = vmatpush1.msra.mxu0 0.0
        %2892 = vmatprep.subr.mxu0 0.0
        %2893 = vmatpush1.msra.mxu0 0.0
        %2894 = vmatprep.subr.mxu0 0.0
        %2895 = vmatpush1.msra.mxu0 0.0
        %2896 = vmatprep.subr.mxu0 0.0
        %2897 = vmatpush1.msra.mxu0 0.0
        %2898 = vmatprep.subr.mxu0 0.0
        %2899 = vmatpush1.msra.mxu0 0.0
        %2900 = vmatprep.subr.mxu0 0.0
        %2901 = vmatpush1.msra.mxu0 0.0
        %2902 = vmatprep.subr.mxu0 0.0
        %2903 = vmatpush1.msra.mxu0 0.0
        %2904 = vmatprep.subr.mxu0 0.0
        %2905 = vmatpush1.msra.mxu0 0.0
        %2906 = vmatprep.subr.mxu0 0.0
        %2907 = vmatpush1.msra.mxu0 0.0
        %2908 = vmatprep.subr.mxu0 0.0
        %2909 = vmatpush1.msra.mxu0 0.0
        %2910 = vmatprep.subr.mxu0 0.0
        %2911 = vmatpush1.msra.mxu0 0.0
        %2912 = vmatprep.subr.mxu0 0.0
        %2913 = vmatpush1.msra.mxu0 0.0
        %2914 = vmatprep.subr.mxu0 0.0
        %2915 = vmatpush1.msra.mxu0 0.0
        %2916 = vmatprep.subr.mxu0 0.0
        %2917 = vmatpush1.msra.mxu0 0.0
        %2918 = vmatprep.subr.mxu0 0.0
        %2919 = vmatpush1.msra.mxu0 0.0
        %2920 = vmatprep.subr.mxu0 0.0
        %2921 = vmatpush1.msra.mxu0 0.0
        %2922 = vmatprep.subr.mxu0 0.0
        %2923 = vmatpush1.msra.mxu0 0.0
        %2924 = vmatprep.subr.mxu0 0.0
        %2925 = vmatpush1.msra.mxu0 0.0
        %2926 = vmatprep.subr.mxu0 0.0
        %2927 = vmatpush1.msra.mxu0 0.0
        %2928 = vmatprep.subr.mxu0 0.0
        %2929 = vmatpush1.msra.mxu0 0.0
        %2930 = vmatprep.mubr.f32.mxu0 0.0
        %v2931 = vand.u32 %v2776, 4294901760
        %2932 = vmatmul.mubr.f32.gmra.mrb[0].mxu0 %v2931
        %v2933 = vpop.f32.mrb[0].mxu0
        %v2934 = vadd.f32 %v2852, %v2933
        %v2935 = vpop.f32.mrb[0].mxu0
        %v2936 = vadd.f32 %v2854, %v2935
        %2937 = vdwg.mxu0
        %v2938 = vand.u32 %v2772, 4294901760
        %v2939 = vsub.f32 %v2772, %v2938
        %2940 = vmatprep.subr.mxu0 %v2939
        %v2941 = vand.u32 %v2771, 4294901760
        %v2942 = vsub.f32 %v2771, %v2941
        %2943 = vmatpush1.msra.mxu0 %v2942
        %2944 = vmatprep.subr.mxu0 0.0
        %2945 = vmatpush1.msra.mxu0 0.0
        %2946 = vmatprep.subr.mxu0 0.0
        %2947 = vmatpush1.msra.mxu0 0.0
        %2948 = vmatprep.subr.mxu0 0.0
        %2949 = vmatpush1.msra.mxu0 0.0
        %2950 = vmatprep.subr.mxu0 0.0
        %2951 = vmatpush1.msra.mxu0 0.0
        %2952 = vmatprep.subr.mxu0 0.0
        %2953 = vmatpush1.msra.mxu0 0.0
        %2954 = vmatprep.subr.mxu0 0.0
        %2955 = vmatpush1.msra.mxu0 0.0
        %2956 = vmatprep.subr.mxu0 0.0
        %2957 = vmatpush1.msra.mxu0 0.0
        %2958 = vmatprep.subr.mxu0 0.0
        %2959 = vmatpush1.msra.mxu0 0.0
        %2960 = vmatprep.subr.mxu0 0.0
        %2961 = vmatpush1.msra.mxu0 0.0
        %2962 = vmatprep.subr.mxu0 0.0
        %2963 = vmatpush1.msra.mxu0 0.0
        %2964 = vmatprep.subr.mxu0 0.0
        %2965 = vmatpush1.msra.mxu0 0.0
        %2966 = vmatprep.subr.mxu0 0.0
        %2967 = vmatpush1.msra.mxu0 0.0
        %2968 = vmatprep.subr.mxu0 0.0
        %2969 = vmatpush1.msra.mxu0 0.0
        %2970 = vmatprep.subr.mxu0 0.0
        %2971 = vmatpush1.msra.mxu0 0.0
        %2972 = vmatprep.subr.mxu0 0.0
        %2973 = vmatpush1.msra.mxu0 0.0
        %2974 = vmatprep.subr.mxu0 0.0
        %2975 = vmatpush1.msra.mxu0 0.0
        %2976 = vmatprep.subr.mxu0 0.0
        %2977 = vmatpush1.msra.mxu0 0.0
        %2978 = vmatprep.subr.mxu0 0.0
        %2979 = vmatpush1.msra.mxu0 0.0
        %2980 = vmatprep.subr.mxu0 0.0
        %2981 = vmatpush1.msra.mxu0 0.0
        %2982 = vmatprep.subr.mxu0 0.0
        %2983 = vmatpush1.msra.mxu0 0.0
        %2984 = vmatprep.subr.mxu0 0.0
        %2985 = vmatpush1.msra.mxu0 0.0
        %2986 = vmatprep.subr.mxu0 0.0
        %2987 = vmatpush1.msra.mxu0 0.0
        %2988 = vmatprep.subr.mxu0 0.0
        %2989 = vmatpush1.msra.mxu0 0.0
        %2990 = vmatprep.subr.mxu0 0.0
        %2991 = vmatpush1.msra.mxu0 0.0
        %2992 = vmatprep.subr.mxu0 0.0
        %2993 = vmatpush1.msra.mxu0 0.0
        %2994 = vmatprep.subr.mxu0 0.0
        %2995 = vmatpush1.msra.mxu0 0.0
        %2996 = vmatprep.subr.mxu0 0.0
        %2997 = vmatpush1.msra.mxu0 0.0
        %2998 = vmatprep.subr.mxu0 0.0
        %2999 = vmatpush1.msra.mxu0 0.0
        %3000 = vmatprep.subr.mxu0 0.0
        %3001 = vmatpush1.msra.mxu0 0.0
        %3002 = vmatprep.subr.mxu0 0.0
        %3003 = vmatpush1.msra.mxu0 0.0
        %3004 = vmatprep.subr.mxu0 0.0
        %3005 = vmatpush1.msra.mxu0 0.0
        %3006 = vmatprep.mubr.f32.mxu0 0.0
        %v3007 = vand.u32 %v2776, 4294901760
        %v3008 = vsub.f32 %v2776, %v3007
        %3009 = vmatmul.mubr.f32.gmra.mrb[0].mxu0 %v3008
        %v3010 = vpop.f32.mrb[0].mxu0
        %v3011 = vadd.f32 %v2934, %v3010
        %v3012 = vpop.f32.mrb[0].mxu0
        %v3013 = vadd.f32 %v2936, %v3012
        %3014 = vdwg.mxu0
        %v3015 = vand.u32 %v2772, 4294901760
        %3016 = vmatprep.subr.mxu0 %v3015
        %v3017 = vand.u32 %v2771, 4294901760
        %3018 = vmatpush1.msra.mxu0 %v3017
        %3019 = vmatprep.subr.mxu0 0.0
        %3020 = vmatpush1.msra.mxu0 0.0
        %3021 = vmatprep.subr.mxu0 0.0
        %3022 = vmatpush1.msra.mxu0 0.0
        %3023 = vmatprep.subr.mxu0 0.0
        %3024 = vmatpush1.msra.mxu0 0.0
        %3025 = vmatprep.subr.mxu0 0.0
        %3026 = vmatpush1.msra.mxu0 0.0
        %3027 = vmatprep.subr.mxu0 0.0
        %3028 = vmatpush1.msra.mxu0 0.0
        %3029 = vmatprep.subr.mxu0 0.0
        %3030 = vmatpush1.msra.mxu0 0.0
        %3031 = vmatprep.subr.mxu0 0.0
        %3032 = vmatpush1.msra.mxu0 0.0
        %3033 = vmatprep.subr.mxu0 0.0
        %3034 = vmatpush1.msra.mxu0 0.0
        %3035 = vmatprep.subr.mxu0 0.0
        %3036 = vmatpush1.msra.mxu0 0.0
        %3037 = vmatprep.subr.mxu0 0.0
        %3038 = vmatpush1.msra.mxu0 0.0
        %3039 = vmatprep.subr.mxu0 0.0
        %3040 = vmatpush1.msra.mxu0 0.0
        %3041 = vmatprep.subr.mxu0 0.0
        %3042 = vmatpush1.msra.mxu0 0.0
        %3043 = vmatprep.subr.mxu0 0.0
        %3044 = vmatpush1.msra.mxu0 0.0
        %3045 = vmatprep.subr.mxu0 0.0
        %3046 = vmatpush1.msra.mxu0 0.0
        %3047 = vmatprep.subr.mxu0 0.0
        %3048 = vmatpush1.msra.mxu0 0.0
        %3049 = vmatprep.subr.mxu0 0.0
        %3050 = vmatpush1.msra.mxu0 0.0
        %3051 = vmatprep.subr.mxu0 0.0
        %3052 = vmatpush1.msra.mxu0 0.0
        %3053 = vmatprep.subr.mxu0 0.0
        %3054 = vmatpush1.msra.mxu0 0.0
        %3055 = vmatprep.subr.mxu0 0.0
        %3056 = vmatpush1.msra.mxu0 0.0
        %3057 = vmatprep.subr.mxu0 0.0
        %3058 = vmatpush1.msra.mxu0 0.0
        %3059 = vmatprep.subr.mxu0 0.0
        %3060 = vmatpush1.msra.mxu0 0.0
        %3061 = vmatprep.subr.mxu0 0.0
        %3062 = vmatpush1.msra.mxu0 0.0
        %3063 = vmatprep.subr.mxu0 0.0
        %3064 = vmatpush1.msra.mxu0 0.0
        %3065 = vmatprep.subr.mxu0 0.0
        %3066 = vmatpush1.msra.mxu0 0.0
        %3067 = vmatprep.subr.mxu0 0.0
        %3068 = vmatpush1.msra.mxu0 0.0
        %3069 = vmatprep.subr.mxu0 0.0
        %3070 = vmatpush1.msra.mxu0 0.0
        %3071 = vmatprep.subr.mxu0 0.0
        %3072 = vmatpush1.msra.mxu0 0.0
        %3073 = vmatprep.subr.mxu0 0.0
        %3074 = vmatpush1.msra.mxu0 0.0
        %3075 = vmatprep.subr.mxu0 0.0
        %3076 = vmatpush1.msra.mxu0 0.0
        %3077 = vmatprep.subr.mxu0 0.0
        %3078 = vmatpush1.msra.mxu0 0.0
        %3079 = vmatprep.subr.mxu0 0.0
        %3080 = vmatpush1.msra.mxu0 0.0
        %3081 = vmatprep.mubr.f32.mxu0 0.0
        %v3082 = vand.u32 %v2776, 4294901760
        %v3083 = vsub.f32 %v2776, %v3082
        %v3084 = vand.u32 %v3083, 4294901760
        %3085 = vmatmul.mubr.f32.gmra.mrb[0].mxu0 %v3084
        %v3086 = vpop.f32.mrb[0].mxu0
        %v3087 = vadd.f32 %v3011, %v3086
        %v3088 = vpop.f32.mrb[0].mxu0
        %v3089 = vadd.f32 %v3013, %v3088
        %3090 = vdwg.mxu0
        %v3091 = vand.u32 %v2772, 4294901760
        %v3092 = vsub.f32 %v2772, %v3091
        %v3093 = vand.u32 %v3092, 4294901760
        %3094 = vmatprep.subr.mxu0 %v3093
        %v3095 = vand.u32 %v2771, 4294901760
        %v3096 = vsub.f32 %v2771, %v3095
        %v3097 = vand.u32 %v3096, 4294901760
        %3098 = vmatpush1.msra.mxu0 %v3097
        %3099 = vmatprep.subr.mxu0 0.0
        %3100 = vmatpush1.msra.mxu0 0.0
        %3101 = vmatprep.subr.mxu0 0.0
        %3102 = vmatpush1.msra.mxu0 0.0
        %3103 = vmatprep.subr.mxu0 0.0
        %3104 = vmatpush1.msra.mxu0 0.0
        %3105 = vmatprep.subr.mxu0 0.0
        %3106 = vmatpush1.msra.mxu0 0.0
        %3107 = vmatprep.subr.mxu0 0.0
        %3108 = vmatpush1.msra.mxu0 0.0
        %3109 = vmatprep.subr.mxu0 0.0
        %3110 = vmatpush1.msra.mxu0 0.0
        %3111 = vmatprep.subr.mxu0 0.0
        %3112 = vmatpush1.msra.mxu0 0.0
        %3113 = vmatprep.subr.mxu0 0.0
        %3114 = vmatpush1.msra.mxu0 0.0
        %3115 = vmatprep.subr.mxu0 0.0
        %3116 = vmatpush1.msra.mxu0 0.0
        %3117 = vmatprep.subr.mxu0 0.0
        %3118 = vmatpush1.msra.mxu0 0.0
        %3119 = vmatprep.subr.mxu0 0.0
        %3120 = vmatpush1.msra.mxu0 0.0
        %3121 = vmatprep.subr.mxu0 0.0
        %3122 = vmatpush1.msra.mxu0 0.0
        %3123 = vmatprep.subr.mxu0 0.0
        %3124 = vmatpush1.msra.mxu0 0.0
        %3125 = vmatprep.subr.mxu0 0.0
        %3126 = vmatpush1.msra.mxu0 0.0
        %3127 = vmatprep.subr.mxu0 0.0
        %3128 = vmatpush1.msra.mxu0 0.0
        %3129 = vmatprep.subr.mxu0 0.0
        %3130 = vmatpush1.msra.mxu0 0.0
        %3131 = vmatprep.subr.mxu0 0.0
        %3132 = vmatpush1.msra.mxu0 0.0
        %3133 = vmatprep.subr.mxu0 0.0
        %3134 = vmatpush1.msra.mxu0 0.0
        %3135 = vmatprep.subr.mxu0 0.0
        %3136 = vmatpush1.msra.mxu0 0.0
        %3137 = vmatprep.subr.mxu0 0.0
        %3138 = vmatpush1.msra.mxu0 0.0
        %3139 = vmatprep.subr.mxu0 0.0
        %3140 = vmatpush1.msra.mxu0 0.0
        %3141 = vmatprep.subr.mxu0 0.0
        %3142 = vmatpush1.msra.mxu0 0.0
        %3143 = vmatprep.subr.mxu0 0.0
        %3144 = vmatpush1.msra.mxu0 0.0
        %3145 = vmatprep.subr.mxu0 0.0
        %3146 = vmatpush1.msra.mxu0 0.0
        %3147 = vmatprep.subr.mxu0 0.0
        %3148 = vmatpush1.msra.mxu0 0.0
        %3149 = vmatprep.subr.mxu0 0.0
        %3150 = vmatpush1.msra.mxu0 0.0
        %3151 = vmatprep.subr.mxu0 0.0
        %3152 = vmatpush1.msra.mxu0 0.0
        %3153 = vmatprep.subr.mxu0 0.0
        %3154 = vmatpush1.msra.mxu0 0.0
        %3155 = vmatprep.subr.mxu0 0.0
        %3156 = vmatpush1.msra.mxu0 0.0
        %3157 = vmatprep.subr.mxu0 0.0
        %3158 = vmatpush1.msra.mxu0 0.0
        %3159 = vmatprep.subr.mxu0 0.0
        %3160 = vmatpush1.msra.mxu0 0.0
        %3161 = vmatprep.mubr.f32.mxu0 0.0
        %v3162 = vand.u32 %v2776, 4294901760
        %3163 = vmatmul.mubr.f32.gmra.mrb[0].mxu0 %v3162
        %v3164 = vpop.f32.mrb[0].mxu0
        %v3165 = vadd.f32 %v3087, %v3164
        %v3166 = vpop.f32.mrb[0].mxu0
        %v3167 = vadd.f32 %v3089, %v3166
        %3168 = vdwg.mxu0
        %v3169 = vand.u32 %v2772, 4294901760
        %3170 = vmatprep.subr.mxu0 %v3169
        %v3171 = vand.u32 %v2771, 4294901760
        %3172 = vmatpush1.msra.mxu0 %v3171
        %3173 = vmatprep.subr.mxu0 0.0
        %3174 = vmatpush1.msra.mxu0 0.0
        %3175 = vmatprep.subr.mxu0 0.0
        %3176 = vmatpush1.msra.mxu0 0.0
        %3177 = vmatprep.subr.mxu0 0.0
        %3178 = vmatpush1.msra.mxu0 0.0
        %3179 = vmatprep.subr.mxu0 0.0
        %3180 = vmatpush1.msra.mxu0 0.0
        %3181 = vmatprep.subr.mxu0 0.0
        %3182 = vmatpush1.msra.mxu0 0.0
        %3183 = vmatprep.subr.mxu0 0.0
        %3184 = vmatpush1.msra.mxu0 0.0
        %3185 = vmatprep.subr.mxu0 0.0
        %3186 = vmatpush1.msra.mxu0 0.0
        %3187 = vmatprep.subr.mxu0 0.0
        %3188 = vmatpush1.msra.mxu0 0.0
        %3189 = vmatprep.subr.mxu0 0.0
        %3190 = vmatpush1.msra.mxu0 0.0
        %3191 = vmatprep.subr.mxu0 0.0
        %3192 = vmatpush1.msra.mxu0 0.0
        %3193 = vmatprep.subr.mxu0 0.0
        %3194 = vmatpush1.msra.mxu0 0.0
        %3195 = vmatprep.subr.mxu0 0.0
        %3196 = vmatpush1.msra.mxu0 0.0
        %3197 = vmatprep.subr.mxu0 0.0
        %3198 = vmatpush1.msra.mxu0 0.0
        %3199 = vmatprep.subr.mxu0 0.0
        %3200 = vmatpush1.msra.mxu0 0.0
        %3201 = vmatprep.subr.mxu0 0.0
        %3202 = vmatpush1.msra.mxu0 0.0
        %3203 = vmatprep.subr.mxu0 0.0
        %3204 = vmatpush1.msra.mxu0 0.0
        %3205 = vmatprep.subr.mxu0 0.0
        %3206 = vmatpush1.msra.mxu0 0.0
        %3207 = vmatprep.subr.mxu0 0.0
        %3208 = vmatpush1.msra.mxu0 0.0
        %3209 = vmatprep.subr.mxu0 0.0
        %3210 = vmatpush1.msra.mxu0 0.0
        %3211 = vmatprep.subr.mxu0 0.0
        %3212 = vmatpush1.msra.mxu0 0.0
        %3213 = vmatprep.subr.mxu0 0.0
        %3214 = vmatpush1.msra.mxu0 0.0
        %3215 = vmatprep.subr.mxu0 0.0
        %3216 = vmatpush1.msra.mxu0 0.0
        %3217 = vmatprep.subr.mxu0 0.0
        %3218 = vmatpush1.msra.mxu0 0.0
        %3219 = vmatprep.subr.mxu0 0.0
        %3220 = vmatpush1.msra.mxu0 0.0
        %3221 = vmatprep.subr.mxu0 0.0
        %3222 = vmatpush1.msra.mxu0 0.0
        %3223 = vmatprep.subr.mxu0 0.0
        %3224 = vmatpush1.msra.mxu0 0.0
        %3225 = vmatprep.subr.mxu0 0.0
        %3226 = vmatpush1.msra.mxu0 0.0
        %3227 = vmatprep.subr.mxu0 0.0
        %3228 = vmatpush1.msra.mxu0 0.0
        %3229 = vmatprep.subr.mxu0 0.0
        %3230 = vmatpush1.msra.mxu0 0.0
        %3231 = vmatprep.subr.mxu0 0.0
        %3232 = vmatpush1.msra.mxu0 0.0
        %3233 = vmatprep.subr.mxu0 0.0
        %3234 = vmatpush1.msra.mxu0 0.0
        %3235 = vmatprep.mubr.f32.mxu0 0.0
        %v3236 = vand.u32 %v2776, 4294901760
        %3237 = vmatmul.mubr.f32.gmra.mrb[0].mxu0 %v3236
        %v3238 = vpop.f32.mrb[0].mxu0
        %v3239 = vadd.f32 %v3165, %v3238
        %v3240 = vpop.f32.mrb[0].mxu0
        %v3241 = vadd.f32 %v3167, %v3240
        %3242 = vdwg.mxu0
        %v3243 = vadd.f32 %v2749, %v3239
        %v3244 = vadd.f32 %v2750, %v3241
        %3245 = vrot.lane.b32.xlu0 %v304, 113
        %v3246 = vpop.permute.xlu0 %3245
        %3247 = vrot.lane.b32.xlu0 %v305, 113
        %v3248 = vpop.permute.xlu0 %3247
        %vm3249 = vcmp.lt.s32.totalorder %v311, 113
        %v3250 = vsel %vm3249, %v3246, %v3248
        %v3251 = vsel %vm3249, %v3248, %v3246
        %s3252 = scalar_lea.vmem %s0, 12
        %v3253 = vld [vmem:[%s3252] sm:$0x3]
        %v3255 = vlaneseq
        %v3256 = vshrl.u32 %v3255, 7
        %v3257 = vsub.s32 0, %v3256
        %v3258 = vrot.slane %v3253, %v3257
        %v3259 = vlaneseq
        %v3260 = vshrl.u32 %v3259, 7
        %v3261 = vsub.s32 1, %v3260
        %v3262 = vrot.slane %v3253, %v3261
        %v3265 = vmul.f32 %v3250, %v3258
        %v3266 = vmul.f32 %v3251, %v3262
        %s3267 = scalar_lea.vmem %s2, 48
        %v3268 = vld [vmem:[%s3267] sm:$0xff]
        %v3270 = vsel %vm354, %v3268, 0
        %v3272 = vand.u32 %v3266, 4294901760
        %3273 = vmatprep.subr.mxu0 %v3272
        %v3274 = vand.u32 %v3265, 4294901760
        %3275 = vmatpush1.msra.mxu0 %v3274
        %3276 = vmatprep.subr.mxu0 0.0
        %3277 = vmatpush1.msra.mxu0 0.0
        %3278 = vmatprep.subr.mxu0 0.0
        %3279 = vmatpush1.msra.mxu0 0.0
        %3280 = vmatprep.subr.mxu0 0.0
        %3281 = vmatpush1.msra.mxu0 0.0
        %3282 = vmatprep.subr.mxu0 0.0
        %3283 = vmatpush1.msra.mxu0 0.0
        %3284 = vmatprep.subr.mxu0 0.0
        %3285 = vmatpush1.msra.mxu0 0.0
        %3286 = vmatprep.subr.mxu0 0.0
        %3287 = vmatpush1.msra.mxu0 0.0
        %3288 = vmatprep.subr.mxu0 0.0
        %3289 = vmatpush1.msra.mxu0 0.0
        %3290 = vmatprep.subr.mxu0 0.0
        %3291 = vmatpush1.msra.mxu0 0.0
        %3292 = vmatprep.subr.mxu0 0.0
        %3293 = vmatpush1.msra.mxu0 0.0
        %3294 = vmatprep.subr.mxu0 0.0
        %3295 = vmatpush1.msra.mxu0 0.0
        %3296 = vmatprep.subr.mxu0 0.0
        %3297 = vmatpush1.msra.mxu0 0.0
        %3298 = vmatprep.subr.mxu0 0.0
        %3299 = vmatpush1.msra.mxu0 0.0
        %3300 = vmatprep.subr.mxu0 0.0
        %3301 = vmatpush1.msra.mxu0 0.0
        %3302 = vmatprep.subr.mxu0 0.0
        %3303 = vmatpush1.msra.mxu0 0.0
        %3304 = vmatprep.subr.mxu0 0.0
        %3305 = vmatpush1.msra.mxu0 0.0
        %3306 = vmatprep.subr.mxu0 0.0
        %3307 = vmatpush1.msra.mxu0 0.0
        %3308 = vmatprep.subr.mxu0 0.0
        %3309 = vmatpush1.msra.mxu0 0.0
        %3310 = vmatprep.subr.mxu0 0.0
        %3311 = vmatpush1.msra.mxu0 0.0
        %3312 = vmatprep.subr.mxu0 0.0
        %3313 = vmatpush1.msra.mxu0 0.0
        %3314 = vmatprep.subr.mxu0 0.0
        %3315 = vmatpush1.msra.mxu0 0.0
        %3316 = vmatprep.subr.mxu0 0.0
        %3317 = vmatpush1.msra.mxu0 0.0
        %3318 = vmatprep.subr.mxu0 0.0
        %3319 = vmatpush1.msra.mxu0 0.0
        %3320 = vmatprep.subr.mxu0 0.0
        %3321 = vmatpush1.msra.mxu0 0.0
        %3322 = vmatprep.subr.mxu0 0.0
        %3323 = vmatpush1.msra.mxu0 0.0
        %3324 = vmatprep.subr.mxu0 0.0
        %3325 = vmatpush1.msra.mxu0 0.0
        %3326 = vmatprep.subr.mxu0 0.0
        %3327 = vmatpush1.msra.mxu0 0.0
        %3328 = vmatprep.subr.mxu0 0.0
        %3329 = vmatpush1.msra.mxu0 0.0
        %3330 = vmatprep.subr.mxu0 0.0
        %3331 = vmatpush1.msra.mxu0 0.0
        %3332 = vmatprep.subr.mxu0 0.0
        %3333 = vmatpush1.msra.mxu0 0.0
        %3334 = vmatprep.subr.mxu0 0.0
        %3335 = vmatpush1.msra.mxu0 0.0
        %3336 = vmatprep.subr.mxu0 0.0
        %3337 = vmatpush1.msra.mxu0 0.0
        %3338 = vmatprep.mubr.f32.mxu0 0.0
        %v3339 = vand.u32 %v3270, 4294901760
        %v3340 = vsub.f32 %v3270, %v3339
        %v3341 = vand.u32 %v3340, 4294901760
        %v3342 = vsub.f32 %v3340, %v3341
        %v3343 = vand.u32 %v3342, 4294901760
        %3344 = vmatmul.mubr.f32.gmra.mrb[0].mxu0 %v3343
        %v3345 = vpop.f32.mrb[0].mxu0
        %v3346 = vadd.f32 0.0, %v3345
        %v3347 = vpop.f32.mrb[0].mxu0
        %v3348 = vadd.f32 0.0, %v3347
        %3349 = vdwg.mxu0
        %v3350 = vand.u32 %v3266, 4294901760
        %v3351 = vsub.f32 %v3266, %v3350
        %v3352 = vand.u32 %v3351, 4294901760
        %v3353 = vsub.f32 %v3351, %v3352
        %v3354 = vand.u32 %v3353, 4294901760
        %3355 = vmatprep.subr.mxu0 %v3354
        %v3356 = vand.u32 %v3265, 4294901760
        %v3357 = vsub.f32 %v3265, %v3356
        %v3358 = vand.u32 %v3357, 4294901760
        %v3359 = vsub.f32 %v3357, %v3358
        %v3360 = vand.u32 %v3359, 4294901760
        %3361 = vmatpush1.msra.mxu0 %v3360
        %3362 = vmatprep.subr.mxu0 0.0
        %3363 = vmatpush1.msra.mxu0 0.0
        %3364 = vmatprep.subr.mxu0 0.0
        %3365 = vmatpush1.msra.mxu0 0.0
        %3366 = vmatprep.subr.mxu0 0.0
        %3367 = vmatpush1.msra.mxu0 0.0
        %3368 = vmatprep.subr.mxu0 0.0
        %3369 = vmatpush1.msra.mxu0 0.0
        %3370 = vmatprep.subr.mxu0 0.0
        %3371 = vmatpush1.msra.mxu0 0.0
        %3372 = vmatprep.subr.mxu0 0.0
        %3373 = vmatpush1.msra.mxu0 0.0
        %3374 = vmatprep.subr.mxu0 0.0
        %3375 = vmatpush1.msra.mxu0 0.0
        %3376 = vmatprep.subr.mxu0 0.0
        %3377 = vmatpush1.msra.mxu0 0.0
        %3378 = vmatprep.subr.mxu0 0.0
        %3379 = vmatpush1.msra.mxu0 0.0
        %3380 = vmatprep.subr.mxu0 0.0
        %3381 = vmatpush1.msra.mxu0 0.0
        %3382 = vmatprep.subr.mxu0 0.0
        %3383 = vmatpush1.msra.mxu0 0.0
        %3384 = vmatprep.subr.mxu0 0.0
        %3385 = vmatpush1.msra.mxu0 0.0
        %3386 = vmatprep.subr.mxu0 0.0
        %3387 = vmatpush1.msra.mxu0 0.0
        %3388 = vmatprep.subr.mxu0 0.0
        %3389 = vmatpush1.msra.mxu0 0.0
        %3390 = vmatprep.subr.mxu0 0.0
        %3391 = vmatpush1.msra.mxu0 0.0
        %3392 = vmatprep.subr.mxu0 0.0
        %3393 = vmatpush1.msra.mxu0 0.0
        %3394 = vmatprep.subr.mxu0 0.0
        %3395 = vmatpush1.msra.mxu0 0.0
        %3396 = vmatprep.subr.mxu0 0.0
        %3397 = vmatpush1.msra.mxu0 0.0
        %3398 = vmatprep.subr.mxu0 0.0
        %3399 = vmatpush1.msra.mxu0 0.0
        %3400 = vmatprep.subr.mxu0 0.0
        %3401 = vmatpush1.msra.mxu0 0.0
        %3402 = vmatprep.subr.mxu0 0.0
        %3403 = vmatpush1.msra.mxu0 0.0
        %3404 = vmatprep.subr.mxu0 0.0
        %3405 = vmatpush1.msra.mxu0 0.0
        %3406 = vmatprep.subr.mxu0 0.0
        %3407 = vmatpush1.msra.mxu0 0.0
        %3408 = vmatprep.subr.mxu0 0.0
        %3409 = vmatpush1.msra.mxu0 0.0
        %3410 = vmatprep.subr.mxu0 0.0
        %3411 = vmatpush1.msra.mxu0 0.0
        %3412 = vmatprep.subr.mxu0 0.0
        %3413 = vmatpush1.msra.mxu0 0.0
        %3414 = vmatprep.subr.mxu0 0.0
        %3415 = vmatpush1.msra.mxu0 0.0
        %3416 = vmatprep.subr.mxu0 0.0
        %3417 = vmatpush1.msra.mxu0 0.0
        %3418 = vmatprep.subr.mxu0 0.0
        %3419 = vmatpush1.msra.mxu0 0.0
        %3420 = vmatprep.subr.mxu0 0.0
        %3421 = vmatpush1.msra.mxu0 0.0
        %3422 = vmatprep.subr.mxu0 0.0
        %3423 = vmatpush1.msra.mxu0 0.0
        %3424 = vmatprep.mubr.f32.mxu0 0.0
        %v3425 = vand.u32 %v3270, 4294901760
        %3426 = vmatmul.mubr.f32.gmra.mrb[0].mxu0 %v3425
        %v3427 = vpop.f32.mrb[0].mxu0
        %v3428 = vadd.f32 %v3346, %v3427
        %v3429 = vpop.f32.mrb[0].mxu0
        %v3430 = vadd.f32 %v3348, %v3429
        %3431 = vdwg.mxu0
        %v3432 = vand.u32 %v3266, 4294901760
        %v3433 = vsub.f32 %v3266, %v3432
        %3434 = vmatprep.subr.mxu0 %v3433
        %v3435 = vand.u32 %v3265, 4294901760
        %v3436 = vsub.f32 %v3265, %v3435
        %3437 = vmatpush1.msra.mxu0 %v3436
        %3438 = vmatprep.subr.mxu0 0.0
        %3439 = vmatpush1.msra.mxu0 0.0
        %3440 = vmatprep.subr.mxu0 0.0
        %3441 = vmatpush1.msra.mxu0 0.0
        %3442 = vmatprep.subr.mxu0 0.0
        %3443 = vmatpush1.msra.mxu0 0.0
        %3444 = vmatprep.subr.mxu0 0.0
        %3445 = vmatpush1.msra.mxu0 0.0
        %3446 = vmatprep.subr.mxu0 0.0
        %3447 = vmatpush1.msra.mxu0 0.0
        %3448 = vmatprep.subr.mxu0 0.0
        %3449 = vmatpush1.msra.mxu0 0.0
        %3450 = vmatprep.subr.mxu0 0.0
        %3451 = vmatpush1.msra.mxu0 0.0
        %3452 = vmatprep.subr.mxu0 0.0
        %3453 = vmatpush1.msra.mxu0 0.0
        %3454 = vmatprep.subr.mxu0 0.0
        %3455 = vmatpush1.msra.mxu0 0.0
        %3456 = vmatprep.subr.mxu0 0.0
        %3457 = vmatpush1.msra.mxu0 0.0
        %3458 = vmatprep.subr.mxu0 0.0
        %3459 = vmatpush1.msra.mxu0 0.0
        %3460 = vmatprep.subr.mxu0 0.0
        %3461 = vmatpush1.msra.mxu0 0.0
        %3462 = vmatprep.subr.mxu0 0.0
        %3463 = vmatpush1.msra.mxu0 0.0
        %3464 = vmatprep.subr.mxu0 0.0
        %3465 = vmatpush1.msra.mxu0 0.0
        %3466 = vmatprep.subr.mxu0 0.0
        %3467 = vmatpush1.msra.mxu0 0.0
        %3468 = vmatprep.subr.mxu0 0.0
        %3469 = vmatpush1.msra.mxu0 0.0
        %3470 = vmatprep.subr.mxu0 0.0
        %3471 = vmatpush1.msra.mxu0 0.0
        %3472 = vmatprep.subr.mxu0 0.0
        %3473 = vmatpush1.msra.mxu0 0.0
        %3474 = vmatprep.subr.mxu0 0.0
        %3475 = vmatpush1.msra.mxu0 0.0
        %3476 = vmatprep.subr.mxu0 0.0
        %3477 = vmatpush1.msra.mxu0 0.0
        %3478 = vmatprep.subr.mxu0 0.0
        %3479 = vmatpush1.msra.mxu0 0.0
        %3480 = vmatprep.subr.mxu0 0.0
        %3481 = vmatpush1.msra.mxu0 0.0
        %3482 = vmatprep.subr.mxu0 0.0
        %3483 = vmatpush1.msra.mxu0 0.0
        %3484 = vmatprep.subr.mxu0 0.0
        %3485 = vmatpush1.msra.mxu0 0.0
        %3486 = vmatprep.subr.mxu0 0.0
        %3487 = vmatpush1.msra.mxu0 0.0
        %3488 = vmatprep.subr.mxu0 0.0
        %3489 = vmatpush1.msra.mxu0 0.0
        %3490 = vmatprep.subr.mxu0 0.0
        %3491 = vmatpush1.msra.mxu0 0.0
        %3492 = vmatprep.subr.mxu0 0.0
        %3493 = vmatpush1.msra.mxu0 0.0
        %3494 = vmatprep.subr.mxu0 0.0
        %3495 = vmatpush1.msra.mxu0 0.0
        %3496 = vmatprep.subr.mxu0 0.0
        %3497 = vmatpush1.msra.mxu0 0.0
        %3498 = vmatprep.subr.mxu0 0.0
        %3499 = vmatpush1.msra.mxu0 0.0
        %3500 = vmatprep.mubr.f32.mxu0 0.0
        %v3501 = vand.u32 %v3270, 4294901760
        %v3502 = vsub.f32 %v3270, %v3501
        %3503 = vmatmul.mubr.f32.gmra.mrb[0].mxu0 %v3502
        %v3504 = vpop.f32.mrb[0].mxu0
        %v3505 = vadd.f32 %v3428, %v3504
        %v3506 = vpop.f32.mrb[0].mxu0
        %v3507 = vadd.f32 %v3430, %v3506
        %3508 = vdwg.mxu0
        %v3509 = vand.u32 %v3266, 4294901760
        %3510 = vmatprep.subr.mxu0 %v3509
        %v3511 = vand.u32 %v3265, 4294901760
        %3512 = vmatpush1.msra.mxu0 %v3511
        %3513 = vmatprep.subr.mxu0 0.0
        %3514 = vmatpush1.msra.mxu0 0.0
        %3515 = vmatprep.subr.mxu0 0.0
        %3516 = vmatpush1.msra.mxu0 0.0
        %3517 = vmatprep.subr.mxu0 0.0
        %3518 = vmatpush1.msra.mxu0 0.0
        %3519 = vmatprep.subr.mxu0 0.0
        %3520 = vmatpush1.msra.mxu0 0.0
        %3521 = vmatprep.subr.mxu0 0.0
        %3522 = vmatpush1.msra.mxu0 0.0
        %3523 = vmatprep.subr.mxu0 0.0
        %3524 = vmatpush1.msra.mxu0 0.0
        %3525 = vmatprep.subr.mxu0 0.0
        %3526 = vmatpush1.msra.mxu0 0.0
        %3527 = vmatprep.subr.mxu0 0.0
        %3528 = vmatpush1.msra.mxu0 0.0
        %3529 = vmatprep.subr.mxu0 0.0
        %3530 = vmatpush1.msra.mxu0 0.0
        %3531 = vmatprep.subr.mxu0 0.0
        %3532 = vmatpush1.msra.mxu0 0.0
        %3533 = vmatprep.subr.mxu0 0.0
        %3534 = vmatpush1.msra.mxu0 0.0
        %3535 = vmatprep.subr.mxu0 0.0
        %3536 = vmatpush1.msra.mxu0 0.0
        %3537 = vmatprep.subr.mxu0 0.0
        %3538 = vmatpush1.msra.mxu0 0.0
        %3539 = vmatprep.subr.mxu0 0.0
        %3540 = vmatpush1.msra.mxu0 0.0
        %3541 = vmatprep.subr.mxu0 0.0
        %3542 = vmatpush1.msra.mxu0 0.0
        %3543 = vmatprep.subr.mxu0 0.0
        %3544 = vmatpush1.msra.mxu0 0.0
        %3545 = vmatprep.subr.mxu0 0.0
        %3546 = vmatpush1.msra.mxu0 0.0
        %3547 = vmatprep.subr.mxu0 0.0
        %3548 = vmatpush1.msra.mxu0 0.0
        %3549 = vmatprep.subr.mxu0 0.0
        %3550 = vmatpush1.msra.mxu0 0.0
        %3551 = vmatprep.subr.mxu0 0.0
        %3552 = vmatpush1.msra.mxu0 0.0
        %3553 = vmatprep.subr.mxu0 0.0
        %3554 = vmatpush1.msra.mxu0 0.0
        %3555 = vmatprep.subr.mxu0 0.0
        %3556 = vmatpush1.msra.mxu0 0.0
        %3557 = vmatprep.subr.mxu0 0.0
        %3558 = vmatpush1.msra.mxu0 0.0
        %3559 = vmatprep.subr.mxu0 0.0
        %3560 = vmatpush1.msra.mxu0 0.0
        %3561 = vmatprep.subr.mxu0 0.0
        %3562 = vmatpush1.msra.mxu0 0.0
        %3563 = vmatprep.subr.mxu0 0.0
        %3564 = vmatpush1.msra.mxu0 0.0
        %3565 = vmatprep.subr.mxu0 0.0
        %3566 = vmatpush1.msra.mxu0 0.0
        %3567 = vmatprep.subr.mxu0 0.0
        %3568 = vmatpush1.msra.mxu0 0.0
        %3569 = vmatprep.subr.mxu0 0.0
        %3570 = vmatpush1.msra.mxu0 0.0
        %3571 = vmatprep.subr.mxu0 0.0
        %3572 = vmatpush1.msra.mxu0 0.0
        %3573 = vmatprep.subr.mxu0 0.0
        %3574 = vmatpush1.msra.mxu0 0.0
        %3575 = vmatprep.mubr.f32.mxu0 0.0
        %v3576 = vand.u32 %v3270, 4294901760
        %v3577 = vsub.f32 %v3270, %v3576
        %v3578 = vand.u32 %v3577, 4294901760
        %3579 = vmatmul.mubr.f32.gmra.mrb[0].mxu0 %v3578
        %v3580 = vpop.f32.mrb[0].mxu0
        %v3581 = vadd.f32 %v3505, %v3580
        %v3582 = vpop.f32.mrb[0].mxu0
        %v3583 = vadd.f32 %v3507, %v3582
        %3584 = vdwg.mxu0
        %v3585 = vand.u32 %v3266, 4294901760
        %v3586 = vsub.f32 %v3266, %v3585
        %v3587 = vand.u32 %v3586, 4294901760
        %3588 = vmatprep.subr.mxu0 %v3587
        %v3589 = vand.u32 %v3265, 4294901760
        %v3590 = vsub.f32 %v3265, %v3589
        %v3591 = vand.u32 %v3590, 4294901760
        %3592 = vmatpush1.msra.mxu0 %v3591
        %3593 = vmatprep.subr.mxu0 0.0
        %3594 = vmatpush1.msra.mxu0 0.0
        %3595 = vmatprep.subr.mxu0 0.0
        %3596 = vmatpush1.msra.mxu0 0.0
        %3597 = vmatprep.subr.mxu0 0.0
        %3598 = vmatpush1.msra.mxu0 0.0
        %3599 = vmatprep.subr.mxu0 0.0
        %3600 = vmatpush1.msra.mxu0 0.0
        %3601 = vmatprep.subr.mxu0 0.0
        %3602 = vmatpush1.msra.mxu0 0.0
        %3603 = vmatprep.subr.mxu0 0.0
        %3604 = vmatpush1.msra.mxu0 0.0
        %3605 = vmatprep.subr.mxu0 0.0
        %3606 = vmatpush1.msra.mxu0 0.0
        %3607 = vmatprep.subr.mxu0 0.0
        %3608 = vmatpush1.msra.mxu0 0.0
        %3609 = vmatprep.subr.mxu0 0.0
        %3610 = vmatpush1.msra.mxu0 0.0
        %3611 = vmatprep.subr.mxu0 0.0
        %3612 = vmatpush1.msra.mxu0 0.0
        %3613 = vmatprep.subr.mxu0 0.0
        %3614 = vmatpush1.msra.mxu0 0.0
        %3615 = vmatprep.subr.mxu0 0.0
        %3616 = vmatpush1.msra.mxu0 0.0
        %3617 = vmatprep.subr.mxu0 0.0
        %3618 = vmatpush1.msra.mxu0 0.0
        %3619 = vmatprep.subr.mxu0 0.0
        %3620 = vmatpush1.msra.mxu0 0.0
        %3621 = vmatprep.subr.mxu0 0.0
        %3622 = vmatpush1.msra.mxu0 0.0
        %3623 = vmatprep.subr.mxu0 0.0
        %3624 = vmatpush1.msra.mxu0 0.0
        %3625 = vmatprep.subr.mxu0 0.0
        %3626 = vmatpush1.msra.mxu0 0.0
        %3627 = vmatprep.subr.mxu0 0.0
        %3628 = vmatpush1.msra.mxu0 0.0
        %3629 = vmatprep.subr.mxu0 0.0
        %3630 = vmatpush1.msra.mxu0 0.0
        %3631 = vmatprep.subr.mxu0 0.0
        %3632 = vmatpush1.msra.mxu0 0.0
        %3633 = vmatprep.subr.mxu0 0.0
        %3634 = vmatpush1.msra.mxu0 0.0
        %3635 = vmatprep.subr.mxu0 0.0
        %3636 = vmatpush1.msra.mxu0 0.0
        %3637 = vmatprep.subr.mxu0 0.0
        %3638 = vmatpush1.msra.mxu0 0.0
        %3639 = vmatprep.subr.mxu0 0.0
        %3640 = vmatpush1.msra.mxu0 0.0
        %3641 = vmatprep.subr.mxu0 0.0
        %3642 = vmatpush1.msra.mxu0 0.0
        %3643 = vmatprep.subr.mxu0 0.0
        %3644 = vmatpush1.msra.mxu0 0.0
        %3645 = vmatprep.subr.mxu0 0.0
        %3646 = vmatpush1.msra.mxu0 0.0
        %3647 = vmatprep.subr.mxu0 0.0
        %3648 = vmatpush1.msra.mxu0 0.0
        %3649 = vmatprep.subr.mxu0 0.0
        %3650 = vmatpush1.msra.mxu0 0.0
        %3651 = vmatprep.subr.mxu0 0.0
        %3652 = vmatpush1.msra.mxu0 0.0
        %3653 = vmatprep.subr.mxu0 0.0
        %3654 = vmatpush1.msra.mxu0 0.0
        %3655 = vmatprep.mubr.f32.mxu0 0.0
        %v3656 = vand.u32 %v3270, 4294901760
        %3657 = vmatmul.mubr.f32.gmra.mrb[0].mxu0 %v3656
        %v3658 = vpop.f32.mrb[0].mxu0
        %v3659 = vadd.f32 %v3581, %v3658
        %v3660 = vpop.f32.mrb[0].mxu0
        %v3661 = vadd.f32 %v3583, %v3660
        %3662 = vdwg.mxu0
        %v3663 = vand.u32 %v3266, 4294901760
        %3664 = vmatprep.subr.mxu0 %v3663
        %v3665 = vand.u32 %v3265, 4294901760
        %3666 = vmatpush1.msra.mxu0 %v3665
        %3667 = vmatprep.subr.mxu0 0.0
        %3668 = vmatpush1.msra.mxu0 0.0
        %3669 = vmatprep.subr.mxu0 0.0
        %3670 = vmatpush1.msra.mxu0 0.0
        %3671 = vmatprep.subr.mxu0 0.0
        %3672 = vmatpush1.msra.mxu0 0.0
        %3673 = vmatprep.subr.mxu0 0.0
        %3674 = vmatpush1.msra.mxu0 0.0
        %3675 = vmatprep.subr.mxu0 0.0
        %3676 = vmatpush1.msra.mxu0 0.0
        %3677 = vmatprep.subr.mxu0 0.0
        %3678 = vmatpush1.msra.mxu0 0.0
        %3679 = vmatprep.subr.mxu0 0.0
        %3680 = vmatpush1.msra.mxu0 0.0
        %3681 = vmatprep.subr.mxu0 0.0
        %3682 = vmatpush1.msra.mxu0 0.0
        %3683 = vmatprep.subr.mxu0 0.0
        %3684 = vmatpush1.msra.mxu0 0.0
        %3685 = vmatprep.subr.mxu0 0.0
        %3686 = vmatpush1.msra.mxu0 0.0
        %3687 = vmatprep.subr.mxu0 0.0
        %3688 = vmatpush1.msra.mxu0 0.0
        %3689 = vmatprep.subr.mxu0 0.0
        %3690 = vmatpush1.msra.mxu0 0.0
        %3691 = vmatprep.subr.mxu0 0.0
        %3692 = vmatpush1.msra.mxu0 0.0
        %3693 = vmatprep.subr.mxu0 0.0
        %3694 = vmatpush1.msra.mxu0 0.0
        %3695 = vmatprep.subr.mxu0 0.0
        %3696 = vmatpush1.msra.mxu0 0.0
        %3697 = vmatprep.subr.mxu0 0.0
        %3698 = vmatpush1.msra.mxu0 0.0
        %3699 = vmatprep.subr.mxu0 0.0
        %3700 = vmatpush1.msra.mxu0 0.0
        %3701 = vmatprep.subr.mxu0 0.0
        %3702 = vmatpush1.msra.mxu0 0.0
        %3703 = vmatprep.subr.mxu0 0.0
        %3704 = vmatpush1.msra.mxu0 0.0
        %3705 = vmatprep.subr.mxu0 0.0
        %3706 = vmatpush1.msra.mxu0 0.0
        %3707 = vmatprep.subr.mxu0 0.0
        %3708 = vmatpush1.msra.mxu0 0.0
        %3709 = vmatprep.subr.mxu0 0.0
        %3710 = vmatpush1.msra.mxu0 0.0
        %3711 = vmatprep.subr.mxu0 0.0
        %3712 = vmatpush1.msra.mxu0 0.0
        %3713 = vmatprep.subr.mxu0 0.0
        %3714 = vmatpush1.msra.mxu0 0.0
        %3715 = vmatprep.subr.mxu0 0.0
        %3716 = vmatpush1.msra.mxu0 0.0
        %3717 = vmatprep.subr.mxu0 0.0
        %3718 = vmatpush1.msra.mxu0 0.0
        %3719 = vmatprep.subr.mxu0 0.0
        %3720 = vmatpush1.msra.mxu0 0.0
        %3721 = vmatprep.subr.mxu0 0.0
        %3722 = vmatpush1.msra.mxu0 0.0
        %3723 = vmatprep.subr.mxu0 0.0
        %3724 = vmatpush1.msra.mxu0 0.0
        %3725 = vmatprep.subr.mxu0 0.0
        %3726 = vmatpush1.msra.mxu0 0.0
        %3727 = vmatprep.subr.mxu0 0.0
        %3728 = vmatpush1.msra.mxu0 0.0
        %3729 = vmatprep.mubr.f32.mxu0 0.0
        %v3730 = vand.u32 %v3270, 4294901760
        %3731 = vmatmul.mubr.f32.gmra.mrb[0].mxu0 %v3730
        %v3732 = vpop.f32.mrb[0].mxu0
        %v3733 = vadd.f32 %v3659, %v3732
        %v3734 = vpop.f32.mrb[0].mxu0
        %v3735 = vadd.f32 %v3661, %v3734
        %3736 = vdwg.mxu0
        %v3737 = vadd.f32 %v3243, %v3733
        %v3738 = vadd.f32 %v3244, %v3735
        %3739 = vrot.lane.b32.xlu0 %v304, 112
        %v3740 = vpop.permute.xlu0 %3739
        %3741 = vrot.lane.b32.xlu0 %v305, 112
        %v3742 = vpop.permute.xlu0 %3741
        %vm3743 = vcmp.lt.s32.totalorder %v311, 112
        %v3744 = vsel %vm3743, %v3740, %v3742
        %v3745 = vsel %vm3743, %v3742, %v3740
        %s3746 = scalar_lea.vmem %s0, 14
        %v3747 = vld [vmem:[%s3746] sm:$0x3]
        %v3749 = vlaneseq
        %v3750 = vshrl.u32 %v3749, 7
        %v3751 = vsub.s32 0, %v3750
        %v3752 = vrot.slane %v3747, %v3751
        %v3753 = vlaneseq
        %v3754 = vshrl.u32 %v3753, 7
        %v3755 = vsub.s32 1, %v3754
        %v3756 = vrot.slane %v3747, %v3755
        %v3759 = vmul.f32 %v3744, %v3752
        %v3760 = vmul.f32 %v3745, %v3756
        %s3761 = scalar_lea.vmem %s2, 56
        %v3762 = vld [vmem:[%s3761] sm:$0xff]
        %v3764 = vsel %vm354, %v3762, 0
        %v3766 = vand.u32 %v3760, 4294901760
        %3767 = vmatprep.subr.mxu0 %v3766
        %v3768 = vand.u32 %v3759, 4294901760
        %3769 = vmatpush1.msra.mxu0 %v3768
        %3770 = vmatprep.subr.mxu0 0.0
        %3771 = vmatpush1.msra.mxu0 0.0
        %3772 = vmatprep.subr.mxu0 0.0
        %3773 = vmatpush1.msra.mxu0 0.0
        %3774 = vmatprep.subr.mxu0 0.0
        %3775 = vmatpush1.msra.mxu0 0.0
        %3776 = vmatprep.subr.mxu0 0.0
        %3777 = vmatpush1.msra.mxu0 0.0
        %3778 = vmatprep.subr.mxu0 0.0
        %3779 = vmatpush1.msra.mxu0 0.0
        %3780 = vmatprep.subr.mxu0 0.0
        %3781 = vmatpush1.msra.mxu0 0.0
        %3782 = vmatprep.subr.mxu0 0.0
        %3783 = vmatpush1.msra.mxu0 0.0
        %3784 = vmatprep.subr.mxu0 0.0
        %3785 = vmatpush1.msra.mxu0 0.0
        %3786 = vmatprep.subr.mxu0 0.0
        %3787 = vmatpush1.msra.mxu0 0.0
        %3788 = vmatprep.subr.mxu0 0.0
        %3789 = vmatpush1.msra.mxu0 0.0
        %3790 = vmatprep.subr.mxu0 0.0
        %3791 = vmatpush1.msra.mxu0 0.0
        %3792 = vmatprep.subr.mxu0 0.0
        %3793 = vmatpush1.msra.mxu0 0.0
        %3794 = vmatprep.subr.mxu0 0.0
        %3795 = vmatpush1.msra.mxu0 0.0
        %3796 = vmatprep.subr.mxu0 0.0
        %3797 = vmatpush1.msra.mxu0 0.0
        %3798 = vmatprep.subr.mxu0 0.0
        %3799 = vmatpush1.msra.mxu0 0.0
        %3800 = vmatprep.subr.mxu0 0.0
        %3801 = vmatpush1.msra.mxu0 0.0
        %3802 = vmatprep.subr.mxu0 0.0
        %3803 = vmatpush1.msra.mxu0 0.0
        %3804 = vmatprep.subr.mxu0 0.0
        %3805 = vmatpush1.msra.mxu0 0.0
        %3806 = vmatprep.subr.mxu0 0.0
        %3807 = vmatpush1.msra.mxu0 0.0
        %3808 = vmatprep.subr.mxu0 0.0
        %3809 = vmatpush1.msra.mxu0 0.0
        %3810 = vmatprep.subr.mxu0 0.0
        %3811 = vmatpush1.msra.mxu0 0.0
        %3812 = vmatprep.subr.mxu0 0.0
        %3813 = vmatpush1.msra.mxu0 0.0
        %3814 = vmatprep.subr.mxu0 0.0
        %3815 = vmatpush1.msra.mxu0 0.0
        %3816 = vmatprep.subr.mxu0 0.0
        %3817 = vmatpush1.msra.mxu0 0.0
        %3818 = vmatprep.subr.mxu0 0.0
        %3819 = vmatpush1.msra.mxu0 0.0
        %3820 = vmatprep.subr.mxu0 0.0
        %3821 = vmatpush1.msra.mxu0 0.0
        %3822 = vmatprep.subr.mxu0 0.0
        %3823 = vmatpush1.msra.mxu0 0.0
        %3824 = vmatprep.subr.mxu0 0.0
        %3825 = vmatpush1.msra.mxu0 0.0
        %3826 = vmatprep.subr.mxu0 0.0
        %3827 = vmatpush1.msra.mxu0 0.0
        %3828 = vmatprep.subr.mxu0 0.0
        %3829 = vmatpush1.msra.mxu0 0.0
        %3830 = vmatprep.subr.mxu0 0.0
        %3831 = vmatpush1.msra.mxu0 0.0
        %3832 = vmatprep.mubr.f32.mxu0 0.0
        %v3833 = vand.u32 %v3764, 4294901760
        %v3834 = vsub.f32 %v3764, %v3833
        %v3835 = vand.u32 %v3834, 4294901760
        %v3836 = vsub.f32 %v3834, %v3835
        %v3837 = vand.u32 %v3836, 4294901760
        %3838 = vmatmul.mubr.f32.gmra.mrb[0].mxu0 %v3837
        %v3839 = vpop.f32.mrb[0].mxu0
        %v3840 = vadd.f32 0.0, %v3839
        %v3841 = vpop.f32.mrb[0].mxu0
        %v3842 = vadd.f32 0.0, %v3841
        %3843 = vdwg.mxu0
        %v3844 = vand.u32 %v3760, 4294901760
        %v3845 = vsub.f32 %v3760, %v3844
        %v3846 = vand.u32 %v3845, 4294901760
        %v3847 = vsub.f32 %v3845, %v3846
        %v3848 = vand.u32 %v3847, 4294901760
        %3849 = vmatprep.subr.mxu0 %v3848
        %v3850 = vand.u32 %v3759, 4294901760
        %v3851 = vsub.f32 %v3759, %v3850
        %v3852 = vand.u32 %v3851, 4294901760
        %v3853 = vsub.f32 %v3851, %v3852
        %v3854 = vand.u32 %v3853, 4294901760
        %3855 = vmatpush1.msra.mxu0 %v3854
        %3856 = vmatprep.subr.mxu0 0.0
        %3857 = vmatpush1.msra.mxu0 0.0
        %3858 = vmatprep.subr.mxu0 0.0
        %3859 = vmatpush1.msra.mxu0 0.0
        %3860 = vmatprep.subr.mxu0 0.0
        %3861 = vmatpush1.msra.mxu0 0.0
        %3862 = vmatprep.subr.mxu0 0.0
        %3863 = vmatpush1.msra.mxu0 0.0
        %3864 = vmatprep.subr.mxu0 0.0
        %3865 = vmatpush1.msra.mxu0 0.0
        %3866 = vmatprep.subr.mxu0 0.0
        %3867 = vmatpush1.msra.mxu0 0.0
        %3868 = vmatprep.subr.mxu0 0.0
        %3869 = vmatpush1.msra.mxu0 0.0
        %3870 = vmatprep.subr.mxu0 0.0
        %3871 = vmatpush1.msra.mxu0 0.0
        %3872 = vmatprep.subr.mxu0 0.0
        %3873 = vmatpush1.msra.mxu0 0.0
        %3874 = vmatprep.subr.mxu0 0.0
        %3875 = vmatpush1.msra.mxu0 0.0
        %3876 = vmatprep.subr.mxu0 0.0
        %3877 = vmatpush1.msra.mxu0 0.0
        %3878 = vmatprep.subr.mxu0 0.0
        %3879 = vmatpush1.msra.mxu0 0.0
        %3880 = vmatprep.subr.mxu0 0.0
        %3881 = vmatpush1.msra.mxu0 0.0
        %3882 = vmatprep.subr.mxu0 0.0
        %3883 = vmatpush1.msra.mxu0 0.0
        %3884 = vmatprep.subr.mxu0 0.0
        %3885 = vmatpush1.msra.mxu0 0.0
        %3886 = vmatprep.subr.mxu0 0.0
        %3887 = vmatpush1.msra.mxu0 0.0
        %3888 = vmatprep.subr.mxu0 0.0
        %3889 = vmatpush1.msra.mxu0 0.0
        %3890 = vmatprep.subr.mxu0 0.0
        %3891 = vmatpush1.msra.mxu0 0.0
        %3892 = vmatprep.subr.mxu0 0.0
        %3893 = vmatpush1.msra.mxu0 0.0
        %3894 = vmatprep.subr.mxu0 0.0
        %3895 = vmatpush1.msra.mxu0 0.0
        %3896 = vmatprep.subr.mxu0 0.0
        %3897 = vmatpush1.msra.mxu0 0.0
        %3898 = vmatprep.subr.mxu0 0.0
        %3899 = vmatpush1.msra.mxu0 0.0
        %3900 = vmatprep.subr.mxu0 0.0
        %3901 = vmatpush1.msra.mxu0 0.0
        %3902 = vmatprep.subr.mxu0 0.0
        %3903 = vmatpush1.msra.mxu0 0.0
        %3904 = vmatprep.subr.mxu0 0.0
        %3905 = vmatpush1.msra.mxu0 0.0
        %3906 = vmatprep.subr.mxu0 0.0
        %3907 = vmatpush1.msra.mxu0 0.0
        %3908 = vmatprep.subr.mxu0 0.0
        %3909 = vmatpush1.msra.mxu0 0.0
        %3910 = vmatprep.subr.mxu0 0.0
        %3911 = vmatpush1.msra.mxu0 0.0
        %3912 = vmatprep.subr.mxu0 0.0
        %3913 = vmatpush1.msra.mxu0 0.0
        %3914 = vmatprep.subr.mxu0 0.0
        %3915 = vmatpush1.msra.mxu0 0.0
        %3916 = vmatprep.subr.mxu0 0.0
        %3917 = vmatpush1.msra.mxu0 0.0
        %3918 = vmatprep.mubr.f32.mxu0 0.0
        %v3919 = vand.u32 %v3764, 4294901760
        %3920 = vmatmul.mubr.f32.gmra.mrb[0].mxu0 %v3919
        %v3921 = vpop.f32.mrb[0].mxu0
        %v3922 = vadd.f32 %v3840, %v3921
        %v3923 = vpop.f32.mrb[0].mxu0
        %v3924 = vadd.f32 %v3842, %v3923
        %3925 = vdwg.mxu0
        %v3926 = vand.u32 %v3760, 4294901760
        %v3927 = vsub.f32 %v3760, %v3926
        %3928 = vmatprep.subr.mxu0 %v3927
        %v3929 = vand.u32 %v3759, 4294901760
        %v3930 = vsub.f32 %v3759, %v3929
        %3931 = vmatpush1.msra.mxu0 %v3930
        %3932 = vmatprep.subr.mxu0 0.0
        %3933 = vmatpush1.msra.mxu0 0.0
        %3934 = vmatprep.subr.mxu0 0.0
        %3935 = vmatpush1.msra.mxu0 0.0
        %3936 = vmatprep.subr.mxu0 0.0
        %3937 = vmatpush1.msra.mxu0 0.0
        %3938 = vmatprep.subr.mxu0 0.0
        %3939 = vmatpush1.msra.mxu0 0.0
        %3940 = vmatprep.subr.mxu0 0.0
        %3941 = vmatpush1.msra.mxu0 0.0
        %3942 = vmatprep.subr.mxu0 0.0
        %3943 = vmatpush1.msra.mxu0 0.0
        %3944 = vmatprep.subr.mxu0 0.0
        %3945 = vmatpush1.msra.mxu0 0.0
        %3946 = vmatprep.subr.mxu0 0.0
        %3947 = vmatpush1.msra.mxu0 0.0
        %3948 = vmatprep.subr.mxu0 0.0
        %3949 = vmatpush1.msra.mxu0 0.0
        %3950 = vmatprep.subr.mxu0 0.0
        %3951 = vmatpush1.msra.mxu0 0.0
        %3952 = vmatprep.subr.mxu0 0.0
        %3953 = vmatpush1.msra.mxu0 0.0
        %3954 = vmatprep.subr.mxu0 0.0
        %3955 = vmatpush1.msra.mxu0 0.0
        %3956 = vmatprep.subr.mxu0 0.0
        %3957 = vmatpush1.msra.mxu0 0.0
        %3958 = vmatprep.subr.mxu0 0.0
        %3959 = vmatpush1.msra.mxu0 0.0
        %3960 = vmatprep.subr.mxu0 0.0
        %3961 = vmatpush1.msra.mxu0 0.0
        %3962 = vmatprep.subr.mxu0 0.0
        %3963 = vmatpush1.msra.mxu0 0.0
        %3964 = vmatprep.subr.mxu0 0.0
        %3965 = vmatpush1.msra.mxu0 0.0
        %3966 = vmatprep.subr.mxu0 0.0
        %3967 = vmatpush1.msra.mxu0 0.0
        %3968 = vmatprep.subr.mxu0 0.0
        %3969 = vmatpush1.msra.mxu0 0.0
        %3970 = vmatprep.subr.mxu0 0.0
        %3971 = vmatpush1.msra.mxu0 0.0
        %3972 = vmatprep.subr.mxu0 0.0
        %3973 = vmatpush1.msra.mxu0 0.0
        %3974 = vmatprep.subr.mxu0 0.0
        %3975 = vmatpush1.msra.mxu0 0.0
        %3976 = vmatprep.subr.mxu0 0.0
        %3977 = vmatpush1.msra.mxu0 0.0
        %3978 = vmatprep.subr.mxu0 0.0
        %3979 = vmatpush1.msra.mxu0 0.0
        %3980 = vmatprep.subr.mxu0 0.0
        %3981 = vmatpush1.msra.mxu0 0.0
        %3982 = vmatprep.subr.mxu0 0.0
        %3983 = vmatpush1.msra.mxu0 0.0
        %3984 = vmatprep.subr.mxu0 0.0
        %3985 = vmatpush1.msra.mxu0 0.0
        %3986 = vmatprep.subr.mxu0 0.0
        %3987 = vmatpush1.msra.mxu0 0.0
        %3988 = vmatprep.subr.mxu0 0.0
        %3989 = vmatpush1.msra.mxu0 0.0
        %3990 = vmatprep.subr.mxu0 0.0
        %3991 = vmatpush1.msra.mxu0 0.0
        %3992 = vmatprep.subr.mxu0 0.0
        %3993 = vmatpush1.msra.mxu0 0.0
        %3994 = vmatprep.mubr.f32.mxu0 0.0
        %v3995 = vand.u32 %v3764, 4294901760
        %v3996 = vsub.f32 %v3764, %v3995
        %3997 = vmatmul.mubr.f32.gmra.mrb[0].mxu0 %v3996
        %v3998 = vpop.f32.mrb[0].mxu0
        %v3999 = vadd.f32 %v3922, %v3998
        %v4000 = vpop.f32.mrb[0].mxu0
        %v4001 = vadd.f32 %v3924, %v4000
        %4002 = vdwg.mxu0
        %v4003 = vand.u32 %v3760, 4294901760
        %4004 = vmatprep.subr.mxu0 %v4003
        %v4005 = vand.u32 %v3759, 4294901760
        %4006 = vmatpush1.msra.mxu0 %v4005
        %4007 = vmatprep.subr.mxu0 0.0
        %4008 = vmatpush1.msra.mxu0 0.0
        %4009 = vmatprep.subr.mxu0 0.0
        %4010 = vmatpush1.msra.mxu0 0.0
        %4011 = vmatprep.subr.mxu0 0.0
        %4012 = vmatpush1.msra.mxu0 0.0
        %4013 = vmatprep.subr.mxu0 0.0
        %4014 = vmatpush1.msra.mxu0 0.0
        %4015 = vmatprep.subr.mxu0 0.0
        %4016 = vmatpush1.msra.mxu0 0.0
        %4017 = vmatprep.subr.mxu0 0.0
        %4018 = vmatpush1.msra.mxu0 0.0
        %4019 = vmatprep.subr.mxu0 0.0
        %4020 = vmatpush1.msra.mxu0 0.0
        %4021 = vmatprep.subr.mxu0 0.0
        %4022 = vmatpush1.msra.mxu0 0.0
        %4023 = vmatprep.subr.mxu0 0.0
        %4024 = vmatpush1.msra.mxu0 0.0
        %4025 = vmatprep.subr.mxu0 0.0
        %4026 = vmatpush1.msra.mxu0 0.0
        %4027 = vmatprep.subr.mxu0 0.0
        %4028 = vmatpush1.msra.mxu0 0.0
        %4029 = vmatprep.subr.mxu0 0.0
        %4030 = vmatpush1.msra.mxu0 0.0
        %4031 = vmatprep.subr.mxu0 0.0
        %4032 = vmatpush1.msra.mxu0 0.0
        %4033 = vmatprep.subr.mxu0 0.0
        %4034 = vmatpush1.msra.mxu0 0.0
        %4035 = vmatprep.subr.mxu0 0.0
        %4036 = vmatpush1.msra.mxu0 0.0
        %4037 = vmatprep.subr.mxu0 0.0
        %4038 = vmatpush1.msra.mxu0 0.0
        %4039 = vmatprep.subr.mxu0 0.0
        %4040 = vmatpush1.msra.mxu0 0.0
        %4041 = vmatprep.subr.mxu0 0.0
        %4042 = vmatpush1.msra.mxu0 0.0
        %4043 = vmatprep.subr.mxu0 0.0
        %4044 = vmatpush1.msra.mxu0 0.0
        %4045 = vmatprep.subr.mxu0 0.0
        %4046 = vmatpush1.msra.mxu0 0.0
        %4047 = vmatprep.subr.mxu0 0.0
        %4048 = vmatpush1.msra.mxu0 0.0
        %4049 = vmatprep.subr.mxu0 0.0
        %4050 = vmatpush1.msra.mxu0 0.0
        %4051 = vmatprep.subr.mxu0 0.0
        %4052 = vmatpush1.msra.mxu0 0.0
        %4053 = vmatprep.subr.mxu0 0.0
        %4054 = vmatpush1.msra.mxu0 0.0
        %4055 = vmatprep.subr.mxu0 0.0
        %4056 = vmatpush1.msra.mxu0 0.0
        %4057 = vmatprep.subr.mxu0 0.0
        %4058 = vmatpush1.msra.mxu0 0.0
        %4059 = vmatprep.subr.mxu0 0.0
        %4060 = vmatpush1.msra.mxu0 0.0
        %4061 = vmatprep.subr.mxu0 0.0
        %4062 = vmatpush1.msra.mxu0 0.0
        %4063 = vmatprep.subr.mxu0 0.0
        %4064 = vmatpush1.msra.mxu0 0.0
        %4065 = vmatprep.subr.mxu0 0.0
        %4066 = vmatpush1.msra.mxu0 0.0
        %4067 = vmatprep.subr.mxu0 0.0
        %4068 = vmatpush1.msra.mxu0 0.0
        %4069 = vmatprep.mubr.f32.mxu0 0.0
        %v4070 = vand.u32 %v3764, 4294901760
        %v4071 = vsub.f32 %v3764, %v4070
        %v4072 = vand.u32 %v4071, 4294901760
        %4073 = vmatmul.mubr.f32.gmra.mrb[0].mxu0 %v4072
        %v4074 = vpop.f32.mrb[0].mxu0
        %v4075 = vadd.f32 %v3999, %v4074
        %v4076 = vpop.f32.mrb[0].mxu0
        %v4077 = vadd.f32 %v4001, %v4076
        %4078 = vdwg.mxu0
        %v4079 = vand.u32 %v3760, 4294901760
        %v4080 = vsub.f32 %v3760, %v4079
        %v4081 = vand.u32 %v4080, 4294901760
        %4082 = vmatprep.subr.mxu0 %v4081
        %v4083 = vand.u32 %v3759, 4294901760
        %v4084 = vsub.f32 %v3759, %v4083
        %v4085 = vand.u32 %v4084, 4294901760
        %4086 = vmatpush1.msra.mxu0 %v4085
        %4087 = vmatprep.subr.mxu0 0.0
        %4088 = vmatpush1.msra.mxu0 0.0
        %4089 = vmatprep.subr.mxu0 0.0
        %4090 = vmatpush1.msra.mxu0 0.0
        %4091 = vmatprep.subr.mxu0 0.0
        %4092 = vmatpush1.msra.mxu0 0.0
        %4093 = vmatprep.subr.mxu0 0.0
        %4094 = vmatpush1.msra.mxu0 0.0
        %4095 = vmatprep.subr.mxu0 0.0
        %4096 = vmatpush1.msra.mxu0 0.0
        %4097 = vmatprep.subr.mxu0 0.0
        %4098 = vmatpush1.msra.mxu0 0.0
        %4099 = vmatprep.subr.mxu0 0.0
        %4100 = vmatpush1.msra.mxu0 0.0
        %4101 = vmatprep.subr.mxu0 0.0
        %4102 = vmatpush1.msra.mxu0 0.0
        %4103 = vmatprep.subr.mxu0 0.0
        %4104 = vmatpush1.msra.mxu0 0.0
        %4105 = vmatprep.subr.mxu0 0.0
        %4106 = vmatpush1.msra.mxu0 0.0
        %4107 = vmatprep.subr.mxu0 0.0
        %4108 = vmatpush1.msra.mxu0 0.0
        %4109 = vmatprep.subr.mxu0 0.0
        %4110 = vmatpush1.msra.mxu0 0.0
        %4111 = vmatprep.subr.mxu0 0.0
        %4112 = vmatpush1.msra.mxu0 0.0
        %4113 = vmatprep.subr.mxu0 0.0
        %4114 = vmatpush1.msra.mxu0 0.0
        %4115 = vmatprep.subr.mxu0 0.0
        %4116 = vmatpush1.msra.mxu0 0.0
        %4117 = vmatprep.subr.mxu0 0.0
        %4118 = vmatpush1.msra.mxu0 0.0
        %4119 = vmatprep.subr.mxu0 0.0
        %4120 = vmatpush1.msra.mxu0 0.0
        %4121 = vmatprep.subr.mxu0 0.0
        %4122 = vmatpush1.msra.mxu0 0.0
        %4123 = vmatprep.subr.mxu0 0.0
        %4124 = vmatpush1.msra.mxu0 0.0
        %4125 = vmatprep.subr.mxu0 0.0
        %4126 = vmatpush1.msra.mxu0 0.0
        %4127 = vmatprep.subr.mxu0 0.0
        %4128 = vmatpush1.msra.mxu0 0.0
        %4129 = vmatprep.subr.mxu0 0.0
        %4130 = vmatpush1.msra.mxu0 0.0
        %4131 = vmatprep.subr.mxu0 0.0
        %4132 = vmatpush1.msra.mxu0 0.0
        %4133 = vmatprep.subr.mxu0 0.0
        %4134 = vmatpush1.msra.mxu0 0.0
        %4135 = vmatprep.subr.mxu0 0.0
        %4136 = vmatpush1.msra.mxu0 0.0
        %4137 = vmatprep.subr.mxu0 0.0
        %4138 = vmatpush1.msra.mxu0 0.0
        %4139 = vmatprep.subr.mxu0 0.0
        %4140 = vmatpush1.msra.mxu0 0.0
        %4141 = vmatprep.subr.mxu0 0.0
        %4142 = vmatpush1.msra.mxu0 0.0
        %4143 = vmatprep.subr.mxu0 0.0
        %4144 = vmatpush1.msra.mxu0 0.0
        %4145 = vmatprep.subr.mxu0 0.0
        %4146 = vmatpush1.msra.mxu0 0.0
        %4147 = vmatprep.subr.mxu0 0.0
        %4148 = vmatpush1.msra.mxu0 0.0
        %4149 = vmatprep.mubr.f32.mxu0 0.0
        %v4150 = vand.u32 %v3764, 4294901760
        %4151 = vmatmul.mubr.f32.gmra.mrb[0].mxu0 %v4150
        %v4152 = vpop.f32.mrb[0].mxu0
        %v4153 = vadd.f32 %v4075, %v4152
        %v4154 = vpop.f32.mrb[0].mxu0
        %v4155 = vadd.f32 %v4077, %v4154
        %4156 = vdwg.mxu0
        %v4157 = vand.u32 %v3760, 4294901760
        %4158 = vmatprep.subr.mxu0 %v4157
        %v4159 = vand.u32 %v3759, 4294901760
        %4160 = vmatpush1.msra.mxu0 %v4159
        %4161 = vmatprep.subr.mxu0 0.0
        %4162 = vmatpush1.msra.mxu0 0.0
        %4163 = vmatprep.subr.mxu0 0.0
        %4164 = vmatpush1.msra.mxu0 0.0
        %4165 = vmatprep.subr.mxu0 0.0
        %4166 = vmatpush1.msra.mxu0 0.0
        %4167 = vmatprep.subr.mxu0 0.0
        %4168 = vmatpush1.msra.mxu0 0.0
        %4169 = vmatprep.subr.mxu0 0.0
        %4170 = vmatpush1.msra.mxu0 0.0
        %4171 = vmatprep.subr.mxu0 0.0
        %4172 = vmatpush1.msra.mxu0 0.0
        %4173 = vmatprep.subr.mxu0 0.0
        %4174 = vmatpush1.msra.mxu0 0.0
        %4175 = vmatprep.subr.mxu0 0.0
        %4176 = vmatpush1.msra.mxu0 0.0
        %4177 = vmatprep.subr.mxu0 0.0
        %4178 = vmatpush1.msra.mxu0 0.0
        %4179 = vmatprep.subr.mxu0 0.0
        %4180 = vmatpush1.msra.mxu0 0.0
        %4181 = vmatprep.subr.mxu0 0.0
        %4182 = vmatpush1.msra.mxu0 0.0
        %4183 = vmatprep.subr.mxu0 0.0
        %4184 = vmatpush1.msra.mxu0 0.0
        %4185 = vmatprep.subr.mxu0 0.0
        %4186 = vmatpush1.msra.mxu0 0.0
        %4187 = vmatprep.subr.mxu0 0.0
        %4188 = vmatpush1.msra.mxu0 0.0
        %4189 = vmatprep.subr.mxu0 0.0
        %4190 = vmatpush1.msra.mxu0 0.0
        %4191 = vmatprep.subr.mxu0 0.0
        %4192 = vmatpush1.msra.mxu0 0.0
        %4193 = vmatprep.subr.mxu0 0.0
        %4194 = vmatpush1.msra.mxu0 0.0
        %4195 = vmatprep.subr.mxu0 0.0
        %4196 = vmatpush1.msra.mxu0 0.0
        %4197 = vmatprep.subr.mxu0 0.0
        %4198 = vmatpush1.msra.mxu0 0.0
        %4199 = vmatprep.subr.mxu0 0.0
        %4200 = vmatpush1.msra.mxu0 0.0
        %4201 = vmatprep.subr.mxu0 0.0
        %4202 = vmatpush1.msra.mxu0 0.0
        %4203 = vmatprep.subr.mxu0 0.0
        %4204 = vmatpush1.msra.mxu0 0.0
        %4205 = vmatprep.subr.mxu0 0.0
        %4206 = vmatpush1.msra.mxu0 0.0
        %4207 = vmatprep.subr.mxu0 0.0
        %4208 = vmatpush1.msra.mxu0 0.0
        %4209 = vmatprep.subr.mxu0 0.0
        %4210 = vmatpush1.msra.mxu0 0.0
        %4211 = vmatprep.subr.mxu0 0.0
        %4212 = vmatpush1.msra.mxu0 0.0
        %4213 = vmatprep.subr.mxu0 0.0
        %4214 = vmatpush1.msra.mxu0 0.0
        %4215 = vmatprep.subr.mxu0 0.0
        %4216 = vmatpush1.msra.mxu0 0.0
        %4217 = vmatprep.subr.mxu0 0.0
        %4218 = vmatpush1.msra.mxu0 0.0
        %4219 = vmatprep.subr.mxu0 0.0
        %4220 = vmatpush1.msra.mxu0 0.0
        %4221 = vmatprep.subr.mxu0 0.0
        %4222 = vmatpush1.msra.mxu0 0.0
        %4223 = vmatprep.mubr.f32.mxu0 0.0
        %v4224 = vand.u32 %v3764, 4294901760
        %4225 = vmatmul.mubr.f32.gmra.mrb[0].mxu0 %v4224
        %v4226 = vpop.f32.mrb[0].mxu0
        %v4227 = vadd.f32 %v4153, %v4226
        %v4228 = vpop.f32.mrb[0].mxu0
        %v4229 = vadd.f32 %v4155, %v4228
        %4230 = vdwg.mxu0
        %v4231 = vadd.f32 %v3737, %v4227
        %v4232 = vadd.f32 %v3738, %v4229
        %4233 = vrot.lane.b32.xlu0 %v304, 111
        %v4234 = vpop.permute.xlu0 %4233
        %4235 = vrot.lane.b32.xlu0 %v305, 111
        %v4236 = vpop.permute.xlu0 %4235
        %vm4237 = vcmp.lt.s32.totalorder %v311, 111
        %v4238 = vsel %vm4237, %v4234, %v4236
        %v4239 = vsel %vm4237, %v4236, %v4234
        %s4240 = scalar_lea.vmem %s0, 16
        %v4241 = vld [vmem:[%s4240] sm:$0x3]
        %v4243 = vlaneseq
        %v4244 = vshrl.u32 %v4243, 7
        %v4245 = vsub.s32 0, %v4244
        %v4246 = vrot.slane %v4241, %v4245
        %v4247 = vlaneseq
        %v4248 = vshrl.u32 %v4247, 7
        %v4249 = vsub.s32 1, %v4248
        %v4250 = vrot.slane %v4241, %v4249
        %v4253 = vmul.f32 %v4238, %v4246
        %v4254 = vmul.f32 %v4239, %v4250
        %s4255 = scalar_lea.vmem %s2, 64
        %v4256 = vld [vmem:[%s4255] sm:$0xff]
        %v4258 = vsel %vm354, %v4256, 0
        %v4260 = vand.u32 %v4254, 4294901760
        %4261 = vmatprep.subr.mxu0 %v4260
        %v4262 = vand.u32 %v4253, 4294901760
        %4263 = vmatpush1.msra.mxu0 %v4262
        %4264 = vmatprep.subr.mxu0 0.0
        %4265 = vmatpush1.msra.mxu0 0.0
        %4266 = vmatprep.subr.mxu0 0.0
        %4267 = vmatpush1.msra.mxu0 0.0
        %4268 = vmatprep.subr.mxu0 0.0
        %4269 = vmatpush1.msra.mxu0 0.0
        %4270 = vmatprep.subr.mxu0 0.0
        %4271 = vmatpush1.msra.mxu0 0.0
        %4272 = vmatprep.subr.mxu0 0.0
        %4273 = vmatpush1.msra.mxu0 0.0
        %4274 = vmatprep.subr.mxu0 0.0
        %4275 = vmatpush1.msra.mxu0 0.0
        %4276 = vmatprep.subr.mxu0 0.0
        %4277 = vmatpush1.msra.mxu0 0.0
        %4278 = vmatprep.subr.mxu0 0.0
        %4279 = vmatpush1.msra.mxu0 0.0
        %4280 = vmatprep.subr.mxu0 0.0
        %4281 = vmatpush1.msra.mxu0 0.0
        %4282 = vmatprep.subr.mxu0 0.0
        %4283 = vmatpush1.msra.mxu0 0.0
        %4284 = vmatprep.subr.mxu0 0.0
        %4285 = vmatpush1.msra.mxu0 0.0
        %4286 = vmatprep.subr.mxu0 0.0
        %4287 = vmatpush1.msra.mxu0 0.0
        %4288 = vmatprep.subr.mxu0 0.0
        %4289 = vmatpush1.msra.mxu0 0.0
        %4290 = vmatprep.subr.mxu0 0.0
        %4291 = vmatpush1.msra.mxu0 0.0
        %4292 = vmatprep.subr.mxu0 0.0
        %4293 = vmatpush1.msra.mxu0 0.0
        %4294 = vmatprep.subr.mxu0 0.0
        %4295 = vmatpush1.msra.mxu0 0.0
        %4296 = vmatprep.subr.mxu0 0.0
        %4297 = vmatpush1.msra.mxu0 0.0
        %4298 = vmatprep.subr.mxu0 0.0
        %4299 = vmatpush1.msra.mxu0 0.0
        %4300 = vmatprep.subr.mxu0 0.0
        %4301 = vmatpush1.msra.mxu0 0.0
        %4302 = vmatprep.subr.mxu0 0.0
        %4303 = vmatpush1.msra.mxu0 0.0
        %4304 = vmatprep.subr.mxu0 0.0
        %4305 = vmatpush1.msra.mxu0 0.0
        %4306 = vmatprep.subr.mxu0 0.0
        %4307 = vmatpush1.msra.mxu0 0.0
        %4308 = vmatprep.subr.mxu0 0.0
        %4309 = vmatpush1.msra.mxu0 0.0
        %4310 = vmatprep.subr.mxu0 0.0
        %4311 = vmatpush1.msra.mxu0 0.0
        %4312 = vmatprep.subr.mxu0 0.0
        %4313 = vmatpush1.msra.mxu0 0.0
        %4314 = vmatprep.subr.mxu0 0.0
        %4315 = vmatpush1.msra.mxu0 0.0
        %4316 = vmatprep.subr.mxu0 0.0
        %4317 = vmatpush1.msra.mxu0 0.0
        %4318 = vmatprep.subr.mxu0 0.0
        %4319 = vmatpush1.msra.mxu0 0.0
        %4320 = vmatprep.subr.mxu0 0.0
        %4321 = vmatpush1.msra.mxu0 0.0
        %4322 = vmatprep.subr.mxu0 0.0
        %4323 = vmatpush1.msra.mxu0 0.0
        %4324 = vmatprep.subr.mxu0 0.0
        %4325 = vmatpush1.msra.mxu0 0.0
        %4326 = vmatprep.mubr.f32.mxu0 0.0
        %v4327 = vand.u32 %v4258, 4294901760
        %v4328 = vsub.f32 %v4258, %v4327
        %v4329 = vand.u32 %v4328, 4294901760
        %v4330 = vsub.f32 %v4328, %v4329
        %v4331 = vand.u32 %v4330, 4294901760
        %4332 = vmatmul.mubr.f32.gmra.mrb[0].mxu0 %v4331
        %v4333 = vpop.f32.mrb[0].mxu0
        %v4334 = vadd.f32 0.0, %v4333
        %v4335 = vpop.f32.mrb[0].mxu0
        %v4336 = vadd.f32 0.0, %v4335
        %4337 = vdwg.mxu0
        %v4338 = vand.u32 %v4254, 4294901760
        %v4339 = vsub.f32 %v4254, %v4338
        %v4340 = vand.u32 %v4339, 4294901760
        %v4341 = vsub.f32 %v4339, %v4340
        %v4342 = vand.u32 %v4341, 4294901760
        %4343 = vmatprep.subr.mxu0 %v4342
        %v4344 = vand.u32 %v4253, 4294901760
        %v4345 = vsub.f32 %v4253, %v4344
        %v4346 = vand.u32 %v4345, 4294901760
        %v4347 = vsub.f32 %v4345, %v4346
        %v4348 = vand.u32 %v4347, 4294901760
        %4349 = vmatpush1.msra.mxu0 %v4348
        %4350 = vmatprep.subr.mxu0 0.0
        %4351 = vmatpush1.msra.mxu0 0.0
        %4352 = vmatprep.subr.mxu0 0.0
        %4353 = vmatpush1.msra.mxu0 0.0
        %4354 = vmatprep.subr.mxu0 0.0
        %4355 = vmatpush1.msra.mxu0 0.0
        %4356 = vmatprep.subr.mxu0 0.0
        %4357 = vmatpush1.msra.mxu0 0.0
        %4358 = vmatprep.subr.mxu0 0.0
        %4359 = vmatpush1.msra.mxu0 0.0
        %4360 = vmatprep.subr.mxu0 0.0
        %4361 = vmatpush1.msra.mxu0 0.0
        %4362 = vmatprep.subr.mxu0 0.0
        %4363 = vmatpush1.msra.mxu0 0.0
        %4364 = vmatprep.subr.mxu0 0.0
        %4365 = vmatpush1.msra.mxu0 0.0
        %4366 = vmatprep.subr.mxu0 0.0
        %4367 = vmatpush1.msra.mxu0 0.0
        %4368 = vmatprep.subr.mxu0 0.0
        %4369 = vmatpush1.msra.mxu0 0.0
        %4370 = vmatprep.subr.mxu0 0.0
        %4371 = vmatpush1.msra.mxu0 0.0
        %4372 = vmatprep.subr.mxu0 0.0
        %4373 = vmatpush1.msra.mxu0 0.0
        %4374 = vmatprep.subr.mxu0 0.0
        %4375 = vmatpush1.msra.mxu0 0.0
        %4376 = vmatprep.subr.mxu0 0.0
        %4377 = vmatpush1.msra.mxu0 0.0
        %4378 = vmatprep.subr.mxu0 0.0
        %4379 = vmatpush1.msra.mxu0 0.0
        %4380 = vmatprep.subr.mxu0 0.0
        %4381 = vmatpush1.msra.mxu0 0.0
        %4382 = vmatprep.subr.mxu0 0.0
        %4383 = vmatpush1.msra.mxu0 0.0
        %4384 = vmatprep.subr.mxu0 0.0
        %4385 = vmatpush1.msra.mxu0 0.0
        %4386 = vmatprep.subr.mxu0 0.0
        %4387 = vmatpush1.msra.mxu0 0.0
        %4388 = vmatprep.subr.mxu0 0.0
        %4389 = vmatpush1.msra.mxu0 0.0
        %4390 = vmatprep.subr.mxu0 0.0
        %4391 = vmatpush1.msra.mxu0 0.0
        %4392 = vmatprep.subr.mxu0 0.0
        %4393 = vmatpush1.msra.mxu0 0.0
        %4394 = vmatprep.subr.mxu0 0.0
        %4395 = vmatpush1.msra.mxu0 0.0
        %4396 = vmatprep.subr.mxu0 0.0
        %4397 = vmatpush1.msra.mxu0 0.0
        %4398 = vmatprep.subr.mxu0 0.0
        %4399 = vmatpush1.msra.mxu0 0.0
        %4400 = vmatprep.subr.mxu0 0.0
        %4401 = vmatpush1.msra.mxu0 0.0
        %4402 = vmatprep.subr.mxu0 0.0
        %4403 = vmatpush1.msra.mxu0 0.0
        %4404 = vmatprep.subr.mxu0 0.0
        %4405 = vmatpush1.msra.mxu0 0.0
        %4406 = vmatprep.subr.mxu0 0.0
        %4407 = vmatpush1.msra.mxu0 0.0
        %4408 = vmatprep.subr.mxu0 0.0
        %4409 = vmatpush1.msra.mxu0 0.0
        %4410 = vmatprep.subr.mxu0 0.0
        %4411 = vmatpush1.msra.mxu0 0.0
        %4412 = vmatprep.mubr.f32.mxu0 0.0
        %v4413 = vand.u32 %v4258, 4294901760
        %4414 = vmatmul.mubr.f32.gmra.mrb[0].mxu0 %v4413
        %v4415 = vpop.f32.mrb[0].mxu0
        %v4416 = vadd.f32 %v4334, %v4415
        %v4417 = vpop.f32.mrb[0].mxu0
        %v4418 = vadd.f32 %v4336, %v4417
        %4419 = vdwg.mxu0
        %v4420 = vand.u32 %v4254, 4294901760
        %v4421 = vsub.f32 %v4254, %v4420
        %4422 = vmatprep.subr.mxu0 %v4421
        %v4423 = vand.u32 %v4253, 4294901760
        %v4424 = vsub.f32 %v4253, %v4423
        %4425 = vmatpush1.msra.mxu0 %v4424
        %4426 = vmatprep.subr.mxu0 0.0
        %4427 = vmatpush1.msra.mxu0 0.0
        %4428 = vmatprep.subr.mxu0 0.0
        %4429 = vmatpush1.msra.mxu0 0.0
        %4430 = vmatprep.subr.mxu0 0.0
        %4431 = vmatpush1.msra.mxu0 0.0
        %4432 = vmatprep.subr.mxu0 0.0
        %4433 = vmatpush1.msra.mxu0 0.0
        %4434 = vmatprep.subr.mxu0 0.0
        %4435 = vmatpush1.msra.mxu0 0.0
        %4436 = vmatprep.subr.mxu0 0.0
        %4437 = vmatpush1.msra.mxu0 0.0
        %4438 = vmatprep.subr.mxu0 0.0
        %4439 = vmatpush1.msra.mxu0 0.0
        %4440 = vmatprep.subr.mxu0 0.0
        %4441 = vmatpush1.msra.mxu0 0.0
        %4442 = vmatprep.subr.mxu0 0.0
        %4443 = vmatpush1.msra.mxu0 0.0
        %4444 = vmatprep.subr.mxu0 0.0
        %4445 = vmatpush1.msra.mxu0 0.0
        %4446 = vmatprep.subr.mxu0 0.0
        %4447 = vmatpush1.msra.mxu0 0.0
        %4448 = vmatprep.subr.mxu0 0.0
        %4449 = vmatpush1.msra.mxu0 0.0
        %4450 = vmatprep.subr.mxu0 0.0
        %4451 = vmatpush1.msra.mxu0 0.0
        %4452 = vmatprep.subr.mxu0 0.0
        %4453 = vmatpush1.msra.mxu0 0.0
        %4454 = vmatprep.subr.mxu0 0.0
        %4455 = vmatpush1.msra.mxu0 0.0
        %4456 = vmatprep.subr.mxu0 0.0
        %4457 = vmatpush1.msra.mxu0 0.0
        %4458 = vmatprep.subr.mxu0 0.0
        %4459 = vmatpush1.msra.mxu0 0.0
        %4460 = vmatprep.subr.mxu0 0.0
        %4461 = vmatpush1.msra.mxu0 0.0
        %4462 = vmatprep.subr.mxu0 0.0
        %4463 = vmatpush1.msra.mxu0 0.0
        %4464 = vmatprep.subr.mxu0 0.0
        %4465 = vmatpush1.msra.mxu0 0.0
        %4466 = vmatprep.subr.mxu0 0.0
        %4467 = vmatpush1.msra.mxu0 0.0
        %4468 = vmatprep.subr.mxu0 0.0
        %4469 = vmatpush1.msra.mxu0 0.0
        %4470 = vmatprep.subr.mxu0 0.0
        %4471 = vmatpush1.msra.mxu0 0.0
        %4472 = vmatprep.subr.mxu0 0.0
        %4473 = vmatpush1.msra.mxu0 0.0
        %4474 = vmatprep.subr.mxu0 0.0
        %4475 = vmatpush1.msra.mxu0 0.0
        %4476 = vmatprep.subr.mxu0 0.0
        %4477 = vmatpush1.msra.mxu0 0.0
        %4478 = vmatprep.subr.mxu0 0.0
        %4479 = vmatpush1.msra.mxu0 0.0
        %4480 = vmatprep.subr.mxu0 0.0
        %4481 = vmatpush1.msra.mxu0 0.0
        %4482 = vmatprep.subr.mxu0 0.0
        %4483 = vmatpush1.msra.mxu0 0.0
        %4484 = vmatprep.subr.mxu0 0.0
        %4485 = vmatpush1.msra.mxu0 0.0
        %4486 = vmatprep.subr.mxu0 0.0
        %4487 = vmatpush1.msra.mxu0 0.0
        %4488 = vmatprep.mubr.f32.mxu0 0.0
        %v4489 = vand.u32 %v4258, 4294901760
        %v4490 = vsub.f32 %v4258, %v4489
        %4491 = vmatmul.mubr.f32.gmra.mrb[0].mxu0 %v4490
        %v4492 = vpop.f32.mrb[0].mxu0
        %v4493 = vadd.f32 %v4416, %v4492
        %v4494 = vpop.f32.mrb[0].mxu0
        %v4495 = vadd.f32 %v4418, %v4494
        %4496 = vdwg.mxu0
        %v4497 = vand.u32 %v4254, 4294901760
        %4498 = vmatprep.subr.mxu0 %v4497
        %v4499 = vand.u32 %v4253, 4294901760
        %4500 = vmatpush1.msra.mxu0 %v4499
        %4501 = vmatprep.subr.mxu0 0.0
        %4502 = vmatpush1.msra.mxu0 0.0
        %4503 = vmatprep.subr.mxu0 0.0
        %4504 = vmatpush1.msra.mxu0 0.0
        %4505 = vmatprep.subr.mxu0 0.0
        %4506 = vmatpush1.msra.mxu0 0.0
        %4507 = vmatprep.subr.mxu0 0.0
        %4508 = vmatpush1.msra.mxu0 0.0
        %4509 = vmatprep.subr.mxu0 0.0
        %4510 = vmatpush1.msra.mxu0 0.0
        %4511 = vmatprep.subr.mxu0 0.0
        %4512 = vmatpush1.msra.mxu0 0.0
        %4513 = vmatprep.subr.mxu0 0.0
        %4514 = vmatpush1.msra.mxu0 0.0
        %4515 = vmatprep.subr.mxu0 0.0
        %4516 = vmatpush1.msra.mxu0 0.0
        %4517 = vmatprep.subr.mxu0 0.0
        %4518 = vmatpush1.msra.mxu0 0.0
        %4519 = vmatprep.subr.mxu0 0.0
        %4520 = vmatpush1.msra.mxu0 0.0
        %4521 = vmatprep.subr.mxu0 0.0
        %4522 = vmatpush1.msra.mxu0 0.0
        %4523 = vmatprep.subr.mxu0 0.0
        %4524 = vmatpush1.msra.mxu0 0.0
        %4525 = vmatprep.subr.mxu0 0.0
        %4526 = vmatpush1.msra.mxu0 0.0
        %4527 = vmatprep.subr.mxu0 0.0
        %4528 = vmatpush1.msra.mxu0 0.0
        %4529 = vmatprep.subr.mxu0 0.0
        %4530 = vmatpush1.msra.mxu0 0.0
        %4531 = vmatprep.subr.mxu0 0.0
        %4532 = vmatpush1.msra.mxu0 0.0
        %4533 = vmatprep.subr.mxu0 0.0
        %4534 = vmatpush1.msra.mxu0 0.0
        %4535 = vmatprep.subr.mxu0 0.0
        %4536 = vmatpush1.msra.mxu0 0.0
        %4537 = vmatprep.subr.mxu0 0.0
        %4538 = vmatpush1.msra.mxu0 0.0
        %4539 = vmatprep.subr.mxu0 0.0
        %4540 = vmatpush1.msra.mxu0 0.0
        %4541 = vmatprep.subr.mxu0 0.0
        %4542 = vmatpush1.msra.mxu0 0.0
        %4543 = vmatprep.subr.mxu0 0.0
        %4544 = vmatpush1.msra.mxu0 0.0
        %4545 = vmatprep.subr.mxu0 0.0
        %4546 = vmatpush1.msra.mxu0 0.0
        %4547 = vmatprep.subr.mxu0 0.0
        %4548 = vmatpush1.msra.mxu0 0.0
        %4549 = vmatprep.subr.mxu0 0.0
        %4550 = vmatpush1.msra.mxu0 0.0
        %4551 = vmatprep.subr.mxu0 0.0
        %4552 = vmatpush1.msra.mxu0 0.0
        %4553 = vmatprep.subr.mxu0 0.0
        %4554 = vmatpush1.msra.mxu0 0.0
        %4555 = vmatprep.subr.mxu0 0.0
        %4556 = vmatpush1.msra.mxu0 0.0
        %4557 = vmatprep.subr.mxu0 0.0
        %4558 = vmatpush1.msra.mxu0 0.0
        %4559 = vmatprep.subr.mxu0 0.0
        %4560 = vmatpush1.msra.mxu0 0.0
        %4561 = vmatprep.subr.mxu0 0.0
        %4562 = vmatpush1.msra.mxu0 0.0
        %4563 = vmatprep.mubr.f32.mxu0 0.0
        %v4564 = vand.u32 %v4258, 4294901760
        %v4565 = vsub.f32 %v4258, %v4564
        %v4566 = vand.u32 %v4565, 4294901760
        %4567 = vmatmul.mubr.f32.gmra.mrb[0].mxu0 %v4566
        %v4568 = vpop.f32.mrb[0].mxu0
        %v4569 = vadd.f32 %v4493, %v4568
        %v4570 = vpop.f32.mrb[0].mxu0
        %v4571 = vadd.f32 %v4495, %v4570
        %4572 = vdwg.mxu0
        %v4573 = vand.u32 %v4254, 4294901760
        %v4574 = vsub.f32 %v4254, %v4573
        %v4575 = vand.u32 %v4574, 4294901760
        %4576 = vmatprep.subr.mxu0 %v4575
        %v4577 = vand.u32 %v4253, 4294901760
        %v4578 = vsub.f32 %v4253, %v4577
        %v4579 = vand.u32 %v4578, 4294901760
        %4580 = vmatpush1.msra.mxu0 %v4579
        %4581 = vmatprep.subr.mxu0 0.0
        %4582 = vmatpush1.msra.mxu0 0.0
        %4583 = vmatprep.subr.mxu0 0.0
        %4584 = vmatpush1.msra.mxu0 0.0
        %4585 = vmatprep.subr.mxu0 0.0
        %4586 = vmatpush1.msra.mxu0 0.0
        %4587 = vmatprep.subr.mxu0 0.0
        %4588 = vmatpush1.msra.mxu0 0.0
        %4589 = vmatprep.subr.mxu0 0.0
        %4590 = vmatpush1.msra.mxu0 0.0
        %4591 = vmatprep.subr.mxu0 0.0
        %4592 = vmatpush1.msra.mxu0 0.0
        %4593 = vmatprep.subr.mxu0 0.0
        %4594 = vmatpush1.msra.mxu0 0.0
        %4595 = vmatprep.subr.mxu0 0.0
        %4596 = vmatpush1.msra.mxu0 0.0
        %4597 = vmatprep.subr.mxu0 0.0
        %4598 = vmatpush1.msra.mxu0 0.0
        %4599 = vmatprep.subr.mxu0 0.0
        %4600 = vmatpush1.msra.mxu0 0.0
        %4601 = vmatprep.subr.mxu0 0.0
        %4602 = vmatpush1.msra.mxu0 0.0
        %4603 = vmatprep.subr.mxu0 0.0
        %4604 = vmatpush1.msra.mxu0 0.0
        %4605 = vmatprep.subr.mxu0 0.0
        %4606 = vmatpush1.msra.mxu0 0.0
        %4607 = vmatprep.subr.mxu0 0.0
        %4608 = vmatpush1.msra.mxu0 0.0
        %4609 = vmatprep.subr.mxu0 0.0
        %4610 = vmatpush1.msra.mxu0 0.0
        %4611 = vmatprep.subr.mxu0 0.0
        %4612 = vmatpush1.msra.mxu0 0.0
        %4613 = vmatprep.subr.mxu0 0.0
        %4614 = vmatpush1.msra.mxu0 0.0
        %4615 = vmatprep.subr.mxu0 0.0
        %4616 = vmatpush1.msra.mxu0 0.0
        %4617 = vmatprep.subr.mxu0 0.0
        %4618 = vmatpush1.msra.mxu0 0.0
        %4619 = vmatprep.subr.mxu0 0.0
        %4620 = vmatpush1.msra.mxu0 0.0
        %4621 = vmatprep.subr.mxu0 0.0
        %4622 = vmatpush1.msra.mxu0 0.0
        %4623 = vmatprep.subr.mxu0 0.0
        %4624 = vmatpush1.msra.mxu0 0.0
        %4625 = vmatprep.subr.mxu0 0.0
        %4626 = vmatpush1.msra.mxu0 0.0
        %4627 = vmatprep.subr.mxu0 0.0
        %4628 = vmatpush1.msra.mxu0 0.0
        %4629 = vmatprep.subr.mxu0 0.0
        %4630 = vmatpush1.msra.mxu0 0.0
        %4631 = vmatprep.subr.mxu0 0.0
        %4632 = vmatpush1.msra.mxu0 0.0
        %4633 = vmatprep.subr.mxu0 0.0
        %4634 = vmatpush1.msra.mxu0 0.0
        %4635 = vmatprep.subr.mxu0 0.0
        %4636 = vmatpush1.msra.mxu0 0.0
        %4637 = vmatprep.subr.mxu0 0.0
        %4638 = vmatpush1.msra.mxu0 0.0
        %4639 = vmatprep.subr.mxu0 0.0
        %4640 = vmatpush1.msra.mxu0 0.0
        %4641 = vmatprep.subr.mxu0 0.0
        %4642 = vmatpush1.msra.mxu0 0.0
        %4643 = vmatprep.mubr.f32.mxu0 0.0
        %v4644 = vand.u32 %v4258, 4294901760
        %4645 = vmatmul.mubr.f32.gmra.mrb[0].mxu0 %v4644
        %v4646 = vpop.f32.mrb[0].mxu0
        %v4647 = vadd.f32 %v4569, %v4646
        %v4648 = vpop.f32.mrb[0].mxu0
        %v4649 = vadd.f32 %v4571, %v4648
        %4650 = vdwg.mxu0
        %v4651 = vand.u32 %v4254, 4294901760
        %4652 = vmatprep.subr.mxu0 %v4651
        %v4653 = vand.u32 %v4253, 4294901760
        %4654 = vmatpush1.msra.mxu0 %v4653
        %4655 = vmatprep.subr.mxu0 0.0
        %4656 = vmatpush1.msra.mxu0 0.0
        %4657 = vmatprep.subr.mxu0 0.0
        %4658 = vmatpush1.msra.mxu0 0.0
        %4659 = vmatprep.subr.mxu0 0.0
        %4660 = vmatpush1.msra.mxu0 0.0
        %4661 = vmatprep.subr.mxu0 0.0
        %4662 = vmatpush1.msra.mxu0 0.0
        %4663 = vmatprep.subr.mxu0 0.0
        %4664 = vmatpush1.msra.mxu0 0.0
        %4665 = vmatprep.subr.mxu0 0.0
        %4666 = vmatpush1.msra.mxu0 0.0
        %4667 = vmatprep.subr.mxu0 0.0
        %4668 = vmatpush1.msra.mxu0 0.0
        %4669 = vmatprep.subr.mxu0 0.0
        %4670 = vmatpush1.msra.mxu0 0.0
        %4671 = vmatprep.subr.mxu0 0.0
        %4672 = vmatpush1.msra.mxu0 0.0
        %4673 = vmatprep.subr.mxu0 0.0
        %4674 = vmatpush1.msra.mxu0 0.0
        %4675 = vmatprep.subr.mxu0 0.0
        %4676 = vmatpush1.msra.mxu0 0.0
        %4677 = vmatprep.subr.mxu0 0.0
        %4678 = vmatpush1.msra.mxu0 0.0
        %4679 = vmatprep.subr.mxu0 0.0
        %4680 = vmatpush1.msra.mxu0 0.0
        %4681 = vmatprep.subr.mxu0 0.0
        %4682 = vmatpush1.msra.mxu0 0.0
        %4683 = vmatprep.subr.mxu0 0.0
        %4684 = vmatpush1.msra.mxu0 0.0
        %4685 = vmatprep.subr.mxu0 0.0
        %4686 = vmatpush1.msra.mxu0 0.0
        %4687 = vmatprep.subr.mxu0 0.0
        %4688 = vmatpush1.msra.mxu0 0.0
        %4689 = vmatprep.subr.mxu0 0.0
        %4690 = vmatpush1.msra.mxu0 0.0
        %4691 = vmatprep.subr.mxu0 0.0
        %4692 = vmatpush1.msra.mxu0 0.0
        %4693 = vmatprep.subr.mxu0 0.0
        %4694 = vmatpush1.msra.mxu0 0.0
        %4695 = vmatprep.subr.mxu0 0.0
        %4696 = vmatpush1.msra.mxu0 0.0
        %4697 = vmatprep.subr.mxu0 0.0
        %4698 = vmatpush1.msra.mxu0 0.0
        %4699 = vmatprep.subr.mxu0 0.0
        %4700 = vmatpush1.msra.mxu0 0.0
        %4701 = vmatprep.subr.mxu0 0.0
        %4702 = vmatpush1.msra.mxu0 0.0
        %4703 = vmatprep.subr.mxu0 0.0
        %4704 = vmatpush1.msra.mxu0 0.0
        %4705 = vmatprep.subr.mxu0 0.0
        %4706 = vmatpush1.msra.mxu0 0.0
        %4707 = vmatprep.subr.mxu0 0.0
        %4708 = vmatpush1.msra.mxu0 0.0
        %4709 = vmatprep.subr.mxu0 0.0
        %4710 = vmatpush1.msra.mxu0 0.0
        %4711 = vmatprep.subr.mxu0 0.0
        %4712 = vmatpush1.msra.mxu0 0.0
        %4713 = vmatprep.subr.mxu0 0.0
        %4714 = vmatpush1.msra.mxu0 0.0
        %4715 = vmatprep.subr.mxu0 0.0
        %4716 = vmatpush1.msra.mxu0 0.0
        %4717 = vmatprep.mubr.f32.mxu0 0.0
        %v4718 = vand.u32 %v4258, 4294901760
        %4719 = vmatmul.mubr.f32.gmra.mrb[0].mxu0 %v4718
        %v4720 = vpop.f32.mrb[0].mxu0
        %v4721 = vadd.f32 %v4647, %v4720
        %v4722 = vpop.f32.mrb[0].mxu0
        %v4723 = vadd.f32 %v4649, %v4722
        %4724 = vdwg.mxu0
        %v4725 = vadd.f32 %v4231, %v4721
        %v4726 = vadd.f32 %v4232, %v4723
        %v4727 = vld [vmem:[%s3] sm:$0xff]
        %v4728 = vld [vmem:[%s4] sm:$0xff]
        %v4729 = vadd.f32 %v4725, %v4726
        %4730 = vadd.xlane.f32.xlu0 %v4729
        %v4731 = vpop.xlane.xlu0 %4730
        %v4732 = vrot.slane %v4731, 4
        %v4733 = vadd.f32 %v4731, %v4732
        %v4734 = vrot.slane %v4733, 2
        %v4735 = vadd.f32 %v4733, %v4734
        %v4736 = vrot.slane %v4735, 1
        %v4737 = vadd.f32 %v4735, %v4736
        %v4738 = vmul.f32 %v4737, 0.00048828125
        %v4739 = vsub.f32 %v4725, %v4738
        %v4740 = vsub.f32 %v4726, %v4738
        %v4741 = vmul.f32 %v4739, %v4739
        %v4742 = vmul.f32 %v4740, %v4740
        %v4743 = vadd.f32 %v4741, %v4742
        %4744 = vadd.xlane.f32.xlu0 %v4743
        %v4745 = vpop.xlane.xlu0 %4744
        %v4746 = vrot.slane %v4745, 4
        %v4747 = vadd.f32 %v4745, %v4746
        %v4748 = vrot.slane %v4747, 2
        %v4749 = vadd.f32 %v4747, %v4748
        %v4750 = vrot.slane %v4749, 1
        %v4751 = vadd.f32 %v4749, %v4750
        %v4752 = vmul.f32 %v4738, 0.0
        %v4753 = vmul.f32 %v4752, %v4738
        %v4754 = vsub.f32 %v4751, %v4753
        %v4755 = vmul.f32 %v4754, 0.00048828125
        %v4756 = vadd.f32 %v4755, 1e-05
        %v4757 = vrsqrt.pop %v4756
        %v4758 = vmul.f32 %v4756, 0.5
        %v4759 = vmul.f32 %v4758, %v4757
        %v4760 = vmul.f32 %v4759, %v4757
        %v4761 = vsub.f32 1.5, %v4760
        %v4762 = vmul.f32 %v4757, %v4761
        %v4763 = vmul.f32 %v4727, %v4762
        %4765 = vset.pattern.permute.xlu0 0
        %4766 = vperm.xlu0 %4765, %v4763
        %v4767 = vpop.permute.xlu0 %4766
        %v4769 = vmul.f32 %v4739, %v4767
        %v4770 = vmul.f32 %v4740, %v4767
        %4772 = vset.pattern.permute.xlu0 0
        %4773 = vperm.xlu0 %4772, %v4728
        %v4774 = vpop.permute.xlu0 %4773
        %v4776 = vadd.f32 %v4769, %v4774
        %v4777 = vadd.f32 %v4770, %v4774
        %v4778 = vmul.f32 %v4776, 0.5
        %v4779 = vmul.f32 %v4777, 0.5
        %v4780 = vmul.f32 %v4776, 0.70710677
        %v4781 = vmul.f32 %v4777, 0.70710677
        %v4782 = vand.u32 2147483647, %v4780
        %v4783 = vand.u32 2147483647, %v4781
        %v4784 = vmul.f32 %v4782, 0.3275911
        %v4785 = vmul.f32 %v4783, 0.3275911
        %v4786 = vadd.f32 %v4784, 1.0
        %v4787 = vadd.f32 %v4785, 1.0
        %v4788 = vrcp.pop %v4786
        %v4789 = vmul.f32 1.0, %v4788
        %v4790 = vrcp.pop %v4787
        %v4791 = vmul.f32 1.0, %v4790
        %v4792 = vmul.f32 %v4786, %v4789
        %v4793 = vmul.f32 %v4787, %v4791
        %v4794 = vsub.f32 2.0, %v4792
        %v4795 = vsub.f32 2.0, %v4793
        %v4796 = vmul.f32 %v4789, %v4794
        %v4797 = vmul.f32 %v4791, %v4795
        %v4798 = vmul.f32 %v4796, 1.0614054
        %v4799 = vmul.f32 %v4797, 1.0614054
        %v4800 = vadd.f32 %v4798, -1.4531521
        %v4801 = vadd.f32 %v4799, -1.4531521
        %v4802 = vmul.f32 %v4800, %v4796
        %v4803 = vmul.f32 %v4801, %v4797
        %v4804 = vadd.f32 %v4802, 1.4214138
        %v4805 = vadd.f32 %v4803, 1.4214138
        %v4806 = vmul.f32 %v4804, %v4796
        %v4807 = vmul.f32 %v4805, %v4797
        %v4808 = vadd.f32 %v4806, -0.28449672
        %v4809 = vadd.f32 %v4807, -0.28449672
        %v4810 = vmul.f32 %v4808, %v4796
        %v4811 = vmul.f32 %v4809, %v4797
        %v4812 = vadd.f32 %v4810, 0.2548296
        %v4813 = vadd.f32 %v4811, 0.2548296
        %v4814 = vmul.f32 %v4812, %v4796
        %v4815 = vmul.f32 %v4813, %v4797
        %v4816 = vsub.f32 0.0, %v4782
        %v4817 = vsub.f32 0.0, %v4783
        %v4818 = vmul.f32 %v4816, %v4782
        %v4819 = vmul.f32 %v4817, %v4783
        %v4820 = vmul.f32 %v4818, 1.442695
        %v4821 = vpow.pop %v4820
        %v4822 = vmul.f32 %v4819, 1.442695
        %v4823 = vpow.pop %v4822
        %v4824 = vmul.f32 %v4814, %v4821
        %v4825 = vmul.f32 %v4815, %v4823
        %v4826 = vsub.f32 1.0, %v4824
        %v4827 = vsub.f32 1.0, %v4825
        %vm4828 = vcmp.ge.f32.partialorder %v4780, 0.0
        %vm4829 = vcmp.ge.f32.partialorder %v4781, 0.0
        %v4830 = vsub.f32 0.0, %v4826
        %v4831 = vsub.f32 0.0, %v4827
        %v4832 = vsel %vm4828, %v4826, %v4830
        %v4833 = vsel %vm4829, %v4827, %v4831
        %v4834 = vadd.f32 %v4832, 1.0
        %v4835 = vadd.f32 %v4833, 1.0
        %v4836 = vmul.f32 %v4778, %v4834
        %v4837 = vmul.f32 %v4779, %v4835
        %4838 = vrot.lane.b32.xlu0 %v4836, 17
        %v4839 = vpop.permute.xlu0 %4838
        %4840 = vrot.lane.b32.xlu0 %v4837, 17
        %v4841 = vpop.permute.xlu0 %4840
        %v4842 = vsel %vm312, %v4839, %v4841
        %v4843 = vsel %vm312, %v4841, %v4839
        %v4844 = vmul.f32 %v4843, %v320
        %v4845 = vmul.f32 %v4842, %v324
        %v4846 = vld [vmem:[%s5] sm:$0xff]
        %4847 = vrot.lane.b32.xlu0 %v4836, 16
        %v4848 = vpop.permute.xlu0 %4847
        %4849 = vrot.lane.b32.xlu0 %v4837, 16
        %v4850 = vpop.permute.xlu0 %4849
        %v4851 = vsel %vm334, %v4848, %v4850
        %v4852 = vsel %vm334, %v4850, %v4848
        %v4853 = vmul.f32 %v4852, %v343
        %v4854 = vmul.f32 %v4851, %v347
        %s4855 = scalar_lea.vmem %s5, 8
        %v4856 = vld [vmem:[%s4855] sm:$0xff]
        %v4858 = vsel %vm354, %v4856, 0
        %v4860 = vand.u32 %v4854, 4294901760
        %4861 = vmatprep.subr.mxu0 %v4860
        %v4862 = vand.u32 %v4853, 4294901760
        %4863 = vmatpush1.msra.mxu0 %v4862
        %4864 = vmatprep.subr.mxu0 0.0
        %4865 = vmatpush1.msra.mxu0 0.0
        %4866 = vmatprep.subr.mxu0 0.0
        %4867 = vmatpush1.msra.mxu0 0.0
        %4868 = vmatprep.subr.mxu0 0.0
        %4869 = vmatpush1.msra.mxu0 0.0
        %4870 = vmatprep.subr.mxu0 0.0
        %4871 = vmatpush1.msra.mxu0 0.0
        %4872 = vmatprep.subr.mxu0 0.0
        %4873 = vmatpush1.msra.mxu0 0.0
        %4874 = vmatprep.subr.mxu0 0.0
        %4875 = vmatpush1.msra.mxu0 0.0
        %4876 = vmatprep.subr.mxu0 0.0
        %4877 = vmatpush1.msra.mxu0 0.0
        %4878 = vmatprep.subr.mxu0 0.0
        %4879 = vmatpush1.msra.mxu0 0.0
        %4880 = vmatprep.subr.mxu0 0.0
        %4881 = vmatpush1.msra.mxu0 0.0
        %4882 = vmatprep.subr.mxu0 0.0
        %4883 = vmatpush1.msra.mxu0 0.0
        %4884 = vmatprep.subr.mxu0 0.0
        %4885 = vmatpush1.msra.mxu0 0.0
        %4886 = vmatprep.subr.mxu0 0.0
        %4887 = vmatpush1.msra.mxu0 0.0
        %4888 = vmatprep.subr.mxu0 0.0
        %4889 = vmatpush1.msra.mxu0 0.0
        %4890 = vmatprep.subr.mxu0 0.0
        %4891 = vmatpush1.msra.mxu0 0.0
        %4892 = vmatprep.subr.mxu0 0.0
        %4893 = vmatpush1.msra.mxu0 0.0
        %4894 = vmatprep.subr.mxu0 0.0
        %4895 = vmatpush1.msra.mxu0 0.0
        %4896 = vmatprep.subr.mxu0 0.0
        %4897 = vmatpush1.msra.mxu0 0.0
        %4898 = vmatprep.subr.mxu0 0.0
        %4899 = vmatpush1.msra.mxu0 0.0
        %4900 = vmatprep.subr.mxu0 0.0
        %4901 = vmatpush1.msra.mxu0 0.0
        %4902 = vmatprep.subr.mxu0 0.0
        %4903 = vmatpush1.msra.mxu0 0.0
        %4904 = vmatprep.subr.mxu0 0.0
        %4905 = vmatpush1.msra.mxu0 0.0
        %4906 = vmatprep.subr.mxu0 0.0
        %4907 = vmatpush1.msra.mxu0 0.0
        %4908 = vmatprep.subr.mxu0 0.0
        %4909 = vmatpush1.msra.mxu0 0.0
        %4910 = vmatprep.subr.mxu0 0.0
        %4911 = vmatpush1.msra.mxu0 0.0
        %4912 = vmatprep.subr.mxu0 0.0
        %4913 = vmatpush1.msra.mxu0 0.0
        %4914 = vmatprep.subr.mxu0 0.0
        %4915 = vmatpush1.msra.mxu0 0.0
        %4916 = vmatprep.subr.mxu0 0.0
        %4917 = vmatpush1.msra.mxu0 0.0
        %4918 = vmatprep.subr.mxu0 0.0
        %4919 = vmatpush1.msra.mxu0 0.0
        %4920 = vmatprep.subr.mxu0 0.0
        %4921 = vmatpush1.msra.mxu0 0.0
        %4922 = vmatprep.subr.mxu0 0.0
        %4923 = vmatpush1.msra.mxu0 0.0
        %4924 = vmatprep.subr.mxu0 0.0
        %4925 = vmatpush1.msra.mxu0 0.0
        %4926 = vmatprep.mubr.f32.mxu0 0.0
        %v4927 = vand.u32 %v4858, 4294901760
        %v4928 = vsub.f32 %v4858, %v4927
        %v4929 = vand.u32 %v4928, 4294901760
        %v4930 = vsub.f32 %v4928, %v4929
        %v4931 = vand.u32 %v4930, 4294901760
        %4932 = vmatmul.mubr.f32.gmra.mrb[0].mxu0 %v4931
        %v4933 = vpop.f32.mrb[0].mxu0
        %v4934 = vadd.f32 0.0, %v4933
        %v4935 = vpop.f32.mrb[0].mxu0
        %v4936 = vadd.f32 0.0, %v4935
        %4937 = vdwg.mxu0
        %v4938 = vand.u32 %v4854, 4294901760
        %v4939 = vsub.f32 %v4854, %v4938
        %v4940 = vand.u32 %v4939, 4294901760
        %v4941 = vsub.f32 %v4939, %v4940
        %v4942 = vand.u32 %v4941, 4294901760
        %4943 = vmatprep.subr.mxu0 %v4942
        %v4944 = vand.u32 %v4853, 4294901760
        %v4945 = vsub.f32 %v4853, %v4944
        %v4946 = vand.u32 %v4945, 4294901760
        %v4947 = vsub.f32 %v4945, %v4946
        %v4948 = vand.u32 %v4947, 4294901760
        %4949 = vmatpush1.msra.mxu0 %v4948
        %4950 = vmatprep.subr.mxu0 0.0
        %4951 = vmatpush1.msra.mxu0 0.0
        %4952 = vmatprep.subr.mxu0 0.0
        %4953 = vmatpush1.msra.mxu0 0.0
        %4954 = vmatprep.subr.mxu0 0.0
        %4955 = vmatpush1.msra.mxu0 0.0
        %4956 = vmatprep.subr.mxu0 0.0
        %4957 = vmatpush1.msra.mxu0 0.0
        %4958 = vmatprep.subr.mxu0 0.0
        %4959 = vmatpush1.msra.mxu0 0.0
        %4960 = vmatprep.subr.mxu0 0.0
        %4961 = vmatpush1.msra.mxu0 0.0
        %4962 = vmatprep.subr.mxu0 0.0
        %4963 = vmatpush1.msra.mxu0 0.0
        %4964 = vmatprep.subr.mxu0 0.0
        %4965 = vmatpush1.msra.mxu0 0.0
        %4966 = vmatprep.subr.mxu0 0.0
        %4967 = vmatpush1.msra.mxu0 0.0
        %4968 = vmatprep.subr.mxu0 0.0
        %4969 = vmatpush1.msra.mxu0 0.0
        %4970 = vmatprep.subr.mxu0 0.0
        %4971 = vmatpush1.msra.mxu0 0.0
        %4972 = vmatprep.subr.mxu0 0.0
        %4973 = vmatpush1.msra.mxu0 0.0
        %4974 = vmatprep.subr.mxu0 0.0
        %4975 = vmatpush1.msra.mxu0 0.0
        %4976 = vmatprep.subr.mxu0 0.0
        %4977 = vmatpush1.msra.mxu0 0.0
        %4978 = vmatprep.subr.mxu0 0.0
        %4979 = vmatpush1.msra.mxu0 0.0
        %4980 = vmatprep.subr.mxu0 0.0
        %4981 = vmatpush1.msra.mxu0 0.0
        %4982 = vmatprep.subr.mxu0 0.0
        %4983 = vmatpush1.msra.mxu0 0.0
        %4984 = vmatprep.subr.mxu0 0.0
        %4985 = vmatpush1.msra.mxu0 0.0
        %4986 = vmatprep.subr.mxu0 0.0
        %4987 = vmatpush1.msra.mxu0 0.0
        %4988 = vmatprep.subr.mxu0 0.0
        %4989 = vmatpush1.msra.mxu0 0.0
        %4990 = vmatprep.subr.mxu0 0.0
        %4991 = vmatpush1.msra.mxu0 0.0
        %4992 = vmatprep.subr.mxu0 0.0
        %4993 = vmatpush1.msra.mxu0 0.0
        %4994 = vmatprep.subr.mxu0 0.0
        %4995 = vmatpush1.msra.mxu0 0.0
        %4996 = vmatprep.subr.mxu0 0.0
        %4997 = vmatpush1.msra.mxu0 0.0
        %4998 = vmatprep.subr.mxu0 0.0
        %4999 = vmatpush1.msra.mxu0 0.0
        %5000 = vmatprep.subr.mxu0 0.0
        %5001 = vmatpush1.msra.mxu0 0.0
        %5002 = vmatprep.subr.mxu0 0.0
        %5003 = vmatpush1.msra.mxu0 0.0
        %5004 = vmatprep.subr.mxu0 0.0
        %5005 = vmatpush1.msra.mxu0 0.0
        %5006 = vmatprep.subr.mxu0 0.0
        %5007 = vmatpush1.msra.mxu0 0.0
        %5008 = vmatprep.subr.mxu0 0.0
        %5009 = vmatpush1.msra.mxu0 0.0
        %5010 = vmatprep.subr.mxu0 0.0
        %5011 = vmatpush1.msra.mxu0 0.0
        %5012 = vmatprep.mubr.f32.mxu0 0.0
        %v5013 = vand.u32 %v4858, 4294901760
        %5014 = vmatmul.mubr.f32.gmra.mrb[0].mxu0 %v5013
        %v5015 = vpop.f32.mrb[0].mxu0
        %v5016 = vadd.f32 %v4934, %v5015
        %v5017 = vpop.f32.mrb[0].mxu0
        %v5018 = vadd.f32 %v4936, %v5017
        %5019 = vdwg.mxu0
        %v5020 = vand.u32 %v4854, 4294901760
        %v5021 = vsub.f32 %v4854, %v5020
        %5022 = vmatprep.subr.mxu0 %v5021
        %v5023 = vand.u32 %v4853, 4294901760
        %v5024 = vsub.f32 %v4853, %v5023
        %5025 = vmatpush1.msra.mxu0 %v5024
        %5026 = vmatprep.subr.mxu0 0.0
        %5027 = vmatpush1.msra.mxu0 0.0
        %5028 = vmatprep.subr.mxu0 0.0
        %5029 = vmatpush1.msra.mxu0 0.0
        %5030 = vmatprep.subr.mxu0 0.0
        %5031 = vmatpush1.msra.mxu0 0.0
        %5032 = vmatprep.subr.mxu0 0.0
        %5033 = vmatpush1.msra.mxu0 0.0
        %5034 = vmatprep.subr.mxu0 0.0
        %5035 = vmatpush1.msra.mxu0 0.0
        %5036 = vmatprep.subr.mxu0 0.0
        %5037 = vmatpush1.msra.mxu0 0.0
        %5038 = vmatprep.subr.mxu0 0.0
        %5039 = vmatpush1.msra.mxu0 0.0
        %5040 = vmatprep.subr.mxu0 0.0
        %5041 = vmatpush1.msra.mxu0 0.0
        %5042 = vmatprep.subr.mxu0 0.0
        %5043 = vmatpush1.msra.mxu0 0.0
        %5044 = vmatprep.subr.mxu0 0.0
        %5045 = vmatpush1.msra.mxu0 0.0
        %5046 = vmatprep.subr.mxu0 0.0
        %5047 = vmatpush1.msra.mxu0 0.0
        %5048 = vmatprep.subr.mxu0 0.0
        %5049 = vmatpush1.msra.mxu0 0.0
        %5050 = vmatprep.subr.mxu0 0.0
        %5051 = vmatpush1.msra.mxu0 0.0
        %5052 = vmatprep.subr.mxu0 0.0
        %5053 = vmatpush1.msra.mxu0 0.0
        %5054 = vmatprep.subr.mxu0 0.0
        %5055 = vmatpush1.msra.mxu0 0.0
        %5056 = vmatprep.subr.mxu0 0.0
        %5057 = vmatpush1.msra.mxu0 0.0
        %5058 = vmatprep.subr.mxu0 0.0
        %5059 = vmatpush1.msra.mxu0 0.0
        %5060 = vmatprep.subr.mxu0 0.0
        %5061 = vmatpush1.msra.mxu0 0.0
        %5062 = vmatprep.subr.mxu0 0.0
        %5063 = vmatpush1.msra.mxu0 0.0
        %5064 = vmatprep.subr.mxu0 0.0
        %5065 = vmatpush1.msra.mxu0 0.0
        %5066 = vmatprep.subr.mxu0 0.0
        %5067 = vmatpush1.msra.mxu0 0.0
        %5068 = vmatprep.subr.mxu0 0.0
        %5069 = vmatpush1.msra.mxu0 0.0
        %5070 = vmatprep.subr.mxu0 0.0
        %5071 = vmatpush1.msra.mxu0 0.0
        %5072 = vmatprep.subr.mxu0 0.0
        %5073 = vmatpush1.msra.mxu0 0.0
        %5074 = vmatprep.subr.mxu0 0.0
        %5075 = vmatpush1.msra.mxu0 0.0
        %5076 = vmatprep.subr.mxu0 0.0
        %5077 = vmatpush1.msra.mxu0 0.0
        %5078 = vmatprep.subr.mxu0 0.0
        %5079 = vmatpush1.msra.mxu0 0.0
        %5080 = vmatprep.subr.mxu0 0.0
        %5081 = vmatpush1.msra.mxu0 0.0
        %5082 = vmatprep.subr.mxu0 0.0
        %5083 = vmatpush1.msra.mxu0 0.0
        %5084 = vmatprep.subr.mxu0 0.0
        %5085 = vmatpush1.msra.mxu0 0.0
        %5086 = vmatprep.subr.mxu0 0.0
        %5087 = vmatpush1.msra.mxu0 0.0
        %5088 = vmatprep.mubr.f32.mxu0 0.0
        %v5089 = vand.u32 %v4858, 4294901760
        %v5090 = vsub.f32 %v4858, %v5089
        %5091 = vmatmul.mubr.f32.gmra.mrb[0].mxu0 %v5090
        %v5092 = vpop.f32.mrb[0].mxu0
        %v5093 = vadd.f32 %v5016, %v5092
        %v5094 = vpop.f32.mrb[0].mxu0
        %v5095 = vadd.f32 %v5018, %v5094
        %5096 = vdwg.mxu0
        %v5097 = vand.u32 %v4854, 4294901760
        %5098 = vmatprep.subr.mxu0 %v5097
        %v5099 = vand.u32 %v4853, 4294901760
        %5100 = vmatpush1.msra.mxu0 %v5099
        %5101 = vmatprep.subr.mxu0 0.0
        %5102 = vmatpush1.msra.mxu0 0.0
        %5103 = vmatprep.subr.mxu0 0.0
        %5104 = vmatpush1.msra.mxu0 0.0
        %5105 = vmatprep.subr.mxu0 0.0
        %5106 = vmatpush1.msra.mxu0 0.0
        %5107 = vmatprep.subr.mxu0 0.0
        %5108 = vmatpush1.msra.mxu0 0.0
        %5109 = vmatprep.subr.mxu0 0.0
        %5110 = vmatpush1.msra.mxu0 0.0
        %5111 = vmatprep.subr.mxu0 0.0
        %5112 = vmatpush1.msra.mxu0 0.0
        %5113 = vmatprep.subr.mxu0 0.0
        %5114 = vmatpush1.msra.mxu0 0.0
        %5115 = vmatprep.subr.mxu0 0.0
        %5116 = vmatpush1.msra.mxu0 0.0
        %5117 = vmatprep.subr.mxu0 0.0
        %5118 = vmatpush1.msra.mxu0 0.0
        %5119 = vmatprep.subr.mxu0 0.0
        %5120 = vmatpush1.msra.mxu0 0.0
        %5121 = vmatprep.subr.mxu0 0.0
        %5122 = vmatpush1.msra.mxu0 0.0
        %5123 = vmatprep.subr.mxu0 0.0
        %5124 = vmatpush1.msra.mxu0 0.0
        %5125 = vmatprep.subr.mxu0 0.0
        %5126 = vmatpush1.msra.mxu0 0.0
        %5127 = vmatprep.subr.mxu0 0.0
        %5128 = vmatpush1.msra.mxu0 0.0
        %5129 = vmatprep.subr.mxu0 0.0
        %5130 = vmatpush1.msra.mxu0 0.0
        %5131 = vmatprep.subr.mxu0 0.0
        %5132 = vmatpush1.msra.mxu0 0.0
        %5133 = vmatprep.subr.mxu0 0.0
        %5134 = vmatpush1.msra.mxu0 0.0
        %5135 = vmatprep.subr.mxu0 0.0
        %5136 = vmatpush1.msra.mxu0 0.0
        %5137 = vmatprep.subr.mxu0 0.0
        %5138 = vmatpush1.msra.mxu0 0.0
        %5139 = vmatprep.subr.mxu0 0.0
        %5140 = vmatpush1.msra.mxu0 0.0
        %5141 = vmatprep.subr.mxu0 0.0
        %5142 = vmatpush1.msra.mxu0 0.0
        %5143 = vmatprep.subr.mxu0 0.0
        %5144 = vmatpush1.msra.mxu0 0.0
        %5145 = vmatprep.subr.mxu0 0.0
        %5146 = vmatpush1.msra.mxu0 0.0
        %5147 = vmatprep.subr.mxu0 0.0
        %5148 = vmatpush1.msra.mxu0 0.0
        %5149 = vmatprep.subr.mxu0 0.0
        %5150 = vmatpush1.msra.mxu0 0.0
        %5151 = vmatprep.subr.mxu0 0.0
        %5152 = vmatpush1.msra.mxu0 0.0
        %5153 = vmatprep.subr.mxu0 0.0
        %5154 = vmatpush1.msra.mxu0 0.0
        %5155 = vmatprep.subr.mxu0 0.0
        %5156 = vmatpush1.msra.mxu0 0.0
        %5157 = vmatprep.subr.mxu0 0.0
        %5158 = vmatpush1.msra.mxu0 0.0
        %5159 = vmatprep.subr.mxu0 0.0
        %5160 = vmatpush1.msra.mxu0 0.0
        %5161 = vmatprep.subr.mxu0 0.0
        %5162 = vmatpush1.msra.mxu0 0.0
        %5163 = vmatprep.mubr.f32.mxu0 0.0
        %v5164 = vand.u32 %v4858, 4294901760
        %v5165 = vsub.f32 %v4858, %v5164
        %v5166 = vand.u32 %v5165, 4294901760
        %5167 = vmatmul.mubr.f32.gmra.mrb[0].mxu0 %v5166
        %v5168 = vpop.f32.mrb[0].mxu0
        %v5169 = vadd.f32 %v5093, %v5168
        %v5170 = vpop.f32.mrb[0].mxu0
        %v5171 = vadd.f32 %v5095, %v5170
        %5172 = vdwg.mxu0
        %v5173 = vand.u32 %v4854, 4294901760
        %v5174 = vsub.f32 %v4854, %v5173
        %v5175 = vand.u32 %v5174, 4294901760
        %5176 = vmatprep.subr.mxu0 %v5175
        %v5177 = vand.u32 %v4853, 4294901760
        %v5178 = vsub.f32 %v4853, %v5177
        %v5179 = vand.u32 %v5178, 4294901760
        %5180 = vmatpush1.msra.mxu0 %v5179
        %5181 = vmatprep.subr.mxu0 0.0
        %5182 = vmatpush1.msra.mxu0 0.0
        %5183 = vmatprep.subr.mxu0 0.0
        %5184 = vmatpush1.msra.mxu0 0.0
        %5185 = vmatprep.subr.mxu0 0.0
        %5186 = vmatpush1.msra.mxu0 0.0
        %5187 = vmatprep.subr.mxu0 0.0
        %5188 = vmatpush1.msra.mxu0 0.0
        %5189 = vmatprep.subr.mxu0 0.0
        %5190 = vmatpush1.msra.mxu0 0.0
        %5191 = vmatprep.subr.mxu0 0.0
        %5192 = vmatpush1.msra.mxu0 0.0
        %5193 = vmatprep.subr.mxu0 0.0
        %5194 = vmatpush1.msra.mxu0 0.0
        %5195 = vmatprep.subr.mxu0 0.0
        %5196 = vmatpush1.msra.mxu0 0.0
        %5197 = vmatprep.subr.mxu0 0.0
        %5198 = vmatpush1.msra.mxu0 0.0
        %5199 = vmatprep.subr.mxu0 0.0
        %5200 = vmatpush1.msra.mxu0 0.0
        %5201 = vmatprep.subr.mxu0 0.0
        %5202 = vmatpush1.msra.mxu0 0.0
        %5203 = vmatprep.subr.mxu0 0.0
        %5204 = vmatpush1.msra.mxu0 0.0
        %5205 = vmatprep.subr.mxu0 0.0
        %5206 = vmatpush1.msra.mxu0 0.0
        %5207 = vmatprep.subr.mxu0 0.0
        %5208 = vmatpush1.msra.mxu0 0.0
        %5209 = vmatprep.subr.mxu0 0.0
        %5210 = vmatpush1.msra.mxu0 0.0
        %5211 = vmatprep.subr.mxu0 0.0
        %5212 = vmatpush1.msra.mxu0 0.0
        %5213 = vmatprep.subr.mxu0 0.0
        %5214 = vmatpush1.msra.mxu0 0.0
        %5215 = vmatprep.subr.mxu0 0.0
        %5216 = vmatpush1.msra.mxu0 0.0
        %5217 = vmatprep.subr.mxu0 0.0
        %5218 = vmatpush1.msra.mxu0 0.0
        %5219 = vmatprep.subr.mxu0 0.0
        %5220 = vmatpush1.msra.mxu0 0.0
        %5221 = vmatprep.subr.mxu0 0.0
        %5222 = vmatpush1.msra.mxu0 0.0
        %5223 = vmatprep.subr.mxu0 0.0
        %5224 = vmatpush1.msra.mxu0 0.0
        %5225 = vmatprep.subr.mxu0 0.0
        %5226 = vmatpush1.msra.mxu0 0.0
        %5227 = vmatprep.subr.mxu0 0.0
        %5228 = vmatpush1.msra.mxu0 0.0
        %5229 = vmatprep.subr.mxu0 0.0
        %5230 = vmatpush1.msra.mxu0 0.0
        %5231 = vmatprep.subr.mxu0 0.0
        %5232 = vmatpush1.msra.mxu0 0.0
        %5233 = vmatprep.subr.mxu0 0.0
        %5234 = vmatpush1.msra.mxu0 0.0
        %5235 = vmatprep.subr.mxu0 0.0
        %5236 = vmatpush1.msra.mxu0 0.0
        %5237 = vmatprep.subr.mxu0 0.0
        %5238 = vmatpush1.msra.mxu0 0.0
        %5239 = vmatprep.subr.mxu0 0.0
        %5240 = vmatpush1.msra.mxu0 0.0
        %5241 = vmatprep.subr.mxu0 0.0
        %5242 = vmatpush1.msra.mxu0 0.0
        %5243 = vmatprep.mubr.f32.mxu0 0.0
        %v5244 = vand.u32 %v4858, 4294901760
        %5245 = vmatmul.mubr.f32.gmra.mrb[0].mxu0 %v5244
        %v5246 = vpop.f32.mrb[0].mxu0
        %v5247 = vadd.f32 %v5169, %v5246
        %v5248 = vpop.f32.mrb[0].mxu0
        %v5249 = vadd.f32 %v5171, %v5248
        %5250 = vdwg.mxu0
        %v5251 = vand.u32 %v4854, 4294901760
        %5252 = vmatprep.subr.mxu0 %v5251
        %v5253 = vand.u32 %v4853, 4294901760
        %5254 = vmatpush1.msra.mxu0 %v5253
        %5255 = vmatprep.subr.mxu0 0.0
        %5256 = vmatpush1.msra.mxu0 0.0
        %5257 = vmatprep.subr.mxu0 0.0
        %5258 = vmatpush1.msra.mxu0 0.0
        %5259 = vmatprep.subr.mxu0 0.0
        %5260 = vmatpush1.msra.mxu0 0.0
        %5261 = vmatprep.subr.mxu0 0.0
        %5262 = vmatpush1.msra.mxu0 0.0
        %5263 = vmatprep.subr.mxu0 0.0
        %5264 = vmatpush1.msra.mxu0 0.0
        %5265 = vmatprep.subr.mxu0 0.0
        %5266 = vmatpush1.msra.mxu0 0.0
        %5267 = vmatprep.subr.mxu0 0.0
        %5268 = vmatpush1.msra.mxu0 0.0
        %5269 = vmatprep.subr.mxu0 0.0
        %5270 = vmatpush1.msra.mxu0 0.0
        %5271 = vmatprep.subr.mxu0 0.0
        %5272 = vmatpush1.msra.mxu0 0.0
        %5273 = vmatprep.subr.mxu0 0.0
        %5274 = vmatpush1.msra.mxu0 0.0
        %5275 = vmatprep.subr.mxu0 0.0
        %5276 = vmatpush1.msra.mxu0 0.0
        %5277 = vmatprep.subr.mxu0 0.0
        %5278 = vmatpush1.msra.mxu0 0.0
        %5279 = vmatprep.subr.mxu0 0.0
        %5280 = vmatpush1.msra.mxu0 0.0
        %5281 = vmatprep.subr.mxu0 0.0
        %5282 = vmatpush1.msra.mxu0 0.0
        %5283 = vmatprep.subr.mxu0 0.0
        %5284 = vmatpush1.msra.mxu0 0.0
        %5285 = vmatprep.subr.mxu0 0.0
        %5286 = vmatpush1.msra.mxu0 0.0
        %5287 = vmatprep.subr.mxu0 0.0
        %5288 = vmatpush1.msra.mxu0 0.0
        %5289 = vmatprep.subr.mxu0 0.0
        %5290 = vmatpush1.msra.mxu0 0.0
        %5291 = vmatprep.subr.mxu0 0.0
        %5292 = vmatpush1.msra.mxu0 0.0
        %5293 = vmatprep.subr.mxu0 0.0
        %5294 = vmatpush1.msra.mxu0 0.0
        %5295 = vmatprep.subr.mxu0 0.0
        %5296 = vmatpush1.msra.mxu0 0.0
        %5297 = vmatprep.subr.mxu0 0.0
        %5298 = vmatpush1.msra.mxu0 0.0
        %5299 = vmatprep.subr.mxu0 0.0
        %5300 = vmatpush1.msra.mxu0 0.0
        %5301 = vmatprep.subr.mxu0 0.0
        %5302 = vmatpush1.msra.mxu0 0.0
        %5303 = vmatprep.subr.mxu0 0.0
        %5304 = vmatpush1.msra.mxu0 0.0
        %5305 = vmatprep.subr.mxu0 0.0
        %5306 = vmatpush1.msra.mxu0 0.0
        %5307 = vmatprep.subr.mxu0 0.0
        %5308 = vmatpush1.msra.mxu0 0.0
        %5309 = vmatprep.subr.mxu0 0.0
        %5310 = vmatpush1.msra.mxu0 0.0
        %5311 = vmatprep.subr.mxu0 0.0
        %5312 = vmatpush1.msra.mxu0 0.0
        %5313 = vmatprep.subr.mxu0 0.0
        %5314 = vmatpush1.msra.mxu0 0.0
        %5315 = vmatprep.subr.mxu0 0.0
        %5316 = vmatpush1.msra.mxu0 0.0
        %5317 = vmatprep.mubr.f32.mxu0 0.0
        %v5318 = vand.u32 %v4858, 4294901760
        %5319 = vmatmul.mubr.f32.gmra.mrb[0].mxu0 %v5318
        %v5320 = vpop.f32.mrb[0].mxu0
        %v5321 = vadd.f32 %v5247, %v5320
        %v5322 = vpop.f32.mrb[0].mxu0
        %v5323 = vadd.f32 %v5249, %v5322
        %5324 = vdwg.mxu0
        %v5326 = vsel %vm354, %v4846, 0
        %v5328 = vand.u32 %v4845, 4294901760
        %5329 = vmatprep.subr.mxu0 %v5328
        %v5330 = vand.u32 %v4844, 4294901760
        %5331 = vmatpush1.msra.mxu0 %v5330
        %5332 = vmatprep.subr.mxu0 0.0
        %5333 = vmatpush1.msra.mxu0 0.0
        %5334 = vmatprep.subr.mxu0 0.0
        %5335 = vmatpush1.msra.mxu0 0.0
        %5336 = vmatprep.subr.mxu0 0.0
        %5337 = vmatpush1.msra.mxu0 0.0
        %5338 = vmatprep.subr.mxu0 0.0
        %5339 = vmatpush1.msra.mxu0 0.0
        %5340 = vmatprep.subr.mxu0 0.0
        %5341 = vmatpush1.msra.mxu0 0.0
        %5342 = vmatprep.subr.mxu0 0.0
        %5343 = vmatpush1.msra.mxu0 0.0
        %5344 = vmatprep.subr.mxu0 0.0
        %5345 = vmatpush1.msra.mxu0 0.0
        %5346 = vmatprep.subr.mxu0 0.0
        %5347 = vmatpush1.msra.mxu0 0.0
        %5348 = vmatprep.subr.mxu0 0.0
        %5349 = vmatpush1.msra.mxu0 0.0
        %5350 = vmatprep.subr.mxu0 0.0
        %5351 = vmatpush1.msra.mxu0 0.0
        %5352 = vmatprep.subr.mxu0 0.0
        %5353 = vmatpush1.msra.mxu0 0.0
        %5354 = vmatprep.subr.mxu0 0.0
        %5355 = vmatpush1.msra.mxu0 0.0
        %5356 = vmatprep.subr.mxu0 0.0
        %5357 = vmatpush1.msra.mxu0 0.0
        %5358 = vmatprep.subr.mxu0 0.0
        %5359 = vmatpush1.msra.mxu0 0.0
        %5360 = vmatprep.subr.mxu0 0.0
        %5361 = vmatpush1.msra.mxu0 0.0
        %5362 = vmatprep.subr.mxu0 0.0
        %5363 = vmatpush1.msra.mxu0 0.0
        %5364 = vmatprep.subr.mxu0 0.0
        %5365 = vmatpush1.msra.mxu0 0.0
        %5366 = vmatprep.subr.mxu0 0.0
        %5367 = vmatpush1.msra.mxu0 0.0
        %5368 = vmatprep.subr.mxu0 0.0
        %5369 = vmatpush1.msra.mxu0 0.0
        %5370 = vmatprep.subr.mxu0 0.0
        %5371 = vmatpush1.msra.mxu0 0.0
        %5372 = vmatprep.subr.mxu0 0.0
        %5373 = vmatpush1.msra.mxu0 0.0
        %5374 = vmatprep.subr.mxu0 0.0
        %5375 = vmatpush1.msra.mxu0 0.0
        %5376 = vmatprep.subr.mxu0 0.0
        %5377 = vmatpush1.msra.mxu0 0.0
        %5378 = vmatprep.subr.mxu0 0.0
        %5379 = vmatpush1.msra.mxu0 0.0
        %5380 = vmatprep.subr.mxu0 0.0
        %5381 = vmatpush1.msra.mxu0 0.0
        %5382 = vmatprep.subr.mxu0 0.0
        %5383 = vmatpush1.msra.mxu0 0.0
        %5384 = vmatprep.subr.mxu0 0.0
        %5385 = vmatpush1.msra.mxu0 0.0
        %5386 = vmatprep.subr.mxu0 0.0
        %5387 = vmatpush1.msra.mxu0 0.0
        %5388 = vmatprep.subr.mxu0 0.0
        %5389 = vmatpush1.msra.mxu0 0.0
        %5390 = vmatprep.subr.mxu0 0.0
        %5391 = vmatpush1.msra.mxu0 0.0
        %5392 = vmatprep.subr.mxu0 0.0
        %5393 = vmatpush1.msra.mxu0 0.0
        %5394 = vmatprep.mubr.f32.mxu0 0.0
        %v5395 = vand.u32 %v5326, 4294901760
        %v5396 = vsub.f32 %v5326, %v5395
        %v5397 = vand.u32 %v5396, 4294901760
        %v5398 = vsub.f32 %v5396, %v5397
        %v5399 = vand.u32 %v5398, 4294901760
        %5400 = vmatmul.mubr.f32.gmra.mrb[0].mxu0 %v5399
        %v5401 = vpop.f32.mrb[0].mxu0
        %v5402 = vadd.f32 %v5321, %v5401
        %v5403 = vpop.f32.mrb[0].mxu0
        %v5404 = vadd.f32 %v5323, %v5403
        %5405 = vdwg.mxu0
        %v5406 = vand.u32 %v4845, 4294901760
        %v5407 = vsub.f32 %v4845, %v5406
        %v5408 = vand.u32 %v5407, 4294901760
        %v5409 = vsub.f32 %v5407, %v5408
        %v5410 = vand.u32 %v5409, 4294901760
        %5411 = vmatprep.subr.mxu0 %v5410
        %v5412 = vand.u32 %v4844, 4294901760
        %v5413 = vsub.f32 %v4844, %v5412
        %v5414 = vand.u32 %v5413, 4294901760
        %v5415 = vsub.f32 %v5413, %v5414
        %v5416 = vand.u32 %v5415, 4294901760
        %5417 = vmatpush1.msra.mxu0 %v5416
        %5418 = vmatprep.subr.mxu0 0.0
        %5419 = vmatpush1.msra.mxu0 0.0
        %5420 = vmatprep.subr.mxu0 0.0
        %5421 = vmatpush1.msra.mxu0 0.0
        %5422 = vmatprep.subr.mxu0 0.0
        %5423 = vmatpush1.msra.mxu0 0.0
        %5424 = vmatprep.subr.mxu0 0.0
        %5425 = vmatpush1.msra.mxu0 0.0
        %5426 = vmatprep.subr.mxu0 0.0
        %5427 = vmatpush1.msra.mxu0 0.0
        %5428 = vmatprep.subr.mxu0 0.0
        %5429 = vmatpush1.msra.mxu0 0.0
        %5430 = vmatprep.subr.mxu0 0.0
        %5431 = vmatpush1.msra.mxu0 0.0
        %5432 = vmatprep.subr.mxu0 0.0
        %5433 = vmatpush1.msra.mxu0 0.0
        %5434 = vmatprep.subr.mxu0 0.0
        %5435 = vmatpush1.msra.mxu0 0.0
        %5436 = vmatprep.subr.mxu0 0.0
        %5437 = vmatpush1.msra.mxu0 0.0
        %5438 = vmatprep.subr.mxu0 0.0
        %5439 = vmatpush1.msra.mxu0 0.0
        %5440 = vmatprep.subr.mxu0 0.0
        %5441 = vmatpush1.msra.mxu0 0.0
        %5442 = vmatprep.subr.mxu0 0.0
        %5443 = vmatpush1.msra.mxu0 0.0
        %5444 = vmatprep.subr.mxu0 0.0
        %5445 = vmatpush1.msra.mxu0 0.0
        %5446 = vmatprep.subr.mxu0 0.0
        %5447 = vmatpush1.msra.mxu0 0.0
        %5448 = vmatprep.subr.mxu0 0.0
        %5449 = vmatpush1.msra.mxu0 0.0
        %5450 = vmatprep.subr.mxu0 0.0
        %5451 = vmatpush1.msra.mxu0 0.0
        %5452 = vmatprep.subr.mxu0 0.0
        %5453 = vmatpush1.msra.mxu0 0.0
        %5454 = vmatprep.subr.mxu0 0.0
        %5455 = vmatpush1.msra.mxu0 0.0
        %5456 = vmatprep.subr.mxu0 0.0
        %5457 = vmatpush1.msra.mxu0 0.0
        %5458 = vmatprep.subr.mxu0 0.0
        %5459 = vmatpush1.msra.mxu0 0.0
        %5460 = vmatprep.subr.mxu0 0.0
        %5461 = vmatpush1.msra.mxu0 0.0
        %5462 = vmatprep.subr.mxu0 0.0
        %5463 = vmatpush1.msra.mxu0 0.0
        %5464 = vmatprep.subr.mxu0 0.0
        %5465 = vmatpush1.msra.mxu0 0.0
        %5466 = vmatprep.subr.mxu0 0.0
        %5467 = vmatpush1.msra.mxu0 0.0
        %5468 = vmatprep.subr.mxu0 0.0
        %5469 = vmatpush1.msra.mxu0 0.0
        %5470 = vmatprep.subr.mxu0 0.0
        %5471 = vmatpush1.msra.mxu0 0.0
        %5472 = vmatprep.subr.mxu0 0.0
        %5473 = vmatpush1.msra.mxu0 0.0
        %5474 = vmatprep.subr.mxu0 0.0
        %5475 = vmatpush1.msra.mxu0 0.0
        %5476 = vmatprep.subr.mxu0 0.0
        %5477 = vmatpush1.msra.mxu0 0.0
        %5478 = vmatprep.subr.mxu0 0.0
        %5479 = vmatpush1.msra.mxu0 0.0
        %5480 = vmatprep.mubr.f32.mxu0 0.0
        %v5481 = vand.u32 %v5326, 4294901760
        %5482 = vmatmul.mubr.f32.gmra.mrb[0].mxu0 %v5481
        %v5483 = vpop.f32.mrb[0].mxu0
        %v5484 = vadd.f32 %v5402, %v5483
        %v5485 = vpop.f32.mrb[0].mxu0
        %v5486 = vadd.f32 %v5404, %v5485
        %5487 = vdwg.mxu0
        %v5488 = vand.u32 %v4845, 4294901760
        %v5489 = vsub.f32 %v4845, %v5488
        %5490 = vmatprep.subr.mxu0 %v5489
        %v5491 = vand.u32 %v4844, 4294901760
        %v5492 = vsub.f32 %v4844, %v5491
        %5493 = vmatpush1.msra.mxu0 %v5492
        %5494 = vmatprep.subr.mxu0 0.0
        %5495 = vmatpush1.msra.mxu0 0.0
        %5496 = vmatprep.subr.mxu0 0.0
        %5497 = vmatpush1.msra.mxu0 0.0
        %5498 = vmatprep.subr.mxu0 0.0
        %5499 = vmatpush1.msra.mxu0 0.0
        %5500 = vmatprep.subr.mxu0 0.0
        %5501 = vmatpush1.msra.mxu0 0.0
        %5502 = vmatprep.subr.mxu0 0.0
        %5503 = vmatpush1.msra.mxu0 0.0
        %5504 = vmatprep.subr.mxu0 0.0
        %5505 = vmatpush1.msra.mxu0 0.0
        %5506 = vmatprep.subr.mxu0 0.0
        %5507 = vmatpush1.msra.mxu0 0.0
        %5508 = vmatprep.subr.mxu0 0.0
        %5509 = vmatpush1.msra.mxu0 0.0
        %5510 = vmatprep.subr.mxu0 0.0
        %5511 = vmatpush1.msra.mxu0 0.0
        %5512 = vmatprep.subr.mxu0 0.0
        %5513 = vmatpush1.msra.mxu0 0.0
        %5514 = vmatprep.subr.mxu0 0.0
        %5515 = vmatpush1.msra.mxu0 0.0
        %5516 = vmatprep.subr.mxu0 0.0
        %5517 = vmatpush1.msra.mxu0 0.0
        %5518 = vmatprep.subr.mxu0 0.0
        %5519 = vmatpush1.msra.mxu0 0.0
        %5520 = vmatprep.subr.mxu0 0.0
        %5521 = vmatpush1.msra.mxu0 0.0
        %5522 = vmatprep.subr.mxu0 0.0
        %5523 = vmatpush1.msra.mxu0 0.0
        %5524 = vmatprep.subr.mxu0 0.0
        %5525 = vmatpush1.msra.mxu0 0.0
        %5526 = vmatprep.subr.mxu0 0.0
        %5527 = vmatpush1.msra.mxu0 0.0
        %5528 = vmatprep.subr.mxu0 0.0
        %5529 = vmatpush1.msra.mxu0 0.0
        %5530 = vmatprep.subr.mxu0 0.0
        %5531 = vmatpush1.msra.mxu0 0.0
        %5532 = vmatprep.subr.mxu0 0.0
        %5533 = vmatpush1.msra.mxu0 0.0
        %5534 = vmatprep.subr.mxu0 0.0
        %5535 = vmatpush1.msra.mxu0 0.0
        %5536 = vmatprep.subr.mxu0 0.0
        %5537 = vmatpush1.msra.mxu0 0.0
        %5538 = vmatprep.subr.mxu0 0.0
        %5539 = vmatpush1.msra.mxu0 0.0
        %5540 = vmatprep.subr.mxu0 0.0
        %5541 = vmatpush1.msra.mxu0 0.0
        %5542 = vmatprep.subr.mxu0 0.0
        %5543 = vmatpush1.msra.mxu0 0.0
        %5544 = vmatprep.subr.mxu0 0.0
        %5545 = vmatpush1.msra.mxu0 0.0
        %5546 = vmatprep.subr.mxu0 0.0
        %5547 = vmatpush1.msra.mxu0 0.0
        %5548 = vmatprep.subr.mxu0 0.0
        %5549 = vmatpush1.msra.mxu0 0.0
        %5550 = vmatprep.subr.mxu0 0.0
        %5551 = vmatpush1.msra.mxu0 0.0
        %5552 = vmatprep.subr.mxu0 0.0
        %5553 = vmatpush1.msra.mxu0 0.0
        %5554 = vmatprep.subr.mxu0 0.0
        %5555 = vmatpush1.msra.mxu0 0.0
        %5556 = vmatprep.mubr.f32.mxu0 0.0
        %v5557 = vand.u32 %v5326, 4294901760
        %v5558 = vsub.f32 %v5326, %v5557
        %5559 = vmatmul.mubr.f32.gmra.mrb[0].mxu0 %v5558
        %v5560 = vpop.f32.mrb[0].mxu0
        %v5561 = vadd.f32 %v5484, %v5560
        %v5562 = vpop.f32.mrb[0].mxu0
        %v5563 = vadd.f32 %v5486, %v5562
        %5564 = vdwg.mxu0
        %v5565 = vand.u32 %v4845, 4294901760
        %5566 = vmatprep.subr.mxu0 %v5565
        %v5567 = vand.u32 %v4844, 4294901760
        %5568 = vmatpush1.msra.mxu0 %v5567
        %5569 = vmatprep.subr.mxu0 0.0
        %5570 = vmatpush1.msra.mxu0 0.0
        %5571 = vmatprep.subr.mxu0 0.0
        %5572 = vmatpush1.msra.mxu0 0.0
        %5573 = vmatprep.subr.mxu0 0.0
        %5574 = vmatpush1.msra.mxu0 0.0
        %5575 = vmatprep.subr.mxu0 0.0
        %5576 = vmatpush1.msra.mxu0 0.0
        %5577 = vmatprep.subr.mxu0 0.0
        %5578 = vmatpush1.msra.mxu0 0.0
        %5579 = vmatprep.subr.mxu0 0.0
        %5580 = vmatpush1.msra.mxu0 0.0
        %5581 = vmatprep.subr.mxu0 0.0
        %5582 = vmatpush1.msra.mxu0 0.0
        %5583 = vmatprep.subr.mxu0 0.0
        %5584 = vmatpush1.msra.mxu0 0.0
        %5585 = vmatprep.subr.mxu0 0.0
        %5586 = vmatpush1.msra.mxu0 0.0
        %5587 = vmatprep.subr.mxu0 0.0
        %5588 = vmatpush1.msra.mxu0 0.0
        %5589 = vmatprep.subr.mxu0 0.0
        %5590 = vmatpush1.msra.mxu0 0.0
        %5591 = vmatprep.subr.mxu0 0.0
        %5592 = vmatpush1.msra.mxu0 0.0
        %5593 = vmatprep.subr.mxu0 0.0
        %5594 = vmatpush1.msra.mxu0 0.0
        %5595 = vmatprep.subr.mxu0 0.0
        %5596 = vmatpush1.msra.mxu0 0.0
        %5597 = vmatprep.subr.mxu0 0.0
        %5598 = vmatpush1.msra.mxu0 0.0
        %5599 = vmatprep.subr.mxu0 0.0
        %5600 = vmatpush1.msra.mxu0 0.0
        %5601 = vmatprep.subr.mxu0 0.0
        %5602 = vmatpush1.msra.mxu0 0.0
        %5603 = vmatprep.subr.mxu0 0.0
        %5604 = vmatpush1.msra.mxu0 0.0
        %5605 = vmatprep.subr.mxu0 0.0
        %5606 = vmatpush1.msra.mxu0 0.0
        %5607 = vmatprep.subr.mxu0 0.0
        %5608 = vmatpush1.msra.mxu0 0.0
        %5609 = vmatprep.subr.mxu0 0.0
        %5610 = vmatpush1.msra.mxu0 0.0
        %5611 = vmatprep.subr.mxu0 0.0
        %5612 = vmatpush1.msra.mxu0 0.0
        %5613 = vmatprep.subr.mxu0 0.0
        %5614 = vmatpush1.msra.mxu0 0.0
        %5615 = vmatprep.subr.mxu0 0.0
        %5616 = vmatpush1.msra.mxu0 0.0
        %5617 = vmatprep.subr.mxu0 0.0
        %5618 = vmatpush1.msra.mxu0 0.0
        %5619 = vmatprep.subr.mxu0 0.0
        %5620 = vmatpush1.msra.mxu0 0.0
        %5621 = vmatprep.subr.mxu0 0.0
        %5622 = vmatpush1.msra.mxu0 0.0
        %5623 = vmatprep.subr.mxu0 0.0
        %5624 = vmatpush1.msra.mxu0 0.0
        %5625 = vmatprep.subr.mxu0 0.0
        %5626 = vmatpush1.msra.mxu0 0.0
        %5627 = vmatprep.subr.mxu0 0.0
        %5628 = vmatpush1.msra.mxu0 0.0
        %5629 = vmatprep.subr.mxu0 0.0
        %5630 = vmatpush1.msra.mxu0 0.0
        %5631 = vmatprep.mubr.f32.mxu0 0.0
        %v5632 = vand.u32 %v5326, 4294901760
        %v5633 = vsub.f32 %v5326, %v5632
        %v5634 = vand.u32 %v5633, 4294901760
        %5635 = vmatmul.mubr.f32.gmra.mrb[0].mxu0 %v5634
        %v5636 = vpop.f32.mrb[0].mxu0
        %v5637 = vadd.f32 %v5561, %v5636
        %v5638 = vpop.f32.mrb[0].mxu0
        %v5639 = vadd.f32 %v5563, %v5638
        %5640 = vdwg.mxu0
        %v5641 = vand.u32 %v4845, 4294901760
        %v5642 = vsub.f32 %v4845, %v5641
        %v5643 = vand.u32 %v5642, 4294901760
        %5644 = vmatprep.subr.mxu0 %v5643
        %v5645 = vand.u32 %v4844, 4294901760
        %v5646 = vsub.f32 %v4844, %v5645
        %v5647 = vand.u32 %v5646, 4294901760
        %5648 = vmatpush1.msra.mxu0 %v5647
        %5649 = vmatprep.subr.mxu0 0.0
        %5650 = vmatpush1.msra.mxu0 0.0
        %5651 = vmatprep.subr.mxu0 0.0
        %5652 = vmatpush1.msra.mxu0 0.0
        %5653 = vmatprep.subr.mxu0 0.0
        %5654 = vmatpush1.msra.mxu0 0.0
        %5655 = vmatprep.subr.mxu0 0.0
        %5656 = vmatpush1.msra.mxu0 0.0
        %5657 = vmatprep.subr.mxu0 0.0
        %5658 = vmatpush1.msra.mxu0 0.0
        %5659 = vmatprep.subr.mxu0 0.0
        %5660 = vmatpush1.msra.mxu0 0.0
        %5661 = vmatprep.subr.mxu0 0.0
        %5662 = vmatpush1.msra.mxu0 0.0
        %5663 = vmatprep.subr.mxu0 0.0
        %5664 = vmatpush1.msra.mxu0 0.0
        %5665 = vmatprep.subr.mxu0 0.0
        %5666 = vmatpush1.msra.mxu0 0.0
        %5667 = vmatprep.subr.mxu0 0.0
        %5668 = vmatpush1.msra.mxu0 0.0
        %5669 = vmatprep.subr.mxu0 0.0
        %5670 = vmatpush1.msra.mxu0 0.0
        %5671 = vmatprep.subr.mxu0 0.0
        %5672 = vmatpush1.msra.mxu0 0.0
        %5673 = vmatprep.subr.mxu0 0.0
        %5674 = vmatpush1.msra.mxu0 0.0
        %5675 = vmatprep.subr.mxu0 0.0
        %5676 = vmatpush1.msra.mxu0 0.0
        %5677 = vmatprep.subr.mxu0 0.0
        %5678 = vmatpush1.msra.mxu0 0.0
        %5679 = vmatprep.subr.mxu0 0.0
        %5680 = vmatpush1.msra.mxu0 0.0
        %5681 = vmatprep.subr.mxu0 0.0
        %5682 = vmatpush1.msra.mxu0 0.0
        %5683 = vmatprep.subr.mxu0 0.0
        %5684 = vmatpush1.msra.mxu0 0.0
        %5685 = vmatprep.subr.mxu0 0.0
        %5686 = vmatpush1.msra.mxu0 0.0
        %5687 = vmatprep.subr.mxu0 0.0
        %5688 = vmatpush1.msra.mxu0 0.0
        %5689 = vmatprep.subr.mxu0 0.0
        %5690 = vmatpush1.msra.mxu0 0.0
        %5691 = vmatprep.subr.mxu0 0.0
        %5692 = vmatpush1.msra.mxu0 0.0
        %5693 = vmatprep.subr.mxu0 0.0
        %5694 = vmatpush1.msra.mxu0 0.0
        %5695 = vmatprep.subr.mxu0 0.0
        %5696 = vmatpush1.msra.mxu0 0.0
        %5697 = vmatprep.subr.mxu0 0.0
        %5698 = vmatpush1.msra.mxu0 0.0
        %5699 = vmatprep.subr.mxu0 0.0
        %5700 = vmatpush1.msra.mxu0 0.0
        %5701 = vmatprep.subr.mxu0 0.0
        %5702 = vmatpush1.msra.mxu0 0.0
        %5703 = vmatprep.subr.mxu0 0.0
        %5704 = vmatpush1.msra.mxu0 0.0
        %5705 = vmatprep.subr.mxu0 0.0
        %5706 = vmatpush1.msra.mxu0 0.0
        %5707 = vmatprep.subr.mxu0 0.0
        %5708 = vmatpush1.msra.mxu0 0.0
        %5709 = vmatprep.subr.mxu0 0.0
        %5710 = vmatpush1.msra.mxu0 0.0
        %5711 = vmatprep.mubr.f32.mxu0 0.0
        %v5712 = vand.u32 %v5326, 4294901760
        %5713 = vmatmul.mubr.f32.gmra.mrb[0].mxu0 %v5712
        %v5714 = vpop.f32.mrb[0].mxu0
        %v5715 = vadd.f32 %v5637, %v5714
        %v5716 = vpop.f32.mrb[0].mxu0
        %v5717 = vadd.f32 %v5639, %v5716
        %5718 = vdwg.mxu0
        %v5719 = vand.u32 %v4845, 4294901760
        %5720 = vmatprep.subr.mxu0 %v5719
        %v5721 = vand.u32 %v4844, 4294901760
        %5722 = vmatpush1.msra.mxu0 %v5721
        %5723 = vmatprep.subr.mxu0 0.0
        %5724 = vmatpush1.msra.mxu0 0.0
        %5725 = vmatprep.subr.mxu0 0.0
        %5726 = vmatpush1.msra.mxu0 0.0
        %5727 = vmatprep.subr.mxu0 0.0
        %5728 = vmatpush1.msra.mxu0 0.0
        %5729 = vmatprep.subr.mxu0 0.0
        %5730 = vmatpush1.msra.mxu0 0.0
        %5731 = vmatprep.subr.mxu0 0.0
        %5732 = vmatpush1.msra.mxu0 0.0
        %5733 = vmatprep.subr.mxu0 0.0
        %5734 = vmatpush1.msra.mxu0 0.0
        %5735 = vmatprep.subr.mxu0 0.0
        %5736 = vmatpush1.msra.mxu0 0.0
        %5737 = vmatprep.subr.mxu0 0.0
        %5738 = vmatpush1.msra.mxu0 0.0
        %5739 = vmatprep.subr.mxu0 0.0
        %5740 = vmatpush1.msra.mxu0 0.0
        %5741 = vmatprep.subr.mxu0 0.0
        %5742 = vmatpush1.msra.mxu0 0.0
        %5743 = vmatprep.subr.mxu0 0.0
        %5744 = vmatpush1.msra.mxu0 0.0
        %5745 = vmatprep.subr.mxu0 0.0
        %5746 = vmatpush1.msra.mxu0 0.0
        %5747 = vmatprep.subr.mxu0 0.0
        %5748 = vmatpush1.msra.mxu0 0.0
        %5749 = vmatprep.subr.mxu0 0.0
        %5750 = vmatpush1.msra.mxu0 0.0
        %5751 = vmatprep.subr.mxu0 0.0
        %5752 = vmatpush1.msra.mxu0 0.0
        %5753 = vmatprep.subr.mxu0 0.0
        %5754 = vmatpush1.msra.mxu0 0.0
        %5755 = vmatprep.subr.mxu0 0.0
        %5756 = vmatpush1.msra.mxu0 0.0
        %5757 = vmatprep.subr.mxu0 0.0
        %5758 = vmatpush1.msra.mxu0 0.0
        %5759 = vmatprep.subr.mxu0 0.0
        %5760 = vmatpush1.msra.mxu0 0.0
        %5761 = vmatprep.subr.mxu0 0.0
        %5762 = vmatpush1.msra.mxu0 0.0
        %5763 = vmatprep.subr.mxu0 0.0
        %5764 = vmatpush1.msra.mxu0 0.0
        %5765 = vmatprep.subr.mxu0 0.0
        %5766 = vmatpush1.msra.mxu0 0.0
        %5767 = vmatprep.subr.mxu0 0.0
        %5768 = vmatpush1.msra.mxu0 0.0
        %5769 = vmatprep.subr.mxu0 0.0
        %5770 = vmatpush1.msra.mxu0 0.0
        %5771 = vmatprep.subr.mxu0 0.0
        %5772 = vmatpush1.msra.mxu0 0.0
        %5773 = vmatprep.subr.mxu0 0.0
        %5774 = vmatpush1.msra.mxu0 0.0
        %5775 = vmatprep.subr.mxu0 0.0
        %5776 = vmatpush1.msra.mxu0 0.0
        %5777 = vmatprep.subr.mxu0 0.0
        %5778 = vmatpush1.msra.mxu0 0.0
        %5779 = vmatprep.subr.mxu0 0.0
        %5780 = vmatpush1.msra.mxu0 0.0
        %5781 = vmatprep.subr.mxu0 0.0
        %5782 = vmatpush1.msra.mxu0 0.0
        %5783 = vmatprep.subr.mxu0 0.0
        %5784 = vmatpush1.msra.mxu0 0.0
        %5785 = vmatprep.mubr.f32.mxu0 0.0
        %v5786 = vand.u32 %v5326, 4294901760
        %5787 = vmatmul.mubr.f32.gmra.mrb[0].mxu0 %v5786
        %v5788 = vpop.f32.mrb[0].mxu0
        %v5789 = vadd.f32 %v5715, %v5788
        %v5790 = vpop.f32.mrb[0].mxu0
        %v5791 = vadd.f32 %v5717, %v5790
        %5792 = vdwg.mxu0
        %5793 = vrot.lane.b32.xlu0 %v4836, 15
        %v5794 = vpop.permute.xlu0 %5793
        %5795 = vrot.lane.b32.xlu0 %v4837, 15
        %v5796 = vpop.permute.xlu0 %5795
        %v5797 = vsel %vm1295, %v5794, %v5796
        %v5798 = vsel %vm1295, %v5796, %v5794
        %v5799 = vmul.f32 %v5798, %v1304
        %v5800 = vmul.f32 %v5797, %v1308
        %s5801 = scalar_lea.vmem %s5, 16
        %v5802 = vld [vmem:[%s5801] sm:$0xff]
        %v5804 = vsel %vm354, %v5802, 0
        %v5806 = vand.u32 %v5800, 4294901760
        %5807 = vmatprep.subr.mxu0 %v5806
        %v5808 = vand.u32 %v5799, 4294901760
        %5809 = vmatpush1.msra.mxu0 %v5808
        %5810 = vmatprep.subr.mxu0 0.0
        %5811 = vmatpush1.msra.mxu0 0.0
        %5812 = vmatprep.subr.mxu0 0.0
        %5813 = vmatpush1.msra.mxu0 0.0
        %5814 = vmatprep.subr.mxu0 0.0
        %5815 = vmatpush1.msra.mxu0 0.0
        %5816 = vmatprep.subr.mxu0 0.0
        %5817 = vmatpush1.msra.mxu0 0.0
        %5818 = vmatprep.subr.mxu0 0.0
        %5819 = vmatpush1.msra.mxu0 0.0
        %5820 = vmatprep.subr.mxu0 0.0
        %5821 = vmatpush1.msra.mxu0 0.0
        %5822 = vmatprep.subr.mxu0 0.0
        %5823 = vmatpush1.msra.mxu0 0.0
        %5824 = vmatprep.subr.mxu0 0.0
        %5825 = vmatpush1.msra.mxu0 0.0
        %5826 = vmatprep.subr.mxu0 0.0
        %5827 = vmatpush1.msra.mxu0 0.0
        %5828 = vmatprep.subr.mxu0 0.0
        %5829 = vmatpush1.msra.mxu0 0.0
        %5830 = vmatprep.subr.mxu0 0.0
        %5831 = vmatpush1.msra.mxu0 0.0
        %5832 = vmatprep.subr.mxu0 0.0
        %5833 = vmatpush1.msra.mxu0 0.0
        %5834 = vmatprep.subr.mxu0 0.0
        %5835 = vmatpush1.msra.mxu0 0.0
        %5836 = vmatprep.subr.mxu0 0.0
        %5837 = vmatpush1.msra.mxu0 0.0
        %5838 = vmatprep.subr.mxu0 0.0
        %5839 = vmatpush1.msra.mxu0 0.0
        %5840 = vmatprep.subr.mxu0 0.0
        %5841 = vmatpush1.msra.mxu0 0.0
        %5842 = vmatprep.subr.mxu0 0.0
        %5843 = vmatpush1.msra.mxu0 0.0
        %5844 = vmatprep.subr.mxu0 0.0
        %5845 = vmatpush1.msra.mxu0 0.0
        %5846 = vmatprep.subr.mxu0 0.0
        %5847 = vmatpush1.msra.mxu0 0.0
        %5848 = vmatprep.subr.mxu0 0.0
        %5849 = vmatpush1.msra.mxu0 0.0
        %5850 = vmatprep.subr.mxu0 0.0
        %5851 = vmatpush1.msra.mxu0 0.0
        %5852 = vmatprep.subr.mxu0 0.0
        %5853 = vmatpush1.msra.mxu0 0.0
        %5854 = vmatprep.subr.mxu0 0.0
        %5855 = vmatpush1.msra.mxu0 0.0
        %5856 = vmatprep.subr.mxu0 0.0
        %5857 = vmatpush1.msra.mxu0 0.0
        %5858 = vmatprep.subr.mxu0 0.0
        %5859 = vmatpush1.msra.mxu0 0.0
        %5860 = vmatprep.subr.mxu0 0.0
        %5861 = vmatpush1.msra.mxu0 0.0
        %5862 = vmatprep.subr.mxu0 0.0
        %5863 = vmatpush1.msra.mxu0 0.0
        %5864 = vmatprep.subr.mxu0 0.0
        %5865 = vmatpush1.msra.mxu0 0.0
        %5866 = vmatprep.subr.mxu0 0.0
        %5867 = vmatpush1.msra.mxu0 0.0
        %5868 = vmatprep.subr.mxu0 0.0
        %5869 = vmatpush1.msra.mxu0 0.0
        %5870 = vmatprep.subr.mxu0 0.0
        %5871 = vmatpush1.msra.mxu0 0.0
        %5872 = vmatprep.mubr.f32.mxu0 0.0
        %v5873 = vand.u32 %v5804, 4294901760
        %v5874 = vsub.f32 %v5804, %v5873
        %v5875 = vand.u32 %v5874, 4294901760
        %v5876 = vsub.f32 %v5874, %v5875
        %v5877 = vand.u32 %v5876, 4294901760
        %5878 = vmatmul.mubr.f32.gmra.mrb[0].mxu0 %v5877
        %v5879 = vpop.f32.mrb[0].mxu0
        %v5880 = vadd.f32 0.0, %v5879
        %v5881 = vpop.f32.mrb[0].mxu0
        %v5882 = vadd.f32 0.0, %v5881
        %5883 = vdwg.mxu0
        %v5884 = vand.u32 %v5800, 4294901760
        %v5885 = vsub.f32 %v5800, %v5884
        %v5886 = vand.u32 %v5885, 4294901760
        %v5887 = vsub.f32 %v5885, %v5886
        %v5888 = vand.u32 %v5887, 4294901760
        %5889 = vmatprep.subr.mxu0 %v5888
        %v5890 = vand.u32 %v5799, 4294901760
        %v5891 = vsub.f32 %v5799, %v5890
        %v5892 = vand.u32 %v5891, 4294901760
        %v5893 = vsub.f32 %v5891, %v5892
        %v5894 = vand.u32 %v5893, 4294901760
        %5895 = vmatpush1.msra.mxu0 %v5894
        %5896 = vmatprep.subr.mxu0 0.0
        %5897 = vmatpush1.msra.mxu0 0.0
        %5898 = vmatprep.subr.mxu0 0.0
        %5899 = vmatpush1.msra.mxu0 0.0
        %5900 = vmatprep.subr.mxu0 0.0
        %5901 = vmatpush1.msra.mxu0 0.0
        %5902 = vmatprep.subr.mxu0 0.0
        %5903 = vmatpush1.msra.mxu0 0.0
        %5904 = vmatprep.subr.mxu0 0.0
        %5905 = vmatpush1.msra.mxu0 0.0
        %5906 = vmatprep.subr.mxu0 0.0
        %5907 = vmatpush1.msra.mxu0 0.0
        %5908 = vmatprep.subr.mxu0 0.0
        %5909 = vmatpush1.msra.mxu0 0.0
        %5910 = vmatprep.subr.mxu0 0.0
        %5911 = vmatpush1.msra.mxu0 0.0
        %5912 = vmatprep.subr.mxu0 0.0
        %5913 = vmatpush1.msra.mxu0 0.0
        %5914 = vmatprep.subr.mxu0 0.0
        %5915 = vmatpush1.msra.mxu0 0.0
        %5916 = vmatprep.subr.mxu0 0.0
        %5917 = vmatpush1.msra.mxu0 0.0
        %5918 = vmatprep.subr.mxu0 0.0
        %5919 = vmatpush1.msra.mxu0 0.0
        %5920 = vmatprep.subr.mxu0 0.0
        %5921 = vmatpush1.msra.mxu0 0.0
        %5922 = vmatprep.subr.mxu0 0.0
        %5923 = vmatpush1.msra.mxu0 0.0
        %5924 = vmatprep.subr.mxu0 0.0
        %5925 = vmatpush1.msra.mxu0 0.0
        %5926 = vmatprep.subr.mxu0 0.0
        %5927 = vmatpush1.msra.mxu0 0.0
        %5928 = vmatprep.subr.mxu0 0.0
        %5929 = vmatpush1.msra.mxu0 0.0
        %5930 = vmatprep.subr.mxu0 0.0
        %5931 = vmatpush1.msra.mxu0 0.0
        %5932 = vmatprep.subr.mxu0 0.0
        %5933 = vmatpush1.msra.mxu0 0.0
        %5934 = vmatprep.subr.mxu0 0.0
        %5935 = vmatpush1.msra.mxu0 0.0
        %5936 = vmatprep.subr.mxu0 0.0
        %5937 = vmatpush1.msra.mxu0 0.0
        %5938 = vmatprep.subr.mxu0 0.0
        %5939 = vmatpush1.msra.mxu0 0.0
        %5940 = vmatprep.subr.mxu0 0.0
        %5941 = vmatpush1.msra.mxu0 0.0
        %5942 = vmatprep.subr.mxu0 0.0
        %5943 = vmatpush1.msra.mxu0 0.0
        %5944 = vmatprep.subr.mxu0 0.0
        %5945 = vmatpush1.msra.mxu0 0.0
        %5946 = vmatprep.subr.mxu0 0.0
        %5947 = vmatpush1.msra.mxu0 0.0
        %5948 = vmatprep.subr.mxu0 0.0
        %5949 = vmatpush1.msra.mxu0 0.0
        %5950 = vmatprep.subr.mxu0 0.0
        %5951 = vmatpush1.msra.mxu0 0.0
        %5952 = vmatprep.subr.mxu0 0.0
        %5953 = vmatpush1.msra.mxu0 0.0
        %5954 = vmatprep.subr.mxu0 0.0
        %5955 = vmatpush1.msra.mxu0 0.0
        %5956 = vmatprep.subr.mxu0 0.0
        %5957 = vmatpush1.msra.mxu0 0.0
        %5958 = vmatprep.mubr.f32.mxu0 0.0
        %v5959 = vand.u32 %v5804, 4294901760
        %5960 = vmatmul.mubr.f32.gmra.mrb[0].mxu0 %v5959
        %v5961 = vpop.f32.mrb[0].mxu0
        %v5962 = vadd.f32 %v5880, %v5961
        %v5963 = vpop.f32.mrb[0].mxu0
        %v5964 = vadd.f32 %v5882, %v5963
        %5965 = vdwg.mxu0
        %v5966 = vand.u32 %v5800, 4294901760
        %v5967 = vsub.f32 %v5800, %v5966
        %5968 = vmatprep.subr.mxu0 %v5967
        %v5969 = vand.u32 %v5799, 4294901760
        %v5970 = vsub.f32 %v5799, %v5969
        %5971 = vmatpush1.msra.mxu0 %v5970
        %5972 = vmatprep.subr.mxu0 0.0
        %5973 = vmatpush1.msra.mxu0 0.0
        %5974 = vmatprep.subr.mxu0 0.0
        %5975 = vmatpush1.msra.mxu0 0.0
        %5976 = vmatprep.subr.mxu0 0.0
        %5977 = vmatpush1.msra.mxu0 0.0
        %5978 = vmatprep.subr.mxu0 0.0
        %5979 = vmatpush1.msra.mxu0 0.0
        %5980 = vmatprep.subr.mxu0 0.0
        %5981 = vmatpush1.msra.mxu0 0.0
        %5982 = vmatprep.subr.mxu0 0.0
        %5983 = vmatpush1.msra.mxu0 0.0
        %5984 = vmatprep.subr.mxu0 0.0
        %5985 = vmatpush1.msra.mxu0 0.0
        %5986 = vmatprep.subr.mxu0 0.0
        %5987 = vmatpush1.msra.mxu0 0.0
        %5988 = vmatprep.subr.mxu0 0.0
        %5989 = vmatpush1.msra.mxu0 0.0
        %5990 = vmatprep.subr.mxu0 0.0
        %5991 = vmatpush1.msra.mxu0 0.0
        %5992 = vmatprep.subr.mxu0 0.0
        %5993 = vmatpush1.msra.mxu0 0.0
        %5994 = vmatprep.subr.mxu0 0.0
        %5995 = vmatpush1.msra.mxu0 0.0
        %5996 = vmatprep.subr.mxu0 0.0
        %5997 = vmatpush1.msra.mxu0 0.0
        %5998 = vmatprep.subr.mxu0 0.0
        %5999 = vmatpush1.msra.mxu0 0.0
        %6000 = vmatprep.subr.mxu0 0.0
        %6001 = vmatpush1.msra.mxu0 0.0
        %6002 = vmatprep.subr.mxu0 0.0
        %6003 = vmatpush1.msra.mxu0 0.0
        %6004 = vmatprep.subr.mxu0 0.0
        %6005 = vmatpush1.msra.mxu0 0.0
        %6006 = vmatprep.subr.mxu0 0.0
        %6007 = vmatpush1.msra.mxu0 0.0
        %6008 = vmatprep.subr.mxu0 0.0
        %6009 = vmatpush1.msra.mxu0 0.0
        %6010 = vmatprep.subr.mxu0 0.0
        %6011 = vmatpush1.msra.mxu0 0.0
        %6012 = vmatprep.subr.mxu0 0.0
        %6013 = vmatpush1.msra.mxu0 0.0
        %6014 = vmatprep.subr.mxu0 0.0
        %6015 = vmatpush1.msra.mxu0 0.0
        %6016 = vmatprep.subr.mxu0 0.0
        %6017 = vmatpush1.msra.mxu0 0.0
        %6018 = vmatprep.subr.mxu0 0.0
        %6019 = vmatpush1.msra.mxu0 0.0
        %6020 = vmatprep.subr.mxu0 0.0
        %6021 = vmatpush1.msra.mxu0 0.0
        %6022 = vmatprep.subr.mxu0 0.0
        %6023 = vmatpush1.msra.mxu0 0.0
        %6024 = vmatprep.subr.mxu0 0.0
        %6025 = vmatpush1.msra.mxu0 0.0
        %6026 = vmatprep.subr.mxu0 0.0
        %6027 = vmatpush1.msra.mxu0 0.0
        %6028 = vmatprep.subr.mxu0 0.0
        %6029 = vmatpush1.msra.mxu0 0.0
        %6030 = vmatprep.subr.mxu0 0.0
        %6031 = vmatpush1.msra.mxu0 0.0
        %6032 = vmatprep.subr.mxu0 0.0
        %6033 = vmatpush1.msra.mxu0 0.0
        %6034 = vmatprep.mubr.f32.mxu0 0.0
        %v6035 = vand.u32 %v5804, 4294901760
        %v6036 = vsub.f32 %v5804, %v6035
        %6037 = vmatmul.mubr.f32.gmra.mrb[0].mxu0 %v6036
        %v6038 = vpop.f32.mrb[0].mxu0
        %v6039 = vadd.f32 %v5962, %v6038
        %v6040 = vpop.f32.mrb[0].mxu0
        %v6041 = vadd.f32 %v5964, %v6040
        %6042 = vdwg.mxu0
        %v6043 = vand.u32 %v5800, 4294901760
        %6044 = vmatprep.subr.mxu0 %v6043
        %v6045 = vand.u32 %v5799, 4294901760
        %6046 = vmatpush1.msra.mxu0 %v6045
        %6047 = vmatprep.subr.mxu0 0.0
        %6048 = vmatpush1.msra.mxu0 0.0
        %6049 = vmatprep.subr.mxu0 0.0
        %6050 = vmatpush1.msra.mxu0 0.0
        %6051 = vmatprep.subr.mxu0 0.0
        %6052 = vmatpush1.msra.mxu0 0.0
        %6053 = vmatprep.subr.mxu0 0.0
        %6054 = vmatpush1.msra.mxu0 0.0
        %6055 = vmatprep.subr.mxu0 0.0
        %6056 = vmatpush1.msra.mxu0 0.0
        %6057 = vmatprep.subr.mxu0 0.0
        %6058 = vmatpush1.msra.mxu0 0.0
        %6059 = vmatprep.subr.mxu0 0.0
        %6060 = vmatpush1.msra.mxu0 0.0
        %6061 = vmatprep.subr.mxu0 0.0
        %6062 = vmatpush1.msra.mxu0 0.0
        %6063 = vmatprep.subr.mxu0 0.0
        %6064 = vmatpush1.msra.mxu0 0.0
        %6065 = vmatprep.subr.mxu0 0.0
        %6066 = vmatpush1.msra.mxu0 0.0
        %6067 = vmatprep.subr.mxu0 0.0
        %6068 = vmatpush1.msra.mxu0 0.0
        %6069 = vmatprep.subr.mxu0 0.0
        %6070 = vmatpush1.msra.mxu0 0.0
        %6071 = vmatprep.subr.mxu0 0.0
        %6072 = vmatpush1.msra.mxu0 0.0
        %6073 = vmatprep.subr.mxu0 0.0
        %6074 = vmatpush1.msra.mxu0 0.0
        %6075 = vmatprep.subr.mxu0 0.0
        %6076 = vmatpush1.msra.mxu0 0.0
        %6077 = vmatprep.subr.mxu0 0.0
        %6078 = vmatpush1.msra.mxu0 0.0
        %6079 = vmatprep.subr.mxu0 0.0
        %6080 = vmatpush1.msra.mxu0 0.0
        %6081 = vmatprep.subr.mxu0 0.0
        %6082 = vmatpush1.msra.mxu0 0.0
        %6083 = vmatprep.subr.mxu0 0.0
        %6084 = vmatpush1.msra.mxu0 0.0
        %6085 = vmatprep.subr.mxu0 0.0
        %6086 = vmatpush1.msra.mxu0 0.0
        %6087 = vmatprep.subr.mxu0 0.0
        %6088 = vmatpush1.msra.mxu0 0.0
        %6089 = vmatprep.subr.mxu0 0.0
        %6090 = vmatpush1.msra.mxu0 0.0
        %6091 = vmatprep.subr.mxu0 0.0
        %6092 = vmatpush1.msra.mxu0 0.0
        %6093 = vmatprep.subr.mxu0 0.0
        %6094 = vmatpush1.msra.mxu0 0.0
        %6095 = vmatprep.subr.mxu0 0.0
        %6096 = vmatpush1.msra.mxu0 0.0
        %6097 = vmatprep.subr.mxu0 0.0
        %6098 = vmatpush1.msra.mxu0 0.0
        %6099 = vmatprep.subr.mxu0 0.0
        %6100 = vmatpush1.msra.mxu0 0.0
        %6101 = vmatprep.subr.mxu0 0.0
        %6102 = vmatpush1.msra.mxu0 0.0
        %6103 = vmatprep.subr.mxu0 0.0
        %6104 = vmatpush1.msra.mxu0 0.0
        %6105 = vmatprep.subr.mxu0 0.0
        %6106 = vmatpush1.msra.mxu0 0.0
        %6107 = vmatprep.subr.mxu0 0.0
        %6108 = vmatpush1.msra.mxu0 0.0
        %6109 = vmatprep.mubr.f32.mxu0 0.0
        %v6110 = vand.u32 %v5804, 4294901760
        %v6111 = vsub.f32 %v5804, %v6110
        %v6112 = vand.u32 %v6111, 4294901760
        %6113 = vmatmul.mubr.f32.gmra.mrb[0].mxu0 %v6112
        %v6114 = vpop.f32.mrb[0].mxu0
        %v6115 = vadd.f32 %v6039, %v6114
        %v6116 = vpop.f32.mrb[0].mxu0
        %v6117 = vadd.f32 %v6041, %v6116
        %6118 = vdwg.mxu0
        %v6119 = vand.u32 %v5800, 4294901760
        %v6120 = vsub.f32 %v5800, %v6119
        %v6121 = vand.u32 %v6120, 4294901760
        %6122 = vmatprep.subr.mxu0 %v6121
        %v6123 = vand.u32 %v5799, 4294901760
        %v6124 = vsub.f32 %v5799, %v6123
        %v6125 = vand.u32 %v6124, 4294901760
        %6126 = vmatpush1.msra.mxu0 %v6125
        %6127 = vmatprep.subr.mxu0 0.0
        %6128 = vmatpush1.msra.mxu0 0.0
        %6129 = vmatprep.subr.mxu0 0.0
        %6130 = vmatpush1.msra.mxu0 0.0
        %6131 = vmatprep.subr.mxu0 0.0
        %6132 = vmatpush1.msra.mxu0 0.0
        %6133 = vmatprep.subr.mxu0 0.0
        %6134 = vmatpush1.msra.mxu0 0.0
        %6135 = vmatprep.subr.mxu0 0.0
        %6136 = vmatpush1.msra.mxu0 0.0
        %6137 = vmatprep.subr.mxu0 0.0
        %6138 = vmatpush1.msra.mxu0 0.0
        %6139 = vmatprep.subr.mxu0 0.0
        %6140 = vmatpush1.msra.mxu0 0.0
        %6141 = vmatprep.subr.mxu0 0.0
        %6142 = vmatpush1.msra.mxu0 0.0
        %6143 = vmatprep.subr.mxu0 0.0
        %6144 = vmatpush1.msra.mxu0 0.0
        %6145 = vmatprep.subr.mxu0 0.0
        %6146 = vmatpush1.msra.mxu0 0.0
        %6147 = vmatprep.subr.mxu0 0.0
        %6148 = vmatpush1.msra.mxu0 0.0
        %6149 = vmatprep.subr.mxu0 0.0
        %6150 = vmatpush1.msra.mxu0 0.0
        %6151 = vmatprep.subr.mxu0 0.0
        %6152 = vmatpush1.msra.mxu0 0.0
        %6153 = vmatprep.subr.mxu0 0.0
        %6154 = vmatpush1.msra.mxu0 0.0
        %6155 = vmatprep.subr.mxu0 0.0
        %6156 = vmatpush1.msra.mxu0 0.0
        %6157 = vmatprep.subr.mxu0 0.0
        %6158 = vmatpush1.msra.mxu0 0.0
        %6159 = vmatprep.subr.mxu0 0.0
        %6160 = vmatpush1.msra.mxu0 0.0
        %6161 = vmatprep.subr.mxu0 0.0
        %6162 = vmatpush1.msra.mxu0 0.0
        %6163 = vmatprep.subr.mxu0 0.0
        %6164 = vmatpush1.msra.mxu0 0.0
        %6165 = vmatprep.subr.mxu0 0.0
        %6166 = vmatpush1.msra.mxu0 0.0
        %6167 = vmatprep.subr.mxu0 0.0
        %6168 = vmatpush1.msra.mxu0 0.0
        %6169 = vmatprep.subr.mxu0 0.0
        %6170 = vmatpush1.msra.mxu0 0.0
        %6171 = vmatprep.subr.mxu0 0.0
        %6172 = vmatpush1.msra.mxu0 0.0
        %6173 = vmatprep.subr.mxu0 0.0
        %6174 = vmatpush1.msra.mxu0 0.0
        %6175 = vmatprep.subr.mxu0 0.0
        %6176 = vmatpush1.msra.mxu0 0.0
        %6177 = vmatprep.subr.mxu0 0.0
        %6178 = vmatpush1.msra.mxu0 0.0
        %6179 = vmatprep.subr.mxu0 0.0
        %6180 = vmatpush1.msra.mxu0 0.0
        %6181 = vmatprep.subr.mxu0 0.0
        %6182 = vmatpush1.msra.mxu0 0.0
        %6183 = vmatprep.subr.mxu0 0.0
        %6184 = vmatpush1.msra.mxu0 0.0
        %6185 = vmatprep.subr.mxu0 0.0
        %6186 = vmatpush1.msra.mxu0 0.0
        %6187 = vmatprep.subr.mxu0 0.0
        %6188 = vmatpush1.msra.mxu0 0.0
        %6189 = vmatprep.mubr.f32.mxu0 0.0
        %v6190 = vand.u32 %v5804, 4294901760
        %6191 = vmatmul.mubr.f32.gmra.mrb[0].mxu0 %v6190
        %v6192 = vpop.f32.mrb[0].mxu0
        %v6193 = vadd.f32 %v6115, %v6192
        %v6194 = vpop.f32.mrb[0].mxu0
        %v6195 = vadd.f32 %v6117, %v6194
        %6196 = vdwg.mxu0
        %v6197 = vand.u32 %v5800, 4294901760
        %6198 = vmatprep.subr.mxu0 %v6197
        %v6199 = vand.u32 %v5799, 4294901760
        %6200 = vmatpush1.msra.mxu0 %v6199
        %6201 = vmatprep.subr.mxu0 0.0
        %6202 = vmatpush1.msra.mxu0 0.0
        %6203 = vmatprep.subr.mxu0 0.0
        %6204 = vmatpush1.msra.mxu0 0.0
        %6205 = vmatprep.subr.mxu0 0.0
        %6206 = vmatpush1.msra.mxu0 0.0
        %6207 = vmatprep.subr.mxu0 0.0
        %6208 = vmatpush1.msra.mxu0 0.0
        %6209 = vmatprep.subr.mxu0 0.0
        %6210 = vmatpush1.msra.mxu0 0.0
        %6211 = vmatprep.subr.mxu0 0.0
        %6212 = vmatpush1.msra.mxu0 0.0
        %6213 = vmatprep.subr.mxu0 0.0
        %6214 = vmatpush1.msra.mxu0 0.0
        %6215 = vmatprep.subr.mxu0 0.0
        %6216 = vmatpush1.msra.mxu0 0.0
        %6217 = vmatprep.subr.mxu0 0.0
        %6218 = vmatpush1.msra.mxu0 0.0
        %6219 = vmatprep.subr.mxu0 0.0
        %6220 = vmatpush1.msra.mxu0 0.0
        %6221 = vmatprep.subr.mxu0 0.0
        %6222 = vmatpush1.msra.mxu0 0.0
        %6223 = vmatprep.subr.mxu0 0.0
        %6224 = vmatpush1.msra.mxu0 0.0
        %6225 = vmatprep.subr.mxu0 0.0
        %6226 = vmatpush1.msra.mxu0 0.0
        %6227 = vmatprep.subr.mxu0 0.0
        %6228 = vmatpush1.msra.mxu0 0.0
        %6229 = vmatprep.subr.mxu0 0.0
        %6230 = vmatpush1.msra.mxu0 0.0
        %6231 = vmatprep.subr.mxu0 0.0
        %6232 = vmatpush1.msra.mxu0 0.0
        %6233 = vmatprep.subr.mxu0 0.0
        %6234 = vmatpush1.msra.mxu0 0.0
        %6235 = vmatprep.subr.mxu0 0.0
        %6236 = vmatpush1.msra.mxu0 0.0
        %6237 = vmatprep.subr.mxu0 0.0
        %6238 = vmatpush1.msra.mxu0 0.0
        %6239 = vmatprep.subr.mxu0 0.0
        %6240 = vmatpush1.msra.mxu0 0.0
        %6241 = vmatprep.subr.mxu0 0.0
        %6242 = vmatpush1.msra.mxu0 0.0
        %6243 = vmatprep.subr.mxu0 0.0
        %6244 = vmatpush1.msra.mxu0 0.0
        %6245 = vmatprep.subr.mxu0 0.0
        %6246 = vmatpush1.msra.mxu0 0.0
        %6247 = vmatprep.subr.mxu0 0.0
        %6248 = vmatpush1.msra.mxu0 0.0
        %6249 = vmatprep.subr.mxu0 0.0
        %6250 = vmatpush1.msra.mxu0 0.0
        %6251 = vmatprep.subr.mxu0 0.0
        %6252 = vmatpush1.msra.mxu0 0.0
        %6253 = vmatprep.subr.mxu0 0.0
        %6254 = vmatpush1.msra.mxu0 0.0
        %6255 = vmatprep.subr.mxu0 0.0
        %6256 = vmatpush1.msra.mxu0 0.0
        %6257 = vmatprep.subr.mxu0 0.0
        %6258 = vmatpush1.msra.mxu0 0.0
        %6259 = vmatprep.subr.mxu0 0.0
        %6260 = vmatpush1.msra.mxu0 0.0
        %6261 = vmatprep.subr.mxu0 0.0
        %6262 = vmatpush1.msra.mxu0 0.0
        %6263 = vmatprep.mubr.f32.mxu0 0.0
        %v6264 = vand.u32 %v5804, 4294901760
        %6265 = vmatmul.mubr.f32.gmra.mrb[0].mxu0 %v6264
        %v6266 = vpop.f32.mrb[0].mxu0
        %v6267 = vadd.f32 %v6193, %v6266
        %v6268 = vpop.f32.mrb[0].mxu0
        %v6269 = vadd.f32 %v6195, %v6268
        %6270 = vdwg.mxu0
        %v6271 = vadd.f32 %v5789, %v6267
        %v6272 = vadd.f32 %v5791, %v6269
        %6273 = vrot.lane.b32.xlu0 %v4836, 1
        %v6274 = vpop.permute.xlu0 %6273
        %6275 = vrot.lane.b32.xlu0 %v4837, 1
        %v6276 = vpop.permute.xlu0 %6275
        %v6277 = vsel %vm1789, %v6274, %v6276
        %v6278 = vsel %vm1789, %v6276, %v6274
        %v6279 = vmul.f32 %v6278, %v1798
        %v6280 = vmul.f32 %v6277, %v1802
        %s6281 = scalar_lea.vmem %s5, 24
        %v6282 = vld [vmem:[%s6281] sm:$0xff]
        %v6284 = vsel %vm354, %v6282, 0
        %v6286 = vand.u32 %v6280, 4294901760
        %6287 = vmatprep.subr.mxu0 %v6286
        %v6288 = vand.u32 %v6279, 4294901760
        %6289 = vmatpush1.msra.mxu0 %v6288
        %6290 = vmatprep.subr.mxu0 0.0
        %6291 = vmatpush1.msra.mxu0 0.0
        %6292 = vmatprep.subr.mxu0 0.0
        %6293 = vmatpush1.msra.mxu0 0.0
        %6294 = vmatprep.subr.mxu0 0.0
        %6295 = vmatpush1.msra.mxu0 0.0
        %6296 = vmatprep.subr.mxu0 0.0
        %6297 = vmatpush1.msra.mxu0 0.0
        %6298 = vmatprep.subr.mxu0 0.0
        %6299 = vmatpush1.msra.mxu0 0.0
        %6300 = vmatprep.subr.mxu0 0.0
        %6301 = vmatpush1.msra.mxu0 0.0
        %6302 = vmatprep.subr.mxu0 0.0
        %6303 = vmatpush1.msra.mxu0 0.0
        %6304 = vmatprep.subr.mxu0 0.0
        %6305 = vmatpush1.msra.mxu0 0.0
        %6306 = vmatprep.subr.mxu0 0.0
        %6307 = vmatpush1.msra.mxu0 0.0
        %6308 = vmatprep.subr.mxu0 0.0
        %6309 = vmatpush1.msra.mxu0 0.0
        %6310 = vmatprep.subr.mxu0 0.0
        %6311 = vmatpush1.msra.mxu0 0.0
        %6312 = vmatprep.subr.mxu0 0.0
        %6313 = vmatpush1.msra.mxu0 0.0
        %6314 = vmatprep.subr.mxu0 0.0
        %6315 = vmatpush1.msra.mxu0 0.0
        %6316 = vmatprep.subr.mxu0 0.0
        %6317 = vmatpush1.msra.mxu0 0.0
        %6318 = vmatprep.subr.mxu0 0.0
        %6319 = vmatpush1.msra.mxu0 0.0
        %6320 = vmatprep.subr.mxu0 0.0
        %6321 = vmatpush1.msra.mxu0 0.0
        %6322 = vmatprep.subr.mxu0 0.0
        %6323 = vmatpush1.msra.mxu0 0.0
        %6324 = vmatprep.subr.mxu0 0.0
        %6325 = vmatpush1.msra.mxu0 0.0
        %6326 = vmatprep.subr.mxu0 0.0
        %6327 = vmatpush1.msra.mxu0 0.0
        %6328 = vmatprep.subr.mxu0 0.0
        %6329 = vmatpush1.msra.mxu0 0.0
        %6330 = vmatprep.subr.mxu0 0.0
        %6331 = vmatpush1.msra.mxu0 0.0
        %6332 = vmatprep.subr.mxu0 0.0
        %6333 = vmatpush1.msra.mxu0 0.0
        %6334 = vmatprep.subr.mxu0 0.0
        %6335 = vmatpush1.msra.mxu0 0.0
        %6336 = vmatprep.subr.mxu0 0.0
        %6337 = vmatpush1.msra.mxu0 0.0
        %6338 = vmatprep.subr.mxu0 0.0
        %6339 = vmatpush1.msra.mxu0 0.0
        %6340 = vmatprep.subr.mxu0 0.0
        %6341 = vmatpush1.msra.mxu0 0.0
        %6342 = vmatprep.subr.mxu0 0.0
        %6343 = vmatpush1.msra.mxu0 0.0
        %6344 = vmatprep.subr.mxu0 0.0
        %6345 = vmatpush1.msra.mxu0 0.0
        %6346 = vmatprep.subr.mxu0 0.0
        %6347 = vmatpush1.msra.mxu0 0.0
        %6348 = vmatprep.subr.mxu0 0.0
        %6349 = vmatpush1.msra.mxu0 0.0
        %6350 = vmatprep.subr.mxu0 0.0
        %6351 = vmatpush1.msra.mxu0 0.0
        %6352 = vmatprep.mubr.f32.mxu0 0.0
        %v6353 = vand.u32 %v6284, 4294901760
        %v6354 = vsub.f32 %v6284, %v6353
        %v6355 = vand.u32 %v6354, 4294901760
        %v6356 = vsub.f32 %v6354, %v6355
        %v6357 = vand.u32 %v6356, 4294901760
        %6358 = vmatmul.mubr.f32.gmra.mrb[0].mxu0 %v6357
        %v6359 = vpop.f32.mrb[0].mxu0
        %v6360 = vadd.f32 0.0, %v6359
        %v6361 = vpop.f32.mrb[0].mxu0
        %v6362 = vadd.f32 0.0, %v6361
        %6363 = vdwg.mxu0
        %v6364 = vand.u32 %v6280, 4294901760
        %v6365 = vsub.f32 %v6280, %v6364
        %v6366 = vand.u32 %v6365, 4294901760
        %v6367 = vsub.f32 %v6365, %v6366
        %v6368 = vand.u32 %v6367, 4294901760
        %6369 = vmatprep.subr.mxu0 %v6368
        %v6370 = vand.u32 %v6279, 4294901760
        %v6371 = vsub.f32 %v6279, %v6370
        %v6372 = vand.u32 %v6371, 4294901760
        %v6373 = vsub.f32 %v6371, %v6372
        %v6374 = vand.u32 %v6373, 4294901760
        %6375 = vmatpush1.msra.mxu0 %v6374
        %6376 = vmatprep.subr.mxu0 0.0
        %6377 = vmatpush1.msra.mxu0 0.0
        %6378 = vmatprep.subr.mxu0 0.0
        %6379 = vmatpush1.msra.mxu0 0.0
        %6380 = vmatprep.subr.mxu0 0.0
        %6381 = vmatpush1.msra.mxu0 0.0
        %6382 = vmatprep.subr.mxu0 0.0
        %6383 = vmatpush1.msra.mxu0 0.0
        %6384 = vmatprep.subr.mxu0 0.0
        %6385 = vmatpush1.msra.mxu0 0.0
        %6386 = vmatprep.subr.mxu0 0.0
        %6387 = vmatpush1.msra.mxu0 0.0
        %6388 = vmatprep.subr.mxu0 0.0
        %6389 = vmatpush1.msra.mxu0 0.0
        %6390 = vmatprep.subr.mxu0 0.0
        %6391 = vmatpush1.msra.mxu0 0.0
        %6392 = vmatprep.subr.mxu0 0.0
        %6393 = vmatpush1.msra.mxu0 0.0
        %6394 = vmatprep.subr.mxu0 0.0
        %6395 = vmatpush1.msra.mxu0 0.0
        %6396 = vmatprep.subr.mxu0 0.0
        %6397 = vmatpush1.msra.mxu0 0.0
        %6398 = vmatprep.subr.mxu0 0.0
        %6399 = vmatpush1.msra.mxu0 0.0
        %6400 = vmatprep.subr.mxu0 0.0
        %6401 = vmatpush1.msra.mxu0 0.0
        %6402 = vmatprep.subr.mxu0 0.0
        %6403 = vmatpush1.msra.mxu0 0.0
        %6404 = vmatprep.subr.mxu0 0.0
        %6405 = vmatpush1.msra.mxu0 0.0
        %6406 = vmatprep.subr.mxu0 0.0
        %6407 = vmatpush1.msra.mxu0 0.0
        %6408 = vmatprep.subr.mxu0 0.0
        %6409 = vmatpush1.msra.mxu0 0.0
        %6410 = vmatprep.subr.mxu0 0.0
        %6411 = vmatpush1.msra.mxu0 0.0
        %6412 = vmatprep.subr.mxu0 0.0
        %6413 = vmatpush1.msra.mxu0 0.0
        %6414 = vmatprep.subr.mxu0 0.0
        %6415 = vmatpush1.msra.mxu0 0.0
        %6416 = vmatprep.subr.mxu0 0.0
        %6417 = vmatpush1.msra.mxu0 0.0
        %6418 = vmatprep.subr.mxu0 0.0
        %6419 = vmatpush1.msra.mxu0 0.0
        %6420 = vmatprep.subr.mxu0 0.0
        %6421 = vmatpush1.msra.mxu0 0.0
        %6422 = vmatprep.subr.mxu0 0.0
        %6423 = vmatpush1.msra.mxu0 0.0
        %6424 = vmatprep.subr.mxu0 0.0
        %6425 = vmatpush1.msra.mxu0 0.0
        %6426 = vmatprep.subr.mxu0 0.0
        %6427 = vmatpush1.msra.mxu0 0.0
        %6428 = vmatprep.subr.mxu0 0.0
        %6429 = vmatpush1.msra.mxu0 0.0
        %6430 = vmatprep.subr.mxu0 0.0
        %6431 = vmatpush1.msra.mxu0 0.0
        %6432 = vmatprep.subr.mxu0 0.0
        %6433 = vmatpush1.msra.mxu0 0.0
        %6434 = vmatprep.subr.mxu0 0.0
        %6435 = vmatpush1.msra.mxu0 0.0
        %6436 = vmatprep.subr.mxu0 0.0
        %6437 = vmatpush1.msra.mxu0 0.0
        %6438 = vmatprep.mubr.f32.mxu0 0.0
        %v6439 = vand.u32 %v6284, 4294901760
        %6440 = vmatmul.mubr.f32.gmra.mrb[0].mxu0 %v6439
        %v6441 = vpop.f32.mrb[0].mxu0
        %v6442 = vadd.f32 %v6360, %v6441
        %v6443 = vpop.f32.mrb[0].mxu0
        %v6444 = vadd.f32 %v6362, %v6443
        %6445 = vdwg.mxu0
        %v6446 = vand.u32 %v6280, 4294901760
        %v6447 = vsub.f32 %v6280, %v6446
        %6448 = vmatprep.subr.mxu0 %v6447
        %v6449 = vand.u32 %v6279, 4294901760
        %v6450 = vsub.f32 %v6279, %v6449
        %6451 = vmatpush1.msra.mxu0 %v6450
        %6452 = vmatprep.subr.mxu0 0.0
        %6453 = vmatpush1.msra.mxu0 0.0
        %6454 = vmatprep.subr.mxu0 0.0
        %6455 = vmatpush1.msra.mxu0 0.0
        %6456 = vmatprep.subr.mxu0 0.0
        %6457 = vmatpush1.msra.mxu0 0.0
        %6458 = vmatprep.subr.mxu0 0.0
        %6459 = vmatpush1.msra.mxu0 0.0
        %6460 = vmatprep.subr.mxu0 0.0
        %6461 = vmatpush1.msra.mxu0 0.0
        %6462 = vmatprep.subr.mxu0 0.0
        %6463 = vmatpush1.msra.mxu0 0.0
        %6464 = vmatprep.subr.mxu0 0.0
        %6465 = vmatpush1.msra.mxu0 0.0
        %6466 = vmatprep.subr.mxu0 0.0
        %6467 = vmatpush1.msra.mxu0 0.0
        %6468 = vmatprep.subr.mxu0 0.0
        %6469 = vmatpush1.msra.mxu0 0.0
        %6470 = vmatprep.subr.mxu0 0.0
        %6471 = vmatpush1.msra.mxu0 0.0
        %6472 = vmatprep.subr.mxu0 0.0
        %6473 = vmatpush1.msra.mxu0 0.0
        %6474 = vmatprep.subr.mxu0 0.0
        %6475 = vmatpush1.msra.mxu0 0.0
        %6476 = vmatprep.subr.mxu0 0.0
        %6477 = vmatpush1.msra.mxu0 0.0
        %6478 = vmatprep.subr.mxu0 0.0
        %6479 = vmatpush1.msra.mxu0 0.0
        %6480 = vmatprep.subr.mxu0 0.0
        %6481 = vmatpush1.msra.mxu0 0.0
        %6482 = vmatprep.subr.mxu0 0.0
        %6483 = vmatpush1.msra.mxu0 0.0
        %6484 = vmatprep.subr.mxu0 0.0
        %6485 = vmatpush1.msra.mxu0 0.0
        %6486 = vmatprep.subr.mxu0 0.0
        %6487 = vmatpush1.msra.mxu0 0.0
        %6488 = vmatprep.subr.mxu0 0.0
        %6489 = vmatpush1.msra.mxu0 0.0
        %6490 = vmatprep.subr.mxu0 0.0
        %6491 = vmatpush1.msra.mxu0 0.0
        %6492 = vmatprep.subr.mxu0 0.0
        %6493 = vmatpush1.msra.mxu0 0.0
        %6494 = vmatprep.subr.mxu0 0.0
        %6495 = vmatpush1.msra.mxu0 0.0
        %6496 = vmatprep.subr.mxu0 0.0
        %6497 = vmatpush1.msra.mxu0 0.0
        %6498 = vmatprep.subr.mxu0 0.0
        %6499 = vmatpush1.msra.mxu0 0.0
        %6500 = vmatprep.subr.mxu0 0.0
        %6501 = vmatpush1.msra.mxu0 0.0
        %6502 = vmatprep.subr.mxu0 0.0
        %6503 = vmatpush1.msra.mxu0 0.0
        %6504 = vmatprep.subr.mxu0 0.0
        %6505 = vmatpush1.msra.mxu0 0.0
        %6506 = vmatprep.subr.mxu0 0.0
        %6507 = vmatpush1.msra.mxu0 0.0
        %6508 = vmatprep.subr.mxu0 0.0
        %6509 = vmatpush1.msra.mxu0 0.0
        %6510 = vmatprep.subr.mxu0 0.0
        %6511 = vmatpush1.msra.mxu0 0.0
        %6512 = vmatprep.subr.mxu0 0.0
        %6513 = vmatpush1.msra.mxu0 0.0
        %6514 = vmatprep.mubr.f32.mxu0 0.0
        %v6515 = vand.u32 %v6284, 4294901760
        %v6516 = vsub.f32 %v6284, %v6515
        %6517 = vmatmul.mubr.f32.gmra.mrb[0].mxu0 %v6516
        %v6518 = vpop.f32.mrb[0].mxu0
        %v6519 = vadd.f32 %v6442, %v6518
        %v6520 = vpop.f32.mrb[0].mxu0
        %v6521 = vadd.f32 %v6444, %v6520
        %6522 = vdwg.mxu0
        %v6523 = vand.u32 %v6280, 4294901760
        %6524 = vmatprep.subr.mxu0 %v6523
        %v6525 = vand.u32 %v6279, 4294901760
        %6526 = vmatpush1.msra.mxu0 %v6525
        %6527 = vmatprep.subr.mxu0 0.0
        %6528 = vmatpush1.msra.mxu0 0.0
        %6529 = vmatprep.subr.mxu0 0.0
        %6530 = vmatpush1.msra.mxu0 0.0
        %6531 = vmatprep.subr.mxu0 0.0
        %6532 = vmatpush1.msra.mxu0 0.0
        %6533 = vmatprep.subr.mxu0 0.0
        %6534 = vmatpush1.msra.mxu0 0.0
        %6535 = vmatprep.subr.mxu0 0.0
        %6536 = vmatpush1.msra.mxu0 0.0
        %6537 = vmatprep.subr.mxu0 0.0
        %6538 = vmatpush1.msra.mxu0 0.0
        %6539 = vmatprep.subr.mxu0 0.0
        %6540 = vmatpush1.msra.mxu0 0.0
        %6541 = vmatprep.subr.mxu0 0.0
        %6542 = vmatpush1.msra.mxu0 0.0
        %6543 = vmatprep.subr.mxu0 0.0
        %6544 = vmatpush1.msra.mxu0 0.0
        %6545 = vmatprep.subr.mxu0 0.0
        %6546 = vmatpush1.msra.mxu0 0.0
        %6547 = vmatprep.subr.mxu0 0.0
        %6548 = vmatpush1.msra.mxu0 0.0
        %6549 = vmatprep.subr.mxu0 0.0
        %6550 = vmatpush1.msra.mxu0 0.0
        %6551 = vmatprep.subr.mxu0 0.0
        %6552 = vmatpush1.msra.mxu0 0.0
        %6553 = vmatprep.subr.mxu0 0.0
        %6554 = vmatpush1.msra.mxu0 0.0
        %6555 = vmatprep.subr.mxu0 0.0
        %6556 = vmatpush1.msra.mxu0 0.0
        %6557 = vmatprep.subr.mxu0 0.0
        %6558 = vmatpush1.msra.mxu0 0.0
        %6559 = vmatprep.subr.mxu0 0.0
        %6560 = vmatpush1.msra.mxu0 0.0
        %6561 = vmatprep.subr.mxu0 0.0
        %6562 = vmatpush1.msra.mxu0 0.0
        %6563 = vmatprep.subr.mxu0 0.0
        %6564 = vmatpush1.msra.mxu0 0.0
        %6565 = vmatprep.subr.mxu0 0.0
        %6566 = vmatpush1.msra.mxu0 0.0
        %6567 = vmatprep.subr.mxu0 0.0
        %6568 = vmatpush1.msra.mxu0 0.0
        %6569 = vmatprep.subr.mxu0 0.0
        %6570 = vmatpush1.msra.mxu0 0.0
        %6571 = vmatprep.subr.mxu0 0.0
        %6572 = vmatpush1.msra.mxu0 0.0
        %6573 = vmatprep.subr.mxu0 0.0
        %6574 = vmatpush1.msra.mxu0 0.0
        %6575 = vmatprep.subr.mxu0 0.0
        %6576 = vmatpush1.msra.mxu0 0.0
        %6577 = vmatprep.subr.mxu0 0.0
        %6578 = vmatpush1.msra.mxu0 0.0
        %6579 = vmatprep.subr.mxu0 0.0
        %6580 = vmatpush1.msra.mxu0 0.0
        %6581 = vmatprep.subr.mxu0 0.0
        %6582 = vmatpush1.msra.mxu0 0.0
        %6583 = vmatprep.subr.mxu0 0.0
        %6584 = vmatpush1.msra.mxu0 0.0
        %6585 = vmatprep.subr.mxu0 0.0
        %6586 = vmatpush1.msra.mxu0 0.0
        %6587 = vmatprep.subr.mxu0 0.0
        %6588 = vmatpush1.msra.mxu0 0.0
        %6589 = vmatprep.mubr.f32.mxu0 0.0
        %v6590 = vand.u32 %v6284, 4294901760
        %v6591 = vsub.f32 %v6284, %v6590
        %v6592 = vand.u32 %v6591, 4294901760
        %6593 = vmatmul.mubr.f32.gmra.mrb[0].mxu0 %v6592
        %v6594 = vpop.f32.mrb[0].mxu0
        %v6595 = vadd.f32 %v6519, %v6594
        %v6596 = vpop.f32.mrb[0].mxu0
        %v6597 = vadd.f32 %v6521, %v6596
        %6598 = vdwg.mxu0
        %v6599 = vand.u32 %v6280, 4294901760
        %v6600 = vsub.f32 %v6280, %v6599
        %v6601 = vand.u32 %v6600, 4294901760
        %6602 = vmatprep.subr.mxu0 %v6601
        %v6603 = vand.u32 %v6279, 4294901760
        %v6604 = vsub.f32 %v6279, %v6603
        %v6605 = vand.u32 %v6604, 4294901760
        %6606 = vmatpush1.msra.mxu0 %v6605
        %6607 = vmatprep.subr.mxu0 0.0
        %6608 = vmatpush1.msra.mxu0 0.0
        %6609 = vmatprep.subr.mxu0 0.0
        %6610 = vmatpush1.msra.mxu0 0.0
        %6611 = vmatprep.subr.mxu0 0.0
        %6612 = vmatpush1.msra.mxu0 0.0
        %6613 = vmatprep.subr.mxu0 0.0
        %6614 = vmatpush1.msra.mxu0 0.0
        %6615 = vmatprep.subr.mxu0 0.0
        %6616 = vmatpush1.msra.mxu0 0.0
        %6617 = vmatprep.subr.mxu0 0.0
        %6618 = vmatpush1.msra.mxu0 0.0
        %6619 = vmatprep.subr.mxu0 0.0
        %6620 = vmatpush1.msra.mxu0 0.0
        %6621 = vmatprep.subr.mxu0 0.0
        %6622 = vmatpush1.msra.mxu0 0.0
        %6623 = vmatprep.subr.mxu0 0.0
        %6624 = vmatpush1.msra.mxu0 0.0
        %6625 = vmatprep.subr.mxu0 0.0
        %6626 = vmatpush1.msra.mxu0 0.0
        %6627 = vmatprep.subr.mxu0 0.0
        %6628 = vmatpush1.msra.mxu0 0.0
        %6629 = vmatprep.subr.mxu0 0.0
        %6630 = vmatpush1.msra.mxu0 0.0
        %6631 = vmatprep.subr.mxu0 0.0
        %6632 = vmatpush1.msra.mxu0 0.0
        %6633 = vmatprep.subr.mxu0 0.0
        %6634 = vmatpush1.msra.mxu0 0.0
        %6635 = vmatprep.subr.mxu0 0.0
        %6636 = vmatpush1.msra.mxu0 0.0
        %6637 = vmatprep.subr.mxu0 0.0
        %6638 = vmatpush1.msra.mxu0 0.0
        %6639 = vmatprep.subr.mxu0 0.0
        %6640 = vmatpush1.msra.mxu0 0.0
        %6641 = vmatprep.subr.mxu0 0.0
        %6642 = vmatpush1.msra.mxu0 0.0
        %6643 = vmatprep.subr.mxu0 0.0
        %6644 = vmatpush1.msra.mxu0 0.0
        %6645 = vmatprep.subr.mxu0 0.0
        %6646 = vmatpush1.msra.mxu0 0.0
        %6647 = vmatprep.subr.mxu0 0.0
        %6648 = vmatpush1.msra.mxu0 0.0
        %6649 = vmatprep.subr.mxu0 0.0
        %6650 = vmatpush1.msra.mxu0 0.0
        %6651 = vmatprep.subr.mxu0 0.0
        %6652 = vmatpush1.msra.mxu0 0.0
        %6653 = vmatprep.subr.mxu0 0.0
        %6654 = vmatpush1.msra.mxu0 0.0
        %6655 = vmatprep.subr.mxu0 0.0
        %6656 = vmatpush1.msra.mxu0 0.0
        %6657 = vmatprep.subr.mxu0 0.0
        %6658 = vmatpush1.msra.mxu0 0.0
        %6659 = vmatprep.subr.mxu0 0.0
        %6660 = vmatpush1.msra.mxu0 0.0
        %6661 = vmatprep.subr.mxu0 0.0
        %6662 = vmatpush1.msra.mxu0 0.0
        %6663 = vmatprep.subr.mxu0 0.0
        %6664 = vmatpush1.msra.mxu0 0.0
        %6665 = vmatprep.subr.mxu0 0.0
        %6666 = vmatpush1.msra.mxu0 0.0
        %6667 = vmatprep.subr.mxu0 0.0
        %6668 = vmatpush1.msra.mxu0 0.0
        %6669 = vmatprep.mubr.f32.mxu0 0.0
        %v6670 = vand.u32 %v6284, 4294901760
        %6671 = vmatmul.mubr.f32.gmra.mrb[0].mxu0 %v6670
        %v6672 = vpop.f32.mrb[0].mxu0
        %v6673 = vadd.f32 %v6595, %v6672
        %v6674 = vpop.f32.mrb[0].mxu0
        %v6675 = vadd.f32 %v6597, %v6674
        %6676 = vdwg.mxu0
        %v6677 = vand.u32 %v6280, 4294901760
        %6678 = vmatprep.subr.mxu0 %v6677
        %v6679 = vand.u32 %v6279, 4294901760
        %6680 = vmatpush1.msra.mxu0 %v6679
        %6681 = vmatprep.subr.mxu0 0.0
        %6682 = vmatpush1.msra.mxu0 0.0
        %6683 = vmatprep.subr.mxu0 0.0
        %6684 = vmatpush1.msra.mxu0 0.0
        %6685 = vmatprep.subr.mxu0 0.0
        %6686 = vmatpush1.msra.mxu0 0.0
        %6687 = vmatprep.subr.mxu0 0.0
        %6688 = vmatpush1.msra.mxu0 0.0
        %6689 = vmatprep.subr.mxu0 0.0
        %6690 = vmatpush1.msra.mxu0 0.0
        %6691 = vmatprep.subr.mxu0 0.0
        %6692 = vmatpush1.msra.mxu0 0.0
        %6693 = vmatprep.subr.mxu0 0.0
        %6694 = vmatpush1.msra.mxu0 0.0
        %6695 = vmatprep.subr.mxu0 0.0
        %6696 = vmatpush1.msra.mxu0 0.0
        %6697 = vmatprep.subr.mxu0 0.0
        %6698 = vmatpush1.msra.mxu0 0.0
        %6699 = vmatprep.subr.mxu0 0.0
        %6700 = vmatpush1.msra.mxu0 0.0
        %6701 = vmatprep.subr.mxu0 0.0
        %6702 = vmatpush1.msra.mxu0 0.0
        %6703 = vmatprep.subr.mxu0 0.0
        %6704 = vmatpush1.msra.mxu0 0.0
        %6705 = vmatprep.subr.mxu0 0.0
        %6706 = vmatpush1.msra.mxu0 0.0
        %6707 = vmatprep.subr.mxu0 0.0
        %6708 = vmatpush1.msra.mxu0 0.0
        %6709 = vmatprep.subr.mxu0 0.0
        %6710 = vmatpush1.msra.mxu0 0.0
        %6711 = vmatprep.subr.mxu0 0.0
        %6712 = vmatpush1.msra.mxu0 0.0
        %6713 = vmatprep.subr.mxu0 0.0
        %6714 = vmatpush1.msra.mxu0 0.0
        %6715 = vmatprep.subr.mxu0 0.0
        %6716 = vmatpush1.msra.mxu0 0.0
        %6717 = vmatprep.subr.mxu0 0.0
        %6718 = vmatpush1.msra.mxu0 0.0
        %6719 = vmatprep.subr.mxu0 0.0
        %6720 = vmatpush1.msra.mxu0 0.0
        %6721 = vmatprep.subr.mxu0 0.0
        %6722 = vmatpush1.msra.mxu0 0.0
        %6723 = vmatprep.subr.mxu0 0.0
        %6724 = vmatpush1.msra.mxu0 0.0
        %6725 = vmatprep.subr.mxu0 0.0
        %6726 = vmatpush1.msra.mxu0 0.0
        %6727 = vmatprep.subr.mxu0 0.0
        %6728 = vmatpush1.msra.mxu0 0.0
        %6729 = vmatprep.subr.mxu0 0.0
        %6730 = vmatpush1.msra.mxu0 0.0
        %6731 = vmatprep.subr.mxu0 0.0
        %6732 = vmatpush1.msra.mxu0 0.0
        %6733 = vmatprep.subr.mxu0 0.0
        %6734 = vmatpush1.msra.mxu0 0.0
        %6735 = vmatprep.subr.mxu0 0.0
        %6736 = vmatpush1.msra.mxu0 0.0
        %6737 = vmatprep.subr.mxu0 0.0
        %6738 = vmatpush1.msra.mxu0 0.0
        %6739 = vmatprep.subr.mxu0 0.0
        %6740 = vmatpush1.msra.mxu0 0.0
        %6741 = vmatprep.subr.mxu0 0.0
        %6742 = vmatpush1.msra.mxu0 0.0
        %6743 = vmatprep.mubr.f32.mxu0 0.0
        %v6744 = vand.u32 %v6284, 4294901760
        %6745 = vmatmul.mubr.f32.gmra.mrb[0].mxu0 %v6744
        %v6746 = vpop.f32.mrb[0].mxu0
        %v6747 = vadd.f32 %v6673, %v6746
        %v6748 = vpop.f32.mrb[0].mxu0
        %v6749 = vadd.f32 %v6675, %v6748
        %6750 = vdwg.mxu0
        %v6751 = vadd.f32 %v6271, %v6747
        %v6752 = vadd.f32 %v6272, %v6749
        %s6753 = scalar_lea.vmem %s5, 32
        %v6754 = vld [vmem:[%s6753] sm:$0xff]
        %v6756 = vsel %vm354, %v6754, 0
        %v6758 = vand.u32 %v4837, 4294901760
        %6759 = vmatprep.subr.mxu0 %v6758
        %v6760 = vand.u32 %v4836, 4294901760
        %6761 = vmatpush1.msra.mxu0 %v6760
        %6762 = vmatprep.subr.mxu0 0.0
        %6763 = vmatpush1.msra.mxu0 0.0
        %6764 = vmatprep.subr.mxu0 0.0
        %6765 = vmatpush1.msra.mxu0 0.0
        %6766 = vmatprep.subr.mxu0 0.0
        %6767 = vmatpush1.msra.mxu0 0.0
        %6768 = vmatprep.subr.mxu0 0.0
        %6769 = vmatpush1.msra.mxu0 0.0
        %6770 = vmatprep.subr.mxu0 0.0
        %6771 = vmatpush1.msra.mxu0 0.0
        %6772 = vmatprep.subr.mxu0 0.0
        %6773 = vmatpush1.msra.mxu0 0.0
        %6774 = vmatprep.subr.mxu0 0.0
        %6775 = vmatpush1.msra.mxu0 0.0
        %6776 = vmatprep.subr.mxu0 0.0
        %6777 = vmatpush1.msra.mxu0 0.0
        %6778 = vmatprep.subr.mxu0 0.0
        %6779 = vmatpush1.msra.mxu0 0.0
        %6780 = vmatprep.subr.mxu0 0.0
        %6781 = vmatpush1.msra.mxu0 0.0
        %6782 = vmatprep.subr.mxu0 0.0
        %6783 = vmatpush1.msra.mxu0 0.0
        %6784 = vmatprep.subr.mxu0 0.0
        %6785 = vmatpush1.msra.mxu0 0.0
        %6786 = vmatprep.subr.mxu0 0.0
        %6787 = vmatpush1.msra.mxu0 0.0
        %6788 = vmatprep.subr.mxu0 0.0
        %6789 = vmatpush1.msra.mxu0 0.0
        %6790 = vmatprep.subr.mxu0 0.0
        %6791 = vmatpush1.msra.mxu0 0.0
        %6792 = vmatprep.subr.mxu0 0.0
        %6793 = vmatpush1.msra.mxu0 0.0
        %6794 = vmatprep.subr.mxu0 0.0
        %6795 = vmatpush1.msra.mxu0 0.0
        %6796 = vmatprep.subr.mxu0 0.0
        %6797 = vmatpush1.msra.mxu0 0.0
        %6798 = vmatprep.subr.mxu0 0.0
        %6799 = vmatpush1.msra.mxu0 0.0
        %6800 = vmatprep.subr.mxu0 0.0
        %6801 = vmatpush1.msra.mxu0 0.0
        %6802 = vmatprep.subr.mxu0 0.0
        %6803 = vmatpush1.msra.mxu0 0.0
        %6804 = vmatprep.subr.mxu0 0.0
        %6805 = vmatpush1.msra.mxu0 0.0
        %6806 = vmatprep.subr.mxu0 0.0
        %6807 = vmatpush1.msra.mxu0 0.0
        %6808 = vmatprep.subr.mxu0 0.0
        %6809 = vmatpush1.msra.mxu0 0.0
        %6810 = vmatprep.subr.mxu0 0.0
        %6811 = vmatpush1.msra.mxu0 0.0
        %6812 = vmatprep.subr.mxu0 0.0
        %6813 = vmatpush1.msra.mxu0 0.0
        %6814 = vmatprep.subr.mxu0 0.0
        %6815 = vmatpush1.msra.mxu0 0.0
        %6816 = vmatprep.subr.mxu0 0.0
        %6817 = vmatpush1.msra.mxu0 0.0
        %6818 = vmatprep.subr.mxu0 0.0
        %6819 = vmatpush1.msra.mxu0 0.0
        %6820 = vmatprep.subr.mxu0 0.0
        %6821 = vmatpush1.msra.mxu0 0.0
        %6822 = vmatprep.subr.mxu0 0.0
        %6823 = vmatpush1.msra.mxu0 0.0
        %6824 = vmatprep.mubr.f32.mxu0 0.0
        %v6825 = vand.u32 %v6756, 4294901760
        %v6826 = vsub.f32 %v6756, %v6825
        %v6827 = vand.u32 %v6826, 4294901760
        %v6828 = vsub.f32 %v6826, %v6827
        %v6829 = vand.u32 %v6828, 4294901760
        %6830 = vmatmul.mubr.f32.gmra.mrb[0].mxu0 %v6829
        %v6831 = vpop.f32.mrb[0].mxu0
        %v6832 = vadd.f32 0.0, %v6831
        %v6833 = vpop.f32.mrb[0].mxu0
        %v6834 = vadd.f32 0.0, %v6833
        %6835 = vdwg.mxu0
        %v6836 = vand.u32 %v4837, 4294901760
        %v6837 = vsub.f32 %v4837, %v6836
        %v6838 = vand.u32 %v6837, 4294901760
        %v6839 = vsub.f32 %v6837, %v6838
        %v6840 = vand.u32 %v6839, 4294901760
        %6841 = vmatprep.subr.mxu0 %v6840
        %v6842 = vand.u32 %v4836, 4294901760
        %v6843 = vsub.f32 %v4836, %v6842
        %v6844 = vand.u32 %v6843, 4294901760
        %v6845 = vsub.f32 %v6843, %v6844
        %v6846 = vand.u32 %v6845, 4294901760
        %6847 = vmatpush1.msra.mxu0 %v6846
        %6848 = vmatprep.subr.mxu0 0.0
        %6849 = vmatpush1.msra.mxu0 0.0
        %6850 = vmatprep.subr.mxu0 0.0
        %6851 = vmatpush1.msra.mxu0 0.0
        %6852 = vmatprep.subr.mxu0 0.0
        %6853 = vmatpush1.msra.mxu0 0.0
        %6854 = vmatprep.subr.mxu0 0.0
        %6855 = vmatpush1.msra.mxu0 0.0
        %6856 = vmatprep.subr.mxu0 0.0
        %6857 = vmatpush1.msra.mxu0 0.0
        %6858 = vmatprep.subr.mxu0 0.0
        %6859 = vmatpush1.msra.mxu0 0.0
        %6860 = vmatprep.subr.mxu0 0.0
        %6861 = vmatpush1.msra.mxu0 0.0
        %6862 = vmatprep.subr.mxu0 0.0
        %6863 = vmatpush1.msra.mxu0 0.0
        %6864 = vmatprep.subr.mxu0 0.0
        %6865 = vmatpush1.msra.mxu0 0.0
        %6866 = vmatprep.subr.mxu0 0.0
        %6867 = vmatpush1.msra.mxu0 0.0
        %6868 = vmatprep.subr.mxu0 0.0
        %6869 = vmatpush1.msra.mxu0 0.0
        %6870 = vmatprep.subr.mxu0 0.0
        %6871 = vmatpush1.msra.mxu0 0.0
        %6872 = vmatprep.subr.mxu0 0.0
        %6873 = vmatpush1.msra.mxu0 0.0
        %6874 = vmatprep.subr.mxu0 0.0
        %6875 = vmatpush1.msra.mxu0 0.0
        %6876 = vmatprep.subr.mxu0 0.0
        %6877 = vmatpush1.msra.mxu0 0.0
        %6878 = vmatprep.subr.mxu0 0.0
        %6879 = vmatpush1.msra.mxu0 0.0
        %6880 = vmatprep.subr.mxu0 0.0
        %6881 = vmatpush1.msra.mxu0 0.0
        %6882 = vmatprep.subr.mxu0 0.0
        %6883 = vmatpush1.msra.mxu0 0.0
        %6884 = vmatprep.subr.mxu0 0.0
        %6885 = vmatpush1.msra.mxu0 0.0
        %6886 = vmatprep.subr.mxu0 0.0
        %6887 = vmatpush1.msra.mxu0 0.0
        %6888 = vmatprep.subr.mxu0 0.0
        %6889 = vmatpush1.msra.mxu0 0.0
        %6890 = vmatprep.subr.mxu0 0.0
        %6891 = vmatpush1.msra.mxu0 0.0
        %6892 = vmatprep.subr.mxu0 0.0
        %6893 = vmatpush1.msra.mxu0 0.0
        %6894 = vmatprep.subr.mxu0 0.0
        %6895 = vmatpush1.msra.mxu0 0.0
        %6896 = vmatprep.subr.mxu0 0.0
        %6897 = vmatpush1.msra.mxu0 0.0
        %6898 = vmatprep.subr.mxu0 0.0
        %6899 = vmatpush1.msra.mxu0 0.0
        %6900 = vmatprep.subr.mxu0 0.0
        %6901 = vmatpush1.msra.mxu0 0.0
        %6902 = vmatprep.subr.mxu0 0.0
        %6903 = vmatpush1.msra.mxu0 0.0
        %6904 = vmatprep.subr.mxu0 0.0
        %6905 = vmatpush1.msra.mxu0 0.0
        %6906 = vmatprep.subr.mxu0 0.0
        %6907 = vmatpush1.msra.mxu0 0.0
        %6908 = vmatprep.subr.mxu0 0.0
        %6909 = vmatpush1.msra.mxu0 0.0
        %6910 = vmatprep.mubr.f32.mxu0 0.0
        %v6911 = vand.u32 %v6756, 4294901760
        %6912 = vmatmul.mubr.f32.gmra.mrb[0].mxu0 %v6911
        %v6913 = vpop.f32.mrb[0].mxu0
        %v6914 = vadd.f32 %v6832, %v6913
        %v6915 = vpop.f32.mrb[0].mxu0
        %v6916 = vadd.f32 %v6834, %v6915
        %6917 = vdwg.mxu0
        %v6918 = vand.u32 %v4837, 4294901760
        %v6919 = vsub.f32 %v4837, %v6918
        %6920 = vmatprep.subr.mxu0 %v6919
        %v6921 = vand.u32 %v4836, 4294901760
        %v6922 = vsub.f32 %v4836, %v6921
        %6923 = vmatpush1.msra.mxu0 %v6922
        %6924 = vmatprep.subr.mxu0 0.0
        %6925 = vmatpush1.msra.mxu0 0.0
        %6926 = vmatprep.subr.mxu0 0.0
        %6927 = vmatpush1.msra.mxu0 0.0
        %6928 = vmatprep.subr.mxu0 0.0
        %6929 = vmatpush1.msra.mxu0 0.0
        %6930 = vmatprep.subr.mxu0 0.0
        %6931 = vmatpush1.msra.mxu0 0.0
        %6932 = vmatprep.subr.mxu0 0.0
        %6933 = vmatpush1.msra.mxu0 0.0
        %6934 = vmatprep.subr.mxu0 0.0
        %6935 = vmatpush1.msra.mxu0 0.0
        %6936 = vmatprep.subr.mxu0 0.0
        %6937 = vmatpush1.msra.mxu0 0.0
        %6938 = vmatprep.subr.mxu0 0.0
        %6939 = vmatpush1.msra.mxu0 0.0
        %6940 = vmatprep.subr.mxu0 0.0
        %6941 = vmatpush1.msra.mxu0 0.0
        %6942 = vmatprep.subr.mxu0 0.0
        %6943 = vmatpush1.msra.mxu0 0.0
        %6944 = vmatprep.subr.mxu0 0.0
        %6945 = vmatpush1.msra.mxu0 0.0
        %6946 = vmatprep.subr.mxu0 0.0
        %6947 = vmatpush1.msra.mxu0 0.0
        %6948 = vmatprep.subr.mxu0 0.0
        %6949 = vmatpush1.msra.mxu0 0.0
        %6950 = vmatprep.subr.mxu0 0.0
        %6951 = vmatpush1.msra.mxu0 0.0
        %6952 = vmatprep.subr.mxu0 0.0
        %6953 = vmatpush1.msra.mxu0 0.0
        %6954 = vmatprep.subr.mxu0 0.0
        %6955 = vmatpush1.msra.mxu0 0.0
        %6956 = vmatprep.subr.mxu0 0.0
        %6957 = vmatpush1.msra.mxu0 0.0
        %6958 = vmatprep.subr.mxu0 0.0
        %6959 = vmatpush1.msra.mxu0 0.0
        %6960 = vmatprep.subr.mxu0 0.0
        %6961 = vmatpush1.msra.mxu0 0.0
        %6962 = vmatprep.subr.mxu0 0.0
        %6963 = vmatpush1.msra.mxu0 0.0
        %6964 = vmatprep.subr.mxu0 0.0
        %6965 = vmatpush1.msra.mxu0 0.0
        %6966 = vmatprep.subr.mxu0 0.0
        %6967 = vmatpush1.msra.mxu0 0.0
        %6968 = vmatprep.subr.mxu0 0.0
        %6969 = vmatpush1.msra.mxu0 0.0
        %6970 = vmatprep.subr.mxu0 0.0
        %6971 = vmatpush1.msra.mxu0 0.0
        %6972 = vmatprep.subr.mxu0 0.0
        %6973 = vmatpush1.msra.mxu0 0.0
        %6974 = vmatprep.subr.mxu0 0.0
        %6975 = vmatpush1.msra.mxu0 0.0
        %6976 = vmatprep.subr.mxu0 0.0
        %6977 = vmatpush1.msra.mxu0 0.0
        %6978 = vmatprep.subr.mxu0 0.0
        %6979 = vmatpush1.msra.mxu0 0.0
        %6980 = vmatprep.subr.mxu0 0.0
        %6981 = vmatpush1.msra.mxu0 0.0
        %6982 = vmatprep.subr.mxu0 0.0
        %6983 = vmatpush1.msra.mxu0 0.0
        %6984 = vmatprep.subr.mxu0 0.0
        %6985 = vmatpush1.msra.mxu0 0.0
        %6986 = vmatprep.mubr.f32.mxu0 0.0
        %v6987 = vand.u32 %v6756, 4294901760
        %v6988 = vsub.f32 %v6756, %v6987
        %6989 = vmatmul.mubr.f32.gmra.mrb[0].mxu0 %v6988
        %v6990 = vpop.f32.mrb[0].mxu0
        %v6991 = vadd.f32 %v6914, %v6990
        %v6992 = vpop.f32.mrb[0].mxu0
        %v6993 = vadd.f32 %v6916, %v6992
        %6994 = vdwg.mxu0
        %v6995 = vand.u32 %v4837, 4294901760
        %6996 = vmatprep.subr.mxu0 %v6995
        %v6997 = vand.u32 %v4836, 4294901760
        %6998 = vmatpush1.msra.mxu0 %v6997
        %6999 = vmatprep.subr.mxu0 0.0
        %7000 = vmatpush1.msra.mxu0 0.0
        %7001 = vmatprep.subr.mxu0 0.0
        %7002 = vmatpush1.msra.mxu0 0.0
        %7003 = vmatprep.subr.mxu0 0.0
        %7004 = vmatpush1.msra.mxu0 0.0
        %7005 = vmatprep.subr.mxu0 0.0
        %7006 = vmatpush1.msra.mxu0 0.0
        %7007 = vmatprep.subr.mxu0 0.0
        %7008 = vmatpush1.msra.mxu0 0.0
        %7009 = vmatprep.subr.mxu0 0.0
        %7010 = vmatpush1.msra.mxu0 0.0
        %7011 = vmatprep.subr.mxu0 0.0
        %7012 = vmatpush1.msra.mxu0 0.0
        %7013 = vmatprep.subr.mxu0 0.0
        %7014 = vmatpush1.msra.mxu0 0.0
        %7015 = vmatprep.subr.mxu0 0.0
        %7016 = vmatpush1.msra.mxu0 0.0
        %7017 = vmatprep.subr.mxu0 0.0
        %7018 = vmatpush1.msra.mxu0 0.0
        %7019 = vmatprep.subr.mxu0 0.0
        %7020 = vmatpush1.msra.mxu0 0.0
        %7021 = vmatprep.subr.mxu0 0.0
        %7022 = vmatpush1.msra.mxu0 0.0
        %7023 = vmatprep.subr.mxu0 0.0
        %7024 = vmatpush1.msra.mxu0 0.0
        %7025 = vmatprep.subr.mxu0 0.0
        %7026 = vmatpush1.msra.mxu0 0.0
        %7027 = vmatprep.subr.mxu0 0.0
        %7028 = vmatpush1.msra.mxu0 0.0
        %7029 = vmatprep.subr.mxu0 0.0
        %7030 = vmatpush1.msra.mxu0 0.0
        %7031 = vmatprep.subr.mxu0 0.0
        %7032 = vmatpush1.msra.mxu0 0.0
        %7033 = vmatprep.subr.mxu0 0.0
        %7034 = vmatpush1.msra.mxu0 0.0
        %7035 = vmatprep.subr.mxu0 0.0
        %7036 = vmatpush1.msra.mxu0 0.0
        %7037 = vmatprep.subr.mxu0 0.0
        %7038 = vmatpush1.msra.mxu0 0.0
        %7039 = vmatprep.subr.mxu0 0.0
        %7040 = vmatpush1.msra.mxu0 0.0
        %7041 = vmatprep.subr.mxu0 0.0
        %7042 = vmatpush1.msra.mxu0 0.0
        %7043 = vmatprep.subr.mxu0 0.0
        %7044 = vmatpush1.msra.mxu0 0.0
        %7045 = vmatprep.subr.mxu0 0.0
        %7046 = vmatpush1.msra.mxu0 0.0
        %7047 = vmatprep.subr.mxu0 0.0
        %7048 = vmatpush1.msra.mxu0 0.0
        %7049 = vmatprep.subr.mxu0 0.0
        %7050 = vmatpush1.msra.mxu0 0.0
        %7051 = vmatprep.subr.mxu0 0.0
        %7052 = vmatpush1.msra.mxu0 0.0
        %7053 = vmatprep.subr.mxu0 0.0
        %7054 = vmatpush1.msra.mxu0 0.0
        %7055 = vmatprep.subr.mxu0 0.0
        %7056 = vmatpush1.msra.mxu0 0.0
        %7057 = vmatprep.subr.mxu0 0.0
        %7058 = vmatpush1.msra.mxu0 0.0
        %7059 = vmatprep.subr.mxu0 0.0
        %7060 = vmatpush1.msra.mxu0 0.0
        %7061 = vmatprep.mubr.f32.mxu0 0.0
        %v7062 = vand.u32 %v6756, 4294901760
        %v7063 = vsub.f32 %v6756, %v7062
        %v7064 = vand.u32 %v7063, 4294901760
        %7065 = vmatmul.mubr.f32.gmra.mrb[0].mxu0 %v7064
        %v7066 = vpop.f32.mrb[0].mxu0
        %v7067 = vadd.f32 %v6991, %v7066
        %v7068 = vpop.f32.mrb[0].mxu0
        %v7069 = vadd.f32 %v6993, %v7068
        %7070 = vdwg.mxu0
        %v7071 = vand.u32 %v4837, 4294901760
        %v7072 = vsub.f32 %v4837, %v7071
        %v7073 = vand.u32 %v7072, 4294901760
        %7074 = vmatprep.subr.mxu0 %v7073
        %v7075 = vand.u32 %v4836, 4294901760
        %v7076 = vsub.f32 %v4836, %v7075
        %v7077 = vand.u32 %v7076, 4294901760
        %7078 = vmatpush1.msra.mxu0 %v7077
        %7079 = vmatprep.subr.mxu0 0.0
        %7080 = vmatpush1.msra.mxu0 0.0
        %7081 = vmatprep.subr.mxu0 0.0
        %7082 = vmatpush1.msra.mxu0 0.0
        %7083 = vmatprep.subr.mxu0 0.0
        %7084 = vmatpush1.msra.mxu0 0.0
        %7085 = vmatprep.subr.mxu0 0.0
        %7086 = vmatpush1.msra.mxu0 0.0
        %7087 = vmatprep.subr.mxu0 0.0
        %7088 = vmatpush1.msra.mxu0 0.0
        %7089 = vmatprep.subr.mxu0 0.0
        %7090 = vmatpush1.msra.mxu0 0.0
        %7091 = vmatprep.subr.mxu0 0.0
        %7092 = vmatpush1.msra.mxu0 0.0
        %7093 = vmatprep.subr.mxu0 0.0
        %7094 = vmatpush1.msra.mxu0 0.0
        %7095 = vmatprep.subr.mxu0 0.0
        %7096 = vmatpush1.msra.mxu0 0.0
        %7097 = vmatprep.subr.mxu0 0.0
        %7098 = vmatpush1.msra.mxu0 0.0
        %7099 = vmatprep.subr.mxu0 0.0
        %7100 = vmatpush1.msra.mxu0 0.0
        %7101 = vmatprep.subr.mxu0 0.0
        %7102 = vmatpush1.msra.mxu0 0.0
        %7103 = vmatprep.subr.mxu0 0.0
        %7104 = vmatpush1.msra.mxu0 0.0
        %7105 = vmatprep.subr.mxu0 0.0
        %7106 = vmatpush1.msra.mxu0 0.0
        %7107 = vmatprep.subr.mxu0 0.0
        %7108 = vmatpush1.msra.mxu0 0.0
        %7109 = vmatprep.subr.mxu0 0.0
        %7110 = vmatpush1.msra.mxu0 0.0
        %7111 = vmatprep.subr.mxu0 0.0
        %7112 = vmatpush1.msra.mxu0 0.0
        %7113 = vmatprep.subr.mxu0 0.0
        %7114 = vmatpush1.msra.mxu0 0.0
        %7115 = vmatprep.subr.mxu0 0.0
        %7116 = vmatpush1.msra.mxu0 0.0
        %7117 = vmatprep.subr.mxu0 0.0
        %7118 = vmatpush1.msra.mxu0 0.0
        %7119 = vmatprep.subr.mxu0 0.0
        %7120 = vmatpush1.msra.mxu0 0.0
        %7121 = vmatprep.subr.mxu0 0.0
        %7122 = vmatpush1.msra.mxu0 0.0
        %7123 = vmatprep.subr.mxu0 0.0
        %7124 = vmatpush1.msra.mxu0 0.0
        %7125 = vmatprep.subr.mxu0 0.0
        %7126 = vmatpush1.msra.mxu0 0.0
        %7127 = vmatprep.subr.mxu0 0.0
        %7128 = vmatpush1.msra.mxu0 0.0
        %7129 = vmatprep.subr.mxu0 0.0
        %7130 = vmatpush1.msra.mxu0 0.0
        %7131 = vmatprep.subr.mxu0 0.0
        %7132 = vmatpush1.msra.mxu0 0.0
        %7133 = vmatprep.subr.mxu0 0.0
        %7134 = vmatpush1.msra.mxu0 0.0
        %7135 = vmatprep.subr.mxu0 0.0
        %7136 = vmatpush1.msra.mxu0 0.0
        %7137 = vmatprep.subr.mxu0 0.0
        %7138 = vmatpush1.msra.mxu0 0.0
        %7139 = vmatprep.subr.mxu0 0.0
        %7140 = vmatpush1.msra.mxu0 0.0
        %7141 = vmatprep.mubr.f32.mxu0 0.0
        %v7142 = vand.u32 %v6756, 4294901760
        %7143 = vmatmul.mubr.f32.gmra.mrb[0].mxu0 %v7142
        %v7144 = vpop.f32.mrb[0].mxu0
        %v7145 = vadd.f32 %v7067, %v7144
        %v7146 = vpop.f32.mrb[0].mxu0
        %v7147 = vadd.f32 %v7069, %v7146
        %7148 = vdwg.mxu0
        %v7149 = vand.u32 %v4837, 4294901760
        %7150 = vmatprep.subr.mxu0 %v7149
        %v7151 = vand.u32 %v4836, 4294901760
        %7152 = vmatpush1.msra.mxu0 %v7151
        %7153 = vmatprep.subr.mxu0 0.0
        %7154 = vmatpush1.msra.mxu0 0.0
        %7155 = vmatprep.subr.mxu0 0.0
        %7156 = vmatpush1.msra.mxu0 0.0
        %7157 = vmatprep.subr.mxu0 0.0
        %7158 = vmatpush1.msra.mxu0 0.0
        %7159 = vmatprep.subr.mxu0 0.0
        %7160 = vmatpush1.msra.mxu0 0.0
        %7161 = vmatprep.subr.mxu0 0.0
        %7162 = vmatpush1.msra.mxu0 0.0
        %7163 = vmatprep.subr.mxu0 0.0
        %7164 = vmatpush1.msra.mxu0 0.0
        %7165 = vmatprep.subr.mxu0 0.0
        %7166 = vmatpush1.msra.mxu0 0.0
        %7167 = vmatprep.subr.mxu0 0.0
        %7168 = vmatpush1.msra.mxu0 0.0
        %7169 = vmatprep.subr.mxu0 0.0
        %7170 = vmatpush1.msra.mxu0 0.0
        %7171 = vmatprep.subr.mxu0 0.0
        %7172 = vmatpush1.msra.mxu0 0.0
        %7173 = vmatprep.subr.mxu0 0.0
        %7174 = vmatpush1.msra.mxu0 0.0
        %7175 = vmatprep.subr.mxu0 0.0
        %7176 = vmatpush1.msra.mxu0 0.0
        %7177 = vmatprep.subr.mxu0 0.0
        %7178 = vmatpush1.msra.mxu0 0.0
        %7179 = vmatprep.subr.mxu0 0.0
        %7180 = vmatpush1.msra.mxu0 0.0
        %7181 = vmatprep.subr.mxu0 0.0
        %7182 = vmatpush1.msra.mxu0 0.0
        %7183 = vmatprep.subr.mxu0 0.0
        %7184 = vmatpush1.msra.mxu0 0.0
        %7185 = vmatprep.subr.mxu0 0.0
        %7186 = vmatpush1.msra.mxu0 0.0
        %7187 = vmatprep.subr.mxu0 0.0
        %7188 = vmatpush1.msra.mxu0 0.0
        %7189 = vmatprep.subr.mxu0 0.0
        %7190 = vmatpush1.msra.mxu0 0.0
        %7191 = vmatprep.subr.mxu0 0.0
        %7192 = vmatpush1.msra.mxu0 0.0
        %7193 = vmatprep.subr.mxu0 0.0
        %7194 = vmatpush1.msra.mxu0 0.0
        %7195 = vmatprep.subr.mxu0 0.0
        %7196 = vmatpush1.msra.mxu0 0.0
        %7197 = vmatprep.subr.mxu0 0.0
        %7198 = vmatpush1.msra.mxu0 0.0
        %7199 = vmatprep.subr.mxu0 0.0
        %7200 = vmatpush1.msra.mxu0 0.0
        %7201 = vmatprep.subr.mxu0 0.0
        %7202 = vmatpush1.msra.mxu0 0.0
        %7203 = vmatprep.subr.mxu0 0.0
        %7204 = vmatpush1.msra.mxu0 0.0
        %7205 = vmatprep.subr.mxu0 0.0
        %7206 = vmatpush1.msra.mxu0 0.0
        %7207 = vmatprep.subr.mxu0 0.0
        %7208 = vmatpush1.msra.mxu0 0.0
        %7209 = vmatprep.subr.mxu0 0.0
        %7210 = vmatpush1.msra.mxu0 0.0
        %7211 = vmatprep.subr.mxu0 0.0
        %7212 = vmatpush1.msra.mxu0 0.0
        %7213 = vmatprep.subr.mxu0 0.0
        %7214 = vmatpush1.msra.mxu0 0.0
        %7215 = vmatprep.mubr.f32.mxu0 0.0
        %v7216 = vand.u32 %v6756, 4294901760
        %7217 = vmatmul.mubr.f32.gmra.mrb[0].mxu0 %v7216
        %v7218 = vpop.f32.mrb[0].mxu0
        %v7219 = vadd.f32 %v7145, %v7218
        %v7220 = vpop.f32.mrb[0].mxu0
        %v7221 = vadd.f32 %v7147, %v7220
        %7222 = vdwg.mxu0
        %v7223 = vadd.f32 %v6751, %v7219
        %v7224 = vadd.f32 %v6752, %v7221
        %7225 = vrot.lane.b32.xlu0 %v4836, 127
        %v7226 = vpop.permute.xlu0 %7225
        %7227 = vrot.lane.b32.xlu0 %v4837, 127
        %v7228 = vpop.permute.xlu0 %7227
        %v7229 = vsel %vm2755, %v7226, %v7228
        %v7230 = vsel %vm2755, %v7228, %v7226
        %v7231 = vmul.f32 %v7229, %v2764
        %v7232 = vmul.f32 %v7230, %v2768
        %s7233 = scalar_lea.vmem %s5, 40
        %v7234 = vld [vmem:[%s7233] sm:$0xff]
        %v7236 = vsel %vm354, %v7234, 0
        %v7238 = vand.u32 %v7232, 4294901760
        %7239 = vmatprep.subr.mxu0 %v7238
        %v7240 = vand.u32 %v7231, 4294901760
        %7241 = vmatpush1.msra.mxu0 %v7240
        %7242 = vmatprep.subr.mxu0 0.0
        %7243 = vmatpush1.msra.mxu0 0.0
        %7244 = vmatprep.subr.mxu0 0.0
        %7245 = vmatpush1.msra.mxu0 0.0
        %7246 = vmatprep.subr.mxu0 0.0
        %7247 = vmatpush1.msra.mxu0 0.0
        %7248 = vmatprep.subr.mxu0 0.0
        %7249 = vmatpush1.msra.mxu0 0.0
        %7250 = vmatprep.subr.mxu0 0.0
        %7251 = vmatpush1.msra.mxu0 0.0
        %7252 = vmatprep.subr.mxu0 0.0
        %7253 = vmatpush1.msra.mxu0 0.0
        %7254 = vmatprep.subr.mxu0 0.0
        %7255 = vmatpush1.msra.mxu0 0.0
        %7256 = vmatprep.subr.mxu0 0.0
        %7257 = vmatpush1.msra.mxu0 0.0
        %7258 = vmatprep.subr.mxu0 0.0
        %7259 = vmatpush1.msra.mxu0 0.0
        %7260 = vmatprep.subr.mxu0 0.0
        %7261 = vmatpush1.msra.mxu0 0.0
        %7262 = vmatprep.subr.mxu0 0.0
        %7263 = vmatpush1.msra.mxu0 0.0
        %7264 = vmatprep.subr.mxu0 0.0
        %7265 = vmatpush1.msra.mxu0 0.0
        %7266 = vmatprep.subr.mxu0 0.0
        %7267 = vmatpush1.msra.mxu0 0.0
        %7268 = vmatprep.subr.mxu0 0.0
        %7269 = vmatpush1.msra.mxu0 0.0
        %7270 = vmatprep.subr.mxu0 0.0
        %7271 = vmatpush1.msra.mxu0 0.0
        %7272 = vmatprep.subr.mxu0 0.0
        %7273 = vmatpush1.msra.mxu0 0.0
        %7274 = vmatprep.subr.mxu0 0.0
        %7275 = vmatpush1.msra.mxu0 0.0
        %7276 = vmatprep.subr.mxu0 0.0
        %7277 = vmatpush1.msra.mxu0 0.0
        %7278 = vmatprep.subr.mxu0 0.0
        %7279 = vmatpush1.msra.mxu0 0.0
        %7280 = vmatprep.subr.mxu0 0.0
        %7281 = vmatpush1.msra.mxu0 0.0
        %7282 = vmatprep.subr.mxu0 0.0
        %7283 = vmatpush1.msra.mxu0 0.0
        %7284 = vmatprep.subr.mxu0 0.0
        %7285 = vmatpush1.msra.mxu0 0.0
        %7286 = vmatprep.subr.mxu0 0.0
        %7287 = vmatpush1.msra.mxu0 0.0
        %7288 = vmatprep.subr.mxu0 0.0
        %7289 = vmatpush1.msra.mxu0 0.0
        %7290 = vmatprep.subr.mxu0 0.0
        %7291 = vmatpush1.msra.mxu0 0.0
        %7292 = vmatprep.subr.mxu0 0.0
        %7293 = vmatpush1.msra.mxu0 0.0
        %7294 = vmatprep.subr.mxu0 0.0
        %7295 = vmatpush1.msra.mxu0 0.0
        %7296 = vmatprep.subr.mxu0 0.0
        %7297 = vmatpush1.msra.mxu0 0.0
        %7298 = vmatprep.subr.mxu0 0.0
        %7299 = vmatpush1.msra.mxu0 0.0
        %7300 = vmatprep.subr.mxu0 0.0
        %7301 = vmatpush1.msra.mxu0 0.0
        %7302 = vmatprep.subr.mxu0 0.0
        %7303 = vmatpush1.msra.mxu0 0.0
        %7304 = vmatprep.mubr.f32.mxu0 0.0
        %v7305 = vand.u32 %v7236, 4294901760
        %v7306 = vsub.f32 %v7236, %v7305
        %v7307 = vand.u32 %v7306, 4294901760
        %v7308 = vsub.f32 %v7306, %v7307
        %v7309 = vand.u32 %v7308, 4294901760
        %7310 = vmatmul.mubr.f32.gmra.mrb[0].mxu0 %v7309
        %v7311 = vpop.f32.mrb[0].mxu0
        %v7312 = vadd.f32 0.0, %v7311
        %v7313 = vpop.f32.mrb[0].mxu0
        %v7314 = vadd.f32 0.0, %v7313
        %7315 = vdwg.mxu0
        %v7316 = vand.u32 %v7232, 4294901760
        %v7317 = vsub.f32 %v7232, %v7316
        %v7318 = vand.u32 %v7317, 4294901760
        %v7319 = vsub.f32 %v7317, %v7318
        %v7320 = vand.u32 %v7319, 4294901760
        %7321 = vmatprep.subr.mxu0 %v7320
        %v7322 = vand.u32 %v7231, 4294901760
        %v7323 = vsub.f32 %v7231, %v7322
        %v7324 = vand.u32 %v7323, 4294901760
        %v7325 = vsub.f32 %v7323, %v7324
        %v7326 = vand.u32 %v7325, 4294901760
        %7327 = vmatpush1.msra.mxu0 %v7326
        %7328 = vmatprep.subr.mxu0 0.0
        %7329 = vmatpush1.msra.mxu0 0.0
        %7330 = vmatprep.subr.mxu0 0.0
        %7331 = vmatpush1.msra.mxu0 0.0
        %7332 = vmatprep.subr.mxu0 0.0
        %7333 = vmatpush1.msra.mxu0 0.0
        %7334 = vmatprep.subr.mxu0 0.0
        %7335 = vmatpush1.msra.mxu0 0.0
        %7336 = vmatprep.subr.mxu0 0.0
        %7337 = vmatpush1.msra.mxu0 0.0
        %7338 = vmatprep.subr.mxu0 0.0
        %7339 = vmatpush1.msra.mxu0 0.0
        %7340 = vmatprep.subr.mxu0 0.0
        %7341 = vmatpush1.msra.mxu0 0.0
        %7342 = vmatprep.subr.mxu0 0.0
        %7343 = vmatpush1.msra.mxu0 0.0
        %7344 = vmatprep.subr.mxu0 0.0
        %7345 = vmatpush1.msra.mxu0 0.0
        %7346 = vmatprep.subr.mxu0 0.0
        %7347 = vmatpush1.msra.mxu0 0.0
        %7348 = vmatprep.subr.mxu0 0.0
        %7349 = vmatpush1.msra.mxu0 0.0
        %7350 = vmatprep.subr.mxu0 0.0
        %7351 = vmatpush1.msra.mxu0 0.0
        %7352 = vmatprep.subr.mxu0 0.0
        %7353 = vmatpush1.msra.mxu0 0.0
        %7354 = vmatprep.subr.mxu0 0.0
        %7355 = vmatpush1.msra.mxu0 0.0
        %7356 = vmatprep.subr.mxu0 0.0
        %7357 = vmatpush1.msra.mxu0 0.0
        %7358 = vmatprep.subr.mxu0 0.0
        %7359 = vmatpush1.msra.mxu0 0.0
        %7360 = vmatprep.subr.mxu0 0.0
        %7361 = vmatpush1.msra.mxu0 0.0
        %7362 = vmatprep.subr.mxu0 0.0
        %7363 = vmatpush1.msra.mxu0 0.0
        %7364 = vmatprep.subr.mxu0 0.0
        %7365 = vmatpush1.msra.mxu0 0.0
        %7366 = vmatprep.subr.mxu0 0.0
        %7367 = vmatpush1.msra.mxu0 0.0
        %7368 = vmatprep.subr.mxu0 0.0
        %7369 = vmatpush1.msra.mxu0 0.0
        %7370 = vmatprep.subr.mxu0 0.0
        %7371 = vmatpush1.msra.mxu0 0.0
        %7372 = vmatprep.subr.mxu0 0.0
        %7373 = vmatpush1.msra.mxu0 0.0
        %7374 = vmatprep.subr.mxu0 0.0
        %7375 = vmatpush1.msra.mxu0 0.0
        %7376 = vmatprep.subr.mxu0 0.0
        %7377 = vmatpush1.msra.mxu0 0.0
        %7378 = vmatprep.subr.mxu0 0.0
        %7379 = vmatpush1.msra.mxu0 0.0
        %7380 = vmatprep.subr.mxu0 0.0
        %7381 = vmatpush1.msra.mxu0 0.0
        %7382 = vmatprep.subr.mxu0 0.0
        %7383 = vmatpush1.msra.mxu0 0.0
        %7384 = vmatprep.subr.mxu0 0.0
        %7385 = vmatpush1.msra.mxu0 0.0
        %7386 = vmatprep.subr.mxu0 0.0
        %7387 = vmatpush1.msra.mxu0 0.0
        %7388 = vmatprep.subr.mxu0 0.0
        %7389 = vmatpush1.msra.mxu0 0.0
        %7390 = vmatprep.mubr.f32.mxu0 0.0
        %v7391 = vand.u32 %v7236, 4294901760
        %7392 = vmatmul.mubr.f32.gmra.mrb[0].mxu0 %v7391
        %v7393 = vpop.f32.mrb[0].mxu0
        %v7394 = vadd.f32 %v7312, %v7393
        %v7395 = vpop.f32.mrb[0].mxu0
        %v7396 = vadd.f32 %v7314, %v7395
        %7397 = vdwg.mxu0
        %v7398 = vand.u32 %v7232, 4294901760
        %v7399 = vsub.f32 %v7232, %v7398
        %7400 = vmatprep.subr.mxu0 %v7399
        %v7401 = vand.u32 %v7231, 4294901760
        %v7402 = vsub.f32 %v7231, %v7401
        %7403 = vmatpush1.msra.mxu0 %v7402
        %7404 = vmatprep.subr.mxu0 0.0
        %7405 = vmatpush1.msra.mxu0 0.0
        %7406 = vmatprep.subr.mxu0 0.0
        %7407 = vmatpush1.msra.mxu0 0.0
        %7408 = vmatprep.subr.mxu0 0.0
        %7409 = vmatpush1.msra.mxu0 0.0
        %7410 = vmatprep.subr.mxu0 0.0
        %7411 = vmatpush1.msra.mxu0 0.0
        %7412 = vmatprep.subr.mxu0 0.0
        %7413 = vmatpush1.msra.mxu0 0.0
        %7414 = vmatprep.subr.mxu0 0.0
        %7415 = vmatpush1.msra.mxu0 0.0
        %7416 = vmatprep.subr.mxu0 0.0
        %7417 = vmatpush1.msra.mxu0 0.0
        %7418 = vmatprep.subr.mxu0 0.0
        %7419 = vmatpush1.msra.mxu0 0.0
        %7420 = vmatprep.subr.mxu0 0.0
        %7421 = vmatpush1.msra.mxu0 0.0
        %7422 = vmatprep.subr.mxu0 0.0
        %7423 = vmatpush1.msra.mxu0 0.0
        %7424 = vmatprep.subr.mxu0 0.0
        %7425 = vmatpush1.msra.mxu0 0.0
        %7426 = vmatprep.subr.mxu0 0.0
        %7427 = vmatpush1.msra.mxu0 0.0
        %7428 = vmatprep.subr.mxu0 0.0
        %7429 = vmatpush1.msra.mxu0 0.0
        %7430 = vmatprep.subr.mxu0 0.0
        %7431 = vmatpush1.msra.mxu0 0.0
        %7432 = vmatprep.subr.mxu0 0.0
        %7433 = vmatpush1.msra.mxu0 0.0
        %7434 = vmatprep.subr.mxu0 0.0
        %7435 = vmatpush1.msra.mxu0 0.0
        %7436 = vmatprep.subr.mxu0 0.0
        %7437 = vmatpush1.msra.mxu0 0.0
        %7438 = vmatprep.subr.mxu0 0.0
        %7439 = vmatpush1.msra.mxu0 0.0
        %7440 = vmatprep.subr.mxu0 0.0
        %7441 = vmatpush1.msra.mxu0 0.0
        %7442 = vmatprep.subr.mxu0 0.0
        %7443 = vmatpush1.msra.mxu0 0.0
        %7444 = vmatprep.subr.mxu0 0.0
        %7445 = vmatpush1.msra.mxu0 0.0
        %7446 = vmatprep.subr.mxu0 0.0
        %7447 = vmatpush1.msra.mxu0 0.0
        %7448 = vmatprep.subr.mxu0 0.0
        %7449 = vmatpush1.msra.mxu0 0.0
        %7450 = vmatprep.subr.mxu0 0.0
        %7451 = vmatpush1.msra.mxu0 0.0
        %7452 = vmatprep.subr.mxu0 0.0
        %7453 = vmatpush1.msra.mxu0 0.0
        %7454 = vmatprep.subr.mxu0 0.0
        %7455 = vmatpush1.msra.mxu0 0.0
        %7456 = vmatprep.subr.mxu0 0.0
        %7457 = vmatpush1.msra.mxu0 0.0
        %7458 = vmatprep.subr.mxu0 0.0
        %7459 = vmatpush1.msra.mxu0 0.0
        %7460 = vmatprep.subr.mxu0 0.0
        %7461 = vmatpush1.msra.mxu0 0.0
        %7462 = vmatprep.subr.mxu0 0.0
        %7463 = vmatpush1.msra.mxu0 0.0
        %7464 = vmatprep.subr.mxu0 0.0
        %7465 = vmatpush1.msra.mxu0 0.0
        %7466 = vmatprep.mubr.f32.mxu0 0.0
        %v7467 = vand.u32 %v7236, 4294901760
        %v7468 = vsub.f32 %v7236, %v7467
        %7469 = vmatmul.mubr.f32.gmra.mrb[0].mxu0 %v7468
        %v7470 = vpop.f32.mrb[0].mxu0
        %v7471 = vadd.f32 %v7394, %v7470
        %v7472 = vpop.f32.mrb[0].mxu0
        %v7473 = vadd.f32 %v7396, %v7472
        %7474 = vdwg.mxu0
        %v7475 = vand.u32 %v7232, 4294901760
        %7476 = vmatprep.subr.mxu0 %v7475
        %v7477 = vand.u32 %v7231, 4294901760
        %7478 = vmatpush1.msra.mxu0 %v7477
        %7479 = vmatprep.subr.mxu0 0.0
        %7480 = vmatpush1.msra.mxu0 0.0
        %7481 = vmatprep.subr.mxu0 0.0
        %7482 = vmatpush1.msra.mxu0 0.0
        %7483 = vmatprep.subr.mxu0 0.0
        %7484 = vmatpush1.msra.mxu0 0.0
        %7485 = vmatprep.subr.mxu0 0.0
        %7486 = vmatpush1.msra.mxu0 0.0
        %7487 = vmatprep.subr.mxu0 0.0
        %7488 = vmatpush1.msra.mxu0 0.0
        %7489 = vmatprep.subr.mxu0 0.0
        %7490 = vmatpush1.msra.mxu0 0.0
        %7491 = vmatprep.subr.mxu0 0.0
        %7492 = vmatpush1.msra.mxu0 0.0
        %7493 = vmatprep.subr.mxu0 0.0
        %7494 = vmatpush1.msra.mxu0 0.0
        %7495 = vmatprep.subr.mxu0 0.0
        %7496 = vmatpush1.msra.mxu0 0.0
        %7497 = vmatprep.subr.mxu0 0.0
        %7498 = vmatpush1.msra.mxu0 0.0
        %7499 = vmatprep.subr.mxu0 0.0
        %7500 = vmatpush1.msra.mxu0 0.0
        %7501 = vmatprep.subr.mxu0 0.0
        %7502 = vmatpush1.msra.mxu0 0.0
        %7503 = vmatprep.subr.mxu0 0.0
        %7504 = vmatpush1.msra.mxu0 0.0
        %7505 = vmatprep.subr.mxu0 0.0
        %7506 = vmatpush1.msra.mxu0 0.0
        %7507 = vmatprep.subr.mxu0 0.0
        %7508 = vmatpush1.msra.mxu0 0.0
        %7509 = vmatprep.subr.mxu0 0.0
        %7510 = vmatpush1.msra.mxu0 0.0
        %7511 = vmatprep.subr.mxu0 0.0
        %7512 = vmatpush1.msra.mxu0 0.0
        %7513 = vmatprep.subr.mxu0 0.0
        %7514 = vmatpush1.msra.mxu0 0.0
        %7515 = vmatprep.subr.mxu0 0.0
        %7516 = vmatpush1.msra.mxu0 0.0
        %7517 = vmatprep.subr.mxu0 0.0
        %7518 = vmatpush1.msra.mxu0 0.0
        %7519 = vmatprep.subr.mxu0 0.0
        %7520 = vmatpush1.msra.mxu0 0.0
        %7521 = vmatprep.subr.mxu0 0.0
        %7522 = vmatpush1.msra.mxu0 0.0
        %7523 = vmatprep.subr.mxu0 0.0
        %7524 = vmatpush1.msra.mxu0 0.0
        %7525 = vmatprep.subr.mxu0 0.0
        %7526 = vmatpush1.msra.mxu0 0.0
        %7527 = vmatprep.subr.mxu0 0.0
        %7528 = vmatpush1.msra.mxu0 0.0
        %7529 = vmatprep.subr.mxu0 0.0
        %7530 = vmatpush1.msra.mxu0 0.0
        %7531 = vmatprep.subr.mxu0 0.0
        %7532 = vmatpush1.msra.mxu0 0.0
        %7533 = vmatprep.subr.mxu0 0.0
        %7534 = vmatpush1.msra.mxu0 0.0
        %7535 = vmatprep.subr.mxu0 0.0
        %7536 = vmatpush1.msra.mxu0 0.0
        %7537 = vmatprep.subr.mxu0 0.0
        %7538 = vmatpush1.msra.mxu0 0.0
        %7539 = vmatprep.subr.mxu0 0.0
        %7540 = vmatpush1.msra.mxu0 0.0
        %7541 = vmatprep.mubr.f32.mxu0 0.0
        %v7542 = vand.u32 %v7236, 4294901760
        %v7543 = vsub.f32 %v7236, %v7542
        %v7544 = vand.u32 %v7543, 4294901760
        %7545 = vmatmul.mubr.f32.gmra.mrb[0].mxu0 %v7544
        %v7546 = vpop.f32.mrb[0].mxu0
        %v7547 = vadd.f32 %v7471, %v7546
        %v7548 = vpop.f32.mrb[0].mxu0
        %v7549 = vadd.f32 %v7473, %v7548
        %7550 = vdwg.mxu0
        %v7551 = vand.u32 %v7232, 4294901760
        %v7552 = vsub.f32 %v7232, %v7551
        %v7553 = vand.u32 %v7552, 4294901760
        %7554 = vmatprep.subr.mxu0 %v7553
        %v7555 = vand.u32 %v7231, 4294901760
        %v7556 = vsub.f32 %v7231, %v7555
        %v7557 = vand.u32 %v7556, 4294901760
        %7558 = vmatpush1.msra.mxu0 %v7557
        %7559 = vmatprep.subr.mxu0 0.0
        %7560 = vmatpush1.msra.mxu0 0.0
        %7561 = vmatprep.subr.mxu0 0.0
        %7562 = vmatpush1.msra.mxu0 0.0
        %7563 = vmatprep.subr.mxu0 0.0
        %7564 = vmatpush1.msra.mxu0 0.0
        %7565 = vmatprep.subr.mxu0 0.0
        %7566 = vmatpush1.msra.mxu0 0.0
        %7567 = vmatprep.subr.mxu0 0.0
        %7568 = vmatpush1.msra.mxu0 0.0
        %7569 = vmatprep.subr.mxu0 0.0
        %7570 = vmatpush1.msra.mxu0 0.0
        %7571 = vmatprep.subr.mxu0 0.0
        %7572 = vmatpush1.msra.mxu0 0.0
        %7573 = vmatprep.subr.mxu0 0.0
        %7574 = vmatpush1.msra.mxu0 0.0
        %7575 = vmatprep.subr.mxu0 0.0
        %7576 = vmatpush1.msra.mxu0 0.0
        %7577 = vmatprep.subr.mxu0 0.0
        %7578 = vmatpush1.msra.mxu0 0.0
        %7579 = vmatprep.subr.mxu0 0.0
        %7580 = vmatpush1.msra.mxu0 0.0
        %7581 = vmatprep.subr.mxu0 0.0
        %7582 = vmatpush1.msra.mxu0 0.0
        %7583 = vmatprep.subr.mxu0 0.0
        %7584 = vmatpush1.msra.mxu0 0.0
        %7585 = vmatprep.subr.mxu0 0.0
        %7586 = vmatpush1.msra.mxu0 0.0
        %7587 = vmatprep.subr.mxu0 0.0
        %7588 = vmatpush1.msra.mxu0 0.0
        %7589 = vmatprep.subr.mxu0 0.0
        %7590 = vmatpush1.msra.mxu0 0.0
        %7591 = vmatprep.subr.mxu0 0.0
        %7592 = vmatpush1.msra.mxu0 0.0
        %7593 = vmatprep.subr.mxu0 0.0
        %7594 = vmatpush1.msra.mxu0 0.0
        %7595 = vmatprep.subr.mxu0 0.0
        %7596 = vmatpush1.msra.mxu0 0.0
        %7597 = vmatprep.subr.mxu0 0.0
        %7598 = vmatpush1.msra.mxu0 0.0
        %7599 = vmatprep.subr.mxu0 0.0
        %7600 = vmatpush1.msra.mxu0 0.0
        %7601 = vmatprep.subr.mxu0 0.0
        %7602 = vmatpush1.msra.mxu0 0.0
        %7603 = vmatprep.subr.mxu0 0.0
        %7604 = vmatpush1.msra.mxu0 0.0
        %7605 = vmatprep.subr.mxu0 0.0
        %7606 = vmatpush1.msra.mxu0 0.0
        %7607 = vmatprep.subr.mxu0 0.0
        %7608 = vmatpush1.msra.mxu0 0.0
        %7609 = vmatprep.subr.mxu0 0.0
        %7610 = vmatpush1.msra.mxu0 0.0
        %7611 = vmatprep.subr.mxu0 0.0
        %7612 = vmatpush1.msra.mxu0 0.0
        %7613 = vmatprep.subr.mxu0 0.0
        %7614 = vmatpush1.msra.mxu0 0.0
        %7615 = vmatprep.subr.mxu0 0.0
        %7616 = vmatpush1.msra.mxu0 0.0
        %7617 = vmatprep.subr.mxu0 0.0
        %7618 = vmatpush1.msra.mxu0 0.0
        %7619 = vmatprep.subr.mxu0 0.0
        %7620 = vmatpush1.msra.mxu0 0.0
        %7621 = vmatprep.mubr.f32.mxu0 0.0
        %v7622 = vand.u32 %v7236, 4294901760
        %7623 = vmatmul.mubr.f32.gmra.mrb[0].mxu0 %v7622
        %v7624 = vpop.f32.mrb[0].mxu0
        %v7625 = vadd.f32 %v7547, %v7624
        %v7626 = vpop.f32.mrb[0].mxu0
        %v7627 = vadd.f32 %v7549, %v7626
        %7628 = vdwg.mxu0
        %v7629 = vand.u32 %v7232, 4294901760
        %7630 = vmatprep.subr.mxu0 %v7629
        %v7631 = vand.u32 %v7231, 4294901760
        %7632 = vmatpush1.msra.mxu0 %v7631
        %7633 = vmatprep.subr.mxu0 0.0
        %7634 = vmatpush1.msra.mxu0 0.0
        %7635 = vmatprep.subr.mxu0 0.0
        %7636 = vmatpush1.msra.mxu0 0.0
        %7637 = vmatprep.subr.mxu0 0.0
        %7638 = vmatpush1.msra.mxu0 0.0
        %7639 = vmatprep.subr.mxu0 0.0
        %7640 = vmatpush1.msra.mxu0 0.0
        %7641 = vmatprep.subr.mxu0 0.0
        %7642 = vmatpush1.msra.mxu0 0.0
        %7643 = vmatprep.subr.mxu0 0.0
        %7644 = vmatpush1.msra.mxu0 0.0
        %7645 = vmatprep.subr.mxu0 0.0
        %7646 = vmatpush1.msra.mxu0 0.0
        %7647 = vmatprep.subr.mxu0 0.0
        %7648 = vmatpush1.msra.mxu0 0.0
        %7649 = vmatprep.subr.mxu0 0.0
        %7650 = vmatpush1.msra.mxu0 0.0
        %7651 = vmatprep.subr.mxu0 0.0
        %7652 = vmatpush1.msra.mxu0 0.0
        %7653 = vmatprep.subr.mxu0 0.0
        %7654 = vmatpush1.msra.mxu0 0.0
        %7655 = vmatprep.subr.mxu0 0.0
        %7656 = vmatpush1.msra.mxu0 0.0
        %7657 = vmatprep.subr.mxu0 0.0
        %7658 = vmatpush1.msra.mxu0 0.0
        %7659 = vmatprep.subr.mxu0 0.0
        %7660 = vmatpush1.msra.mxu0 0.0
        %7661 = vmatprep.subr.mxu0 0.0
        %7662 = vmatpush1.msra.mxu0 0.0
        %7663 = vmatprep.subr.mxu0 0.0
        %7664 = vmatpush1.msra.mxu0 0.0
        %7665 = vmatprep.subr.mxu0 0.0
        %7666 = vmatpush1.msra.mxu0 0.0
        %7667 = vmatprep.subr.mxu0 0.0
        %7668 = vmatpush1.msra.mxu0 0.0
        %7669 = vmatprep.subr.mxu0 0.0
        %7670 = vmatpush1.msra.mxu0 0.0
        %7671 = vmatprep.subr.mxu0 0.0
        %7672 = vmatpush1.msra.mxu0 0.0
        %7673 = vmatprep.subr.mxu0 0.0
        %7674 = vmatpush1.msra.mxu0 0.0
        %7675 = vmatprep.subr.mxu0 0.0
        %7676 = vmatpush1.msra.mxu0 0.0
        %7677 = vmatprep.subr.mxu0 0.0
        %7678 = vmatpush1.msra.mxu0 0.0
        %7679 = vmatprep.subr.mxu0 0.0
        %7680 = vmatpush1.msra.mxu0 0.0
        %7681 = vmatprep.subr.mxu0 0.0
        %7682 = vmatpush1.msra.mxu0 0.0
        %7683 = vmatprep.subr.mxu0 0.0
        %7684 = vmatpush1.msra.mxu0 0.0
        %7685 = vmatprep.subr.mxu0 0.0
        %7686 = vmatpush1.msra.mxu0 0.0
        %7687 = vmatprep.subr.mxu0 0.0
        %7688 = vmatpush1.msra.mxu0 0.0
        %7689 = vmatprep.subr.mxu0 0.0
        %7690 = vmatpush1.msra.mxu0 0.0
        %7691 = vmatprep.subr.mxu0 0.0
        %7692 = vmatpush1.msra.mxu0 0.0
        %7693 = vmatprep.subr.mxu0 0.0
        %7694 = vmatpush1.msra.mxu0 0.0
        %7695 = vmatprep.mubr.f32.mxu0 0.0
        %v7696 = vand.u32 %v7236, 4294901760
        %7697 = vmatmul.mubr.f32.gmra.mrb[0].mxu0 %v7696
        %v7698 = vpop.f32.mrb[0].mxu0
        %v7699 = vadd.f32 %v7625, %v7698
        %v7700 = vpop.f32.mrb[0].mxu0
        %v7701 = vadd.f32 %v7627, %v7700
        %7702 = vdwg.mxu0
        %v7703 = vadd.f32 %v7223, %v7699
        %v7704 = vadd.f32 %v7224, %v7701
        %7705 = vrot.lane.b32.xlu0 %v4836, 113
        %v7706 = vpop.permute.xlu0 %7705
        %7707 = vrot.lane.b32.xlu0 %v4837, 113
        %v7708 = vpop.permute.xlu0 %7707
        %v7709 = vsel %vm3249, %v7706, %v7708
        %v7710 = vsel %vm3249, %v7708, %v7706
        %v7711 = vmul.f32 %v7709, %v3258
        %v7712 = vmul.f32 %v7710, %v3262
        %s7713 = scalar_lea.vmem %s5, 48
        %v7714 = vld [vmem:[%s7713] sm:$0xff]
        %v7716 = vsel %vm354, %v7714, 0
        %v7718 = vand.u32 %v7712, 4294901760
        %7719 = vmatprep.subr.mxu0 %v7718
        %v7720 = vand.u32 %v7711, 4294901760
        %7721 = vmatpush1.msra.mxu0 %v7720
        %7722 = vmatprep.subr.mxu0 0.0
        %7723 = vmatpush1.msra.mxu0 0.0
        %7724 = vmatprep.subr.mxu0 0.0
        %7725 = vmatpush1.msra.mxu0 0.0
        %7726 = vmatprep.subr.mxu0 0.0
        %7727 = vmatpush1.msra.mxu0 0.0
        %7728 = vmatprep.subr.mxu0 0.0
        %7729 = vmatpush1.msra.mxu0 0.0
        %7730 = vmatprep.subr.mxu0 0.0
        %7731 = vmatpush1.msra.mxu0 0.0
        %7732 = vmatprep.subr.mxu0 0.0
        %7733 = vmatpush1.msra.mxu0 0.0
        %7734 = vmatprep.subr.mxu0 0.0
        %7735 = vmatpush1.msra.mxu0 0.0
        %7736 = vmatprep.subr.mxu0 0.0
        %7737 = vmatpush1.msra.mxu0 0.0
        %7738 = vmatprep.subr.mxu0 0.0
        %7739 = vmatpush1.msra.mxu0 0.0
        %7740 = vmatprep.subr.mxu0 0.0
        %7741 = vmatpush1.msra.mxu0 0.0
        %7742 = vmatprep.subr.mxu0 0.0
        %7743 = vmatpush1.msra.mxu0 0.0
        %7744 = vmatprep.subr.mxu0 0.0
        %7745 = vmatpush1.msra.mxu0 0.0
        %7746 = vmatprep.subr.mxu0 0.0
        %7747 = vmatpush1.msra.mxu0 0.0
        %7748 = vmatprep.subr.mxu0 0.0
        %7749 = vmatpush1.msra.mxu0 0.0
        %7750 = vmatprep.subr.mxu0 0.0
        %7751 = vmatpush1.msra.mxu0 0.0
        %7752 = vmatprep.subr.mxu0 0.0
        %7753 = vmatpush1.msra.mxu0 0.0
        %7754 = vmatprep.subr.mxu0 0.0
        %7755 = vmatpush1.msra.mxu0 0.0
        %7756 = vmatprep.subr.mxu0 0.0
        %7757 = vmatpush1.msra.mxu0 0.0
        %7758 = vmatprep.subr.mxu0 0.0
        %7759 = vmatpush1.msra.mxu0 0.0
        %7760 = vmatprep.subr.mxu0 0.0
        %7761 = vmatpush1.msra.mxu0 0.0
        %7762 = vmatprep.subr.mxu0 0.0
        %7763 = vmatpush1.msra.mxu0 0.0
        %7764 = vmatprep.subr.mxu0 0.0
        %7765 = vmatpush1.msra.mxu0 0.0
        %7766 = vmatprep.subr.mxu0 0.0
        %7767 = vmatpush1.msra.mxu0 0.0
        %7768 = vmatprep.subr.mxu0 0.0
        %7769 = vmatpush1.msra.mxu0 0.0
        %7770 = vmatprep.subr.mxu0 0.0
        %7771 = vmatpush1.msra.mxu0 0.0
        %7772 = vmatprep.subr.mxu0 0.0
        %7773 = vmatpush1.msra.mxu0 0.0
        %7774 = vmatprep.subr.mxu0 0.0
        %7775 = vmatpush1.msra.mxu0 0.0
        %7776 = vmatprep.subr.mxu0 0.0
        %7777 = vmatpush1.msra.mxu0 0.0
        %7778 = vmatprep.subr.mxu0 0.0
        %7779 = vmatpush1.msra.mxu0 0.0
        %7780 = vmatprep.subr.mxu0 0.0
        %7781 = vmatpush1.msra.mxu0 0.0
        %7782 = vmatprep.subr.mxu0 0.0
        %7783 = vmatpush1.msra.mxu0 0.0
        %7784 = vmatprep.mubr.f32.mxu0 0.0
        %v7785 = vand.u32 %v7716, 4294901760
        %v7786 = vsub.f32 %v7716, %v7785
        %v7787 = vand.u32 %v7786, 4294901760
        %v7788 = vsub.f32 %v7786, %v7787
        %v7789 = vand.u32 %v7788, 4294901760
        %7790 = vmatmul.mubr.f32.gmra.mrb[0].mxu0 %v7789
        %v7791 = vpop.f32.mrb[0].mxu0
        %v7792 = vadd.f32 0.0, %v7791
        %v7793 = vpop.f32.mrb[0].mxu0
        %v7794 = vadd.f32 0.0, %v7793
        %7795 = vdwg.mxu0
        %v7796 = vand.u32 %v7712, 4294901760
        %v7797 = vsub.f32 %v7712, %v7796
        %v7798 = vand.u32 %v7797, 4294901760
        %v7799 = vsub.f32 %v7797, %v7798
        %v7800 = vand.u32 %v7799, 4294901760
        %7801 = vmatprep.subr.mxu0 %v7800
        %v7802 = vand.u32 %v7711, 4294901760
        %v7803 = vsub.f32 %v7711, %v7802
        %v7804 = vand.u32 %v7803, 4294901760
        %v7805 = vsub.f32 %v7803, %v7804
        %v7806 = vand.u32 %v7805, 4294901760
        %7807 = vmatpush1.msra.mxu0 %v7806
        %7808 = vmatprep.subr.mxu0 0.0
        %7809 = vmatpush1.msra.mxu0 0.0
        %7810 = vmatprep.subr.mxu0 0.0
        %7811 = vmatpush1.msra.mxu0 0.0
        %7812 = vmatprep.subr.mxu0 0.0
        %7813 = vmatpush1.msra.mxu0 0.0
        %7814 = vmatprep.subr.mxu0 0.0
        %7815 = vmatpush1.msra.mxu0 0.0
        %7816 = vmatprep.subr.mxu0 0.0
        %7817 = vmatpush1.msra.mxu0 0.0
        %7818 = vmatprep.subr.mxu0 0.0
        %7819 = vmatpush1.msra.mxu0 0.0
        %7820 = vmatprep.subr.mxu0 0.0
        %7821 = vmatpush1.msra.mxu0 0.0
        %7822 = vmatprep.subr.mxu0 0.0
        %7823 = vmatpush1.msra.mxu0 0.0
        %7824 = vmatprep.subr.mxu0 0.0
        %7825 = vmatpush1.msra.mxu0 0.0
        %7826 = vmatprep.subr.mxu0 0.0
        %7827 = vmatpush1.msra.mxu0 0.0
        %7828 = vmatprep.subr.mxu0 0.0
        %7829 = vmatpush1.msra.mxu0 0.0
        %7830 = vmatprep.subr.mxu0 0.0
        %7831 = vmatpush1.msra.mxu0 0.0
        %7832 = vmatprep.subr.mxu0 0.0
        %7833 = vmatpush1.msra.mxu0 0.0
        %7834 = vmatprep.subr.mxu0 0.0
        %7835 = vmatpush1.msra.mxu0 0.0
        %7836 = vmatprep.subr.mxu0 0.0
        %7837 = vmatpush1.msra.mxu0 0.0
        %7838 = vmatprep.subr.mxu0 0.0
        %7839 = vmatpush1.msra.mxu0 0.0
        %7840 = vmatprep.subr.mxu0 0.0
        %7841 = vmatpush1.msra.mxu0 0.0
        %7842 = vmatprep.subr.mxu0 0.0
        %7843 = vmatpush1.msra.mxu0 0.0
        %7844 = vmatprep.subr.mxu0 0.0
        %7845 = vmatpush1.msra.mxu0 0.0
        %7846 = vmatprep.subr.mxu0 0.0
        %7847 = vmatpush1.msra.mxu0 0.0
        %7848 = vmatprep.subr.mxu0 0.0
        %7849 = vmatpush1.msra.mxu0 0.0
        %7850 = vmatprep.subr.mxu0 0.0
        %7851 = vmatpush1.msra.mxu0 0.0
        %7852 = vmatprep.subr.mxu0 0.0
        %7853 = vmatpush1.msra.mxu0 0.0
        %7854 = vmatprep.subr.mxu0 0.0
        %7855 = vmatpush1.msra.mxu0 0.0
        %7856 = vmatprep.subr.mxu0 0.0
        %7857 = vmatpush1.msra.mxu0 0.0
        %7858 = vmatprep.subr.mxu0 0.0
        %7859 = vmatpush1.msra.mxu0 0.0
        %7860 = vmatprep.subr.mxu0 0.0
        %7861 = vmatpush1.msra.mxu0 0.0
        %7862 = vmatprep.subr.mxu0 0.0
        %7863 = vmatpush1.msra.mxu0 0.0
        %7864 = vmatprep.subr.mxu0 0.0
        %7865 = vmatpush1.msra.mxu0 0.0
        %7866 = vmatprep.subr.mxu0 0.0
        %7867 = vmatpush1.msra.mxu0 0.0
        %7868 = vmatprep.subr.mxu0 0.0
        %7869 = vmatpush1.msra.mxu0 0.0
        %7870 = vmatprep.mubr.f32.mxu0 0.0
        %v7871 = vand.u32 %v7716, 4294901760
        %7872 = vmatmul.mubr.f32.gmra.mrb[0].mxu0 %v7871
        %v7873 = vpop.f32.mrb[0].mxu0
        %v7874 = vadd.f32 %v7792, %v7873
        %v7875 = vpop.f32.mrb[0].mxu0
        %v7876 = vadd.f32 %v7794, %v7875
        %7877 = vdwg.mxu0
        %v7878 = vand.u32 %v7712, 4294901760
        %v7879 = vsub.f32 %v7712, %v7878
        %7880 = vmatprep.subr.mxu0 %v7879
        %v7881 = vand.u32 %v7711, 4294901760
        %v7882 = vsub.f32 %v7711, %v7881
        %7883 = vmatpush1.msra.mxu0 %v7882
        %7884 = vmatprep.subr.mxu0 0.0
        %7885 = vmatpush1.msra.mxu0 0.0
        %7886 = vmatprep.subr.mxu0 0.0
        %7887 = vmatpush1.msra.mxu0 0.0
        %7888 = vmatprep.subr.mxu0 0.0
        %7889 = vmatpush1.msra.mxu0 0.0
        %7890 = vmatprep.subr.mxu0 0.0
        %7891 = vmatpush1.msra.mxu0 0.0
        %7892 = vmatprep.subr.mxu0 0.0
        %7893 = vmatpush1.msra.mxu0 0.0
        %7894 = vmatprep.subr.mxu0 0.0
        %7895 = vmatpush1.msra.mxu0 0.0
        %7896 = vmatprep.subr.mxu0 0.0
        %7897 = vmatpush1.msra.mxu0 0.0
        %7898 = vmatprep.subr.mxu0 0.0
        %7899 = vmatpush1.msra.mxu0 0.0
        %7900 = vmatprep.subr.mxu0 0.0
        %7901 = vmatpush1.msra.mxu0 0.0
        %7902 = vmatprep.subr.mxu0 0.0
        %7903 = vmatpush1.msra.mxu0 0.0
        %7904 = vmatprep.subr.mxu0 0.0
        %7905 = vmatpush1.msra.mxu0 0.0
        %7906 = vmatprep.subr.mxu0 0.0
        %7907 = vmatpush1.msra.mxu0 0.0
        %7908 = vmatprep.subr.mxu0 0.0
        %7909 = vmatpush1.msra.mxu0 0.0
        %7910 = vmatprep.subr.mxu0 0.0
        %7911 = vmatpush1.msra.mxu0 0.0
        %7912 = vmatprep.subr.mxu0 0.0
        %7913 = vmatpush1.msra.mxu0 0.0
        %7914 = vmatprep.subr.mxu0 0.0
        %7915 = vmatpush1.msra.mxu0 0.0
        %7916 = vmatprep.subr.mxu0 0.0
        %7917 = vmatpush1.msra.mxu0 0.0
        %7918 = vmatprep.subr.mxu0 0.0
        %7919 = vmatpush1.msra.mxu0 0.0
        %7920 = vmatprep.subr.mxu0 0.0
        %7921 = vmatpush1.msra.mxu0 0.0
        %7922 = vmatprep.subr.mxu0 0.0
        %7923 = vmatpush1.msra.mxu0 0.0
        %7924 = vmatprep.subr.mxu0 0.0
        %7925 = vmatpush1.msra.mxu0 0.0
        %7926 = vmatprep.subr.mxu0 0.0
        %7927 = vmatpush1.msra.mxu0 0.0
        %7928 = vmatprep.subr.mxu0 0.0
        %7929 = vmatpush1.msra.mxu0 0.0
        %7930 = vmatprep.subr.mxu0 0.0
        %7931 = vmatpush1.msra.mxu0 0.0
        %7932 = vmatprep.subr.mxu0 0.0
        %7933 = vmatpush1.msra.mxu0 0.0
        %7934 = vmatprep.subr.mxu0 0.0
        %7935 = vmatpush1.msra.mxu0 0.0
        %7936 = vmatprep.subr.mxu0 0.0
        %7937 = vmatpush1.msra.mxu0 0.0
        %7938 = vmatprep.subr.mxu0 0.0
        %7939 = vmatpush1.msra.mxu0 0.0
        %7940 = vmatprep.subr.mxu0 0.0
        %7941 = vmatpush1.msra.mxu0 0.0
        %7942 = vmatprep.subr.mxu0 0.0
        %7943 = vmatpush1.msra.mxu0 0.0
        %7944 = vmatprep.subr.mxu0 0.0
        %7945 = vmatpush1.msra.mxu0 0.0
        %7946 = vmatprep.mubr.f32.mxu0 0.0
        %v7947 = vand.u32 %v7716, 4294901760
        %v7948 = vsub.f32 %v7716, %v7947
        %7949 = vmatmul.mubr.f32.gmra.mrb[0].mxu0 %v7948
        %v7950 = vpop.f32.mrb[0].mxu0
        %v7951 = vadd.f32 %v7874, %v7950
        %v7952 = vpop.f32.mrb[0].mxu0
        %v7953 = vadd.f32 %v7876, %v7952
        %7954 = vdwg.mxu0
        %v7955 = vand.u32 %v7712, 4294901760
        %7956 = vmatprep.subr.mxu0 %v7955
        %v7957 = vand.u32 %v7711, 4294901760
        %7958 = vmatpush1.msra.mxu0 %v7957
        %7959 = vmatprep.subr.mxu0 0.0
        %7960 = vmatpush1.msra.mxu0 0.0
        %7961 = vmatprep.subr.mxu0 0.0
        %7962 = vmatpush1.msra.mxu0 0.0
        %7963 = vmatprep.subr.mxu0 0.0
        %7964 = vmatpush1.msra.mxu0 0.0
        %7965 = vmatprep.subr.mxu0 0.0
        %7966 = vmatpush1.msra.mxu0 0.0
        %7967 = vmatprep.subr.mxu0 0.0
        %7968 = vmatpush1.msra.mxu0 0.0
        %7969 = vmatprep.subr.mxu0 0.0
        %7970 = vmatpush1.msra.mxu0 0.0
        %7971 = vmatprep.subr.mxu0 0.0
        %7972 = vmatpush1.msra.mxu0 0.0
        %7973 = vmatprep.subr.mxu0 0.0
        %7974 = vmatpush1.msra.mxu0 0.0
        %7975 = vmatprep.subr.mxu0 0.0
        %7976 = vmatpush1.msra.mxu0 0.0
        %7977 = vmatprep.subr.mxu0 0.0
        %7978 = vmatpush1.msra.mxu0 0.0
        %7979 = vmatprep.subr.mxu0 0.0
        %7980 = vmatpush1.msra.mxu0 0.0
        %7981 = vmatprep.subr.mxu0 0.0
        %7982 = vmatpush1.msra.mxu0 0.0
        %7983 = vmatprep.subr.mxu0 0.0
        %7984 = vmatpush1.msra.mxu0 0.0
        %7985 = vmatprep.subr.mxu0 0.0
        %7986 = vmatpush1.msra.mxu0 0.0
        %7987 = vmatprep.subr.mxu0 0.0
        %7988 = vmatpush1.msra.mxu0 0.0
        %7989 = vmatprep.subr.mxu0 0.0
        %7990 = vmatpush1.msra.mxu0 0.0
        %7991 = vmatprep.subr.mxu0 0.0
        %7992 = vmatpush1.msra.mxu0 0.0
        %7993 = vmatprep.subr.mxu0 0.0
        %7994 = vmatpush1.msra.mxu0 0.0
        %7995 = vmatprep.subr.mxu0 0.0
        %7996 = vmatpush1.msra.mxu0 0.0
        %7997 = vmatprep.subr.mxu0 0.0
        %7998 = vmatpush1.msra.mxu0 0.0
        %7999 = vmatprep.subr.mxu0 0.0
        %8000 = vmatpush1.msra.mxu0 0.0
        %8001 = vmatprep.subr.mxu0 0.0
        %8002 = vmatpush1.msra.mxu0 0.0
        %8003 = vmatprep.subr.mxu0 0.0
        %8004 = vmatpush1.msra.mxu0 0.0
        %8005 = vmatprep.subr.mxu0 0.0
        %8006 = vmatpush1.msra.mxu0 0.0
        %8007 = vmatprep.subr.mxu0 0.0
        %8008 = vmatpush1.msra.mxu0 0.0
        %8009 = vmatprep.subr.mxu0 0.0
        %8010 = vmatpush1.msra.mxu0 0.0
        %8011 = vmatprep.subr.mxu0 0.0
        %8012 = vmatpush1.msra.mxu0 0.0
        %8013 = vmatprep.subr.mxu0 0.0
        %8014 = vmatpush1.msra.mxu0 0.0
        %8015 = vmatprep.subr.mxu0 0.0
        %8016 = vmatpush1.msra.mxu0 0.0
        %8017 = vmatprep.subr.mxu0 0.0
        %8018 = vmatpush1.msra.mxu0 0.0
        %8019 = vmatprep.subr.mxu0 0.0
        %8020 = vmatpush1.msra.mxu0 0.0
        %8021 = vmatprep.mubr.f32.mxu0 0.0
        %v8022 = vand.u32 %v7716, 4294901760
        %v8023 = vsub.f32 %v7716, %v8022
        %v8024 = vand.u32 %v8023, 4294901760
        %8025 = vmatmul.mubr.f32.gmra.mrb[0].mxu0 %v8024
        %v8026 = vpop.f32.mrb[0].mxu0
        %v8027 = vadd.f32 %v7951, %v8026
        %v8028 = vpop.f32.mrb[0].mxu0
        %v8029 = vadd.f32 %v7953, %v8028
        %8030 = vdwg.mxu0
        %v8031 = vand.u32 %v7712, 4294901760
        %v8032 = vsub.f32 %v7712, %v8031
        %v8033 = vand.u32 %v8032, 4294901760
        %8034 = vmatprep.subr.mxu0 %v8033
        %v8035 = vand.u32 %v7711, 4294901760
        %v8036 = vsub.f32 %v7711, %v8035
        %v8037 = vand.u32 %v8036, 4294901760
        %8038 = vmatpush1.msra.mxu0 %v8037
        %8039 = vmatprep.subr.mxu0 0.0
        %8040 = vmatpush1.msra.mxu0 0.0
        %8041 = vmatprep.subr.mxu0 0.0
        %8042 = vmatpush1.msra.mxu0 0.0
        %8043 = vmatprep.subr.mxu0 0.0
        %8044 = vmatpush1.msra.mxu0 0.0
        %8045 = vmatprep.subr.mxu0 0.0
        %8046 = vmatpush1.msra.mxu0 0.0
        %8047 = vmatprep.subr.mxu0 0.0
        %8048 = vmatpush1.msra.mxu0 0.0
        %8049 = vmatprep.subr.mxu0 0.0
        %8050 = vmatpush1.msra.mxu0 0.0
        %8051 = vmatprep.subr.mxu0 0.0
        %8052 = vmatpush1.msra.mxu0 0.0
        %8053 = vmatprep.subr.mxu0 0.0
        %8054 = vmatpush1.msra.mxu0 0.0
        %8055 = vmatprep.subr.mxu0 0.0
        %8056 = vmatpush1.msra.mxu0 0.0
        %8057 = vmatprep.subr.mxu0 0.0
        %8058 = vmatpush1.msra.mxu0 0.0
        %8059 = vmatprep.subr.mxu0 0.0
        %8060 = vmatpush1.msra.mxu0 0.0
        %8061 = vmatprep.subr.mxu0 0.0
        %8062 = vmatpush1.msra.mxu0 0.0
        %8063 = vmatprep.subr.mxu0 0.0
        %8064 = vmatpush1.msra.mxu0 0.0
        %8065 = vmatprep.subr.mxu0 0.0
        %8066 = vmatpush1.msra.mxu0 0.0
        %8067 = vmatprep.subr.mxu0 0.0
        %8068 = vmatpush1.msra.mxu0 0.0
        %8069 = vmatprep.subr.mxu0 0.0
        %8070 = vmatpush1.msra.mxu0 0.0
        %8071 = vmatprep.subr.mxu0 0.0
        %8072 = vmatpush1.msra.mxu0 0.0
        %8073 = vmatprep.subr.mxu0 0.0
        %8074 = vmatpush1.msra.mxu0 0.0
        %8075 = vmatprep.subr.mxu0 0.0
        %8076 = vmatpush1.msra.mxu0 0.0
        %8077 = vmatprep.subr.mxu0 0.0
        %8078 = vmatpush1.msra.mxu0 0.0
        %8079 = vmatprep.subr.mxu0 0.0
        %8080 = vmatpush1.msra.mxu0 0.0
        %8081 = vmatprep.subr.mxu0 0.0
        %8082 = vmatpush1.msra.mxu0 0.0
        %8083 = vmatprep.subr.mxu0 0.0
        %8084 = vmatpush1.msra.mxu0 0.0
        %8085 = vmatprep.subr.mxu0 0.0
        %8086 = vmatpush1.msra.mxu0 0.0
        %8087 = vmatprep.subr.mxu0 0.0
        %8088 = vmatpush1.msra.mxu0 0.0
        %8089 = vmatprep.subr.mxu0 0.0
        %8090 = vmatpush1.msra.mxu0 0.0
        %8091 = vmatprep.subr.mxu0 0.0
        %8092 = vmatpush1.msra.mxu0 0.0
        %8093 = vmatprep.subr.mxu0 0.0
        %8094 = vmatpush1.msra.mxu0 0.0
        %8095 = vmatprep.subr.mxu0 0.0
        %8096 = vmatpush1.msra.mxu0 0.0
        %8097 = vmatprep.subr.mxu0 0.0
        %8098 = vmatpush1.msra.mxu0 0.0
        %8099 = vmatprep.subr.mxu0 0.0
        %8100 = vmatpush1.msra.mxu0 0.0
        %8101 = vmatprep.mubr.f32.mxu0 0.0
        %v8102 = vand.u32 %v7716, 4294901760
        %8103 = vmatmul.mubr.f32.gmra.mrb[0].mxu0 %v8102
        %v8104 = vpop.f32.mrb[0].mxu0
        %v8105 = vadd.f32 %v8027, %v8104
        %v8106 = vpop.f32.mrb[0].mxu0
        %v8107 = vadd.f32 %v8029, %v8106
        %8108 = vdwg.mxu0
        %v8109 = vand.u32 %v7712, 4294901760
        %8110 = vmatprep.subr.mxu0 %v8109
        %v8111 = vand.u32 %v7711, 4294901760
        %8112 = vmatpush1.msra.mxu0 %v8111
        %8113 = vmatprep.subr.mxu0 0.0
        %8114 = vmatpush1.msra.mxu0 0.0
        %8115 = vmatprep.subr.mxu0 0.0
        %8116 = vmatpush1.msra.mxu0 0.0
        %8117 = vmatprep.subr.mxu0 0.0
        %8118 = vmatpush1.msra.mxu0 0.0
        %8119 = vmatprep.subr.mxu0 0.0
        %8120 = vmatpush1.msra.mxu0 0.0
        %8121 = vmatprep.subr.mxu0 0.0
        %8122 = vmatpush1.msra.mxu0 0.0
        %8123 = vmatprep.subr.mxu0 0.0
        %8124 = vmatpush1.msra.mxu0 0.0
        %8125 = vmatprep.subr.mxu0 0.0
        %8126 = vmatpush1.msra.mxu0 0.0
        %8127 = vmatprep.subr.mxu0 0.0
        %8128 = vmatpush1.msra.mxu0 0.0
        %8129 = vmatprep.subr.mxu0 0.0
        %8130 = vmatpush1.msra.mxu0 0.0
        %8131 = vmatprep.subr.mxu0 0.0
        %8132 = vmatpush1.msra.mxu0 0.0
        %8133 = vmatprep.subr.mxu0 0.0
        %8134 = vmatpush1.msra.mxu0 0.0
        %8135 = vmatprep.subr.mxu0 0.0
        %8136 = vmatpush1.msra.mxu0 0.0
        %8137 = vmatprep.subr.mxu0 0.0
        %8138 = vmatpush1.msra.mxu0 0.0
        %8139 = vmatprep.subr.mxu0 0.0
        %8140 = vmatpush1.msra.mxu0 0.0
        %8141 = vmatprep.subr.mxu0 0.0
        %8142 = vmatpush1.msra.mxu0 0.0
        %8143 = vmatprep.subr.mxu0 0.0
        %8144 = vmatpush1.msra.mxu0 0.0
        %8145 = vmatprep.subr.mxu0 0.0
        %8146 = vmatpush1.msra.mxu0 0.0
        %8147 = vmatprep.subr.mxu0 0.0
        %8148 = vmatpush1.msra.mxu0 0.0
        %8149 = vmatprep.subr.mxu0 0.0
        %8150 = vmatpush1.msra.mxu0 0.0
        %8151 = vmatprep.subr.mxu0 0.0
        %8152 = vmatpush1.msra.mxu0 0.0
        %8153 = vmatprep.subr.mxu0 0.0
        %8154 = vmatpush1.msra.mxu0 0.0
        %8155 = vmatprep.subr.mxu0 0.0
        %8156 = vmatpush1.msra.mxu0 0.0
        %8157 = vmatprep.subr.mxu0 0.0
        %8158 = vmatpush1.msra.mxu0 0.0
        %8159 = vmatprep.subr.mxu0 0.0
        %8160 = vmatpush1.msra.mxu0 0.0
        %8161 = vmatprep.subr.mxu0 0.0
        %8162 = vmatpush1.msra.mxu0 0.0
        %8163 = vmatprep.subr.mxu0 0.0
        %8164 = vmatpush1.msra.mxu0 0.0
        %8165 = vmatprep.subr.mxu0 0.0
        %8166 = vmatpush1.msra.mxu0 0.0
        %8167 = vmatprep.subr.mxu0 0.0
        %8168 = vmatpush1.msra.mxu0 0.0
        %8169 = vmatprep.subr.mxu0 0.0
        %8170 = vmatpush1.msra.mxu0 0.0
        %8171 = vmatprep.subr.mxu0 0.0
        %8172 = vmatpush1.msra.mxu0 0.0
        %8173 = vmatprep.subr.mxu0 0.0
        %8174 = vmatpush1.msra.mxu0 0.0
        %8175 = vmatprep.mubr.f32.mxu0 0.0
        %v8176 = vand.u32 %v7716, 4294901760
        %8177 = vmatmul.mubr.f32.gmra.mrb[0].mxu0 %v8176
        %v8178 = vpop.f32.mrb[0].mxu0
        %v8179 = vadd.f32 %v8105, %v8178
        %v8180 = vpop.f32.mrb[0].mxu0
        %v8181 = vadd.f32 %v8107, %v8180
        %8182 = vdwg.mxu0
        %v8183 = vadd.f32 %v7703, %v8179
        %v8184 = vadd.f32 %v7704, %v8181
        %8185 = vrot.lane.b32.xlu0 %v4836, 112
        %v8186 = vpop.permute.xlu0 %8185
        %8187 = vrot.lane.b32.xlu0 %v4837, 112
        %v8188 = vpop.permute.xlu0 %8187
        %v8189 = vsel %vm3743, %v8186, %v8188
        %v8190 = vsel %vm3743, %v8188, %v8186
        %v8191 = vmul.f32 %v8189, %v3752
        %v8192 = vmul.f32 %v8190, %v3756
        %s8193 = scalar_lea.vmem %s5, 56
        %v8194 = vld [vmem:[%s8193] sm:$0xff]
        %v8196 = vsel %vm354, %v8194, 0
        %v8198 = vand.u32 %v8192, 4294901760
        %8199 = vmatprep.subr.mxu0 %v8198
        %v8200 = vand.u32 %v8191, 4294901760
        %8201 = vmatpush1.msra.mxu0 %v8200
        %8202 = vmatprep.subr.mxu0 0.0
        %8203 = vmatpush1.msra.mxu0 0.0
        %8204 = vmatprep.subr.mxu0 0.0
        %8205 = vmatpush1.msra.mxu0 0.0
        %8206 = vmatprep.subr.mxu0 0.0
        %8207 = vmatpush1.msra.mxu0 0.0
        %8208 = vmatprep.subr.mxu0 0.0
        %8209 = vmatpush1.msra.mxu0 0.0
        %8210 = vmatprep.subr.mxu0 0.0
        %8211 = vmatpush1.msra.mxu0 0.0
        %8212 = vmatprep.subr.mxu0 0.0
        %8213 = vmatpush1.msra.mxu0 0.0
        %8214 = vmatprep.subr.mxu0 0.0
        %8215 = vmatpush1.msra.mxu0 0.0
        %8216 = vmatprep.subr.mxu0 0.0
        %8217 = vmatpush1.msra.mxu0 0.0
        %8218 = vmatprep.subr.mxu0 0.0
        %8219 = vmatpush1.msra.mxu0 0.0
        %8220 = vmatprep.subr.mxu0 0.0
        %8221 = vmatpush1.msra.mxu0 0.0
        %8222 = vmatprep.subr.mxu0 0.0
        %8223 = vmatpush1.msra.mxu0 0.0
        %8224 = vmatprep.subr.mxu0 0.0
        %8225 = vmatpush1.msra.mxu0 0.0
        %8226 = vmatprep.subr.mxu0 0.0
        %8227 = vmatpush1.msra.mxu0 0.0
        %8228 = vmatprep.subr.mxu0 0.0
        %8229 = vmatpush1.msra.mxu0 0.0
        %8230 = vmatprep.subr.mxu0 0.0
        %8231 = vmatpush1.msra.mxu0 0.0
        %8232 = vmatprep.subr.mxu0 0.0
        %8233 = vmatpush1.msra.mxu0 0.0
        %8234 = vmatprep.subr.mxu0 0.0
        %8235 = vmatpush1.msra.mxu0 0.0
        %8236 = vmatprep.subr.mxu0 0.0
        %8237 = vmatpush1.msra.mxu0 0.0
        %8238 = vmatprep.subr.mxu0 0.0
        %8239 = vmatpush1.msra.mxu0 0.0
        %8240 = vmatprep.subr.mxu0 0.0
        %8241 = vmatpush1.msra.mxu0 0.0
        %8242 = vmatprep.subr.mxu0 0.0
        %8243 = vmatpush1.msra.mxu0 0.0
        %8244 = vmatprep.subr.mxu0 0.0
        %8245 = vmatpush1.msra.mxu0 0.0
        %8246 = vmatprep.subr.mxu0 0.0
        %8247 = vmatpush1.msra.mxu0 0.0
        %8248 = vmatprep.subr.mxu0 0.0
        %8249 = vmatpush1.msra.mxu0 0.0
        %8250 = vmatprep.subr.mxu0 0.0
        %8251 = vmatpush1.msra.mxu0 0.0
        %8252 = vmatprep.subr.mxu0 0.0
        %8253 = vmatpush1.msra.mxu0 0.0
        %8254 = vmatprep.subr.mxu0 0.0
        %8255 = vmatpush1.msra.mxu0 0.0
        %8256 = vmatprep.subr.mxu0 0.0
        %8257 = vmatpush1.msra.mxu0 0.0
        %8258 = vmatprep.subr.mxu0 0.0
        %8259 = vmatpush1.msra.mxu0 0.0
        %8260 = vmatprep.subr.mxu0 0.0
        %8261 = vmatpush1.msra.mxu0 0.0
        %8262 = vmatprep.subr.mxu0 0.0
        %8263 = vmatpush1.msra.mxu0 0.0
        %8264 = vmatprep.mubr.f32.mxu0 0.0
        %v8265 = vand.u32 %v8196, 4294901760
        %v8266 = vsub.f32 %v8196, %v8265
        %v8267 = vand.u32 %v8266, 4294901760
        %v8268 = vsub.f32 %v8266, %v8267
        %v8269 = vand.u32 %v8268, 4294901760
        %8270 = vmatmul.mubr.f32.gmra.mrb[0].mxu0 %v8269
        %v8271 = vpop.f32.mrb[0].mxu0
        %v8272 = vadd.f32 0.0, %v8271
        %v8273 = vpop.f32.mrb[0].mxu0
        %v8274 = vadd.f32 0.0, %v8273
        %8275 = vdwg.mxu0
        %v8276 = vand.u32 %v8192, 4294901760
        %v8277 = vsub.f32 %v8192, %v8276
        %v8278 = vand.u32 %v8277, 4294901760
        %v8279 = vsub.f32 %v8277, %v8278
        %v8280 = vand.u32 %v8279, 4294901760
        %8281 = vmatprep.subr.mxu0 %v8280
        %v8282 = vand.u32 %v8191, 4294901760
        %v8283 = vsub.f32 %v8191, %v8282
        %v8284 = vand.u32 %v8283, 4294901760
        %v8285 = vsub.f32 %v8283, %v8284
        %v8286 = vand.u32 %v8285, 4294901760
        %8287 = vmatpush1.msra.mxu0 %v8286
        %8288 = vmatprep.subr.mxu0 0.0
        %8289 = vmatpush1.msra.mxu0 0.0
        %8290 = vmatprep.subr.mxu0 0.0
        %8291 = vmatpush1.msra.mxu0 0.0
        %8292 = vmatprep.subr.mxu0 0.0
        %8293 = vmatpush1.msra.mxu0 0.0
        %8294 = vmatprep.subr.mxu0 0.0
        %8295 = vmatpush1.msra.mxu0 0.0
        %8296 = vmatprep.subr.mxu0 0.0
        %8297 = vmatpush1.msra.mxu0 0.0
        %8298 = vmatprep.subr.mxu0 0.0
        %8299 = vmatpush1.msra.mxu0 0.0
        %8300 = vmatprep.subr.mxu0 0.0
        %8301 = vmatpush1.msra.mxu0 0.0
        %8302 = vmatprep.subr.mxu0 0.0
        %8303 = vmatpush1.msra.mxu0 0.0
        %8304 = vmatprep.subr.mxu0 0.0
        %8305 = vmatpush1.msra.mxu0 0.0
        %8306 = vmatprep.subr.mxu0 0.0
        %8307 = vmatpush1.msra.mxu0 0.0
        %8308 = vmatprep.subr.mxu0 0.0
        %8309 = vmatpush1.msra.mxu0 0.0
        %8310 = vmatprep.subr.mxu0 0.0
        %8311 = vmatpush1.msra.mxu0 0.0
        %8312 = vmatprep.subr.mxu0 0.0
        %8313 = vmatpush1.msra.mxu0 0.0
        %8314 = vmatprep.subr.mxu0 0.0
        %8315 = vmatpush1.msra.mxu0 0.0
        %8316 = vmatprep.subr.mxu0 0.0
        %8317 = vmatpush1.msra.mxu0 0.0
        %8318 = vmatprep.subr.mxu0 0.0
        %8319 = vmatpush1.msra.mxu0 0.0
        %8320 = vmatprep.subr.mxu0 0.0
        %8321 = vmatpush1.msra.mxu0 0.0
        %8322 = vmatprep.subr.mxu0 0.0
        %8323 = vmatpush1.msra.mxu0 0.0
        %8324 = vmatprep.subr.mxu0 0.0
        %8325 = vmatpush1.msra.mxu0 0.0
        %8326 = vmatprep.subr.mxu0 0.0
        %8327 = vmatpush1.msra.mxu0 0.0
        %8328 = vmatprep.subr.mxu0 0.0
        %8329 = vmatpush1.msra.mxu0 0.0
        %8330 = vmatprep.subr.mxu0 0.0
        %8331 = vmatpush1.msra.mxu0 0.0
        %8332 = vmatprep.subr.mxu0 0.0
        %8333 = vmatpush1.msra.mxu0 0.0
        %8334 = vmatprep.subr.mxu0 0.0
        %8335 = vmatpush1.msra.mxu0 0.0
        %8336 = vmatprep.subr.mxu0 0.0
        %8337 = vmatpush1.msra.mxu0 0.0
        %8338 = vmatprep.subr.mxu0 0.0
        %8339 = vmatpush1.msra.mxu0 0.0
        %8340 = vmatprep.subr.mxu0 0.0
        %8341 = vmatpush1.msra.mxu0 0.0
        %8342 = vmatprep.subr.mxu0 0.0
        %8343 = vmatpush1.msra.mxu0 0.0
        %8344 = vmatprep.subr.mxu0 0.0
        %8345 = vmatpush1.msra.mxu0 0.0
        %8346 = vmatprep.subr.mxu0 0.0
        %8347 = vmatpush1.msra.mxu0 0.0
        %8348 = vmatprep.subr.mxu0 0.0
        %8349 = vmatpush1.msra.mxu0 0.0
        %8350 = vmatprep.mubr.f32.mxu0 0.0
        %v8351 = vand.u32 %v8196, 4294901760
        %8352 = vmatmul.mubr.f32.gmra.mrb[0].mxu0 %v8351
        %v8353 = vpop.f32.mrb[0].mxu0
        %v8354 = vadd.f32 %v8272, %v8353
        %v8355 = vpop.f32.mrb[0].mxu0
        %v8356 = vadd.f32 %v8274, %v8355
        %8357 = vdwg.mxu0
        %v8358 = vand.u32 %v8192, 4294901760
        %v8359 = vsub.f32 %v8192, %v8358
        %8360 = vmatprep.subr.mxu0 %v8359
        %v8361 = vand.u32 %v8191, 4294901760
        %v8362 = vsub.f32 %v8191, %v8361
        %8363 = vmatpush1.msra.mxu0 %v8362
        %8364 = vmatprep.subr.mxu0 0.0
        %8365 = vmatpush1.msra.mxu0 0.0
        %8366 = vmatprep.subr.mxu0 0.0
        %8367 = vmatpush1.msra.mxu0 0.0
        %8368 = vmatprep.subr.mxu0 0.0
        %8369 = vmatpush1.msra.mxu0 0.0
        %8370 = vmatprep.subr.mxu0 0.0
        %8371 = vmatpush1.msra.mxu0 0.0
        %8372 = vmatprep.subr.mxu0 0.0
        %8373 = vmatpush1.msra.mxu0 0.0
        %8374 = vmatprep.subr.mxu0 0.0
        %8375 = vmatpush1.msra.mxu0 0.0
        %8376 = vmatprep.subr.mxu0 0.0
        %8377 = vmatpush1.msra.mxu0 0.0
        %8378 = vmatprep.subr.mxu0 0.0
        %8379 = vmatpush1.msra.mxu0 0.0
        %8380 = vmatprep.subr.mxu0 0.0
        %8381 = vmatpush1.msra.mxu0 0.0
        %8382 = vmatprep.subr.mxu0 0.0
        %8383 = vmatpush1.msra.mxu0 0.0
        %8384 = vmatprep.subr.mxu0 0.0
        %8385 = vmatpush1.msra.mxu0 0.0
        %8386 = vmatprep.subr.mxu0 0.0
        %8387 = vmatpush1.msra.mxu0 0.0
        %8388 = vmatprep.subr.mxu0 0.0
        %8389 = vmatpush1.msra.mxu0 0.0
        %8390 = vmatprep.subr.mxu0 0.0
        %8391 = vmatpush1.msra.mxu0 0.0
        %8392 = vmatprep.subr.mxu0 0.0
        %8393 = vmatpush1.msra.mxu0 0.0
        %8394 = vmatprep.subr.mxu0 0.0
        %8395 = vmatpush1.msra.mxu0 0.0
        %8396 = vmatprep.subr.mxu0 0.0
        %8397 = vmatpush1.msra.mxu0 0.0
        %8398 = vmatprep.subr.mxu0 0.0
        %8399 = vmatpush1.msra.mxu0 0.0
        %8400 = vmatprep.subr.mxu0 0.0
        %8401 = vmatpush1.msra.mxu0 0.0
        %8402 = vmatprep.subr.mxu0 0.0
        %8403 = vmatpush1.msra.mxu0 0.0
        %8404 = vmatprep.subr.mxu0 0.0
        %8405 = vmatpush1.msra.mxu0 0.0
        %8406 = vmatprep.subr.mxu0 0.0
        %8407 = vmatpush1.msra.mxu0 0.0
        %8408 = vmatprep.subr.mxu0 0.0
        %8409 = vmatpush1.msra.mxu0 0.0
        %8410 = vmatprep.subr.mxu0 0.0
        %8411 = vmatpush1.msra.mxu0 0.0
        %8412 = vmatprep.subr.mxu0 0.0
        %8413 = vmatpush1.msra.mxu0 0.0
        %8414 = vmatprep.subr.mxu0 0.0
        %8415 = vmatpush1.msra.mxu0 0.0
        %8416 = vmatprep.subr.mxu0 0.0
        %8417 = vmatpush1.msra.mxu0 0.0
        %8418 = vmatprep.subr.mxu0 0.0
        %8419 = vmatpush1.msra.mxu0 0.0
        %8420 = vmatprep.subr.mxu0 0.0
        %8421 = vmatpush1.msra.mxu0 0.0
        %8422 = vmatprep.subr.mxu0 0.0
        %8423 = vmatpush1.msra.mxu0 0.0
        %8424 = vmatprep.subr.mxu0 0.0
        %8425 = vmatpush1.msra.mxu0 0.0
        %8426 = vmatprep.mubr.f32.mxu0 0.0
        %v8427 = vand.u32 %v8196, 4294901760
        %v8428 = vsub.f32 %v8196, %v8427
        %8429 = vmatmul.mubr.f32.gmra.mrb[0].mxu0 %v8428
        %v8430 = vpop.f32.mrb[0].mxu0
        %v8431 = vadd.f32 %v8354, %v8430
        %v8432 = vpop.f32.mrb[0].mxu0
        %v8433 = vadd.f32 %v8356, %v8432
        %8434 = vdwg.mxu0
        %v8435 = vand.u32 %v8192, 4294901760
        %8436 = vmatprep.subr.mxu0 %v8435
        %v8437 = vand.u32 %v8191, 4294901760
        %8438 = vmatpush1.msra.mxu0 %v8437
        %8439 = vmatprep.subr.mxu0 0.0
        %8440 = vmatpush1.msra.mxu0 0.0
        %8441 = vmatprep.subr.mxu0 0.0
        %8442 = vmatpush1.msra.mxu0 0.0
        %8443 = vmatprep.subr.mxu0 0.0
        %8444 = vmatpush1.msra.mxu0 0.0
        %8445 = vmatprep.subr.mxu0 0.0
        %8446 = vmatpush1.msra.mxu0 0.0
        %8447 = vmatprep.subr.mxu0 0.0
        %8448 = vmatpush1.msra.mxu0 0.0
        %8449 = vmatprep.subr.mxu0 0.0
        %8450 = vmatpush1.msra.mxu0 0.0
        %8451 = vmatprep.subr.mxu0 0.0
        %8452 = vmatpush1.msra.mxu0 0.0
        %8453 = vmatprep.subr.mxu0 0.0
        %8454 = vmatpush1.msra.mxu0 0.0
        %8455 = vmatprep.subr.mxu0 0.0
        %8456 = vmatpush1.msra.mxu0 0.0
        %8457 = vmatprep.subr.mxu0 0.0
        %8458 = vmatpush1.msra.mxu0 0.0
        %8459 = vmatprep.subr.mxu0 0.0
        %8460 = vmatpush1.msra.mxu0 0.0
        %8461 = vmatprep.subr.mxu0 0.0
        %8462 = vmatpush1.msra.mxu0 0.0
        %8463 = vmatprep.subr.mxu0 0.0
        %8464 = vmatpush1.msra.mxu0 0.0
        %8465 = vmatprep.subr.mxu0 0.0
        %8466 = vmatpush1.msra.mxu0 0.0
        %8467 = vmatprep.subr.mxu0 0.0
        %8468 = vmatpush1.msra.mxu0 0.0
        %8469 = vmatprep.subr.mxu0 0.0
        %8470 = vmatpush1.msra.mxu0 0.0
        %8471 = vmatprep.subr.mxu0 0.0
        %8472 = vmatpush1.msra.mxu0 0.0
        %8473 = vmatprep.subr.mxu0 0.0
        %8474 = vmatpush1.msra.mxu0 0.0
        %8475 = vmatprep.subr.mxu0 0.0
        %8476 = vmatpush1.msra.mxu0 0.0
        %8477 = vmatprep.subr.mxu0 0.0
        %8478 = vmatpush1.msra.mxu0 0.0
        %8479 = vmatprep.subr.mxu0 0.0
        %8480 = vmatpush1.msra.mxu0 0.0
        %8481 = vmatprep.subr.mxu0 0.0
        %8482 = vmatpush1.msra.mxu0 0.0
        %8483 = vmatprep.subr.mxu0 0.0
        %8484 = vmatpush1.msra.mxu0 0.0
        %8485 = vmatprep.subr.mxu0 0.0
        %8486 = vmatpush1.msra.mxu0 0.0
        %8487 = vmatprep.subr.mxu0 0.0
        %8488 = vmatpush1.msra.mxu0 0.0
        %8489 = vmatprep.subr.mxu0 0.0
        %8490 = vmatpush1.msra.mxu0 0.0
        %8491 = vmatprep.subr.mxu0 0.0
        %8492 = vmatpush1.msra.mxu0 0.0
        %8493 = vmatprep.subr.mxu0 0.0
        %8494 = vmatpush1.msra.mxu0 0.0
        %8495 = vmatprep.subr.mxu0 0.0
        %8496 = vmatpush1.msra.mxu0 0.0
        %8497 = vmatprep.subr.mxu0 0.0
        %8498 = vmatpush1.msra.mxu0 0.0
        %8499 = vmatprep.subr.mxu0 0.0
        %8500 = vmatpush1.msra.mxu0 0.0
        %8501 = vmatprep.mubr.f32.mxu0 0.0
        %v8502 = vand.u32 %v8196, 4294901760
        %v8503 = vsub.f32 %v8196, %v8502
        %v8504 = vand.u32 %v8503, 4294901760
        %8505 = vmatmul.mubr.f32.gmra.mrb[0].mxu0 %v8504
        %v8506 = vpop.f32.mrb[0].mxu0
        %v8507 = vadd.f32 %v8431, %v8506
        %v8508 = vpop.f32.mrb[0].mxu0
        %v8509 = vadd.f32 %v8433, %v8508
        %8510 = vdwg.mxu0
        %v8511 = vand.u32 %v8192, 4294901760
        %v8512 = vsub.f32 %v8192, %v8511
        %v8513 = vand.u32 %v8512, 4294901760
        %8514 = vmatprep.subr.mxu0 %v8513
        %v8515 = vand.u32 %v8191, 4294901760
        %v8516 = vsub.f32 %v8191, %v8515
        %v8517 = vand.u32 %v8516, 4294901760
        %8518 = vmatpush1.msra.mxu0 %v8517
        %8519 = vmatprep.subr.mxu0 0.0
        %8520 = vmatpush1.msra.mxu0 0.0
        %8521 = vmatprep.subr.mxu0 0.0
        %8522 = vmatpush1.msra.mxu0 0.0
        %8523 = vmatprep.subr.mxu0 0.0
        %8524 = vmatpush1.msra.mxu0 0.0
        %8525 = vmatprep.subr.mxu0 0.0
        %8526 = vmatpush1.msra.mxu0 0.0
        %8527 = vmatprep.subr.mxu0 0.0
        %8528 = vmatpush1.msra.mxu0 0.0
        %8529 = vmatprep.subr.mxu0 0.0
        %8530 = vmatpush1.msra.mxu0 0.0
        %8531 = vmatprep.subr.mxu0 0.0
        %8532 = vmatpush1.msra.mxu0 0.0
        %8533 = vmatprep.subr.mxu0 0.0
        %8534 = vmatpush1.msra.mxu0 0.0
        %8535 = vmatprep.subr.mxu0 0.0
        %8536 = vmatpush1.msra.mxu0 0.0
        %8537 = vmatprep.subr.mxu0 0.0
        %8538 = vmatpush1.msra.mxu0 0.0
        %8539 = vmatprep.subr.mxu0 0.0
        %8540 = vmatpush1.msra.mxu0 0.0
        %8541 = vmatprep.subr.mxu0 0.0
        %8542 = vmatpush1.msra.mxu0 0.0
        %8543 = vmatprep.subr.mxu0 0.0
        %8544 = vmatpush1.msra.mxu0 0.0
        %8545 = vmatprep.subr.mxu0 0.0
        %8546 = vmatpush1.msra.mxu0 0.0
        %8547 = vmatprep.subr.mxu0 0.0
        %8548 = vmatpush1.msra.mxu0 0.0
        %8549 = vmatprep.subr.mxu0 0.0
        %8550 = vmatpush1.msra.mxu0 0.0
        %8551 = vmatprep.subr.mxu0 0.0
        %8552 = vmatpush1.msra.mxu0 0.0
        %8553 = vmatprep.subr.mxu0 0.0
        %8554 = vmatpush1.msra.mxu0 0.0
        %8555 = vmatprep.subr.mxu0 0.0
        %8556 = vmatpush1.msra.mxu0 0.0
        %8557 = vmatprep.subr.mxu0 0.0
        %8558 = vmatpush1.msra.mxu0 0.0
        %8559 = vmatprep.subr.mxu0 0.0
        %8560 = vmatpush1.msra.mxu0 0.0
        %8561 = vmatprep.subr.mxu0 0.0
        %8562 = vmatpush1.msra.mxu0 0.0
        %8563 = vmatprep.subr.mxu0 0.0
        %8564 = vmatpush1.msra.mxu0 0.0
        %8565 = vmatprep.subr.mxu0 0.0
        %8566 = vmatpush1.msra.mxu0 0.0
        %8567 = vmatprep.subr.mxu0 0.0
        %8568 = vmatpush1.msra.mxu0 0.0
        %8569 = vmatprep.subr.mxu0 0.0
        %8570 = vmatpush1.msra.mxu0 0.0
        %8571 = vmatprep.subr.mxu0 0.0
        %8572 = vmatpush1.msra.mxu0 0.0
        %8573 = vmatprep.subr.mxu0 0.0
        %8574 = vmatpush1.msra.mxu0 0.0
        %8575 = vmatprep.subr.mxu0 0.0
        %8576 = vmatpush1.msra.mxu0 0.0
        %8577 = vmatprep.subr.mxu0 0.0
        %8578 = vmatpush1.msra.mxu0 0.0
        %8579 = vmatprep.subr.mxu0 0.0
        %8580 = vmatpush1.msra.mxu0 0.0
        %8581 = vmatprep.mubr.f32.mxu0 0.0
        %v8582 = vand.u32 %v8196, 4294901760
        %8583 = vmatmul.mubr.f32.gmra.mrb[0].mxu0 %v8582
        %v8584 = vpop.f32.mrb[0].mxu0
        %v8585 = vadd.f32 %v8507, %v8584
        %v8586 = vpop.f32.mrb[0].mxu0
        %v8587 = vadd.f32 %v8509, %v8586
        %8588 = vdwg.mxu0
        %v8589 = vand.u32 %v8192, 4294901760
        %8590 = vmatprep.subr.mxu0 %v8589
        %v8591 = vand.u32 %v8191, 4294901760
        %8592 = vmatpush1.msra.mxu0 %v8591
        %8593 = vmatprep.subr.mxu0 0.0
        %8594 = vmatpush1.msra.mxu0 0.0
        %8595 = vmatprep.subr.mxu0 0.0
        %8596 = vmatpush1.msra.mxu0 0.0
        %8597 = vmatprep.subr.mxu0 0.0
        %8598 = vmatpush1.msra.mxu0 0.0
        %8599 = vmatprep.subr.mxu0 0.0
        %8600 = vmatpush1.msra.mxu0 0.0
        %8601 = vmatprep.subr.mxu0 0.0
        %8602 = vmatpush1.msra.mxu0 0.0
        %8603 = vmatprep.subr.mxu0 0.0
        %8604 = vmatpush1.msra.mxu0 0.0
        %8605 = vmatprep.subr.mxu0 0.0
        %8606 = vmatpush1.msra.mxu0 0.0
        %8607 = vmatprep.subr.mxu0 0.0
        %8608 = vmatpush1.msra.mxu0 0.0
        %8609 = vmatprep.subr.mxu0 0.0
        %8610 = vmatpush1.msra.mxu0 0.0
        %8611 = vmatprep.subr.mxu0 0.0
        %8612 = vmatpush1.msra.mxu0 0.0
        %8613 = vmatprep.subr.mxu0 0.0
        %8614 = vmatpush1.msra.mxu0 0.0
        %8615 = vmatprep.subr.mxu0 0.0
        %8616 = vmatpush1.msra.mxu0 0.0
        %8617 = vmatprep.subr.mxu0 0.0
        %8618 = vmatpush1.msra.mxu0 0.0
        %8619 = vmatprep.subr.mxu0 0.0
        %8620 = vmatpush1.msra.mxu0 0.0
        %8621 = vmatprep.subr.mxu0 0.0
        %8622 = vmatpush1.msra.mxu0 0.0
        %8623 = vmatprep.subr.mxu0 0.0
        %8624 = vmatpush1.msra.mxu0 0.0
        %8625 = vmatprep.subr.mxu0 0.0
        %8626 = vmatpush1.msra.mxu0 0.0
        %8627 = vmatprep.subr.mxu0 0.0
        %8628 = vmatpush1.msra.mxu0 0.0
        %8629 = vmatprep.subr.mxu0 0.0
        %8630 = vmatpush1.msra.mxu0 0.0
        %8631 = vmatprep.subr.mxu0 0.0
        %8632 = vmatpush1.msra.mxu0 0.0
        %8633 = vmatprep.subr.mxu0 0.0
        %8634 = vmatpush1.msra.mxu0 0.0
        %8635 = vmatprep.subr.mxu0 0.0
        %8636 = vmatpush1.msra.mxu0 0.0
        %8637 = vmatprep.subr.mxu0 0.0
        %8638 = vmatpush1.msra.mxu0 0.0
        %8639 = vmatprep.subr.mxu0 0.0
        %8640 = vmatpush1.msra.mxu0 0.0
        %8641 = vmatprep.subr.mxu0 0.0
        %8642 = vmatpush1.msra.mxu0 0.0
        %8643 = vmatprep.subr.mxu0 0.0
        %8644 = vmatpush1.msra.mxu0 0.0
        %8645 = vmatprep.subr.mxu0 0.0
        %8646 = vmatpush1.msra.mxu0 0.0
        %8647 = vmatprep.subr.mxu0 0.0
        %8648 = vmatpush1.msra.mxu0 0.0
        %8649 = vmatprep.subr.mxu0 0.0
        %8650 = vmatpush1.msra.mxu0 0.0
        %8651 = vmatprep.subr.mxu0 0.0
        %8652 = vmatpush1.msra.mxu0 0.0
        %8653 = vmatprep.subr.mxu0 0.0
        %8654 = vmatpush1.msra.mxu0 0.0
        %8655 = vmatprep.mubr.f32.mxu0 0.0
        %v8656 = vand.u32 %v8196, 4294901760
        %8657 = vmatmul.mubr.f32.gmra.mrb[0].mxu0 %v8656
        %v8658 = vpop.f32.mrb[0].mxu0
        %v8659 = vadd.f32 %v8585, %v8658
        %v8660 = vpop.f32.mrb[0].mxu0
        %v8661 = vadd.f32 %v8587, %v8660
        %8662 = vdwg.mxu0
        %v8663 = vadd.f32 %v8183, %v8659
        %v8664 = vadd.f32 %v8184, %v8661
        %8665 = vrot.lane.b32.xlu0 %v4836, 111
        %v8666 = vpop.permute.xlu0 %8665
        %8667 = vrot.lane.b32.xlu0 %v4837, 111
        %v8668 = vpop.permute.xlu0 %8667
        %v8669 = vsel %vm4237, %v8666, %v8668
        %v8670 = vsel %vm4237, %v8668, %v8666
        %v8671 = vmul.f32 %v8669, %v4246
        %v8672 = vmul.f32 %v8670, %v4250
        %s8673 = scalar_lea.vmem %s5, 64
        %v8674 = vld [vmem:[%s8673] sm:$0xff]
        %v8676 = vsel %vm354, %v8674, 0
        %v8678 = vand.u32 %v8672, 4294901760
        %8679 = vmatprep.subr.mxu0 %v8678
        %v8680 = vand.u32 %v8671, 4294901760
        %8681 = vmatpush1.msra.mxu0 %v8680
        %8682 = vmatprep.subr.mxu0 0.0
        %8683 = vmatpush1.msra.mxu0 0.0
        %8684 = vmatprep.subr.mxu0 0.0
        %8685 = vmatpush1.msra.mxu0 0.0
        %8686 = vmatprep.subr.mxu0 0.0
        %8687 = vmatpush1.msra.mxu0 0.0
        %8688 = vmatprep.subr.mxu0 0.0
        %8689 = vmatpush1.msra.mxu0 0.0
        %8690 = vmatprep.subr.mxu0 0.0
        %8691 = vmatpush1.msra.mxu0 0.0
        %8692 = vmatprep.subr.mxu0 0.0
        %8693 = vmatpush1.msra.mxu0 0.0
        %8694 = vmatprep.subr.mxu0 0.0
        %8695 = vmatpush1.msra.mxu0 0.0
        %8696 = vmatprep.subr.mxu0 0.0
        %8697 = vmatpush1.msra.mxu0 0.0
        %8698 = vmatprep.subr.mxu0 0.0
        %8699 = vmatpush1.msra.mxu0 0.0
        %8700 = vmatprep.subr.mxu0 0.0
        %8701 = vmatpush1.msra.mxu0 0.0
        %8702 = vmatprep.subr.mxu0 0.0
        %8703 = vmatpush1.msra.mxu0 0.0
        %8704 = vmatprep.subr.mxu0 0.0
        %8705 = vmatpush1.msra.mxu0 0.0
        %8706 = vmatprep.subr.mxu0 0.0
        %8707 = vmatpush1.msra.mxu0 0.0
        %8708 = vmatprep.subr.mxu0 0.0
        %8709 = vmatpush1.msra.mxu0 0.0
        %8710 = vmatprep.subr.mxu0 0.0
        %8711 = vmatpush1.msra.mxu0 0.0
        %8712 = vmatprep.subr.mxu0 0.0
        %8713 = vmatpush1.msra.mxu0 0.0
        %8714 = vmatprep.subr.mxu0 0.0
        %8715 = vmatpush1.msra.mxu0 0.0
        %8716 = vmatprep.subr.mxu0 0.0
        %8717 = vmatpush1.msra.mxu0 0.0
        %8718 = vmatprep.subr.mxu0 0.0
        %8719 = vmatpush1.msra.mxu0 0.0
        %8720 = vmatprep.subr.mxu0 0.0
        %8721 = vmatpush1.msra.mxu0 0.0
        %8722 = vmatprep.subr.mxu0 0.0
        %8723 = vmatpush1.msra.mxu0 0.0
        %8724 = vmatprep.subr.mxu0 0.0
        %8725 = vmatpush1.msra.mxu0 0.0
        %8726 = vmatprep.subr.mxu0 0.0
        %8727 = vmatpush1.msra.mxu0 0.0
        %8728 = vmatprep.subr.mxu0 0.0
        %8729 = vmatpush1.msra.mxu0 0.0
        %8730 = vmatprep.subr.mxu0 0.0
        %8731 = vmatpush1.msra.mxu0 0.0
        %8732 = vmatprep.subr.mxu0 0.0
        %8733 = vmatpush1.msra.mxu0 0.0
        %8734 = vmatprep.subr.mxu0 0.0
        %8735 = vmatpush1.msra.mxu0 0.0
        %8736 = vmatprep.subr.mxu0 0.0
        %8737 = vmatpush1.msra.mxu0 0.0
        %8738 = vmatprep.subr.mxu0 0.0
        %8739 = vmatpush1.msra.mxu0 0.0
        %8740 = vmatprep.subr.mxu0 0.0
        %8741 = vmatpush1.msra.mxu0 0.0
        %8742 = vmatprep.subr.mxu0 0.0
        %8743 = vmatpush1.msra.mxu0 0.0
        %8744 = vmatprep.mubr.f32.mxu0 0.0
        %v8745 = vand.u32 %v8676, 4294901760
        %v8746 = vsub.f32 %v8676, %v8745
        %v8747 = vand.u32 %v8746, 4294901760
        %v8748 = vsub.f32 %v8746, %v8747
        %v8749 = vand.u32 %v8748, 4294901760
        %8750 = vmatmul.mubr.f32.gmra.mrb[0].mxu0 %v8749
        %v8751 = vpop.f32.mrb[0].mxu0
        %v8752 = vadd.f32 0.0, %v8751
        %v8753 = vpop.f32.mrb[0].mxu0
        %v8754 = vadd.f32 0.0, %v8753
        %8755 = vdwg.mxu0
        %v8756 = vand.u32 %v8672, 4294901760
        %v8757 = vsub.f32 %v8672, %v8756
        %v8758 = vand.u32 %v8757, 4294901760
        %v8759 = vsub.f32 %v8757, %v8758
        %v8760 = vand.u32 %v8759, 4294901760
        %8761 = vmatprep.subr.mxu0 %v8760
        %v8762 = vand.u32 %v8671, 4294901760
        %v8763 = vsub.f32 %v8671, %v8762
        %v8764 = vand.u32 %v8763, 4294901760
        %v8765 = vsub.f32 %v8763, %v8764
        %v8766 = vand.u32 %v8765, 4294901760
        %8767 = vmatpush1.msra.mxu0 %v8766
        %8768 = vmatprep.subr.mxu0 0.0
        %8769 = vmatpush1.msra.mxu0 0.0
        %8770 = vmatprep.subr.mxu0 0.0
        %8771 = vmatpush1.msra.mxu0 0.0
        %8772 = vmatprep.subr.mxu0 0.0
        %8773 = vmatpush1.msra.mxu0 0.0
        %8774 = vmatprep.subr.mxu0 0.0
        %8775 = vmatpush1.msra.mxu0 0.0
        %8776 = vmatprep.subr.mxu0 0.0
        %8777 = vmatpush1.msra.mxu0 0.0
        %8778 = vmatprep.subr.mxu0 0.0
        %8779 = vmatpush1.msra.mxu0 0.0
        %8780 = vmatprep.subr.mxu0 0.0
        %8781 = vmatpush1.msra.mxu0 0.0
        %8782 = vmatprep.subr.mxu0 0.0
        %8783 = vmatpush1.msra.mxu0 0.0
        %8784 = vmatprep.subr.mxu0 0.0
        %8785 = vmatpush1.msra.mxu0 0.0
        %8786 = vmatprep.subr.mxu0 0.0
        %8787 = vmatpush1.msra.mxu0 0.0
        %8788 = vmatprep.subr.mxu0 0.0
        %8789 = vmatpush1.msra.mxu0 0.0
        %8790 = vmatprep.subr.mxu0 0.0
        %8791 = vmatpush1.msra.mxu0 0.0
        %8792 = vmatprep.subr.mxu0 0.0
        %8793 = vmatpush1.msra.mxu0 0.0
        %8794 = vmatprep.subr.mxu0 0.0
        %8795 = vmatpush1.msra.mxu0 0.0
        %8796 = vmatprep.subr.mxu0 0.0
        %8797 = vmatpush1.msra.mxu0 0.0
        %8798 = vmatprep.subr.mxu0 0.0
        %8799 = vmatpush1.msra.mxu0 0.0
        %8800 = vmatprep.subr.mxu0 0.0
        %8801 = vmatpush1.msra.mxu0 0.0
        %8802 = vmatprep.subr.mxu0 0.0
        %8803 = vmatpush1.msra.mxu0 0.0
        %8804 = vmatprep.subr.mxu0 0.0
        %8805 = vmatpush1.msra.mxu0 0.0
        %8806 = vmatprep.subr.mxu0 0.0
        %8807 = vmatpush1.msra.mxu0 0.0
        %8808 = vmatprep.subr.mxu0 0.0
        %8809 = vmatpush1.msra.mxu0 0.0
        %8810 = vmatprep.subr.mxu0 0.0
        %8811 = vmatpush1.msra.mxu0 0.0
        %8812 = vmatprep.subr.mxu0 0.0
        %8813 = vmatpush1.msra.mxu0 0.0
        %8814 = vmatprep.subr.mxu0 0.0
        %8815 = vmatpush1.msra.mxu0 0.0
        %8816 = vmatprep.subr.mxu0 0.0
        %8817 = vmatpush1.msra.mxu0 0.0
        %8818 = vmatprep.subr.mxu0 0.0
        %8819 = vmatpush1.msra.mxu0 0.0
        %8820 = vmatprep.subr.mxu0 0.0
        %8821 = vmatpush1.msra.mxu0 0.0
        %8822 = vmatprep.subr.mxu0 0.0
        %8823 = vmatpush1.msra.mxu0 0.0
        %8824 = vmatprep.subr.mxu0 0.0
        %8825 = vmatpush1.msra.mxu0 0.0
        %8826 = vmatprep.subr.mxu0 0.0
        %8827 = vmatpush1.msra.mxu0 0.0
        %8828 = vmatprep.subr.mxu0 0.0
        %8829 = vmatpush1.msra.mxu0 0.0
        %8830 = vmatprep.mubr.f32.mxu0 0.0
        %v8831 = vand.u32 %v8676, 4294901760
        %8832 = vmatmul.mubr.f32.gmra.mrb[0].mxu0 %v8831
        %v8833 = vpop.f32.mrb[0].mxu0
        %v8834 = vadd.f32 %v8752, %v8833
        %v8835 = vpop.f32.mrb[0].mxu0
        %v8836 = vadd.f32 %v8754, %v8835
        %8837 = vdwg.mxu0
        %v8838 = vand.u32 %v8672, 4294901760
        %v8839 = vsub.f32 %v8672, %v8838
        %8840 = vmatprep.subr.mxu0 %v8839
        %v8841 = vand.u32 %v8671, 4294901760
        %v8842 = vsub.f32 %v8671, %v8841
        %8843 = vmatpush1.msra.mxu0 %v8842
        %8844 = vmatprep.subr.mxu0 0.0
        %8845 = vmatpush1.msra.mxu0 0.0
        %8846 = vmatprep.subr.mxu0 0.0
        %8847 = vmatpush1.msra.mxu0 0.0
        %8848 = vmatprep.subr.mxu0 0.0
        %8849 = vmatpush1.msra.mxu0 0.0
        %8850 = vmatprep.subr.mxu0 0.0
        %8851 = vmatpush1.msra.mxu0 0.0
        %8852 = vmatprep.subr.mxu0 0.0
        %8853 = vmatpush1.msra.mxu0 0.0
        %8854 = vmatprep.subr.mxu0 0.0
        %8855 = vmatpush1.msra.mxu0 0.0
        %8856 = vmatprep.subr.mxu0 0.0
        %8857 = vmatpush1.msra.mxu0 0.0
        %8858 = vmatprep.subr.mxu0 0.0
        %8859 = vmatpush1.msra.mxu0 0.0
        %8860 = vmatprep.subr.mxu0 0.0
        %8861 = vmatpush1.msra.mxu0 0.0
        %8862 = vmatprep.subr.mxu0 0.0
        %8863 = vmatpush1.msra.mxu0 0.0
        %8864 = vmatprep.subr.mxu0 0.0
        %8865 = vmatpush1.msra.mxu0 0.0
        %8866 = vmatprep.subr.mxu0 0.0
        %8867 = vmatpush1.msra.mxu0 0.0
        %8868 = vmatprep.subr.mxu0 0.0
        %8869 = vmatpush1.msra.mxu0 0.0
        %8870 = vmatprep.subr.mxu0 0.0
        %8871 = vmatpush1.msra.mxu0 0.0
        %8872 = vmatprep.subr.mxu0 0.0
        %8873 = vmatpush1.msra.mxu0 0.0
        %8874 = vmatprep.subr.mxu0 0.0
        %8875 = vmatpush1.msra.mxu0 0.0
        %8876 = vmatprep.subr.mxu0 0.0
        %8877 = vmatpush1.msra.mxu0 0.0
        %8878 = vmatprep.subr.mxu0 0.0
        %8879 = vmatpush1.msra.mxu0 0.0
        %8880 = vmatprep.subr.mxu0 0.0
        %8881 = vmatpush1.msra.mxu0 0.0
        %8882 = vmatprep.subr.mxu0 0.0
        %8883 = vmatpush1.msra.mxu0 0.0
        %8884 = vmatprep.subr.mxu0 0.0
        %8885 = vmatpush1.msra.mxu0 0.0
        %8886 = vmatprep.subr.mxu0 0.0
        %8887 = vmatpush1.msra.mxu0 0.0
        %8888 = vmatprep.subr.mxu0 0.0
        %8889 = vmatpush1.msra.mxu0 0.0
        %8890 = vmatprep.subr.mxu0 0.0
        %8891 = vmatpush1.msra.mxu0 0.0
        %8892 = vmatprep.subr.mxu0 0.0
        %8893 = vmatpush1.msra.mxu0 0.0
        %8894 = vmatprep.subr.mxu0 0.0
        %8895 = vmatpush1.msra.mxu0 0.0
        %8896 = vmatprep.subr.mxu0 0.0
        %8897 = vmatpush1.msra.mxu0 0.0
        %8898 = vmatprep.subr.mxu0 0.0
        %8899 = vmatpush1.msra.mxu0 0.0
        %8900 = vmatprep.subr.mxu0 0.0
        %8901 = vmatpush1.msra.mxu0 0.0
        %8902 = vmatprep.subr.mxu0 0.0
        %8903 = vmatpush1.msra.mxu0 0.0
        %8904 = vmatprep.subr.mxu0 0.0
        %8905 = vmatpush1.msra.mxu0 0.0
        %8906 = vmatprep.mubr.f32.mxu0 0.0
        %v8907 = vand.u32 %v8676, 4294901760
        %v8908 = vsub.f32 %v8676, %v8907
        %8909 = vmatmul.mubr.f32.gmra.mrb[0].mxu0 %v8908
        %v8910 = vpop.f32.mrb[0].mxu0
        %v8911 = vadd.f32 %v8834, %v8910
        %v8912 = vpop.f32.mrb[0].mxu0
        %v8913 = vadd.f32 %v8836, %v8912
        %8914 = vdwg.mxu0
        %v8915 = vand.u32 %v8672, 4294901760
        %8916 = vmatprep.subr.mxu0 %v8915
        %v8917 = vand.u32 %v8671, 4294901760
        %8918 = vmatpush1.msra.mxu0 %v8917
        %8919 = vmatprep.subr.mxu0 0.0
        %8920 = vmatpush1.msra.mxu0 0.0
        %8921 = vmatprep.subr.mxu0 0.0
        %8922 = vmatpush1.msra.mxu0 0.0
        %8923 = vmatprep.subr.mxu0 0.0
        %8924 = vmatpush1.msra.mxu0 0.0
        %8925 = vmatprep.subr.mxu0 0.0
        %8926 = vmatpush1.msra.mxu0 0.0
        %8927 = vmatprep.subr.mxu0 0.0
        %8928 = vmatpush1.msra.mxu0 0.0
        %8929 = vmatprep.subr.mxu0 0.0
        %8930 = vmatpush1.msra.mxu0 0.0
        %8931 = vmatprep.subr.mxu0 0.0
        %8932 = vmatpush1.msra.mxu0 0.0
        %8933 = vmatprep.subr.mxu0 0.0
        %8934 = vmatpush1.msra.mxu0 0.0
        %8935 = vmatprep.subr.mxu0 0.0
        %8936 = vmatpush1.msra.mxu0 0.0
        %8937 = vmatprep.subr.mxu0 0.0
        %8938 = vmatpush1.msra.mxu0 0.0
        %8939 = vmatprep.subr.mxu0 0.0
        %8940 = vmatpush1.msra.mxu0 0.0
        %8941 = vmatprep.subr.mxu0 0.0
        %8942 = vmatpush1.msra.mxu0 0.0
        %8943 = vmatprep.subr.mxu0 0.0
        %8944 = vmatpush1.msra.mxu0 0.0
        %8945 = vmatprep.subr.mxu0 0.0
        %8946 = vmatpush1.msra.mxu0 0.0
        %8947 = vmatprep.subr.mxu0 0.0
        %8948 = vmatpush1.msra.mxu0 0.0
        %8949 = vmatprep.subr.mxu0 0.0
        %8950 = vmatpush1.msra.mxu0 0.0
        %8951 = vmatprep.subr.mxu0 0.0
        %8952 = vmatpush1.msra.mxu0 0.0
        %8953 = vmatprep.subr.mxu0 0.0
        %8954 = vmatpush1.msra.mxu0 0.0
        %8955 = vmatprep.subr.mxu0 0.0
        %8956 = vmatpush1.msra.mxu0 0.0
        %8957 = vmatprep.subr.mxu0 0.0
        %8958 = vmatpush1.msra.mxu0 0.0
        %8959 = vmatprep.subr.mxu0 0.0
        %8960 = vmatpush1.msra.mxu0 0.0
        %8961 = vmatprep.subr.mxu0 0.0
        %8962 = vmatpush1.msra.mxu0 0.0
        %8963 = vmatprep.subr.mxu0 0.0
        %8964 = vmatpush1.msra.mxu0 0.0
        %8965 = vmatprep.subr.mxu0 0.0
        %8966 = vmatpush1.msra.mxu0 0.0
        %8967 = vmatprep.subr.mxu0 0.0
        %8968 = vmatpush1.msra.mxu0 0.0
        %8969 = vmatprep.subr.mxu0 0.0
        %8970 = vmatpush1.msra.mxu0 0.0
        %8971 = vmatprep.subr.mxu0 0.0
        %8972 = vmatpush1.msra.mxu0 0.0
        %8973 = vmatprep.subr.mxu0 0.0
        %8974 = vmatpush1.msra.mxu0 0.0
        %8975 = vmatprep.subr.mxu0 0.0
        %8976 = vmatpush1.msra.mxu0 0.0
        %8977 = vmatprep.subr.mxu0 0.0
        %8978 = vmatpush1.msra.mxu0 0.0
        %8979 = vmatprep.subr.mxu0 0.0
        %8980 = vmatpush1.msra.mxu0 0.0
        %8981 = vmatprep.mubr.f32.mxu0 0.0
        %v8982 = vand.u32 %v8676, 4294901760
        %v8983 = vsub.f32 %v8676, %v8982
        %v8984 = vand.u32 %v8983, 4294901760
        %8985 = vmatmul.mubr.f32.gmra.mrb[0].mxu0 %v8984
        %v8986 = vpop.f32.mrb[0].mxu0
        %v8987 = vadd.f32 %v8911, %v8986
        %v8988 = vpop.f32.mrb[0].mxu0
        %v8989 = vadd.f32 %v8913, %v8988
        %8990 = vdwg.mxu0
        %v8991 = vand.u32 %v8672, 4294901760
        %v8992 = vsub.f32 %v8672, %v8991
        %v8993 = vand.u32 %v8992, 4294901760
        %8994 = vmatprep.subr.mxu0 %v8993
        %v8995 = vand.u32 %v8671, 4294901760
        %v8996 = vsub.f32 %v8671, %v8995
        %v8997 = vand.u32 %v8996, 4294901760
        %8998 = vmatpush1.msra.mxu0 %v8997
        %8999 = vmatprep.subr.mxu0 0.0
        %9000 = vmatpush1.msra.mxu0 0.0
        %9001 = vmatprep.subr.mxu0 0.0
        %9002 = vmatpush1.msra.mxu0 0.0
        %9003 = vmatprep.subr.mxu0 0.0
        %9004 = vmatpush1.msra.mxu0 0.0
        %9005 = vmatprep.subr.mxu0 0.0
        %9006 = vmatpush1.msra.mxu0 0.0
        %9007 = vmatprep.subr.mxu0 0.0
        %9008 = vmatpush1.msra.mxu0 0.0
        %9009 = vmatprep.subr.mxu0 0.0
        %9010 = vmatpush1.msra.mxu0 0.0
        %9011 = vmatprep.subr.mxu0 0.0
        %9012 = vmatpush1.msra.mxu0 0.0
        %9013 = vmatprep.subr.mxu0 0.0
        %9014 = vmatpush1.msra.mxu0 0.0
        %9015 = vmatprep.subr.mxu0 0.0
        %9016 = vmatpush1.msra.mxu0 0.0
        %9017 = vmatprep.subr.mxu0 0.0
        %9018 = vmatpush1.msra.mxu0 0.0
        %9019 = vmatprep.subr.mxu0 0.0
        %9020 = vmatpush1.msra.mxu0 0.0
        %9021 = vmatprep.subr.mxu0 0.0
        %9022 = vmatpush1.msra.mxu0 0.0
        %9023 = vmatprep.subr.mxu0 0.0
        %9024 = vmatpush1.msra.mxu0 0.0
        %9025 = vmatprep.subr.mxu0 0.0
        %9026 = vmatpush1.msra.mxu0 0.0
        %9027 = vmatprep.subr.mxu0 0.0
        %9028 = vmatpush1.msra.mxu0 0.0
        %9029 = vmatprep.subr.mxu0 0.0
        %9030 = vmatpush1.msra.mxu0 0.0
        %9031 = vmatprep.subr.mxu0 0.0
        %9032 = vmatpush1.msra.mxu0 0.0
        %9033 = vmatprep.subr.mxu0 0.0
        %9034 = vmatpush1.msra.mxu0 0.0
        %9035 = vmatprep.subr.mxu0 0.0
        %9036 = vmatpush1.msra.mxu0 0.0
        %9037 = vmatprep.subr.mxu0 0.0
        %9038 = vmatpush1.msra.mxu0 0.0
        %9039 = vmatprep.subr.mxu0 0.0
        %9040 = vmatpush1.msra.mxu0 0.0
        %9041 = vmatprep.subr.mxu0 0.0
        %9042 = vmatpush1.msra.mxu0 0.0
        %9043 = vmatprep.subr.mxu0 0.0
        %9044 = vmatpush1.msra.mxu0 0.0
        %9045 = vmatprep.subr.mxu0 0.0
        %9046 = vmatpush1.msra.mxu0 0.0
        %9047 = vmatprep.subr.mxu0 0.0
        %9048 = vmatpush1.msra.mxu0 0.0
        %9049 = vmatprep.subr.mxu0 0.0
        %9050 = vmatpush1.msra.mxu0 0.0
        %9051 = vmatprep.subr.mxu0 0.0
        %9052 = vmatpush1.msra.mxu0 0.0
        %9053 = vmatprep.subr.mxu0 0.0
        %9054 = vmatpush1.msra.mxu0 0.0
        %9055 = vmatprep.subr.mxu0 0.0
        %9056 = vmatpush1.msra.mxu0 0.0
        %9057 = vmatprep.subr.mxu0 0.0
        %9058 = vmatpush1.msra.mxu0 0.0
        %9059 = vmatprep.subr.mxu0 0.0
        %9060 = vmatpush1.msra.mxu0 0.0
        %9061 = vmatprep.mubr.f32.mxu0 0.0
        %v9062 = vand.u32 %v8676, 4294901760
        %9063 = vmatmul.mubr.f32.gmra.mrb[0].mxu0 %v9062
        %v9064 = vpop.f32.mrb[0].mxu0
        %v9065 = vadd.f32 %v8987, %v9064
        %v9066 = vpop.f32.mrb[0].mxu0
        %v9067 = vadd.f32 %v8989, %v9066
        %9068 = vdwg.mxu0
        %v9069 = vand.u32 %v8672, 4294901760
        %9070 = vmatprep.subr.mxu0 %v9069
        %v9071 = vand.u32 %v8671, 4294901760
        %9072 = vmatpush1.msra.mxu0 %v9071
        %9073 = vmatprep.subr.mxu0 0.0
        %9074 = vmatpush1.msra.mxu0 0.0
        %9075 = vmatprep.subr.mxu0 0.0
        %9076 = vmatpush1.msra.mxu0 0.0
        %9077 = vmatprep.subr.mxu0 0.0
        %9078 = vmatpush1.msra.mxu0 0.0
        %9079 = vmatprep.subr.mxu0 0.0
        %9080 = vmatpush1.msra.mxu0 0.0
        %9081 = vmatprep.subr.mxu0 0.0
        %9082 = vmatpush1.msra.mxu0 0.0
        %9083 = vmatprep.subr.mxu0 0.0
        %9084 = vmatpush1.msra.mxu0 0.0
        %9085 = vmatprep.subr.mxu0 0.0
        %9086 = vmatpush1.msra.mxu0 0.0
        %9087 = vmatprep.subr.mxu0 0.0
        %9088 = vmatpush1.msra.mxu0 0.0
        %9089 = vmatprep.subr.mxu0 0.0
        %9090 = vmatpush1.msra.mxu0 0.0
        %9091 = vmatprep.subr.mxu0 0.0
        %9092 = vmatpush1.msra.mxu0 0.0
        %9093 = vmatprep.subr.mxu0 0.0
        %9094 = vmatpush1.msra.mxu0 0.0
        %9095 = vmatprep.subr.mxu0 0.0
        %9096 = vmatpush1.msra.mxu0 0.0
        %9097 = vmatprep.subr.mxu0 0.0
        %9098 = vmatpush1.msra.mxu0 0.0
        %9099 = vmatprep.subr.mxu0 0.0
        %9100 = vmatpush1.msra.mxu0 0.0
        %9101 = vmatprep.subr.mxu0 0.0
        %9102 = vmatpush1.msra.mxu0 0.0
        %9103 = vmatprep.subr.mxu0 0.0
        %9104 = vmatpush1.msra.mxu0 0.0
        %9105 = vmatprep.subr.mxu0 0.0
        %9106 = vmatpush1.msra.mxu0 0.0
        %9107 = vmatprep.subr.mxu0 0.0
        %9108 = vmatpush1.msra.mxu0 0.0
        %9109 = vmatprep.subr.mxu0 0.0
        %9110 = vmatpush1.msra.mxu0 0.0
        %9111 = vmatprep.subr.mxu0 0.0
        %9112 = vmatpush1.msra.mxu0 0.0
        %9113 = vmatprep.subr.mxu0 0.0
        %9114 = vmatpush1.msra.mxu0 0.0
        %9115 = vmatprep.subr.mxu0 0.0
        %9116 = vmatpush1.msra.mxu0 0.0
        %9117 = vmatprep.subr.mxu0 0.0
        %9118 = vmatpush1.msra.mxu0 0.0
        %9119 = vmatprep.subr.mxu0 0.0
        %9120 = vmatpush1.msra.mxu0 0.0
        %9121 = vmatprep.subr.mxu0 0.0
        %9122 = vmatpush1.msra.mxu0 0.0
        %9123 = vmatprep.subr.mxu0 0.0
        %9124 = vmatpush1.msra.mxu0 0.0
        %9125 = vmatprep.subr.mxu0 0.0
        %9126 = vmatpush1.msra.mxu0 0.0
        %9127 = vmatprep.subr.mxu0 0.0
        %9128 = vmatpush1.msra.mxu0 0.0
        %9129 = vmatprep.subr.mxu0 0.0
        %9130 = vmatpush1.msra.mxu0 0.0
        %9131 = vmatprep.subr.mxu0 0.0
        %9132 = vmatpush1.msra.mxu0 0.0
        %9133 = vmatprep.subr.mxu0 0.0
        %9134 = vmatpush1.msra.mxu0 0.0
        %9135 = vmatprep.mubr.f32.mxu0 0.0
        %v9136 = vand.u32 %v8676, 4294901760
        %9137 = vmatmul.mubr.f32.gmra.mrb[0].mxu0 %v9136
        %v9138 = vpop.f32.mrb[0].mxu0
        %v9139 = vadd.f32 %v9065, %v9138
        %v9140 = vpop.f32.mrb[0].mxu0
        %v9141 = vadd.f32 %v9067, %v9140
        %9142 = vdwg.mxu0
        %v9143 = vadd.f32 %v8663, %v9139
        %v9144 = vadd.f32 %v8664, %v9141
        %v9145 = vld [vmem:[%s6] sm:$0xff]
        %v9146 = vld [vmem:[%s7] sm:$0xff]
        %v9147 = vadd.f32 %v9143, %v9144
        %9148 = vadd.xlane.f32.xlu0 %v9147
        %v9149 = vpop.xlane.xlu0 %9148
        %v9150 = vrot.slane %v9149, 4
        %v9151 = vadd.f32 %v9149, %v9150
        %v9152 = vrot.slane %v9151, 2
        %v9153 = vadd.f32 %v9151, %v9152
        %v9154 = vrot.slane %v9153, 1
        %v9155 = vadd.f32 %v9153, %v9154
        %v9156 = vmul.f32 %v9155, 0.00048828125
        %v9157 = vsub.f32 %v9143, %v9156
        %v9158 = vsub.f32 %v9144, %v9156
        %v9159 = vmul.f32 %v9157, %v9157
        %v9160 = vmul.f32 %v9158, %v9158
        %v9161 = vadd.f32 %v9159, %v9160
        %9162 = vadd.xlane.f32.xlu0 %v9161
        %v9163 = vpop.xlane.xlu0 %9162
        %v9164 = vrot.slane %v9163, 4
        %v9165 = vadd.f32 %v9163, %v9164
        %v9166 = vrot.slane %v9165, 2
        %v9167 = vadd.f32 %v9165, %v9166
        %v9168 = vrot.slane %v9167, 1
        %v9169 = vadd.f32 %v9167, %v9168
        %v9170 = vmul.f32 %v9156, 0.0
        %v9171 = vmul.f32 %v9170, %v9156
        %v9172 = vsub.f32 %v9169, %v9171
        %v9173 = vmul.f32 %v9172, 0.00048828125
        %v9174 = vadd.f32 %v9173, 1e-05
        %v9175 = vrsqrt.pop %v9174
        %v9176 = vmul.f32 %v9174, 0.5
        %v9177 = vmul.f32 %v9176, %v9175
        %v9178 = vmul.f32 %v9177, %v9175
        %v9179 = vsub.f32 1.5, %v9178
        %v9180 = vmul.f32 %v9175, %v9179
        %v9181 = vmul.f32 %v9145, %v9180
        %9183 = vset.pattern.permute.xlu0 0
        %9184 = vperm.xlu0 %9183, %v9181
        %v9185 = vpop.permute.xlu0 %9184
        %v9187 = vmul.f32 %v9157, %v9185
        %v9188 = vmul.f32 %v9158, %v9185
        %9190 = vset.pattern.permute.xlu0 0
        %9191 = vperm.xlu0 %9190, %v9146
        %v9192 = vpop.permute.xlu0 %9191
        %v9194 = vadd.f32 %v9187, %v9192
        %v9195 = vadd.f32 %v9188, %v9192
        %9196 = vst [vmem:[%s298] sm:$0xff] %v9194
        %9197 = vst [vmem:[%s298 + $0x8] sm:$0xff] %v9195
        %s9198 = sand.u32 %s203, 1
        %s9199 = scalar_lea.sflag [#allocation3], %s9198
        %s9200 = sand.u32 %s203, 1
        %s9201 = smul.addr %s9200, 16
        %s9202 = scalar_lea.vmem [#allocation2], %s9201
        // Predicated region
        $region53: #{tpu_custom_call.1} parent=51 // pred_check
          %p9203 = pneg %p213
        $region54: #{tpu_custom_call.1} parent=51 // pred_check_branch
          %9205 = sbr.rel (%p9203) target = $region56
        $region55: #{tpu_custom_call.1} parent=51 // pred_region
          %s9207 = ssub.s32 256, 256
          %9208 = vsyncadd %s9199, %s9207
          %s9209 = smul.addr %s22, 2
          %s9210 = smul.addr %s9209, 128
          %s9211 = scalar_lea.hbm %s8, %s9210
          %s9213 = sshll.u32 %s9202, 4
          %s9214 = int_to_ptr.vmem [resolvable:$true] %s9213
          %9216 = dma.vmem_to_hbm [thread:$0]  %s9214, 256, %s9211, %s9199
        $region56: #{tpu_custom_call.1} parent=51 // pred_fallthru
          _
      $region52: #{tpu_custom_call.1} parent=5 // pred_fallthru
        _
      %p9217 = scmp.le.s32.totalorder 2, %s17
      // Predicated region
      $region57: #{tpu_custom_call.1} parent=5 // pred_check
        %p9218 = pneg %p9217
      $region58: #{tpu_custom_call.1} parent=5 // pred_check_branch
        %9220 = sbr.rel (%p9218) target = $region60
      $region59: #{tpu_custom_call.1} parent=5 // pred_region
        %s9221 = ssub.s32 %s17, 2
        // Predicated region
        $region61: #{tpu_custom_call.1} parent=59 // pred_check
          %p9222 = pneg %p219
        $region62: #{tpu_custom_call.1} parent=59 // pred_check_branch
          %9224 = sbr.rel (%p9222) target = $region64
        $region63: #{tpu_custom_call.1} parent=59 // pred_region
          %s9225 = sand.u32 %s204, 1
          %s9226 = scalar_lea.sflag [#allocation3], %s9225
          %s9227 = sand.u32 %s204, 1
          %s9228 = smul.addr %s9227, 16
          %s9229 = scalar_lea.vmem [#allocation2], %s9228
          %9230 = dma.done %s9226, 256
        $region64: #{tpu_custom_call.1} parent=59 // pred_fallthru
          _
      $region60: #{tpu_custom_call.1} parent=5 // pred_fallthru
        _
    $region6: #{tpu_custom_call.1} parent=1 // loop_footer
      %s21 = sadd.s32 1, %s17
    $region7: #{tpu_custom_call.1} parent=1 // loop_footer_branch
      %16 = sbr.rel target = $region3
    $region8: #{tpu_custom_call.1} parent=1 // loop_exit
      _
    %9231 = vsyncpa [#allocation3], 1
    %s9232 = scalar_lea.sflag [#allocation3], 1
    %9233 = vsyncpa %s9232, 1

</llo_original>
